<compile_context>
chip_gen: v6e
topology: v6e:2x2x1
jax: 0.10.0
libtpu: 0.0.40
codegen_flags: <defaults>
</compile_context>

<pallas_src>
import functools

import jax
import jax.numpy as jnp
from jax import lax
from jax.experimental import pallas as pl
from jax.experimental.pallas import tpu as pltpu


# -----------------------------------------------------------------------------
# Fused kernel: one grid step == `nb` images (batch folded into matmul M dim).
# -----------------------------------------------------------------------------
def _fused_convseq_kernel(nb, H, W, Cin, Cout,
                          xp_ref, bw1_ref, b1_ref, bwr_ref, br_ref,
                          o_ref,
                          rme_ref, ev_ref, od_ref, lft_ref):
    Ho, Wo = (H + 1) // 2, (W + 1) // 2
    f32 = jnp.float32
    NEG = jnp.float32(-jnp.inf)          # only ever used inside max(), never in a product

    def conv3x3(ap, load_w, bias_row, h, lanes_in, lanes_out):
        # ap       : (nb, h+2, lanes_in) zero-row-padded activation (a value).
        # load_w(dy): (lanes_in, lanes_out) banded weight for kernel row dy.
        # Conv = 3 MXU matmuls (one per dy); dx taps / W-padding live in the
        # banded weights, dy taps are row-shifted slices (sublane shifts).
        acc = None
        for dy in range(3):
            lhs = ap[:, dy:dy + h, :].reshape(nb * h, lanes_in)
            part = jnp.dot(lhs, load_w(dy), preferred_element_type=f32)
            acc = part if acc is None else acc + part
        return (acc + bias_row).reshape(nb, h, lanes_out)

    # ---- stage 1: conv3x3(x) + bias  (xp_ref already zero-row-padded) -------
    xp = xp_ref[...].astype(f32)                                  # (nb, H+2, W*Cin)
    y = conv3x3(xp, lambda dy: bw1_ref[dy], b1_ref[...],
                H, W * Cin, W * Cout)                             # (nb, H, W*Cout)

    # ---- stage 2: maxpool 3x3 / stride 2 / pad 1 (separable, lane-dense) ----
    nrow = jnp.full((nb, 1, W * Cout), NEG, f32)
    ypad = jnp.concatenate([nrow, y, nrow], axis=1)               # (nb, H+2, W*Cout)
    rmax = jnp.maximum(jnp.maximum(ypad[:, 0:H, :], ypad[:, 1:H + 1, :]),
                       ypad[:, 2:H + 2, :])                       # (nb, H, W*Cout)
    # even rows == the pooled-window centre rows
    for i in range(Ho):
        rme_ref[:, i, :] = rmax[:, 2 * i, :]
    rme = rme_ref[...]                                            # (nb, Ho, W*Cout)
    # column split: ev = col 2j (centre), od = col 2j+1 (right), lft = col 2j-1
    lft_ref[:, :, 0:Cout] = jnp.full((nb, Ho, Cout), NEG, f32)    # j=0 has no left nb
    for j in range(Wo):
        lo = j * Cout
        ev_ref[:, :, lo:lo + Cout] = rme[:, :, (2 * j) * Cout:(2 * j + 1) * Cout]
        if 2 * j + 1 < W:
            od_ref[:, :, lo:lo + Cout] = rme[:, :, (2 * j + 1) * Cout:(2 * j + 2) * Cout]
        else:
            od_ref[:, :, lo:lo + Cout] = jnp.full((nb, Ho, Cout), NEG, f32)
        if j > 0:
            lft_ref[:, :, lo:lo + Cout] = rme[:, :, (2 * j - 1) * Cout:(2 * j) * Cout]
    pooled = jnp.maximum(ev_ref[...],
                         jnp.maximum(od_ref[...], lft_ref[...]))  # (nb, Ho, Wo*Cout)

    # ---- stages 3 & 4: two pre-activation residual blocks -------------------
    zrow = jnp.zeros((nb, 1, Wo * Cout), f32)
    act = pooled
    for blk in range(2):
        resid = act
        t = act
        for cv in range(2):
            k = 2 * blk + cv
            t = jnp.maximum(t, 0.0)                  # single pre-activation ReLU
            tp = jnp.concatenate([zrow, t, zrow], axis=1)         # (nb, Ho+2, Wo*Cout)
            t = conv3x3(tp, lambda dy, k=k: bwr_ref[3 * k + dy], br_ref[k],
                        Ho, Wo * Cout, Wo * Cout)
        act = t + resid                                           # (nb, Ho, Wo*Cout)

    o_ref[...] = act.astype(o_ref.dtype)


# -----------------------------------------------------------------------------
# Wrapper glue: banded weights, lane-dense layouts, NCHW in / NCHW out.
# -----------------------------------------------------------------------------
def _banded_from_hwio(w_hwio, width):
    """(3,3,Cin,Cout) HWIO conv weights -> (3, width*Cin, width*Cout) banded
    matrices: output column block wo reads input blocks wo-1, wo, wo+1
    (missing blocks at the edges encode the zero padding in W)."""
    KH, KW, Cin, Cout = w_hwio.shape
    wi = jnp.arange(width)[:, None]                    # input column block
    wo = jnp.arange(width)[None, :]                    # output column block
    dx = wi - wo + 1                                   # kernel column tap
    valid = (dx >= 0) & (dx < KW)
    taps = w_hwio[:, jnp.clip(dx, 0, KW - 1)]          # (KH, width, width, Cin, Cout)
    taps = jnp.where(valid[None, :, :, None, None], taps, 0.0)
    taps = jnp.transpose(taps, (0, 1, 3, 2, 4))        # (KH, width, Cin, width, Cout)
    return taps.reshape(KH, width * Cin, width * Cout)


@functools.partial(jax.jit, static_argnums=(2, 3, 4))
def conv_sequence_forward(x_nchw, params, input_shape, out_channels,
                          images_per_step=None):
    N, Cin, H, W = x_nchw.shape
    Cout = out_channels
    Ho, Wo = (H + 1) // 2, (W + 1) // 2
    nb = N if images_per_step is None else images_per_step   # set to 1 on v7x to
    assert N % nb == 0                                        # split batch over 2 TCs

    # layout glue (free): NCHW -> (N, H+2, W*Cin), zero-row-padded for the dy taps.
    x3 = jnp.transpose(x_nchw, (0, 2, 3, 1)).reshape(N, H, W * Cin)
    x3p = jnp.pad(x3, ((0, 0), (1, 1), (0, 0)))

    # banded weights + lane-tiled biases (pure functions of the parameters).
    bw1 = _banded_from_hwio(params["conv_w"], W)                      # (3, W*Cin, W*Cout)
    b1 = jnp.tile(params["conv_b"], W).reshape(1, W * Cout)
    res_w = [params["res0"]["w0"], params["res0"]["w1"],
             params["res1"]["w0"], params["res1"]["w1"]]
    res_b = [params["res0"]["b0"], params["res0"]["b1"],
             params["res1"]["b0"], params["res1"]["b1"]]
    bwr = jnp.concatenate([_banded_from_hwio(w, Wo) for w in res_w],
                          axis=0)                                     # (12, Wo*Cout, Wo*Cout)
    br = jnp.stack([jnp.tile(b, Wo).reshape(1, Wo * Cout) for b in res_b])  # (4, 1, Wo*Cout)

    kernel = functools.partial(_fused_convseq_kernel, nb, H, W, Cin, Cout)

    out3 = pl.pallas_call(
        kernel,
        out_shape=jax.ShapeDtypeStruct((N, Ho, Wo * Cout), x_nchw.dtype),
        grid=(N // nb,),
        in_specs=[
            pl.BlockSpec((nb, H + 2, W * Cin), lambda g: (g, 0, 0)),
            pl.BlockSpec((3, W * Cin, W * Cout), lambda g: (0, 0, 0)),
            pl.BlockSpec((1, W * Cout), lambda g: (0, 0)),
            pl.BlockSpec((12, Wo * Cout, Wo * Cout), lambda g: (0, 0, 0)),
            pl.BlockSpec((4, 1, Wo * Cout), lambda g: (0, 0, 0)),
        ],
        out_specs=pl.BlockSpec((nb, Ho, Wo * Cout), lambda g: (g, 0, 0)),
        scratch_shapes=[
            pltpu.VMEM((nb, Ho, W * Cout), jnp.float32),   # even-row row-max
            pltpu.VMEM((nb, Ho, Wo * Cout), jnp.float32),  # centre column blocks
            pltpu.VMEM((nb, Ho, Wo * Cout), jnp.float32),  # right-neighbour blocks
            pltpu.VMEM((nb, Ho, Wo * Cout), jnp.float32),  # left-neighbour blocks
        ],
        compiler_params=pltpu.CompilerParams(
            dimension_semantics=("parallel",)),
    )(x3p, bw1, b1, bwr, br)

    # lane-dense kernel output (N, Ho, Wo*Cout) -> NCHW
    out = jnp.transpose(out3.reshape(N, Ho, Wo, Cout), (0, 3, 1, 2))
    _c, h_in, w_in = input_shape
    assert out.shape[1:] == (out_channels, (h_in + 1) // 2, (w_in + 1) // 2), out.shape
    return out


# -----------------------------------------------------------------------------
# Parameter init (deterministic, synthetic) + pure-JAX reference for checking
# -----------------------------------------------------------------------------
def init_params(key, in_channels, out_channels, scale=0.1):
    def conv_init(k, cin, cout):
        kw, kb = jax.random.split(k)
        w = scale * jax.random.normal(kw, (3, 3, cin, cout), jnp.float32)  # HWIO
        b = scale * jax.random.normal(kb, (cout,), jnp.float32)
        return w, b

    keys = jax.random.split(key, 5)
    cw, cb = conv_init(keys[0], in_channels, out_channels)
    r0w0, r0b0 = conv_init(keys[1], out_channels, out_channels)
    r0w1, r0b1 = conv_init(keys[2], out_channels, out_channels)
    r1w0, r1b0 = conv_init(keys[3], out_channels, out_channels)
    r1w1, r1b1 = conv_init(keys[4], out_channels, out_channels)
    return {
        "conv_w": cw, "conv_b": cb,
        "res0": {"w0": r0w0, "b0": r0b0, "w1": r0w1, "b1": r0b1},
        "res1": {"w0": r1w0, "b0": r1b0, "w1": r1w1, "b1": r1b1},
    }


def reference_forward(x_nchw, params):
    def conv(x, w_hwio, b):
        w_oihw = jnp.transpose(w_hwio, (3, 2, 0, 1))
        y = lax.conv_general_dilated(
            x, w_oihw, window_strides=(1, 1), padding="SAME",
            dimension_numbers=("NCHW", "OIHW", "NCHW"),
            precision=lax.Precision.HIGHEST)
        return y + b[None, :, None, None]

    x = conv(x_nchw, params["conv_w"], params["conv_b"])
    x = lax.reduce_window(x, -jnp.inf, lax.max,
                          window_dimensions=(1, 1, 3, 3),
                          window_strides=(1, 1, 2, 2),
                          padding=[(0, 0), (0, 0), (1, 1), (1, 1)])
    for blk in ("res0", "res1"):
        inp = x
        x = conv(jnp.maximum(x, 0.0), params[blk]["w0"], params[blk]["b0"])
        x = conv(jnp.maximum(x, 0.0), params[blk]["w1"], params[blk]["b1"])
        x = x + inp
    return x


if __name__ == "__main__":
    jax.config.update("jax_default_matmul_precision", "highest")

    # shapes consistent with the module: input_shape=(C,H,W)=(4,16,16)
    N, C, H, W = 2, 4, 16, 16
    OUT_CHANNELS = 16
    input_shape = (C, H, W)

    key = jax.random.PRNGKey(0)
    kx, kp = jax.random.split(key)
    x = jax.random.normal(kx, (N, C, H, W), jnp.float32)
    params = init_params(kp, C, OUT_CHANNELS)

    out = conv_sequence_forward(x, params, input_shape, OUT_CHANNELS, None)
    out = jax.block_until_ready(out)

    ref = jax.block_until_ready(reference_forward(x, params))
    assert out.shape == (N, OUT_CHANNELS, (H + 1) // 2, (W + 1) // 2), out.shape
    assert jnp.allclose(out, ref, rtol=2e-3, atol=2e-3), \
        float(jnp.max(jnp.abs(out - ref)))

    print("KERNEL_OK")
</pallas_src>

<mosaic_0001>
module attributes {stable_mosaic.version = 11 : i64} {
  func.func @_fused_convseq_kernel(%arg0: i32, %arg1: memref<2x18x64xf32, #tpu.memory_space<vmem>>, %arg2: memref<3x64x256xf32, #tpu.memory_space<vmem>>, %arg3: memref<1x256xf32, #tpu.memory_space<vmem>>, %arg4: memref<12x128x128xf32, #tpu.memory_space<vmem>>, %arg5: memref<4x1x128xf32, #tpu.memory_space<vmem>>, %arg6: memref<2x8x128xf32, #tpu.memory_space<vmem>>, %arg7: memref<2x8x256xf32, #tpu.memory_space<vmem>>, %arg8: memref<2x8x128xf32, #tpu.memory_space<vmem>>, %arg9: memref<2x8x128xf32, #tpu.memory_space<vmem>>, %arg10: memref<2x8x128xf32, #tpu.memory_space<vmem>>) attributes {dimension_semantics = [#tpu.dimension_semantics<parallel>], iteration_bounds = array<i64: 1>, scalar_prefetch = 0 : i64, scratch_operands = 4 : i64, tpu.core_type = #tpu.core_type<tc>, window_params = [{transform_indices = @transform_0, window_bounds = array<i64: 2, 18, 64>}, {pipeline_mode = #tpu.pipeline_mode<synchronous>, transform_indices = @transform_1, window_bounds = array<i64: 3, 64, 256>}, {pipeline_mode = #tpu.pipeline_mode<synchronous>, transform_indices = @transform_2, window_bounds = array<i64: 1, 256>}, {pipeline_mode = #tpu.pipeline_mode<synchronous>, transform_indices = @transform_3, window_bounds = array<i64: 12, 128, 128>}, {pipeline_mode = #tpu.pipeline_mode<synchronous>, transform_indices = @transform_4, window_bounds = array<i64: 4, 1, 128>}, {transform_indices = @transform_5, window_bounds = array<i64: 2, 8, 128>}]} {
    %c0 = arith.constant 0 : index
    %c0_0 = arith.constant 0 : index
    %c0_1 = arith.constant 0 : index
    %0 = vector.load %arg1[%c0, %c0_0, %c0_1] : memref<2x18x64xf32, #tpu.memory_space<vmem>>, vector<2x18x64xf32>
    %c0_2 = arith.constant 0 : index
    %c0_3 = arith.constant 0 : index
    %1 = vector.load %arg3[%c0_2, %c0_3] : memref<1x256xf32, #tpu.memory_space<vmem>>, vector<1x256xf32>
    %2 = vector.extract_strided_slice %0 {offsets = [0, 0, 0], sizes = [2, 16, 64], strides = [1, 1, 1]} : vector<2x18x64xf32> to vector<2x16x64xf32>
    %3 = vector.shape_cast %2 : vector<2x16x64xf32> to vector<32x64xf32>
    %c0_4 = arith.constant 0 : index
    %c0_5 = arith.constant 0 : index
    %c0_6 = arith.constant 0 : index
    %4 = vector.load %arg2[%c0_4, %c0_5, %c0_6] : memref<3x64x256xf32, #tpu.memory_space<vmem>>, vector<1x64x256xf32>
    %5 = vector.shape_cast %4 : vector<1x64x256xf32> to vector<64x256xf32>
    %cst = arith.constant dense<0.000000e+00> : vector<32x256xf32>
    %6 = tpu.matmul %3, %5, %cst {dimension_numbers = #tpu.dot_dimension_numbers<[1], [0], [0], [1], [0, 0, 1, 1], [], []>, precision = #tpu.contract_precision<fp32>} : vector<32x64xf32>, vector<64x256xf32>, vector<32x256xf32> -> vector<32x256xf32>
    %7 = vector.extract_strided_slice %0 {offsets = [0, 1, 0], sizes = [2, 16, 64], strides = [1, 1, 1]} : vector<2x18x64xf32> to vector<2x16x64xf32>
    %8 = vector.shape_cast %7 : vector<2x16x64xf32> to vector<32x64xf32>
    %c1 = arith.constant 1 : index
    %c0_7 = arith.constant 0 : index
    %c0_8 = arith.constant 0 : index
    %9 = vector.load %arg2[%c1, %c0_7, %c0_8] : memref<3x64x256xf32, #tpu.memory_space<vmem>>, vector<1x64x256xf32>
    %10 = vector.shape_cast %9 : vector<1x64x256xf32> to vector<64x256xf32>
    %cst_9 = arith.constant dense<0.000000e+00> : vector<32x256xf32>
    %11 = tpu.matmul %8, %10, %cst_9 {dimension_numbers = #tpu.dot_dimension_numbers<[1], [0], [0], [1], [0, 0, 1, 1], [], []>, precision = #tpu.contract_precision<fp32>} : vector<32x64xf32>, vector<64x256xf32>, vector<32x256xf32> -> vector<32x256xf32>
    %12 = arith.addf %6, %11 : vector<32x256xf32>
    %13 = vector.extract_strided_slice %0 {offsets = [0, 2, 0], sizes = [2, 16, 64], strides = [1, 1, 1]} : vector<2x18x64xf32> to vector<2x16x64xf32>
    %14 = vector.shape_cast %13 : vector<2x16x64xf32> to vector<32x64xf32>
    %c2 = arith.constant 2 : index
    %c0_10 = arith.constant 0 : index
    %c0_11 = arith.constant 0 : index
    %15 = vector.load %arg2[%c2, %c0_10, %c0_11] : memref<3x64x256xf32, #tpu.memory_space<vmem>>, vector<1x64x256xf32>
    %16 = vector.shape_cast %15 : vector<1x64x256xf32> to vector<64x256xf32>
    %cst_12 = arith.constant dense<0.000000e+00> : vector<32x256xf32>
    %17 = tpu.matmul %14, %16, %cst_12 {dimension_numbers = #tpu.dot_dimension_numbers<[1], [0], [0], [1], [0, 0, 1, 1], [], []>, precision = #tpu.contract_precision<fp32>} : vector<32x64xf32>, vector<64x256xf32>, vector<32x256xf32> -> vector<32x256xf32>
    %18 = arith.addf %12, %17 : vector<32x256xf32>
    %19 = vector.broadcast %1 : vector<1x256xf32> to vector<32x256xf32>
    %20 = arith.addf %18, %19 : vector<32x256xf32>
    %21 = vector.shape_cast %20 : vector<32x256xf32> to vector<2x16x256xf32>
    %cst_13 = arith.constant 0xFF800000 : f32
    %22 = vector.broadcast %cst_13 : f32 to vector<2x1x256xf32>
    %23 = tpu.concatenate %22, %21, %22 in 1 : vector<2x1x256xf32>, vector<2x16x256xf32>, vector<2x1x256xf32> -> vector<2x18x256xf32>
    %24 = vector.extract_strided_slice %23 {offsets = [0, 0, 0], sizes = [2, 16, 256], strides = [1, 1, 1]} : vector<2x18x256xf32> to vector<2x16x256xf32>
    %25 = vector.extract_strided_slice %23 {offsets = [0, 1, 0], sizes = [2, 16, 256], strides = [1, 1, 1]} : vector<2x18x256xf32> to vector<2x16x256xf32>
    %26 = arith.maximumf %24, %25 : vector<2x16x256xf32>
    %27 = vector.extract_strided_slice %23 {offsets = [0, 2, 0], sizes = [2, 16, 256], strides = [1, 1, 1]} : vector<2x18x256xf32> to vector<2x16x256xf32>
    %28 = arith.maximumf %26, %27 : vector<2x16x256xf32>
    %29 = vector.extract_strided_slice %28 {offsets = [0, 0, 0], sizes = [2, 1, 256], strides = [1, 1, 1]} : vector<2x16x256xf32> to vector<2x1x256xf32>
    %30 = vector.shape_cast %29 : vector<2x1x256xf32> to vector<2x256xf32>
    %c0_14 = arith.constant 0 : index
    %c0_15 = arith.constant 0 : index
    %c0_16 = arith.constant 0 : index
    %31 = vector.load %arg7[%c0_14, %c0_15, %c0_16] : memref<2x8x256xf32, #tpu.memory_space<vmem>>, vector<2x1x256xf32>
    %32 = vector.shape_cast %31 : vector<2x1x256xf32> to vector<2x256xf32>
    %33 = vector.shape_cast %30 : vector<2x256xf32> to vector<2x1x256xf32>
    tpu.vector_store %arg7[%c0_14, %c0_15, %c0_16], %33 {strides = array<i32>} : memref<2x8x256xf32, #tpu.memory_space<vmem>>, vector<2x1x256xf32>,
    %34 = vector.extract_strided_slice %28 {offsets = [0, 2, 0], sizes = [2, 1, 256], strides = [1, 1, 1]} : vector<2x16x256xf32> to vector<2x1x256xf32>
    %35 = vector.shape_cast %34 : vector<2x1x256xf32> to vector<2x256xf32>
    %c0_17 = arith.constant 0 : index
    %c1_18 = arith.constant 1 : index
    %c0_19 = arith.constant 0 : index
    %36 = vector.load %arg7[%c0_17, %c1_18, %c0_19] : memref<2x8x256xf32, #tpu.memory_space<vmem>>, vector<2x1x256xf32>
    %37 = vector.shape_cast %36 : vector<2x1x256xf32> to vector<2x256xf32>
    %38 = vector.shape_cast %35 : vector<2x256xf32> to vector<2x1x256xf32>
    tpu.vector_store %arg7[%c0_17, %c1_18, %c0_19], %38 {strides = array<i32>} : memref<2x8x256xf32, #tpu.memory_space<vmem>>, vector<2x1x256xf32>,
    %39 = vector.extract_strided_slice %28 {offsets = [0, 4, 0], sizes = [2, 1, 256], strides = [1, 1, 1]} : vector<2x16x256xf32> to vector<2x1x256xf32>
    %40 = vector.shape_cast %39 : vector<2x1x256xf32> to vector<2x256xf32>
    %c0_20 = arith.constant 0 : index
    %c2_21 = arith.constant 2 : index
    %c0_22 = arith.constant 0 : index
    %41 = vector.load %arg7[%c0_20, %c2_21, %c0_22] : memref<2x8x256xf32, #tpu.memory_space<vmem>>, vector<2x1x256xf32>
    %42 = vector.shape_cast %41 : vector<2x1x256xf32> to vector<2x256xf32>
    %43 = vector.shape_cast %40 : vector<2x256xf32> to vector<2x1x256xf32>
    tpu.vector_store %arg7[%c0_20, %c2_21, %c0_22], %43 {strides = array<i32>} : memref<2x8x256xf32, #tpu.memory_space<vmem>>, vector<2x1x256xf32>,
    %44 = vector.extract_strided_slice %28 {offsets = [0, 6, 0], sizes = [2, 1, 256], strides = [1, 1, 1]} : vector<2x16x256xf32> to vector<2x1x256xf32>
    %45 = vector.shape_cast %44 : vector<2x1x256xf32> to vector<2x256xf32>
    %c0_23 = arith.constant 0 : index
    %c3 = arith.constant 3 : index
    %c0_24 = arith.constant 0 : index
    %46 = vector.load %arg7[%c0_23, %c3, %c0_24] : memref<2x8x256xf32, #tpu.memory_space<vmem>>, vector<2x1x256xf32>
    %47 = vector.shape_cast %46 : vector<2x1x256xf32> to vector<2x256xf32>
    %48 = vector.shape_cast %45 : vector<2x256xf32> to vector<2x1x256xf32>
    tpu.vector_store %arg7[%c0_23, %c3, %c0_24], %48 {strides = array<i32>} : memref<2x8x256xf32, #tpu.memory_space<vmem>>, vector<2x1x256xf32>,
    %49 = vector.extract_strided_slice %28 {offsets = [0, 8, 0], sizes = [2, 1, 256], strides = [1, 1, 1]} : vector<2x16x256xf32> to vector<2x1x256xf32>
    %50 = vector.shape_cast %49 : vector<2x1x256xf32> to vector<2x256xf32>
    %c0_25 = arith.constant 0 : index
    %c4 = arith.constant 4 : index
    %c0_26 = arith.constant 0 : index
    %51 = vector.load %arg7[%c0_25, %c4, %c0_26] : memref<2x8x256xf32, #tpu.memory_space<vmem>>, vector<2x1x256xf32>
    %52 = vector.shape_cast %51 : vector<2x1x256xf32> to vector<2x256xf32>
    %53 = vector.shape_cast %50 : vector<2x256xf32> to vector<2x1x256xf32>
    tpu.vector_store %arg7[%c0_25, %c4, %c0_26], %53 {strides = array<i32>} : memref<2x8x256xf32, #tpu.memory_space<vmem>>, vector<2x1x256xf32>,
    %54 = vector.extract_strided_slice %28 {offsets = [0, 10, 0], sizes = [2, 1, 256], strides = [1, 1, 1]} : vector<2x16x256xf32> to vector<2x1x256xf32>
    %55 = vector.shape_cast %54 : vector<2x1x256xf32> to vector<2x256xf32>
    %c0_27 = arith.constant 0 : index
    %c5 = arith.constant 5 : index
    %c0_28 = arith.constant 0 : index
    %56 = vector.load %arg7[%c0_27, %c5, %c0_28] : memref<2x8x256xf32, #tpu.memory_space<vmem>>, vector<2x1x256xf32>
    %57 = vector.shape_cast %56 : vector<2x1x256xf32> to vector<2x256xf32>
    %58 = vector.shape_cast %55 : vector<2x256xf32> to vector<2x1x256xf32>
    tpu.vector_store %arg7[%c0_27, %c5, %c0_28], %58 {strides = array<i32>} : memref<2x8x256xf32, #tpu.memory_space<vmem>>, vector<2x1x256xf32>,
    %59 = vector.extract_strided_slice %28 {offsets = [0, 12, 0], sizes = [2, 1, 256], strides = [1, 1, 1]} : vector<2x16x256xf32> to vector<2x1x256xf32>
    %60 = vector.shape_cast %59 : vector<2x1x256xf32> to vector<2x256xf32>
    %c0_29 = arith.constant 0 : index
    %c6 = arith.constant 6 : index
    %c0_30 = arith.constant 0 : index
    %61 = vector.load %arg7[%c0_29, %c6, %c0_30] : memref<2x8x256xf32, #tpu.memory_space<vmem>>, vector<2x1x256xf32>
    %62 = vector.shape_cast %61 : vector<2x1x256xf32> to vector<2x256xf32>
    %63 = vector.shape_cast %60 : vector<2x256xf32> to vector<2x1x256xf32>
    tpu.vector_store %arg7[%c0_29, %c6, %c0_30], %63 {strides = array<i32>} : memref<2x8x256xf32, #tpu.memory_space<vmem>>, vector<2x1x256xf32>,
    %64 = vector.extract_strided_slice %28 {offsets = [0, 14, 0], sizes = [2, 1, 256], strides = [1, 1, 1]} : vector<2x16x256xf32> to vector<2x1x256xf32>
    %65 = vector.shape_cast %64 : vector<2x1x256xf32> to vector<2x256xf32>
    %c0_31 = arith.constant 0 : index
    %c7 = arith.constant 7 : index
    %c0_32 = arith.constant 0 : index
    %66 = vector.load %arg7[%c0_31, %c7, %c0_32] : memref<2x8x256xf32, #tpu.memory_space<vmem>>, vector<2x1x256xf32>
    %67 = vector.shape_cast %66 : vector<2x1x256xf32> to vector<2x256xf32>
    %68 = vector.shape_cast %65 : vector<2x256xf32> to vector<2x1x256xf32>
    tpu.vector_store %arg7[%c0_31, %c7, %c0_32], %68 {strides = array<i32>} : memref<2x8x256xf32, #tpu.memory_space<vmem>>, vector<2x1x256xf32>,
    %c0_33 = arith.constant 0 : index
    %c0_34 = arith.constant 0 : index
    %c0_35 = arith.constant 0 : index
    %69 = vector.load %arg7[%c0_33, %c0_34, %c0_35] : memref<2x8x256xf32, #tpu.memory_space<vmem>>, vector<2x8x256xf32>
    %cst_36 = arith.constant 0xFF800000 : f32
    %70 = vector.broadcast %cst_36 : f32 to vector<2x8x16xf32>
    %c0_37 = arith.constant 0 : index
    %c0_38 = arith.constant 0 : index
    %c0_39 = arith.constant 0 : index
    %71 = vector.load %arg10[%c0_37, %c0_38, %c0_39] : memref<2x8x128xf32, #tpu.memory_space<vmem>>, vector<2x8x16xf32>
    tpu.vector_store %arg10[%c0_37, %c0_38, %c0_39], %70 {strides = array<i32>} : memref<2x8x128xf32, #tpu.memory_space<vmem>>, vector<2x8x16xf32>,
    %72 = vector.extract_strided_slice %69 {offsets = [0, 0, 0], sizes = [2, 8, 16], strides = [1, 1, 1]} : vector<2x8x256xf32> to vector<2x8x16xf32>
    %c0_40 = arith.constant 0 : index
    %c0_41 = arith.constant 0 : index
    %c0_42 = arith.constant 0 : index
    %73 = vector.load %arg8[%c0_40, %c0_41, %c0_42] : memref<2x8x128xf32, #tpu.memory_space<vmem>>, vector<2x8x16xf32>
    tpu.vector_store %arg8[%c0_40, %c0_41, %c0_42], %72 {strides = array<i32>} : memref<2x8x128xf32, #tpu.memory_space<vmem>>, vector<2x8x16xf32>,
    %74 = vector.extract_strided_slice %69 {offsets = [0, 0, 16], sizes = [2, 8, 16], strides = [1, 1, 1]} : vector<2x8x256xf32> to vector<2x8x16xf32>
    %c0_43 = arith.constant 0 : index
    %c0_44 = arith.constant 0 : index
    %c0_45 = arith.constant 0 : index
    %75 = vector.load %arg9[%c0_43, %c0_44, %c0_45] : memref<2x8x128xf32, #tpu.memory_space<vmem>>, vector<2x8x16xf32>
    tpu.vector_store %arg9[%c0_43, %c0_44, %c0_45], %74 {strides = array<i32>} : memref<2x8x128xf32, #tpu.memory_space<vmem>>, vector<2x8x16xf32>,
    %76 = vector.extract_strided_slice %69 {offsets = [0, 0, 32], sizes = [2, 8, 16], strides = [1, 1, 1]} : vector<2x8x256xf32> to vector<2x8x16xf32>
    %c0_46 = arith.constant 0 : index
    %c0_47 = arith.constant 0 : index
    %c16 = arith.constant 16 : index
    %77 = vector.load %arg8[%c0_46, %c0_47, %c16] : memref<2x8x128xf32, #tpu.memory_space<vmem>>, vector<2x8x16xf32>
    tpu.vector_store %arg8[%c0_46, %c0_47, %c16], %76 {strides = array<i32>} : memref<2x8x128xf32, #tpu.memory_space<vmem>>, vector<2x8x16xf32>,
    %78 = vector.extract_strided_slice %69 {offsets = [0, 0, 48], sizes = [2, 8, 16], strides = [1, 1, 1]} : vector<2x8x256xf32> to vector<2x8x16xf32>
    %c0_48 = arith.constant 0 : index
    %c0_49 = arith.constant 0 : index
    %c16_50 = arith.constant 16 : index
    %79 = vector.load %arg9[%c0_48, %c0_49, %c16_50] : memref<2x8x128xf32, #tpu.memory_space<vmem>>, vector<2x8x16xf32>
    tpu.vector_store %arg9[%c0_48, %c0_49, %c16_50], %78 {strides = array<i32>} : memref<2x8x128xf32, #tpu.memory_space<vmem>>, vector<2x8x16xf32>,
    %80 = vector.extract_strided_slice %69 {offsets = [0, 0, 16], sizes = [2, 8, 16], strides = [1, 1, 1]} : vector<2x8x256xf32> to vector<2x8x16xf32>
    %c0_51 = arith.constant 0 : index
    %c0_52 = arith.constant 0 : index
    %c16_53 = arith.constant 16 : index
    %81 = vector.load %arg10[%c0_51, %c0_52, %c16_53] : memref<2x8x128xf32, #tpu.memory_space<vmem>>, vector<2x8x16xf32>
    tpu.vector_store %arg10[%c0_51, %c0_52, %c16_53], %80 {strides = array<i32>} : memref<2x8x128xf32, #tpu.memory_space<vmem>>, vector<2x8x16xf32>,
    %82 = vector.extract_strided_slice %69 {offsets = [0, 0, 64], sizes = [2, 8, 16], strides = [1, 1, 1]} : vector<2x8x256xf32> to vector<2x8x16xf32>
    %c0_54 = arith.constant 0 : index
    %c0_55 = arith.constant 0 : index
    %c32 = arith.constant 32 : index
    %83 = vector.load %arg8[%c0_54, %c0_55, %c32] : memref<2x8x128xf32, #tpu.memory_space<vmem>>, vector<2x8x16xf32>
    tpu.vector_store %arg8[%c0_54, %c0_55, %c32], %82 {strides = array<i32>} : memref<2x8x128xf32, #tpu.memory_space<vmem>>, vector<2x8x16xf32>,
    %84 = vector.extract_strided_slice %69 {offsets = [0, 0, 80], sizes = [2, 8, 16], strides = [1, 1, 1]} : vector<2x8x256xf32> to vector<2x8x16xf32>
    %c0_56 = arith.constant 0 : index
    %c0_57 = arith.constant 0 : index
    %c32_58 = arith.constant 32 : index
    %85 = vector.load %arg9[%c0_56, %c0_57, %c32_58] : memref<2x8x128xf32, #tpu.memory_space<vmem>>, vector<2x8x16xf32>
    tpu.vector_store %arg9[%c0_56, %c0_57, %c32_58], %84 {strides = array<i32>} : memref<2x8x128xf32, #tpu.memory_space<vmem>>, vector<2x8x16xf32>,
    %86 = vector.extract_strided_slice %69 {offsets = [0, 0, 48], sizes = [2, 8, 16], strides = [1, 1, 1]} : vector<2x8x256xf32> to vector<2x8x16xf32>
    %c0_59 = arith.constant 0 : index
    %c0_60 = arith.constant 0 : index
    %c32_61 = arith.constant 32 : index
    %87 = vector.load %arg10[%c0_59, %c0_60, %c32_61] : memref<2x8x128xf32, #tpu.memory_space<vmem>>, vector<2x8x16xf32>
    tpu.vector_store %arg10[%c0_59, %c0_60, %c32_61], %86 {strides = array<i32>} : memref<2x8x128xf32, #tpu.memory_space<vmem>>, vector<2x8x16xf32>,
    %88 = vector.extract_strided_slice %69 {offsets = [0, 0, 96], sizes = [2, 8, 16], strides = [1, 1, 1]} : vector<2x8x256xf32> to vector<2x8x16xf32>
    %c0_62 = arith.constant 0 : index
    %c0_63 = arith.constant 0 : index
    %c48 = arith.constant 48 : index
    %89 = vector.load %arg8[%c0_62, %c0_63, %c48] : memref<2x8x128xf32, #tpu.memory_space<vmem>>, vector<2x8x16xf32>
    tpu.vector_store %arg8[%c0_62, %c0_63, %c48], %88 {strides = array<i32>} : memref<2x8x128xf32, #tpu.memory_space<vmem>>, vector<2x8x16xf32>,
    %90 = vector.extract_strided_slice %69 {offsets = [0, 0, 112], sizes = [2, 8, 16], strides = [1, 1, 1]} : vector<2x8x256xf32> to vector<2x8x16xf32>
    %c0_64 = arith.constant 0 : index
    %c0_65 = arith.constant 0 : index
    %c48_66 = arith.constant 48 : index
    %91 = vector.load %arg9[%c0_64, %c0_65, %c48_66] : memref<2x8x128xf32, #tpu.memory_space<vmem>>, vector<2x8x16xf32>
    tpu.vector_store %arg9[%c0_64, %c0_65, %c48_66], %90 {strides = array<i32>} : memref<2x8x128xf32, #tpu.memory_space<vmem>>, vector<2x8x16xf32>,
    %92 = vector.extract_strided_slice %69 {offsets = [0, 0, 80], sizes = [2, 8, 16], strides = [1, 1, 1]} : vector<2x8x256xf32> to vector<2x8x16xf32>
    %c0_67 = arith.constant 0 : index
    %c0_68 = arith.constant 0 : index
    %c48_69 = arith.constant 48 : index
    %93 = vector.load %arg10[%c0_67, %c0_68, %c48_69] : memref<2x8x128xf32, #tpu.memory_space<vmem>>, vector<2x8x16xf32>
    tpu.vector_store %arg10[%c0_67, %c0_68, %c48_69], %92 {strides = array<i32>} : memref<2x8x128xf32, #tpu.memory_space<vmem>>, vector<2x8x16xf32>,
    %94 = vector.extract_strided_slice %69 {offsets = [0, 0, 128], sizes = [2, 8, 16], strides = [1, 1, 1]} : vector<2x8x256xf32> to vector<2x8x16xf32>
    %c0_70 = arith.constant 0 : index
    %c0_71 = arith.constant 0 : index
    %c64 = arith.constant 64 : index
    %95 = vector.load %arg8[%c0_70, %c0_71, %c64] : memref<2x8x128xf32, #tpu.memory_space<vmem>>, vector<2x8x16xf32>
    tpu.vector_store %arg8[%c0_70, %c0_71, %c64], %94 {strides = array<i32>} : memref<2x8x128xf32, #tpu.memory_space<vmem>>, vector<2x8x16xf32>,
    %96 = vector.extract_strided_slice %69 {offsets = [0, 0, 144], sizes = [2, 8, 16], strides = [1, 1, 1]} : vector<2x8x256xf32> to vector<2x8x16xf32>
    %c0_72 = arith.constant 0 : index
    %c0_73 = arith.constant 0 : index
    %c64_74 = arith.constant 64 : index
    %97 = vector.load %arg9[%c0_72, %c0_73, %c64_74] : memref<2x8x128xf32, #tpu.memory_space<vmem>>, vector<2x8x16xf32>
    tpu.vector_store %arg9[%c0_72, %c0_73, %c64_74], %96 {strides = array<i32>} : memref<2x8x128xf32, #tpu.memory_space<vmem>>, vector<2x8x16xf32>,
    %98 = vector.extract_strided_slice %69 {offsets = [0, 0, 112], sizes = [2, 8, 16], strides = [1, 1, 1]} : vector<2x8x256xf32> to vector<2x8x16xf32>
    %c0_75 = arith.constant 0 : index
    %c0_76 = arith.constant 0 : index
    %c64_77 = arith.constant 64 : index
    %99 = vector.load %arg10[%c0_75, %c0_76, %c64_77] : memref<2x8x128xf32, #tpu.memory_space<vmem>>, vector<2x8x16xf32>
    tpu.vector_store %arg10[%c0_75, %c0_76, %c64_77], %98 {strides = array<i32>} : memref<2x8x128xf32, #tpu.memory_space<vmem>>, vector<2x8x16xf32>,
    %100 = vector.extract_strided_slice %69 {offsets = [0, 0, 160], sizes = [2, 8, 16], strides = [1, 1, 1]} : vector<2x8x256xf32> to vector<2x8x16xf32>
    %c0_78 = arith.constant 0 : index
    %c0_79 = arith.constant 0 : index
    %c80 = arith.constant 80 : index
    %101 = vector.load %arg8[%c0_78, %c0_79, %c80] : memref<2x8x128xf32, #tpu.memory_space<vmem>>, vector<2x8x16xf32>
    tpu.vector_store %arg8[%c0_78, %c0_79, %c80], %100 {strides = array<i32>} : memref<2x8x128xf32, #tpu.memory_space<vmem>>, vector<2x8x16xf32>,
    %102 = vector.extract_strided_slice %69 {offsets = [0, 0, 176], sizes = [2, 8, 16], strides = [1, 1, 1]} : vector<2x8x256xf32> to vector<2x8x16xf32>
    %c0_80 = arith.constant 0 : index
    %c0_81 = arith.constant 0 : index
    %c80_82 = arith.constant 80 : index
    %103 = vector.load %arg9[%c0_80, %c0_81, %c80_82] : memref<2x8x128xf32, #tpu.memory_space<vmem>>, vector<2x8x16xf32>
    tpu.vector_store %arg9[%c0_80, %c0_81, %c80_82], %102 {strides = array<i32>} : memref<2x8x128xf32, #tpu.memory_space<vmem>>, vector<2x8x16xf32>,
    %104 = vector.extract_strided_slice %69 {offsets = [0, 0, 144], sizes = [2, 8, 16], strides = [1, 1, 1]} : vector<2x8x256xf32> to vector<2x8x16xf32>
    %c0_83 = arith.constant 0 : index
    %c0_84 = arith.constant 0 : index
    %c80_85 = arith.constant 80 : index
    %105 = vector.load %arg10[%c0_83, %c0_84, %c80_85] : memref<2x8x128xf32, #tpu.memory_space<vmem>>, vector<2x8x16xf32>
    tpu.vector_store %arg10[%c0_83, %c0_84, %c80_85], %104 {strides = array<i32>} : memref<2x8x128xf32, #tpu.memory_space<vmem>>, vector<2x8x16xf32>,
    %106 = vector.extract_strided_slice %69 {offsets = [0, 0, 192], sizes = [2, 8, 16], strides = [1, 1, 1]} : vector<2x8x256xf32> to vector<2x8x16xf32>
    %c0_86 = arith.constant 0 : index
    %c0_87 = arith.constant 0 : index
    %c96 = arith.constant 96 : index
    %107 = vector.load %arg8[%c0_86, %c0_87, %c96] : memref<2x8x128xf32, #tpu.memory_space<vmem>>, vector<2x8x16xf32>
    tpu.vector_store %arg8[%c0_86, %c0_87, %c96], %106 {strides = array<i32>} : memref<2x8x128xf32, #tpu.memory_space<vmem>>, vector<2x8x16xf32>,
    %108 = vector.extract_strided_slice %69 {offsets = [0, 0, 208], sizes = [2, 8, 16], strides = [1, 1, 1]} : vector<2x8x256xf32> to vector<2x8x16xf32>
    %c0_88 = arith.constant 0 : index
    %c0_89 = arith.constant 0 : index
    %c96_90 = arith.constant 96 : index
    %109 = vector.load %arg9[%c0_88, %c0_89, %c96_90] : memref<2x8x128xf32, #tpu.memory_space<vmem>>, vector<2x8x16xf32>
    tpu.vector_store %arg9[%c0_88, %c0_89, %c96_90], %108 {strides = array<i32>} : memref<2x8x128xf32, #tpu.memory_space<vmem>>, vector<2x8x16xf32>,
    %110 = vector.extract_strided_slice %69 {offsets = [0, 0, 176], sizes = [2, 8, 16], strides = [1, 1, 1]} : vector<2x8x256xf32> to vector<2x8x16xf32>
    %c0_91 = arith.constant 0 : index
    %c0_92 = arith.constant 0 : index
    %c96_93 = arith.constant 96 : index
    %111 = vector.load %arg10[%c0_91, %c0_92, %c96_93] : memref<2x8x128xf32, #tpu.memory_space<vmem>>, vector<2x8x16xf32>
    tpu.vector_store %arg10[%c0_91, %c0_92, %c96_93], %110 {strides = array<i32>} : memref<2x8x128xf32, #tpu.memory_space<vmem>>, vector<2x8x16xf32>,
    %112 = vector.extract_strided_slice %69 {offsets = [0, 0, 224], sizes = [2, 8, 16], strides = [1, 1, 1]} : vector<2x8x256xf32> to vector<2x8x16xf32>
    %c0_94 = arith.constant 0 : index
    %c0_95 = arith.constant 0 : index
    %c112 = arith.constant 112 : index
    %113 = vector.load %arg8[%c0_94, %c0_95, %c112] : memref<2x8x128xf32, #tpu.memory_space<vmem>>, vector<2x8x16xf32>
    tpu.vector_store %arg8[%c0_94, %c0_95, %c112], %112 {strides = array<i32>} : memref<2x8x128xf32, #tpu.memory_space<vmem>>, vector<2x8x16xf32>,
    %114 = vector.extract_strided_slice %69 {offsets = [0, 0, 240], sizes = [2, 8, 16], strides = [1, 1, 1]} : vector<2x8x256xf32> to vector<2x8x16xf32>
    %c0_96 = arith.constant 0 : index
    %c0_97 = arith.constant 0 : index
    %c112_98 = arith.constant 112 : index
    %115 = vector.load %arg9[%c0_96, %c0_97, %c112_98] : memref<2x8x128xf32, #tpu.memory_space<vmem>>, vector<2x8x16xf32>
    tpu.vector_store %arg9[%c0_96, %c0_97, %c112_98], %114 {strides = array<i32>} : memref<2x8x128xf32, #tpu.memory_space<vmem>>, vector<2x8x16xf32>,
    %116 = vector.extract_strided_slice %69 {offsets = [0, 0, 208], sizes = [2, 8, 16], strides = [1, 1, 1]} : vector<2x8x256xf32> to vector<2x8x16xf32>
    %c0_99 = arith.constant 0 : index
    %c0_100 = arith.constant 0 : index
    %c112_101 = arith.constant 112 : index
    %117 = vector.load %arg10[%c0_99, %c0_100, %c112_101] : memref<2x8x128xf32, #tpu.memory_space<vmem>>, vector<2x8x16xf32>
    tpu.vector_store %arg10[%c0_99, %c0_100, %c112_101], %116 {strides = array<i32>} : memref<2x8x128xf32, #tpu.memory_space<vmem>>, vector<2x8x16xf32>,
    %c0_102 = arith.constant 0 : index
    %c0_103 = arith.constant 0 : index
    %c0_104 = arith.constant 0 : index
    %118 = vector.load %arg8[%c0_102, %c0_103, %c0_104] : memref<2x8x128xf32, #tpu.memory_space<vmem>>, vector<2x8x128xf32>
    %c0_105 = arith.constant 0 : index
    %c0_106 = arith.constant 0 : index
    %c0_107 = arith.constant 0 : index
    %119 = vector.load %arg9[%c0_105, %c0_106, %c0_107] : memref<2x8x128xf32, #tpu.memory_space<vmem>>, vector<2x8x128xf32>
    %c0_108 = arith.constant 0 : index
    %c0_109 = arith.constant 0 : index
    %c0_110 = arith.constant 0 : index
    %120 = vector.load %arg10[%c0_108, %c0_109, %c0_110] : memref<2x8x128xf32, #tpu.memory_space<vmem>>, vector<2x8x128xf32>
    %121 = arith.maximumf %119, %120 : vector<2x8x128xf32>
    %122 = arith.maximumf %118, %121 : vector<2x8x128xf32>
    %cst_111 = arith.constant 0.000000e+00 : f32
    %123 = vector.broadcast %cst_111 : f32 to vector<2x1x128xf32>
    %cst_112 = arith.constant 0.000000e+00 : f32
    %124 = vector.broadcast %cst_112 : f32 to vector<2x8x128xf32>
    %125 = arith.maximumf %122, %124 : vector<2x8x128xf32>
    %126 = tpu.concatenate %123, %125, %123 in 1 : vector<2x1x128xf32>, vector<2x8x128xf32>, vector<2x1x128xf32> -> vector<2x10x128xf32>
    %c0_113 = arith.constant 0 : index
    %c0_114 = arith.constant 0 : index
    %c0_115 = arith.constant 0 : index
    %127 = vector.load %arg5[%c0_113, %c0_114, %c0_115] : memref<4x1x128xf32, #tpu.memory_space<vmem>>, vector<1x1x128xf32>
    %128 = vector.shape_cast %127 : vector<1x1x128xf32> to vector<1x128xf32>
    %129 = vector.extract_strided_slice %126 {offsets = [0, 0, 0], sizes = [2, 8, 128], strides = [1, 1, 1]} : vector<2x10x128xf32> to vector<2x8x128xf32>
    %130 = vector.shape_cast %129 : vector<2x8x128xf32> to vector<16x128xf32>
    %c0_116 = arith.constant 0 : index
    %c0_117 = arith.constant 0 : index
    %c0_118 = arith.constant 0 : index
    %131 = vector.load %arg4[%c0_116, %c0_117, %c0_118] : memref<12x128x128xf32, #tpu.memory_space<vmem>>, vector<1x128x128xf32>
    %132 = vector.shape_cast %131 : vector<1x128x128xf32> to vector<128x128xf32>
    %cst_119 = arith.constant dense<0.000000e+00> : vector<16x128xf32>
    %133 = tpu.matmul %130, %132, %cst_119 {dimension_numbers = #tpu.dot_dimension_numbers<[1], [0], [0], [1], [0, 0, 1, 1], [], []>, precision = #tpu.contract_precision<fp32>} : vector<16x128xf32>, vector<128x128xf32>, vector<16x128xf32> -> vector<16x128xf32>
    %134 = vector.extract_strided_slice %126 {offsets = [0, 1, 0], sizes = [2, 8, 128], strides = [1, 1, 1]} : vector<2x10x128xf32> to vector<2x8x128xf32>
    %135 = vector.shape_cast %134 : vector<2x8x128xf32> to vector<16x128xf32>
    %c1_120 = arith.constant 1 : index
    %c0_121 = arith.constant 0 : index
    %c0_122 = arith.constant 0 : index
    %136 = vector.load %arg4[%c1_120, %c0_121, %c0_122] : memref<12x128x128xf32, #tpu.memory_space<vmem>>, vector<1x128x128xf32>
    %137 = vector.shape_cast %136 : vector<1x128x128xf32> to vector<128x128xf32>
    %cst_123 = arith.constant dense<0.000000e+00> : vector<16x128xf32>
    %138 = tpu.matmul %135, %137, %cst_123 {dimension_numbers = #tpu.dot_dimension_numbers<[1], [0], [0], [1], [0, 0, 1, 1], [], []>, precision = #tpu.contract_precision<fp32>} : vector<16x128xf32>, vector<128x128xf32>, vector<16x128xf32> -> vector<16x128xf32>
    %139 = arith.addf %133, %138 : vector<16x128xf32>
    %140 = vector.extract_strided_slice %126 {offsets = [0, 2, 0], sizes = [2, 8, 128], strides = [1, 1, 1]} : vector<2x10x128xf32> to vector<2x8x128xf32>
    %141 = vector.shape_cast %140 : vector<2x8x128xf32> to vector<16x128xf32>
    %c2_124 = arith.constant 2 : index
    %c0_125 = arith.constant 0 : index
    %c0_126 = arith.constant 0 : index
    %142 = vector.load %arg4[%c2_124, %c0_125, %c0_126] : memref<12x128x128xf32, #tpu.memory_space<vmem>>, vector<1x128x128xf32>
    %143 = vector.shape_cast %142 : vector<1x128x128xf32> to vector<128x128xf32>
    %cst_127 = arith.constant dense<0.000000e+00> : vector<16x128xf32>
    %144 = tpu.matmul %141, %143, %cst_127 {dimension_numbers = #tpu.dot_dimension_numbers<[1], [0], [0], [1], [0, 0, 1, 1], [], []>, precision = #tpu.contract_precision<fp32>} : vector<16x128xf32>, vector<128x128xf32>, vector<16x128xf32> -> vector<16x128xf32>
    %145 = arith.addf %139, %144 : vector<16x128xf32>
    %146 = vector.broadcast %128 : vector<1x128xf32> to vector<16x128xf32>
    %147 = arith.addf %145, %146 : vector<16x128xf32>
    %148 = vector.shape_cast %147 : vector<16x128xf32> to vector<2x8x128xf32>
    %cst_128 = arith.constant 0.000000e+00 : f32
    %149 = vector.broadcast %cst_128 : f32 to vector<2x8x128xf32>
    %150 = arith.maximumf %148, %149 : vector<2x8x128xf32>
    %151 = tpu.concatenate %123, %150, %123 in 1 : vector<2x1x128xf32>, vector<2x8x128xf32>, vector<2x1x128xf32> -> vector<2x10x128xf32>
    %c1_129 = arith.constant 1 : index
    %c0_130 = arith.constant 0 : index
    %c0_131 = arith.constant 0 : index
    %152 = vector.load %arg5[%c1_129, %c0_130, %c0_131] : memref<4x1x128xf32, #tpu.memory_space<vmem>>, vector<1x1x128xf32>
    %153 = vector.shape_cast %152 : vector<1x1x128xf32> to vector<1x128xf32>
    %154 = vector.extract_strided_slice %151 {offsets = [0, 0, 0], sizes = [2, 8, 128], strides = [1, 1, 1]} : vector<2x10x128xf32> to vector<2x8x128xf32>
    %155 = vector.shape_cast %154 : vector<2x8x128xf32> to vector<16x128xf32>
    %c3_132 = arith.constant 3 : index
    %c0_133 = arith.constant 0 : index
    %c0_134 = arith.constant 0 : index
    %156 = vector.load %arg4[%c3_132, %c0_133, %c0_134] : memref<12x128x128xf32, #tpu.memory_space<vmem>>, vector<1x128x128xf32>
    %157 = vector.shape_cast %156 : vector<1x128x128xf32> to vector<128x128xf32>
    %cst_135 = arith.constant dense<0.000000e+00> : vector<16x128xf32>
    %158 = tpu.matmul %155, %157, %cst_135 {dimension_numbers = #tpu.dot_dimension_numbers<[1], [0], [0], [1], [0, 0, 1, 1], [], []>, precision = #tpu.contract_precision<fp32>} : vector<16x128xf32>, vector<128x128xf32>, vector<16x128xf32> -> vector<16x128xf32>
    %159 = vector.extract_strided_slice %151 {offsets = [0, 1, 0], sizes = [2, 8, 128], strides = [1, 1, 1]} : vector<2x10x128xf32> to vector<2x8x128xf32>
    %160 = vector.shape_cast %159 : vector<2x8x128xf32> to vector<16x128xf32>
    %c4_136 = arith.constant 4 : index
    %c0_137 = arith.constant 0 : index
    %c0_138 = arith.constant 0 : index
    %161 = vector.load %arg4[%c4_136, %c0_137, %c0_138] : memref<12x128x128xf32, #tpu.memory_space<vmem>>, vector<1x128x128xf32>
    %162 = vector.shape_cast %161 : vector<1x128x128xf32> to vector<128x128xf32>
    %cst_139 = arith.constant dense<0.000000e+00> : vector<16x128xf32>
    %163 = tpu.matmul %160, %162, %cst_139 {dimension_numbers = #tpu.dot_dimension_numbers<[1], [0], [0], [1], [0, 0, 1, 1], [], []>, precision = #tpu.contract_precision<fp32>} : vector<16x128xf32>, vector<128x128xf32>, vector<16x128xf32> -> vector<16x128xf32>
    %164 = arith.addf %158, %163 : vector<16x128xf32>
    %165 = vector.extract_strided_slice %151 {offsets = [0, 2, 0], sizes = [2, 8, 128], strides = [1, 1, 1]} : vector<2x10x128xf32> to vector<2x8x128xf32>
    %166 = vector.shape_cast %165 : vector<2x8x128xf32> to vector<16x128xf32>
    %c5_140 = arith.constant 5 : index
    %c0_141 = arith.constant 0 : index
    %c0_142 = arith.constant 0 : index
    %167 = vector.load %arg4[%c5_140, %c0_141, %c0_142] : memref<12x128x128xf32, #tpu.memory_space<vmem>>, vector<1x128x128xf32>
    %168 = vector.shape_cast %167 : vector<1x128x128xf32> to vector<128x128xf32>
    %cst_143 = arith.constant dense<0.000000e+00> : vector<16x128xf32>
    %169 = tpu.matmul %166, %168, %cst_143 {dimension_numbers = #tpu.dot_dimension_numbers<[1], [0], [0], [1], [0, 0, 1, 1], [], []>, precision = #tpu.contract_precision<fp32>} : vector<16x128xf32>, vector<128x128xf32>, vector<16x128xf32> -> vector<16x128xf32>
    %170 = arith.addf %164, %169 : vector<16x128xf32>
    %171 = vector.broadcast %153 : vector<1x128xf32> to vector<16x128xf32>
    %172 = arith.addf %170, %171 : vector<16x128xf32>
    %173 = vector.shape_cast %172 : vector<16x128xf32> to vector<2x8x128xf32>
    %174 = arith.addf %173, %122 : vector<2x8x128xf32>
    %cst_144 = arith.constant 0.000000e+00 : f32
    %175 = vector.broadcast %cst_144 : f32 to vector<2x8x128xf32>
    %176 = arith.maximumf %174, %175 : vector<2x8x128xf32>
    %177 = tpu.concatenate %123, %176, %123 in 1 : vector<2x1x128xf32>, vector<2x8x128xf32>, vector<2x1x128xf32> -> vector<2x10x128xf32>
    %c2_145 = arith.constant 2 : index
    %c0_146 = arith.constant 0 : index
    %c0_147 = arith.constant 0 : index
    %178 = vector.load %arg5[%c2_145, %c0_146, %c0_147] : memref<4x1x128xf32, #tpu.memory_space<vmem>>, vector<1x1x128xf32>
    %179 = vector.shape_cast %178 : vector<1x1x128xf32> to vector<1x128xf32>
    %180 = vector.extract_strided_slice %177 {offsets = [0, 0, 0], sizes = [2, 8, 128], strides = [1, 1, 1]} : vector<2x10x128xf32> to vector<2x8x128xf32>
    %181 = vector.shape_cast %180 : vector<2x8x128xf32> to vector<16x128xf32>
    %c6_148 = arith.constant 6 : index
    %c0_149 = arith.constant 0 : index
    %c0_150 = arith.constant 0 : index
    %182 = vector.load %arg4[%c6_148, %c0_149, %c0_150] : memref<12x128x128xf32, #tpu.memory_space<vmem>>, vector<1x128x128xf32>
    %183 = vector.shape_cast %182 : vector<1x128x128xf32> to vector<128x128xf32>
    %cst_151 = arith.constant dense<0.000000e+00> : vector<16x128xf32>
    %184 = tpu.matmul %181, %183, %cst_151 {dimension_numbers = #tpu.dot_dimension_numbers<[1], [0], [0], [1], [0, 0, 1, 1], [], []>, precision = #tpu.contract_precision<fp32>} : vector<16x128xf32>, vector<128x128xf32>, vector<16x128xf32> -> vector<16x128xf32>
    %185 = vector.extract_strided_slice %177 {offsets = [0, 1, 0], sizes = [2, 8, 128], strides = [1, 1, 1]} : vector<2x10x128xf32> to vector<2x8x128xf32>
    %186 = vector.shape_cast %185 : vector<2x8x128xf32> to vector<16x128xf32>
    %c7_152 = arith.constant 7 : index
    %c0_153 = arith.constant 0 : index
    %c0_154 = arith.constant 0 : index
    %187 = vector.load %arg4[%c7_152, %c0_153, %c0_154] : memref<12x128x128xf32, #tpu.memory_space<vmem>>, vector<1x128x128xf32>
    %188 = vector.shape_cast %187 : vector<1x128x128xf32> to vector<128x128xf32>
    %cst_155 = arith.constant dense<0.000000e+00> : vector<16x128xf32>
    %189 = tpu.matmul %186, %188, %cst_155 {dimension_numbers = #tpu.dot_dimension_numbers<[1], [0], [0], [1], [0, 0, 1, 1], [], []>, precision = #tpu.contract_precision<fp32>} : vector<16x128xf32>, vector<128x128xf32>, vector<16x128xf32> -> vector<16x128xf32>
    %190 = arith.addf %184, %189 : vector<16x128xf32>
    %191 = vector.extract_strided_slice %177 {offsets = [0, 2, 0], sizes = [2, 8, 128], strides = [1, 1, 1]} : vector<2x10x128xf32> to vector<2x8x128xf32>
    %192 = vector.shape_cast %191 : vector<2x8x128xf32> to vector<16x128xf32>
    %c8 = arith.constant 8 : index
    %c0_156 = arith.constant 0 : index
    %c0_157 = arith.constant 0 : index
    %193 = vector.load %arg4[%c8, %c0_156, %c0_157] : memref<12x128x128xf32, #tpu.memory_space<vmem>>, vector<1x128x128xf32>
    %194 = vector.shape_cast %193 : vector<1x128x128xf32> to vector<128x128xf32>
    %cst_158 = arith.constant dense<0.000000e+00> : vector<16x128xf32>
    %195 = tpu.matmul %192, %194, %cst_158 {dimension_numbers = #tpu.dot_dimension_numbers<[1], [0], [0], [1], [0, 0, 1, 1], [], []>, precision = #tpu.contract_precision<fp32>} : vector<16x128xf32>, vector<128x128xf32>, vector<16x128xf32> -> vector<16x128xf32>
    %196 = arith.addf %190, %195 : vector<16x128xf32>
    %197 = vector.broadcast %179 : vector<1x128xf32> to vector<16x128xf32>
    %198 = arith.addf %196, %197 : vector<16x128xf32>
    %199 = vector.shape_cast %198 : vector<16x128xf32> to vector<2x8x128xf32>
    %cst_159 = arith.constant 0.000000e+00 : f32
    %200 = vector.broadcast %cst_159 : f32 to vector<2x8x128xf32>
    %201 = arith.maximumf %199, %200 : vector<2x8x128xf32>
    %202 = tpu.concatenate %123, %201, %123 in 1 : vector<2x1x128xf32>, vector<2x8x128xf32>, vector<2x1x128xf32> -> vector<2x10x128xf32>
    %c3_160 = arith.constant 3 : index
    %c0_161 = arith.constant 0 : index
    %c0_162 = arith.constant 0 : index
    %203 = vector.load %arg5[%c3_160, %c0_161, %c0_162] : memref<4x1x128xf32, #tpu.memory_space<vmem>>, vector<1x1x128xf32>
    %204 = vector.shape_cast %203 : vector<1x1x128xf32> to vector<1x128xf32>
    %205 = vector.extract_strided_slice %202 {offsets = [0, 0, 0], sizes = [2, 8, 128], strides = [1, 1, 1]} : vector<2x10x128xf32> to vector<2x8x128xf32>
    %206 = vector.shape_cast %205 : vector<2x8x128xf32> to vector<16x128xf32>
    %c9 = arith.constant 9 : index
    %c0_163 = arith.constant 0 : index
    %c0_164 = arith.constant 0 : index
    %207 = vector.load %arg4[%c9, %c0_163, %c0_164] : memref<12x128x128xf32, #tpu.memory_space<vmem>>, vector<1x128x128xf32>
    %208 = vector.shape_cast %207 : vector<1x128x128xf32> to vector<128x128xf32>
    %cst_165 = arith.constant dense<0.000000e+00> : vector<16x128xf32>
    %209 = tpu.matmul %206, %208, %cst_165 {dimension_numbers = #tpu.dot_dimension_numbers<[1], [0], [0], [1], [0, 0, 1, 1], [], []>, precision = #tpu.contract_precision<fp32>} : vector<16x128xf32>, vector<128x128xf32>, vector<16x128xf32> -> vector<16x128xf32>
    %210 = vector.extract_strided_slice %202 {offsets = [0, 1, 0], sizes = [2, 8, 128], strides = [1, 1, 1]} : vector<2x10x128xf32> to vector<2x8x128xf32>
    %211 = vector.shape_cast %210 : vector<2x8x128xf32> to vector<16x128xf32>
    %c10 = arith.constant 10 : index
    %c0_166 = arith.constant 0 : index
    %c0_167 = arith.constant 0 : index
    %212 = vector.load %arg4[%c10, %c0_166, %c0_167] : memref<12x128x128xf32, #tpu.memory_space<vmem>>, vector<1x128x128xf32>
    %213 = vector.shape_cast %212 : vector<1x128x128xf32> to vector<128x128xf32>
    %cst_168 = arith.constant dense<0.000000e+00> : vector<16x128xf32>
    %214 = tpu.matmul %211, %213, %cst_168 {dimension_numbers = #tpu.dot_dimension_numbers<[1], [0], [0], [1], [0, 0, 1, 1], [], []>, precision = #tpu.contract_precision<fp32>} : vector<16x128xf32>, vector<128x128xf32>, vector<16x128xf32> -> vector<16x128xf32>
    %215 = arith.addf %209, %214 : vector<16x128xf32>
    %216 = vector.extract_strided_slice %202 {offsets = [0, 2, 0], sizes = [2, 8, 128], strides = [1, 1, 1]} : vector<2x10x128xf32> to vector<2x8x128xf32>
    %217 = vector.shape_cast %216 : vector<2x8x128xf32> to vector<16x128xf32>
    %c11 = arith.constant 11 : index
    %c0_169 = arith.constant 0 : index
    %c0_170 = arith.constant 0 : index
    %218 = vector.load %arg4[%c11, %c0_169, %c0_170] : memref<12x128x128xf32, #tpu.memory_space<vmem>>, vector<1x128x128xf32>
    %219 = vector.shape_cast %218 : vector<1x128x128xf32> to vector<128x128xf32>
    %cst_171 = arith.constant dense<0.000000e+00> : vector<16x128xf32>
    %220 = tpu.matmul %217, %219, %cst_171 {dimension_numbers = #tpu.dot_dimension_numbers<[1], [0], [0], [1], [0, 0, 1, 1], [], []>, precision = #tpu.contract_precision<fp32>} : vector<16x128xf32>, vector<128x128xf32>, vector<16x128xf32> -> vector<16x128xf32>
    %221 = arith.addf %215, %220 : vector<16x128xf32>
    %222 = vector.broadcast %204 : vector<1x128xf32> to vector<16x128xf32>
    %223 = arith.addf %221, %222 : vector<16x128xf32>
    %224 = vector.shape_cast %223 : vector<16x128xf32> to vector<2x8x128xf32>
    %225 = arith.addf %224, %174 : vector<2x8x128xf32>
    %c0_172 = arith.constant 0 : index
    %c0_173 = arith.constant 0 : index
    %c0_174 = arith.constant 0 : index
    %226 = vector.load %arg6[%c0_172, %c0_173, %c0_174] : memref<2x8x128xf32, #tpu.memory_space<vmem>>, vector<2x8x128xf32>
    tpu.vector_store %arg6[%c0_172, %c0_173, %c0_174], %225 {strides = array<i32>} : memref<2x8x128xf32, #tpu.memory_space<vmem>>, vector<2x8x128xf32>,
    return
  }
  func.func @transform_0(%arg0: i32) -> (i32, i32, i32) {
    %c0_i32 = arith.constant 0 : i32
    %c0_i32_0 = arith.constant 0 : i32
    %c0_i32_1 = arith.constant 0 : i32
    return %arg0, %c0_i32, %c0_i32_0 : i32, i32, i32
  }
  func.func @transform_1(%arg0: i32) -> (i32, i32, i32) {
    %c0_i32 = arith.constant 0 : i32
    %c0_i32_0 = arith.constant 0 : i32
    %c0_i32_1 = arith.constant 0 : i32
    %c0_i32_2 = arith.constant 0 : i32
    return %c0_i32, %c0_i32_0, %c0_i32_1 : i32, i32, i32
  }
  func.func @transform_2(%arg0: i32) -> (i32, i32) {
    %c0_i32 = arith.constant 0 : i32
    %c0_i32_0 = arith.constant 0 : i32
    %c0_i32_1 = arith.constant 0 : i32
    return %c0_i32, %c0_i32_0 : i32, i32
  }
  func.func @transform_3(%arg0: i32) -> (i32, i32, i32) {
    %c0_i32 = arith.constant 0 : i32
    %c0_i32_0 = arith.constant 0 : i32
    %c0_i32_1 = arith.constant 0 : i32
    %c0_i32_2 = arith.constant 0 : i32
    return %c0_i32, %c0_i32_0, %c0_i32_1 : i32, i32, i32
  }
  func.func @transform_4(%arg0: i32) -> (i32, i32, i32) {
    %c0_i32 = arith.constant 0 : i32
    %c0_i32_0 = arith.constant 0 : i32
    %c0_i32_1 = arith.constant 0 : i32
    %c0_i32_2 = arith.constant 0 : i32
    return %c0_i32, %c0_i32_0, %c0_i32_1 : i32, i32, i32
  }
  func.func @transform_5(%arg0: i32) -> (i32, i32, i32) {
    %c0_i32 = arith.constant 0 : i32
    %c0_i32_0 = arith.constant 0 : i32
    %c0_i32_1 = arith.constant 0 : i32
    return %arg0, %c0_i32, %c0_i32_0 : i32, i32, i32
  }
}

</mosaic_0001>

<llo_original>
// kernel: tile.33
$region0: #{tile.33}
  #allocation0 [shape = 's32[1]{0}', space=sflag, size = 0x4, scoped, tag = 'scoped memory for tile.33']
  %s0 = inlined_call_operand.vmem [shape: f32[16], index: 0, kind: input, shape index: {}]
  %s1 = inlined_call_operand.vmem [shape: f32[8,16], index: 1, kind: output, shape index: {}]
  // Predicated region
  $region2: #{tile.33} parent=0 // pred_check
    _
  $region3: #{tile.33} parent=0 // pred_check_branch
    %3 = sbr.rel (0) target = $region5
  $region4: #{tile.33} parent=0 // pred_region
    _
  $region5: #{tile.33} parent=0 // pred_fallthru
    _
  %v4 = vld [vmem:[%s0] ss:$0 sm:$0xff]
  %5 = vst [vmem:[%s1] sm:$0xff] %v4

// kernel: tile.46
$region0: #{tile.46}
  %s0 = inlined_call_operand.vmem [shape: f32[8,16], index: 0, kind: input, shape index: {}]
  %s1 = inlined_call_operand.vmem [shape: f32[1,1,128], index: 1, kind: output, shape index: {}]
  $region1: #{tile.46} parent=0
    #allocation0 [shape = 'u8[4096]{0}', space=vmem, size = 0x1000, scoped, tag = 'scoped mem for output reshape']
    %v2 = vld [vmem:[%s0] sm:$0x1]
    %vm3 = vcmask 130048
    %4 = vst.msk [vmem:[#allocation0] sm:$0x1] %vm3, %v2
    %s5 = scalar_lea.vmem %s0, 7
    %v6 = vld [vmem:[%s5] sm:$0x1]
    %7 = vrot.lane.b32.xlu0 %v6, 112
    %v8 = vpop.permute.xlu0 %7
    %vm9 = vcmask 1048448
    %10 = vst.msk [vmem:[#allocation0] sm:$0x1] %vm9, %v8
    %s11 = scalar_lea.vmem %s0, 6
    %v12 = vld [vmem:[%s11] sm:$0x1]
    %13 = vrot.lane.b32.xlu0 %v12, 96
    %v14 = vpop.permute.xlu0 %13
    %vm15 = vcmask 917248
    %16 = vst.msk [vmem:[#allocation0] sm:$0x1] %vm15, %v14
    %s17 = scalar_lea.vmem %s0, 5
    %v18 = vld [vmem:[%s17] sm:$0x1]
    %19 = vrot.lane.b32.xlu0 %v18, 80
    %v20 = vpop.permute.xlu0 %19
    %vm21 = vcmask 786048
    %22 = vst.msk [vmem:[#allocation0] sm:$0x1] %vm21, %v20
    %s23 = scalar_lea.vmem %s0, 4
    %v24 = vld [vmem:[%s23] sm:$0x1]
    %25 = vrot.lane.b32.xlu0 %v24, 64
    %v26 = vpop.permute.xlu0 %25
    %vm27 = vcmask 654848
    %28 = vst.msk [vmem:[#allocation0] sm:$0x1] %vm27, %v26
    %s29 = scalar_lea.vmem %s0, 3
    %v30 = vld [vmem:[%s29] sm:$0x1]
    %31 = vrot.lane.b32.xlu0 %v30, 48
    %v32 = vpop.permute.xlu0 %31
    %vm33 = vcmask 523648
    %34 = vst.msk [vmem:[#allocation0] sm:$0x1] %vm33, %v32
    %s35 = scalar_lea.vmem %s0, 2
    %v36 = vld [vmem:[%s35] sm:$0x1]
    %37 = vrot.lane.b32.xlu0 %v36, 32
    %v38 = vpop.permute.xlu0 %37
    %vm39 = vcmask 392448
    %40 = vst.msk [vmem:[#allocation0] sm:$0x1] %vm39, %v38
    %s41 = scalar_lea.vmem %s0, 1
    %v42 = vld [vmem:[%s41] sm:$0x1]
    %43 = vrot.lane.b32.xlu0 %v42, 16
    %v44 = vpop.permute.xlu0 %43
    %vm45 = vcmask 261248
    %46 = vst.msk [vmem:[#allocation0] sm:$0x1] %vm45, %v44
    %s48 = sshll.u32 1, 1
    %s49 = ssub.s32 %s48, 1
    %v51 = vld [vmem:[#allocation0] sm:%s49]
    %s52 = sshll.u32 1, 1
    %s53 = ssub.s32 %s52, 1
    %54 = vst [vmem:[%s1] sm:%s53] %v51

// kernel: tile.28
$region0: #{tile.28}
  #allocation0 [shape = 's32[1]{0}', space=sflag, size = 0x4, scoped, tag = 'scoped memory for tile.28']
  %s0 = inlined_call_operand.vmem [shape: f32[16], index: 0, kind: input, shape index: {}]
  %s1 = inlined_call_operand.vmem [shape: f32[16,16], index: 1, kind: output, shape index: {}]
  // Predicated region
  $region2: #{tile.28} parent=0 // pred_check
    _
  $region3: #{tile.28} parent=0 // pred_check_branch
    %3 = sbr.rel (0) target = $region5
  $region4: #{tile.28} parent=0 // pred_region
    _
  $region5: #{tile.28} parent=0 // pred_fallthru
    _
  %v4 = vld [vmem:[%s0] ss:$0 sm:$0xff]
  %5 = vst [vmem:[%s1] sm:$0xff] %v4
  %s6 = scalar_lea.vmem %s1, 8
  %7 = vst [vmem:[%s6] sm:$0xff] %v4

// kernel: tile.29
$region0: #{tile.29}
  %s0 = inlined_call_operand.vmem [shape: f32[16,16], index: 0, kind: input, shape index: {}]
  %s1 = inlined_call_operand.vmem [shape: f32[1,256], index: 1, kind: output, shape index: {}]
  $region1: #{tile.29} parent=0
    #allocation0 [shape = 'u8[8192]{0}', space=vmem, size = 0x2000, scoped, tag = 'scoped mem for output reshape']
    %s2 = smov 3
    %v3 = vld [vmem:[%s0] ss:$8 sm:%s2]
    %vm4 = vcmask 130048
    %5 = vst.msk [vmem:[#allocation0] ss:$8 sm:$0x3] %vm4, %v3
    %s6 = scalar_lea.vmem %s0, 7
    %s7 = smov 3
    %v8 = vld [vmem:[%s6] ss:$8 sm:%s7]
    %9 = vrot.lane.b32.xlu0 %v8, 112
    %v10 = vpop.permute.xlu0 %9
    %vm11 = vcmask 1048448
    %12 = vst.msk [vmem:[#allocation0] ss:$8 sm:$0x3] %vm11, %v10
    %s13 = scalar_lea.vmem %s0, 6
    %s14 = smov 3
    %v15 = vld [vmem:[%s13] ss:$8 sm:%s14]
    %16 = vrot.lane.b32.xlu0 %v15, 96
    %v17 = vpop.permute.xlu0 %16
    %vm18 = vcmask 917248
    %19 = vst.msk [vmem:[#allocation0] ss:$8 sm:$0x3] %vm18, %v17
    %s20 = scalar_lea.vmem %s0, 5
    %s21 = smov 3
    %v22 = vld [vmem:[%s20] ss:$8 sm:%s21]
    %23 = vrot.lane.b32.xlu0 %v22, 80
    %v24 = vpop.permute.xlu0 %23
    %vm25 = vcmask 786048
    %26 = vst.msk [vmem:[#allocation0] ss:$8 sm:$0x3] %vm25, %v24
    %s27 = scalar_lea.vmem %s0, 4
    %s28 = smov 3
    %v29 = vld [vmem:[%s27] ss:$8 sm:%s28]
    %30 = vrot.lane.b32.xlu0 %v29, 64
    %v31 = vpop.permute.xlu0 %30
    %vm32 = vcmask 654848
    %33 = vst.msk [vmem:[#allocation0] ss:$8 sm:$0x3] %vm32, %v31
    %s34 = scalar_lea.vmem %s0, 3
    %s35 = smov 3
    %v36 = vld [vmem:[%s34] ss:$8 sm:%s35]
    %37 = vrot.lane.b32.xlu0 %v36, 48
    %v38 = vpop.permute.xlu0 %37
    %vm39 = vcmask 523648
    %40 = vst.msk [vmem:[#allocation0] ss:$8 sm:$0x3] %vm39, %v38
    %s41 = scalar_lea.vmem %s0, 2
    %s42 = smov 3
    %v43 = vld [vmem:[%s41] ss:$8 sm:%s42]
    %44 = vrot.lane.b32.xlu0 %v43, 32
    %v45 = vpop.permute.xlu0 %44
    %vm46 = vcmask 392448
    %47 = vst.msk [vmem:[#allocation0] ss:$8 sm:$0x3] %vm46, %v45
    %s48 = scalar_lea.vmem %s0, 1
    %s49 = smov 3
    %v50 = vld [vmem:[%s48] ss:$8 sm:%s49]
    %51 = vrot.lane.b32.xlu0 %v50, 16
    %v52 = vpop.permute.xlu0 %51
    %vm53 = vcmask 261248
    %54 = vst.msk [vmem:[#allocation0] ss:$8 sm:$0x3] %vm53, %v52
    %s56 = sshll.u32 1, 1
    %s57 = ssub.s32 %s56, 1
    %v59 = vld [vmem:[#allocation0] sm:%s57]
    %s60 = sshll.u32 1, 1
    %s61 = ssub.s32 %s60, 1
    %62 = vst [vmem:[%s1] sm:%s61] %v59
    %s63 = scalar_lea.vmem [#allocation0], 8
    %v64 = vld [vmem:[%s63] sm:%s57]
    %s65 = sshll.u32 1, 1
    %s66 = ssub.s32 %s65, 1
    %s67 = scalar_lea.vmem %s1, 1
    %68 = vst [vmem:[%s67] sm:%s66] %v64

// kernel: conv_sequence_forward.1
$region0: #{conv_sequence_forward.1}
  #allocation0 [shape = 'u32[]', space=smem, size = 0x4, offset = 0x4, fixed_abs, tag = 'smem constant byte address 0x4 - core index']
  #allocation1 [shape = 'u32[144,128]{1,0:T(1,128)}', space=vmem, size = 0x12000, scoped, tag = 'internal scratch']
  #allocation2 [shape = 'f32[2,8,256]{2,1,0:T(8,128)}', space=vmem, size = 0x4000, scoped, tag = 'scratch operand']
  #allocation3 [shape = 'f32[2,8,128]{2,1,0:T(8,128)}', space=vmem, size = 0x2000, scoped, tag = 'scratch operand']
  #allocation4 [shape = 'f32[2,8,128]{2,1,0:T(8,128)}', space=vmem, size = 0x2000, scoped, tag = 'scratch operand']
  #allocation5 [shape = 'f32[2,8,128]{2,1,0:T(8,128)}', space=vmem, size = 0x2000, scoped, tag = 'scratch operand']
  %s0 = inlined_call_operand.vmem [shape: f32[2,18,64], index: 0, kind: input, shape index: {}]
  %s1 = inlined_call_operand.vmem [shape: f32[3,64,256], index: 1, kind: input, shape index: {}]
  %s2 = inlined_call_operand.vmem [shape: f32[1,256], index: 2, kind: input, shape index: {}]
  %s3 = inlined_call_operand.vmem [shape: f32[12,128,128], index: 3, kind: input, shape index: {}]
  %s4 = inlined_call_operand.vmem [shape: f32[4,1,128], index: 4, kind: input, shape index: {}]
  %s5 = inlined_call_operand.vmem [shape: f32[2,8,128], index: 5, kind: output, shape index: {}]
  %s6 = sld [smem:[#allocation0]]
  $region30: #{conv_sequence_forward.1} parent=0
    _
  %s8 = ssub.s32 1, %s6
  %s9 = scalar_select 0, %s8, %s6
  // Predicated region
  $region2: #{conv_sequence_forward.1} parent=0 // pred_check
    _
  $region3: #{conv_sequence_forward.1} parent=0 // pred_check_branch
    %11 = sbr.rel (0) target = $region5
  $region4: #{conv_sequence_forward.1} parent=0 // pred_region
    _
  $region5: #{conv_sequence_forward.1} parent=0 // pred_fallthru
    _
  // Predicated region
  $region6: #{conv_sequence_forward.1} parent=0 // pred_check
    _
  $region7: #{conv_sequence_forward.1} parent=0 // pred_check_branch
    %13 = sbr.rel (0) target = $region9
  $region8: #{conv_sequence_forward.1} parent=0 // pred_region
    _
  $region9: #{conv_sequence_forward.1} parent=0 // pred_fallthru
    _
  // Predicated region
  $region10: #{conv_sequence_forward.1} parent=0 // pred_check
    _
  $region11: #{conv_sequence_forward.1} parent=0 // pred_check_branch
    %15 = sbr.rel (0) target = $region13
  $region12: #{conv_sequence_forward.1} parent=0 // pred_region
    _
  $region13: #{conv_sequence_forward.1} parent=0 // pred_fallthru
    _
  // Predicated region
  $region14: #{conv_sequence_forward.1} parent=0 // pred_check
    _
  $region15: #{conv_sequence_forward.1} parent=0 // pred_check_branch
    %17 = sbr.rel (0) target = $region17
  $region16: #{conv_sequence_forward.1} parent=0 // pred_region
    _
  $region17: #{conv_sequence_forward.1} parent=0 // pred_fallthru
    _
  // Predicated region
  $region18: #{conv_sequence_forward.1} parent=0 // pred_check
    _
  $region19: #{conv_sequence_forward.1} parent=0 // pred_check_branch
    %19 = sbr.rel (0) target = $region21
  $region20: #{conv_sequence_forward.1} parent=0 // pred_region
    _
  $region21: #{conv_sequence_forward.1} parent=0 // pred_fallthru
    _
  %v20 = vld [vmem:[%s0] sm:$0xff]
  %v21 = vld [vmem:[%s0 + $0x8] sm:$0xff]
  %v22 = vld [vmem:[%s0 + $0x10] sm:$0x3]
  %v23 = vld [vmem:[%s0 + $0x18] sm:$0xff]
  %v24 = vld [vmem:[%s0 + $0x20] sm:$0xff]
  %v25 = vld [vmem:[%s0 + $0x28] sm:$0x3]
  %v26 = vld [vmem:[%s2] sm:$0x3]
  %v27 = vld [vmem:[%s1] sm:$0xff]
  %v28 = vld [vmem:[%s1 + $0x8] sm:$0xff]
  %v29 = vld [vmem:[%s1 + $0x10] sm:$0xff]
  %v30 = vld [vmem:[%s1 + $0x18] sm:$0xff]
  %v31 = vld [vmem:[%s1 + $0x20] sm:$0xff]
  %v32 = vld [vmem:[%s1 + $0x28] sm:$0xff]
  %v33 = vld [vmem:[%s1 + $0x30] sm:$0xff]
  %v34 = vld [vmem:[%s1 + $0x38] sm:$0xff]
  %v35 = vld [vmem:[%s1 + $0x40] sm:$0xff]
  %v36 = vld [vmem:[%s1 + $0x48] sm:$0xff]
  %v37 = vld [vmem:[%s1 + $0x50] sm:$0xff]
  %v38 = vld [vmem:[%s1 + $0x58] sm:$0xff]
  %v39 = vld [vmem:[%s1 + $0x60] sm:$0xff]
  %v40 = vld [vmem:[%s1 + $0x68] sm:$0xff]
  %v41 = vld [vmem:[%s1 + $0x70] sm:$0xff]
  %v42 = vld [vmem:[%s1 + $0x78] sm:$0xff]
  %vm49 = vcmask 1046528
  %v50 = vrot.slane %v20, 1
  %v51 = vrot.slane %v21, 1
  %v52 = vsel %vm49, %v50, %v51
  %v53 = vrot.slane %v22, 1
  %v54 = vsel %vm49, %v51, %v53
  %v55 = vrot.slane %v23, 1
  %v56 = vrot.slane %v24, 1
  %v57 = vsel %vm49, %v55, %v56
  %v58 = vrot.slane %v25, 1
  %v59 = vsel %vm49, %v56, %v58
  %s60 = scalar_lea.vmem %s1, 128
  %v61 = vld [vmem:[%s60] sm:$0xff]
  %v62 = vld [vmem:[%s60 + $0x8] sm:$0xff]
  %v63 = vld [vmem:[%s60 + $0x10] sm:$0xff]
  %v64 = vld [vmem:[%s60 + $0x18] sm:$0xff]
  %v65 = vld [vmem:[%s60 + $0x20] sm:$0xff]
  %v66 = vld [vmem:[%s60 + $0x28] sm:$0xff]
  %v67 = vld [vmem:[%s60 + $0x30] sm:$0xff]
  %v68 = vld [vmem:[%s60 + $0x38] sm:$0xff]
  %v69 = vld [vmem:[%s60 + $0x40] sm:$0xff]
  %v70 = vld [vmem:[%s60 + $0x48] sm:$0xff]
  %v71 = vld [vmem:[%s60 + $0x50] sm:$0xff]
  %v72 = vld [vmem:[%s60 + $0x58] sm:$0xff]
  %v73 = vld [vmem:[%s60 + $0x60] sm:$0xff]
  %v74 = vld [vmem:[%s60 + $0x68] sm:$0xff]
  %v75 = vld [vmem:[%s60 + $0x70] sm:$0xff]
  %v76 = vld [vmem:[%s60 + $0x78] sm:$0xff]
  %vm77 = vcmask 523264
  %v78 = vsel %vm77, %v52, 0
  %v80 = vsel %vm77, %v54, 0
  %v82 = vsel %vm77, %v57, 0
  %v84 = vsel %vm77, %v59, 0
  %86 = vmatprep.subr.mxu0 0.0
  %87 = vmatpush1.msra.mxu0 0.0
  %88 = vmatprep.subr.mxu0 0.0
  %89 = vmatpush1.msra.mxu0 0.0
  %90 = vmatprep.subr.mxu0 0.0
  %91 = vmatpush1.msra.mxu0 0.0
  %92 = vmatprep.subr.mxu0 0.0
  %93 = vmatpush1.msra.mxu0 0.0
  %94 = vmatprep.subr.mxu0 0.0
  %95 = vmatpush1.msra.mxu0 0.0
  %96 = vmatprep.subr.mxu0 0.0
  %97 = vmatpush1.msra.mxu0 0.0
  %98 = vmatprep.subr.mxu0 0.0
  %99 = vmatpush1.msra.mxu0 0.0
  %100 = vmatprep.subr.mxu0 0.0
  %101 = vmatpush1.msra.mxu0 0.0
  %v102 = vand.u32 %v76, 4294901760
  %103 = vmatprep.subr.mxu0 %v102
  %v104 = vand.u32 %v75, 4294901760
  %105 = vmatpush1.msra.mxu0 %v104
  %v106 = vand.u32 %v74, 4294901760
  %107 = vmatprep.subr.mxu0 %v106
  %v108 = vand.u32 %v73, 4294901760
  %109 = vmatpush1.msra.mxu0 %v108
  %v110 = vand.u32 %v72, 4294901760
  %111 = vmatprep.subr.mxu0 %v110
  %v112 = vand.u32 %v71, 4294901760
  %113 = vmatpush1.msra.mxu0 %v112
  %v114 = vand.u32 %v70, 4294901760
  %115 = vmatprep.subr.mxu0 %v114
  %v116 = vand.u32 %v69, 4294901760
  %117 = vmatpush1.msra.mxu0 %v116
  %v118 = vand.u32 %v68, 4294901760
  %119 = vmatprep.subr.mxu0 %v118
  %v120 = vand.u32 %v67, 4294901760
  %121 = vmatpush1.msra.mxu0 %v120
  %v122 = vand.u32 %v66, 4294901760
  %123 = vmatprep.subr.mxu0 %v122
  %v124 = vand.u32 %v65, 4294901760
  %125 = vmatpush1.msra.mxu0 %v124
  %v126 = vand.u32 %v64, 4294901760
  %127 = vmatprep.subr.mxu0 %v126
  %v128 = vand.u32 %v63, 4294901760
  %129 = vmatpush1.msra.mxu0 %v128
  %v130 = vand.u32 %v62, 4294901760
  %131 = vmatprep.subr.mxu0 %v130
  %v132 = vand.u32 %v61, 4294901760
  %133 = vmatpush1.msra.mxu0 %v132
  %134 = vmatprep.subr.mxu0 0.0
  %135 = vmatpush2.msra.mxu0 0.0
  %136 = vmatprep.subr.mxu0 0.0
  %137 = vmatpush2.msra.mxu0 0.0
  %138 = vmatprep.subr.mxu0 0.0
  %139 = vmatpush2.msra.mxu0 0.0
  %140 = vmatprep.subr.mxu0 0.0
  %141 = vmatpush2.msra.mxu0 0.0
  %142 = vmatprep.subr.mxu0 0.0
  %143 = vmatpush2.msra.mxu0 0.0
  %144 = vmatprep.subr.mxu0 0.0
  %145 = vmatpush2.msra.mxu0 0.0
  %146 = vmatprep.subr.mxu0 0.0
  %147 = vmatpush2.msra.mxu0 0.0
  %148 = vmatprep.subr.mxu0 0.0
  %149 = vmatpush2.msra.mxu0 0.0
  %150 = vmatprep.subr.mxu0 0.0
  %151 = vmatpush2.msra.mxu0 0.0
  %152 = vmatprep.subr.mxu0 0.0
  %153 = vmatpush2.msra.mxu0 0.0
  %154 = vmatprep.subr.mxu0 0.0
  %155 = vmatpush2.msra.mxu0 0.0
  %156 = vmatprep.subr.mxu0 0.0
  %157 = vmatpush2.msra.mxu0 0.0
  %158 = vmatprep.subr.mxu0 0.0
  %159 = vmatpush2.msra.mxu0 0.0
  %160 = vmatprep.subr.mxu0 0.0
  %161 = vmatpush2.msra.mxu0 0.0
  %162 = vmatprep.subr.mxu0 0.0
  %163 = vmatpush2.msra.mxu0 0.0
  %164 = vmatprep.subr.mxu0 0.0
  %165 = vmatpush2.msra.mxu0 0.0
  %166 = vmatprep.mubr.f32.mxu0 0.0
  %v167 = vand.u32 %v78, 4294901760
  %v168 = vsub.f32 %v78, %v167
  %v169 = vand.u32 %v168, 4294901760
  %v170 = vsub.f32 %v168, %v169
  %v171 = vand.u32 %v170, 4294901760
  %172 = vmatmul.mubr.f32.gmra.mxu0 %v171
  %v173 = vpop.f32.mrf.mxu0
  %v174 = vadd.f32 0.0, %v173
  %v175 = vpop.f32.mrf.mxu0
  %v176 = vadd.f32 0.0, %v175
  %177 = vmatprep.mubr.f32.mxu0 0.0
  %v178 = vand.u32 %v80, 4294901760
  %v179 = vsub.f32 %v80, %v178
  %v180 = vand.u32 %v179, 4294901760
  %v181 = vsub.f32 %v179, %v180
  %v182 = vand.u32 %v181, 4294901760
  %183 = vmatmul.mubr.f32.gmra.mxu0 %v182
  %v184 = vpop.f32.mrf.mxu0
  %v185 = vadd.f32 0.0, %v184
  %v186 = vpop.f32.mrf.mxu0
  %v187 = vadd.f32 0.0, %v186
  %188 = vmatprep.mubr.f32.mxu0 0.0
  %v189 = vand.u32 %v82, 4294901760
  %v190 = vsub.f32 %v82, %v189
  %v191 = vand.u32 %v190, 4294901760
  %v192 = vsub.f32 %v190, %v191
  %v193 = vand.u32 %v192, 4294901760
  %194 = vmatmul.mubr.f32.gmra.mxu0 %v193
  %v195 = vpop.f32.mrf.mxu0
  %v196 = vadd.f32 0.0, %v195
  %v197 = vpop.f32.mrf.mxu0
  %v198 = vadd.f32 0.0, %v197
  %199 = vmatprep.mubr.f32.mxu0 0.0
  %v200 = vand.u32 %v84, 4294901760
  %v201 = vsub.f32 %v84, %v200
  %v202 = vand.u32 %v201, 4294901760
  %v203 = vsub.f32 %v201, %v202
  %v204 = vand.u32 %v203, 4294901760
  %205 = vmatmul.mubr.f32.gmra.mxu0 %v204
  %v206 = vpop.f32.mrf.mxu0
  %v207 = vadd.f32 0.0, %v206
  %v208 = vpop.f32.mrf.mxu0
  %v209 = vadd.f32 0.0, %v208
  %210 = vdwg.mxu0
  %211 = vmatprep.subr.mxu0 0.0
  %212 = vmatpush1.msra.mxu0 0.0
  %213 = vmatprep.subr.mxu0 0.0
  %214 = vmatpush1.msra.mxu0 0.0
  %215 = vmatprep.subr.mxu0 0.0
  %216 = vmatpush1.msra.mxu0 0.0
  %217 = vmatprep.subr.mxu0 0.0
  %218 = vmatpush1.msra.mxu0 0.0
  %219 = vmatprep.subr.mxu0 0.0
  %220 = vmatpush1.msra.mxu0 0.0
  %221 = vmatprep.subr.mxu0 0.0
  %222 = vmatpush1.msra.mxu0 0.0
  %223 = vmatprep.subr.mxu0 0.0
  %224 = vmatpush1.msra.mxu0 0.0
  %225 = vmatprep.subr.mxu0 0.0
  %226 = vmatpush1.msra.mxu0 0.0
  %v227 = vand.u32 %v76, 4294901760
  %v228 = vsub.f32 %v76, %v227
  %v229 = vand.u32 %v228, 4294901760
  %v230 = vsub.f32 %v228, %v229
  %v231 = vand.u32 %v230, 4294901760
  %232 = vmatprep.subr.mxu0 %v231
  %v233 = vand.u32 %v75, 4294901760
  %v234 = vsub.f32 %v75, %v233
  %v235 = vand.u32 %v234, 4294901760
  %v236 = vsub.f32 %v234, %v235
  %v237 = vand.u32 %v236, 4294901760
  %238 = vmatpush1.msra.mxu0 %v237
  %v239 = vand.u32 %v74, 4294901760
  %v240 = vsub.f32 %v74, %v239
  %v241 = vand.u32 %v240, 4294901760
  %v242 = vsub.f32 %v240, %v241
  %v243 = vand.u32 %v242, 4294901760
  %244 = vmatprep.subr.mxu0 %v243
  %v245 = vand.u32 %v73, 4294901760
  %v246 = vsub.f32 %v73, %v245
  %v247 = vand.u32 %v246, 4294901760
  %v248 = vsub.f32 %v246, %v247
  %v249 = vand.u32 %v248, 4294901760
  %250 = vmatpush1.msra.mxu0 %v249
  %v251 = vand.u32 %v72, 4294901760
  %v252 = vsub.f32 %v72, %v251
  %v253 = vand.u32 %v252, 4294901760
  %v254 = vsub.f32 %v252, %v253
  %v255 = vand.u32 %v254, 4294901760
  %256 = vmatprep.subr.mxu0 %v255
  %v257 = vand.u32 %v71, 4294901760
  %v258 = vsub.f32 %v71, %v257
  %v259 = vand.u32 %v258, 4294901760
  %v260 = vsub.f32 %v258, %v259
  %v261 = vand.u32 %v260, 4294901760
  %262 = vmatpush1.msra.mxu0 %v261
  %v263 = vand.u32 %v70, 4294901760
  %v264 = vsub.f32 %v70, %v263
  %v265 = vand.u32 %v264, 4294901760
  %v266 = vsub.f32 %v264, %v265
  %v267 = vand.u32 %v266, 4294901760
  %268 = vmatprep.subr.mxu0 %v267
  %v269 = vand.u32 %v69, 4294901760
  %v270 = vsub.f32 %v69, %v269
  %v271 = vand.u32 %v270, 4294901760
  %v272 = vsub.f32 %v270, %v271
  %v273 = vand.u32 %v272, 4294901760
  %274 = vmatpush1.msra.mxu0 %v273
  %v275 = vand.u32 %v68, 4294901760
  %v276 = vsub.f32 %v68, %v275
  %v277 = vand.u32 %v276, 4294901760
  %v278 = vsub.f32 %v276, %v277
  %v279 = vand.u32 %v278, 4294901760
  %280 = vmatprep.subr.mxu0 %v279
  %v281 = vand.u32 %v67, 4294901760
  %v282 = vsub.f32 %v67, %v281
  %v283 = vand.u32 %v282, 4294901760
  %v284 = vsub.f32 %v282, %v283
  %v285 = vand.u32 %v284, 4294901760
  %286 = vmatpush1.msra.mxu0 %v285
  %v287 = vand.u32 %v66, 4294901760
  %v288 = vsub.f32 %v66, %v287
  %v289 = vand.u32 %v288, 4294901760
  %v290 = vsub.f32 %v288, %v289
  %v291 = vand.u32 %v290, 4294901760
  %292 = vmatprep.subr.mxu0 %v291
  %v293 = vand.u32 %v65, 4294901760
  %v294 = vsub.f32 %v65, %v293
  %v295 = vand.u32 %v294, 4294901760
  %v296 = vsub.f32 %v294, %v295
  %v297 = vand.u32 %v296, 4294901760
  %298 = vmatpush1.msra.mxu0 %v297
  %v299 = vand.u32 %v64, 4294901760
  %v300 = vsub.f32 %v64, %v299
  %v301 = vand.u32 %v300, 4294901760
  %v302 = vsub.f32 %v300, %v301
  %v303 = vand.u32 %v302, 4294901760
  %304 = vmatprep.subr.mxu0 %v303
  %v305 = vand.u32 %v63, 4294901760
  %v306 = vsub.f32 %v63, %v305
  %v307 = vand.u32 %v306, 4294901760
  %v308 = vsub.f32 %v306, %v307
  %v309 = vand.u32 %v308, 4294901760
  %310 = vmatpush1.msra.mxu0 %v309
  %v311 = vand.u32 %v62, 4294901760
  %v312 = vsub.f32 %v62, %v311
  %v313 = vand.u32 %v312, 4294901760
  %v314 = vsub.f32 %v312, %v313
  %v315 = vand.u32 %v314, 4294901760
  %316 = vmatprep.subr.mxu0 %v315
  %v317 = vand.u32 %v61, 4294901760
  %v318 = vsub.f32 %v61, %v317
  %v319 = vand.u32 %v318, 4294901760
  %v320 = vsub.f32 %v318, %v319
  %v321 = vand.u32 %v320, 4294901760
  %322 = vmatpush1.msra.mxu0 %v321
  %323 = vmatprep.subr.mxu0 0.0
  %324 = vmatpush2.msra.mxu0 0.0
  %325 = vmatprep.subr.mxu0 0.0
  %326 = vmatpush2.msra.mxu0 0.0
  %327 = vmatprep.subr.mxu0 0.0
  %328 = vmatpush2.msra.mxu0 0.0
  %329 = vmatprep.subr.mxu0 0.0
  %330 = vmatpush2.msra.mxu0 0.0
  %331 = vmatprep.subr.mxu0 0.0
  %332 = vmatpush2.msra.mxu0 0.0
  %333 = vmatprep.subr.mxu0 0.0
  %334 = vmatpush2.msra.mxu0 0.0
  %335 = vmatprep.subr.mxu0 0.0
  %336 = vmatpush2.msra.mxu0 0.0
  %337 = vmatprep.subr.mxu0 0.0
  %338 = vmatpush2.msra.mxu0 0.0
  %339 = vmatprep.subr.mxu0 0.0
  %340 = vmatpush2.msra.mxu0 0.0
  %341 = vmatprep.subr.mxu0 0.0
  %342 = vmatpush2.msra.mxu0 0.0
  %343 = vmatprep.subr.mxu0 0.0
  %344 = vmatpush2.msra.mxu0 0.0
  %345 = vmatprep.subr.mxu0 0.0
  %346 = vmatpush2.msra.mxu0 0.0
  %347 = vmatprep.subr.mxu0 0.0
  %348 = vmatpush2.msra.mxu0 0.0
  %349 = vmatprep.subr.mxu0 0.0
  %350 = vmatpush2.msra.mxu0 0.0
  %351 = vmatprep.subr.mxu0 0.0
  %352 = vmatpush2.msra.mxu0 0.0
  %353 = vmatprep.subr.mxu0 0.0
  %354 = vmatpush2.msra.mxu0 0.0
  %355 = vmatprep.mubr.f32.mxu0 0.0
  %v356 = vand.u32 %v78, 4294901760
  %357 = vmatmul.mubr.f32.gmra.mxu0 %v356
  %v358 = vpop.f32.mrf.mxu0
  %v359 = vadd.f32 %v174, %v358
  %v360 = vpop.f32.mrf.mxu0
  %v361 = vadd.f32 %v176, %v360
  %362 = vmatprep.mubr.f32.mxu0 0.0
  %v363 = vand.u32 %v80, 4294901760
  %364 = vmatmul.mubr.f32.gmra.mxu0 %v363
  %v365 = vpop.f32.mrf.mxu0
  %v366 = vadd.f32 %v185, %v365
  %v367 = vpop.f32.mrf.mxu0
  %v368 = vadd.f32 %v187, %v367
  %369 = vmatprep.mubr.f32.mxu0 0.0
  %v370 = vand.u32 %v82, 4294901760
  %371 = vmatmul.mubr.f32.gmra.mxu0 %v370
  %v372 = vpop.f32.mrf.mxu0
  %v373 = vadd.f32 %v196, %v372
  %v374 = vpop.f32.mrf.mxu0
  %v375 = vadd.f32 %v198, %v374
  %376 = vmatprep.mubr.f32.mxu0 0.0
  %v377 = vand.u32 %v84, 4294901760
  %378 = vmatmul.mubr.f32.gmra.mxu0 %v377
  %v379 = vpop.f32.mrf.mxu0
  %v380 = vadd.f32 %v207, %v379
  %v381 = vpop.f32.mrf.mxu0
  %v382 = vadd.f32 %v209, %v381
  %383 = vdwg.mxu0
  %384 = vmatprep.subr.mxu0 0.0
  %385 = vmatpush1.msra.mxu0 0.0
  %386 = vmatprep.subr.mxu0 0.0
  %387 = vmatpush1.msra.mxu0 0.0
  %388 = vmatprep.subr.mxu0 0.0
  %389 = vmatpush1.msra.mxu0 0.0
  %390 = vmatprep.subr.mxu0 0.0
  %391 = vmatpush1.msra.mxu0 0.0
  %392 = vmatprep.subr.mxu0 0.0
  %393 = vmatpush1.msra.mxu0 0.0
  %394 = vmatprep.subr.mxu0 0.0
  %395 = vmatpush1.msra.mxu0 0.0
  %396 = vmatprep.subr.mxu0 0.0
  %397 = vmatpush1.msra.mxu0 0.0
  %398 = vmatprep.subr.mxu0 0.0
  %399 = vmatpush1.msra.mxu0 0.0
  %v400 = vand.u32 %v76, 4294901760
  %v401 = vsub.f32 %v76, %v400
  %402 = vmatprep.subr.mxu0 %v401
  %v403 = vand.u32 %v75, 4294901760
  %v404 = vsub.f32 %v75, %v403
  %405 = vmatpush1.msra.mxu0 %v404
  %v406 = vand.u32 %v74, 4294901760
  %v407 = vsub.f32 %v74, %v406
  %408 = vmatprep.subr.mxu0 %v407
  %v409 = vand.u32 %v73, 4294901760
  %v410 = vsub.f32 %v73, %v409
  %411 = vmatpush1.msra.mxu0 %v410
  %v412 = vand.u32 %v72, 4294901760
  %v413 = vsub.f32 %v72, %v412
  %414 = vmatprep.subr.mxu0 %v413
  %v415 = vand.u32 %v71, 4294901760
  %v416 = vsub.f32 %v71, %v415
  %417 = vmatpush1.msra.mxu0 %v416
  %v418 = vand.u32 %v70, 4294901760
  %v419 = vsub.f32 %v70, %v418
  %420 = vmatprep.subr.mxu0 %v419
  %v421 = vand.u32 %v69, 4294901760
  %v422 = vsub.f32 %v69, %v421
  %423 = vmatpush1.msra.mxu0 %v422
  %v424 = vand.u32 %v68, 4294901760
  %v425 = vsub.f32 %v68, %v424
  %426 = vmatprep.subr.mxu0 %v425
  %v427 = vand.u32 %v67, 4294901760
  %v428 = vsub.f32 %v67, %v427
  %429 = vmatpush1.msra.mxu0 %v428
  %v430 = vand.u32 %v66, 4294901760
  %v431 = vsub.f32 %v66, %v430
  %432 = vmatprep.subr.mxu0 %v431
  %v433 = vand.u32 %v65, 4294901760
  %v434 = vsub.f32 %v65, %v433
  %435 = vmatpush1.msra.mxu0 %v434
  %v436 = vand.u32 %v64, 4294901760
  %v437 = vsub.f32 %v64, %v436
  %438 = vmatprep.subr.mxu0 %v437
  %v439 = vand.u32 %v63, 4294901760
  %v440 = vsub.f32 %v63, %v439
  %441 = vmatpush1.msra.mxu0 %v440
  %v442 = vand.u32 %v62, 4294901760
  %v443 = vsub.f32 %v62, %v442
  %444 = vmatprep.subr.mxu0 %v443
  %v445 = vand.u32 %v61, 4294901760
  %v446 = vsub.f32 %v61, %v445
  %447 = vmatpush1.msra.mxu0 %v446
  %448 = vmatprep.subr.mxu0 0.0
  %449 = vmatpush2.msra.mxu0 0.0
  %450 = vmatprep.subr.mxu0 0.0
  %451 = vmatpush2.msra.mxu0 0.0
  %452 = vmatprep.subr.mxu0 0.0
  %453 = vmatpush2.msra.mxu0 0.0
  %454 = vmatprep.subr.mxu0 0.0
  %455 = vmatpush2.msra.mxu0 0.0
  %456 = vmatprep.subr.mxu0 0.0
  %457 = vmatpush2.msra.mxu0 0.0
  %458 = vmatprep.subr.mxu0 0.0
  %459 = vmatpush2.msra.mxu0 0.0
  %460 = vmatprep.subr.mxu0 0.0
  %461 = vmatpush2.msra.mxu0 0.0
  %462 = vmatprep.subr.mxu0 0.0
  %463 = vmatpush2.msra.mxu0 0.0
  %464 = vmatprep.subr.mxu0 0.0
  %465 = vmatpush2.msra.mxu0 0.0
  %466 = vmatprep.subr.mxu0 0.0
  %467 = vmatpush2.msra.mxu0 0.0
  %468 = vmatprep.subr.mxu0 0.0
  %469 = vmatpush2.msra.mxu0 0.0
  %470 = vmatprep.subr.mxu0 0.0
  %471 = vmatpush2.msra.mxu0 0.0
  %472 = vmatprep.subr.mxu0 0.0
  %473 = vmatpush2.msra.mxu0 0.0
  %474 = vmatprep.subr.mxu0 0.0
  %475 = vmatpush2.msra.mxu0 0.0
  %476 = vmatprep.subr.mxu0 0.0
  %477 = vmatpush2.msra.mxu0 0.0
  %478 = vmatprep.subr.mxu0 0.0
  %479 = vmatpush2.msra.mxu0 0.0
  %480 = vmatprep.mubr.f32.mxu0 0.0
  %v481 = vand.u32 %v78, 4294901760
  %v482 = vsub.f32 %v78, %v481
  %483 = vmatmul.mubr.f32.gmra.mxu0 %v482
  %v484 = vpop.f32.mrf.mxu0
  %v485 = vadd.f32 %v359, %v484
  %v486 = vpop.f32.mrf.mxu0
  %v487 = vadd.f32 %v361, %v486
  %488 = vmatprep.mubr.f32.mxu0 0.0
  %v489 = vand.u32 %v80, 4294901760
  %v490 = vsub.f32 %v80, %v489
  %491 = vmatmul.mubr.f32.gmra.mxu0 %v490
  %v492 = vpop.f32.mrf.mxu0
  %v493 = vadd.f32 %v366, %v492
  %v494 = vpop.f32.mrf.mxu0
  %v495 = vadd.f32 %v368, %v494
  %496 = vmatprep.mubr.f32.mxu0 0.0
  %v497 = vand.u32 %v82, 4294901760
  %v498 = vsub.f32 %v82, %v497
  %499 = vmatmul.mubr.f32.gmra.mxu0 %v498
  %v500 = vpop.f32.mrf.mxu0
  %v501 = vadd.f32 %v373, %v500
  %v502 = vpop.f32.mrf.mxu0
  %v503 = vadd.f32 %v375, %v502
  %504 = vmatprep.mubr.f32.mxu0 0.0
  %v505 = vand.u32 %v84, 4294901760
  %v506 = vsub.f32 %v84, %v505
  %507 = vmatmul.mubr.f32.gmra.mxu0 %v506
  %v508 = vpop.f32.mrf.mxu0
  %v509 = vadd.f32 %v380, %v508
  %v510 = vpop.f32.mrf.mxu0
  %v511 = vadd.f32 %v382, %v510
  %512 = vdwg.mxu0
  %513 = vmatprep.subr.mxu0 0.0
  %514 = vmatpush1.msra.mxu0 0.0
  %515 = vmatprep.subr.mxu0 0.0
  %516 = vmatpush1.msra.mxu0 0.0
  %517 = vmatprep.subr.mxu0 0.0
  %518 = vmatpush1.msra.mxu0 0.0
  %519 = vmatprep.subr.mxu0 0.0
  %520 = vmatpush1.msra.mxu0 0.0
  %521 = vmatprep.subr.mxu0 0.0
  %522 = vmatpush1.msra.mxu0 0.0
  %523 = vmatprep.subr.mxu0 0.0
  %524 = vmatpush1.msra.mxu0 0.0
  %525 = vmatprep.subr.mxu0 0.0
  %526 = vmatpush1.msra.mxu0 0.0
  %527 = vmatprep.subr.mxu0 0.0
  %528 = vmatpush1.msra.mxu0 0.0
  %v529 = vand.u32 %v76, 4294901760
  %530 = vmatprep.subr.mxu0 %v529
  %v531 = vand.u32 %v75, 4294901760
  %532 = vmatpush1.msra.mxu0 %v531
  %v533 = vand.u32 %v74, 4294901760
  %534 = vmatprep.subr.mxu0 %v533
  %v535 = vand.u32 %v73, 4294901760
  %536 = vmatpush1.msra.mxu0 %v535
  %v537 = vand.u32 %v72, 4294901760
  %538 = vmatprep.subr.mxu0 %v537
  %v539 = vand.u32 %v71, 4294901760
  %540 = vmatpush1.msra.mxu0 %v539
  %v541 = vand.u32 %v70, 4294901760
  %542 = vmatprep.subr.mxu0 %v541
  %v543 = vand.u32 %v69, 4294901760
  %544 = vmatpush1.msra.mxu0 %v543
  %v545 = vand.u32 %v68, 4294901760
  %546 = vmatprep.subr.mxu0 %v545
  %v547 = vand.u32 %v67, 4294901760
  %548 = vmatpush1.msra.mxu0 %v547
  %v549 = vand.u32 %v66, 4294901760
  %550 = vmatprep.subr.mxu0 %v549
  %v551 = vand.u32 %v65, 4294901760
  %552 = vmatpush1.msra.mxu0 %v551
  %v553 = vand.u32 %v64, 4294901760
  %554 = vmatprep.subr.mxu0 %v553
  %v555 = vand.u32 %v63, 4294901760
  %556 = vmatpush1.msra.mxu0 %v555
  %v557 = vand.u32 %v62, 4294901760
  %558 = vmatprep.subr.mxu0 %v557
  %v559 = vand.u32 %v61, 4294901760
  %560 = vmatpush1.msra.mxu0 %v559
  %561 = vmatprep.subr.mxu0 0.0
  %562 = vmatpush2.msra.mxu0 0.0
  %563 = vmatprep.subr.mxu0 0.0
  %564 = vmatpush2.msra.mxu0 0.0
  %565 = vmatprep.subr.mxu0 0.0
  %566 = vmatpush2.msra.mxu0 0.0
  %567 = vmatprep.subr.mxu0 0.0
  %568 = vmatpush2.msra.mxu0 0.0
  %569 = vmatprep.subr.mxu0 0.0
  %570 = vmatpush2.msra.mxu0 0.0
  %571 = vmatprep.subr.mxu0 0.0
  %572 = vmatpush2.msra.mxu0 0.0
  %573 = vmatprep.subr.mxu0 0.0
  %574 = vmatpush2.msra.mxu0 0.0
  %575 = vmatprep.subr.mxu0 0.0
  %576 = vmatpush2.msra.mxu0 0.0
  %577 = vmatprep.subr.mxu0 0.0
  %578 = vmatpush2.msra.mxu0 0.0
  %579 = vmatprep.subr.mxu0 0.0
  %580 = vmatpush2.msra.mxu0 0.0
  %581 = vmatprep.subr.mxu0 0.0
  %582 = vmatpush2.msra.mxu0 0.0
  %583 = vmatprep.subr.mxu0 0.0
  %584 = vmatpush2.msra.mxu0 0.0
  %585 = vmatprep.subr.mxu0 0.0
  %586 = vmatpush2.msra.mxu0 0.0
  %587 = vmatprep.subr.mxu0 0.0
  %588 = vmatpush2.msra.mxu0 0.0
  %589 = vmatprep.subr.mxu0 0.0
  %590 = vmatpush2.msra.mxu0 0.0
  %591 = vmatprep.subr.mxu0 0.0
  %592 = vmatpush2.msra.mxu0 0.0
  %593 = vmatprep.mubr.f32.mxu0 0.0
  %v594 = vand.u32 %v78, 4294901760
  %v595 = vsub.f32 %v78, %v594
  %v596 = vand.u32 %v595, 4294901760
  %597 = vmatmul.mubr.f32.gmra.mxu0 %v596
  %v598 = vpop.f32.mrf.mxu0
  %v599 = vadd.f32 %v485, %v598
  %v600 = vpop.f32.mrf.mxu0
  %v601 = vadd.f32 %v487, %v600
  %602 = vmatprep.mubr.f32.mxu0 0.0
  %v603 = vand.u32 %v80, 4294901760
  %v604 = vsub.f32 %v80, %v603
  %v605 = vand.u32 %v604, 4294901760
  %606 = vmatmul.mubr.f32.gmra.mxu0 %v605
  %v607 = vpop.f32.mrf.mxu0
  %v608 = vadd.f32 %v493, %v607
  %v609 = vpop.f32.mrf.mxu0
  %v610 = vadd.f32 %v495, %v609
  %611 = vmatprep.mubr.f32.mxu0 0.0
  %v612 = vand.u32 %v82, 4294901760
  %v613 = vsub.f32 %v82, %v612
  %v614 = vand.u32 %v613, 4294901760
  %615 = vmatmul.mubr.f32.gmra.mxu0 %v614
  %v616 = vpop.f32.mrf.mxu0
  %v617 = vadd.f32 %v501, %v616
  %v618 = vpop.f32.mrf.mxu0
  %v619 = vadd.f32 %v503, %v618
  %620 = vmatprep.mubr.f32.mxu0 0.0
  %v621 = vand.u32 %v84, 4294901760
  %v622 = vsub.f32 %v84, %v621
  %v623 = vand.u32 %v622, 4294901760
  %624 = vmatmul.mubr.f32.gmra.mxu0 %v623
  %v625 = vpop.f32.mrf.mxu0
  %v626 = vadd.f32 %v509, %v625
  %v627 = vpop.f32.mrf.mxu0
  %v628 = vadd.f32 %v511, %v627
  %629 = vdwg.mxu0
  %630 = vmatprep.subr.mxu0 0.0
  %631 = vmatpush1.msra.mxu0 0.0
  %632 = vmatprep.subr.mxu0 0.0
  %633 = vmatpush1.msra.mxu0 0.0
  %634 = vmatprep.subr.mxu0 0.0
  %635 = vmatpush1.msra.mxu0 0.0
  %636 = vmatprep.subr.mxu0 0.0
  %637 = vmatpush1.msra.mxu0 0.0
  %638 = vmatprep.subr.mxu0 0.0
  %639 = vmatpush1.msra.mxu0 0.0
  %640 = vmatprep.subr.mxu0 0.0
  %641 = vmatpush1.msra.mxu0 0.0
  %642 = vmatprep.subr.mxu0 0.0
  %643 = vmatpush1.msra.mxu0 0.0
  %644 = vmatprep.subr.mxu0 0.0
  %645 = vmatpush1.msra.mxu0 0.0
  %v646 = vand.u32 %v76, 4294901760
  %v647 = vsub.f32 %v76, %v646
  %v648 = vand.u32 %v647, 4294901760
  %649 = vmatprep.subr.mxu0 %v648
  %v650 = vand.u32 %v75, 4294901760
  %v651 = vsub.f32 %v75, %v650
  %v652 = vand.u32 %v651, 4294901760
  %653 = vmatpush1.msra.mxu0 %v652
  %v654 = vand.u32 %v74, 4294901760
  %v655 = vsub.f32 %v74, %v654
  %v656 = vand.u32 %v655, 4294901760
  %657 = vmatprep.subr.mxu0 %v656
  %v658 = vand.u32 %v73, 4294901760
  %v659 = vsub.f32 %v73, %v658
  %v660 = vand.u32 %v659, 4294901760
  %661 = vmatpush1.msra.mxu0 %v660
  %v662 = vand.u32 %v72, 4294901760
  %v663 = vsub.f32 %v72, %v662
  %v664 = vand.u32 %v663, 4294901760
  %665 = vmatprep.subr.mxu0 %v664
  %v666 = vand.u32 %v71, 4294901760
  %v667 = vsub.f32 %v71, %v666
  %v668 = vand.u32 %v667, 4294901760
  %669 = vmatpush1.msra.mxu0 %v668
  %v670 = vand.u32 %v70, 4294901760
  %v671 = vsub.f32 %v70, %v670
  %v672 = vand.u32 %v671, 4294901760
  %673 = vmatprep.subr.mxu0 %v672
  %v674 = vand.u32 %v69, 4294901760
  %v675 = vsub.f32 %v69, %v674
  %v676 = vand.u32 %v675, 4294901760
  %677 = vmatpush1.msra.mxu0 %v676
  %v678 = vand.u32 %v68, 4294901760
  %v679 = vsub.f32 %v68, %v678
  %v680 = vand.u32 %v679, 4294901760
  %681 = vmatprep.subr.mxu0 %v680
  %v682 = vand.u32 %v67, 4294901760
  %v683 = vsub.f32 %v67, %v682
  %v684 = vand.u32 %v683, 4294901760
  %685 = vmatpush1.msra.mxu0 %v684
  %v686 = vand.u32 %v66, 4294901760
  %v687 = vsub.f32 %v66, %v686
  %v688 = vand.u32 %v687, 4294901760
  %689 = vmatprep.subr.mxu0 %v688
  %v690 = vand.u32 %v65, 4294901760
  %v691 = vsub.f32 %v65, %v690
  %v692 = vand.u32 %v691, 4294901760
  %693 = vmatpush1.msra.mxu0 %v692
  %v694 = vand.u32 %v64, 4294901760
  %v695 = vsub.f32 %v64, %v694
  %v696 = vand.u32 %v695, 4294901760
  %697 = vmatprep.subr.mxu0 %v696
  %v698 = vand.u32 %v63, 4294901760
  %v699 = vsub.f32 %v63, %v698
  %v700 = vand.u32 %v699, 4294901760
  %701 = vmatpush1.msra.mxu0 %v700
  %v702 = vand.u32 %v62, 4294901760
  %v703 = vsub.f32 %v62, %v702
  %v704 = vand.u32 %v703, 4294901760
  %705 = vmatprep.subr.mxu0 %v704
  %v706 = vand.u32 %v61, 4294901760
  %v707 = vsub.f32 %v61, %v706
  %v708 = vand.u32 %v707, 4294901760
  %709 = vmatpush1.msra.mxu0 %v708
  %710 = vmatprep.subr.mxu0 0.0
  %711 = vmatpush2.msra.mxu0 0.0
  %712 = vmatprep.subr.mxu0 0.0
  %713 = vmatpush2.msra.mxu0 0.0
  %714 = vmatprep.subr.mxu0 0.0
  %715 = vmatpush2.msra.mxu0 0.0
  %716 = vmatprep.subr.mxu0 0.0
  %717 = vmatpush2.msra.mxu0 0.0
  %718 = vmatprep.subr.mxu0 0.0
  %719 = vmatpush2.msra.mxu0 0.0
  %720 = vmatprep.subr.mxu0 0.0
  %721 = vmatpush2.msra.mxu0 0.0
  %722 = vmatprep.subr.mxu0 0.0
  %723 = vmatpush2.msra.mxu0 0.0
  %724 = vmatprep.subr.mxu0 0.0
  %725 = vmatpush2.msra.mxu0 0.0
  %726 = vmatprep.subr.mxu0 0.0
  %727 = vmatpush2.msra.mxu0 0.0
  %728 = vmatprep.subr.mxu0 0.0
  %729 = vmatpush2.msra.mxu0 0.0
  %730 = vmatprep.subr.mxu0 0.0
  %731 = vmatpush2.msra.mxu0 0.0
  %732 = vmatprep.subr.mxu0 0.0
  %733 = vmatpush2.msra.mxu0 0.0
  %734 = vmatprep.subr.mxu0 0.0
  %735 = vmatpush2.msra.mxu0 0.0
  %736 = vmatprep.subr.mxu0 0.0
  %737 = vmatpush2.msra.mxu0 0.0
  %738 = vmatprep.subr.mxu0 0.0
  %739 = vmatpush2.msra.mxu0 0.0
  %740 = vmatprep.subr.mxu0 0.0
  %741 = vmatpush2.msra.mxu0 0.0
  %742 = vmatprep.mubr.f32.mxu0 0.0
  %v743 = vand.u32 %v78, 4294901760
  %744 = vmatmul.mubr.f32.gmra.mxu0 %v743
  %v745 = vpop.f32.mrf.mxu0
  %v746 = vadd.f32 %v599, %v745
  %v747 = vpop.f32.mrf.mxu0
  %v748 = vadd.f32 %v601, %v747
  %749 = vmatprep.mubr.f32.mxu0 0.0
  %v750 = vand.u32 %v80, 4294901760
  %751 = vmatmul.mubr.f32.gmra.mxu0 %v750
  %v752 = vpop.f32.mrf.mxu0
  %v753 = vadd.f32 %v608, %v752
  %v754 = vpop.f32.mrf.mxu0
  %v755 = vadd.f32 %v610, %v754
  %756 = vmatprep.mubr.f32.mxu0 0.0
  %v757 = vand.u32 %v82, 4294901760
  %758 = vmatmul.mubr.f32.gmra.mxu0 %v757
  %v759 = vpop.f32.mrf.mxu0
  %v760 = vadd.f32 %v617, %v759
  %v761 = vpop.f32.mrf.mxu0
  %v762 = vadd.f32 %v619, %v761
  %763 = vmatprep.mubr.f32.mxu0 0.0
  %v764 = vand.u32 %v84, 4294901760
  %765 = vmatmul.mubr.f32.gmra.mxu0 %v764
  %v766 = vpop.f32.mrf.mxu0
  %v767 = vadd.f32 %v626, %v766
  %v768 = vpop.f32.mrf.mxu0
  %v769 = vadd.f32 %v628, %v768
  %770 = vdwg.mxu0
  %771 = vmatprep.subr.mxu0 0.0
  %772 = vmatpush1.msra.mxu0 0.0
  %773 = vmatprep.subr.mxu0 0.0
  %774 = vmatpush1.msra.mxu0 0.0
  %775 = vmatprep.subr.mxu0 0.0
  %776 = vmatpush1.msra.mxu0 0.0
  %777 = vmatprep.subr.mxu0 0.0
  %778 = vmatpush1.msra.mxu0 0.0
  %779 = vmatprep.subr.mxu0 0.0
  %780 = vmatpush1.msra.mxu0 0.0
  %781 = vmatprep.subr.mxu0 0.0
  %782 = vmatpush1.msra.mxu0 0.0
  %783 = vmatprep.subr.mxu0 0.0
  %784 = vmatpush1.msra.mxu0 0.0
  %785 = vmatprep.subr.mxu0 0.0
  %786 = vmatpush1.msra.mxu0 0.0
  %v787 = vand.u32 %v76, 4294901760
  %788 = vmatprep.subr.mxu0 %v787
  %v789 = vand.u32 %v75, 4294901760
  %790 = vmatpush1.msra.mxu0 %v789
  %v791 = vand.u32 %v74, 4294901760
  %792 = vmatprep.subr.mxu0 %v791
  %v793 = vand.u32 %v73, 4294901760
  %794 = vmatpush1.msra.mxu0 %v793
  %v795 = vand.u32 %v72, 4294901760
  %796 = vmatprep.subr.mxu0 %v795
  %v797 = vand.u32 %v71, 4294901760
  %798 = vmatpush1.msra.mxu0 %v797
  %v799 = vand.u32 %v70, 4294901760
  %800 = vmatprep.subr.mxu0 %v799
  %v801 = vand.u32 %v69, 4294901760
  %802 = vmatpush1.msra.mxu0 %v801
  %v803 = vand.u32 %v68, 4294901760
  %804 = vmatprep.subr.mxu0 %v803
  %v805 = vand.u32 %v67, 4294901760
  %806 = vmatpush1.msra.mxu0 %v805
  %v807 = vand.u32 %v66, 4294901760
  %808 = vmatprep.subr.mxu0 %v807
  %v809 = vand.u32 %v65, 4294901760
  %810 = vmatpush1.msra.mxu0 %v809
  %v811 = vand.u32 %v64, 4294901760
  %812 = vmatprep.subr.mxu0 %v811
  %v813 = vand.u32 %v63, 4294901760
  %814 = vmatpush1.msra.mxu0 %v813
  %v815 = vand.u32 %v62, 4294901760
  %816 = vmatprep.subr.mxu0 %v815
  %v817 = vand.u32 %v61, 4294901760
  %818 = vmatpush1.msra.mxu0 %v817
  %819 = vmatprep.subr.mxu0 0.0
  %820 = vmatpush2.msra.mxu0 0.0
  %821 = vmatprep.subr.mxu0 0.0
  %822 = vmatpush2.msra.mxu0 0.0
  %823 = vmatprep.subr.mxu0 0.0
  %824 = vmatpush2.msra.mxu0 0.0
  %825 = vmatprep.subr.mxu0 0.0
  %826 = vmatpush2.msra.mxu0 0.0
  %827 = vmatprep.subr.mxu0 0.0
  %828 = vmatpush2.msra.mxu0 0.0
  %829 = vmatprep.subr.mxu0 0.0
  %830 = vmatpush2.msra.mxu0 0.0
  %831 = vmatprep.subr.mxu0 0.0
  %832 = vmatpush2.msra.mxu0 0.0
  %833 = vmatprep.subr.mxu0 0.0
  %834 = vmatpush2.msra.mxu0 0.0
  %835 = vmatprep.subr.mxu0 0.0
  %836 = vmatpush2.msra.mxu0 0.0
  %837 = vmatprep.subr.mxu0 0.0
  %838 = vmatpush2.msra.mxu0 0.0
  %839 = vmatprep.subr.mxu0 0.0
  %840 = vmatpush2.msra.mxu0 0.0
  %841 = vmatprep.subr.mxu0 0.0
  %842 = vmatpush2.msra.mxu0 0.0
  %843 = vmatprep.subr.mxu0 0.0
  %844 = vmatpush2.msra.mxu0 0.0
  %845 = vmatprep.subr.mxu0 0.0
  %846 = vmatpush2.msra.mxu0 0.0
  %847 = vmatprep.subr.mxu0 0.0
  %848 = vmatpush2.msra.mxu0 0.0
  %849 = vmatprep.subr.mxu0 0.0
  %850 = vmatpush2.msra.mxu0 0.0
  %851 = vmatprep.mubr.f32.mxu0 0.0
  %v852 = vand.u32 %v78, 4294901760
  %853 = vmatmul.mubr.f32.gmra.mxu0 %v852
  %v854 = vpop.f32.mrf.mxu0
  %v855 = vadd.f32 %v746, %v854
  %v856 = vpop.f32.mrf.mxu0
  %v857 = vadd.f32 %v748, %v856
  %858 = vmatprep.mubr.f32.mxu0 0.0
  %v859 = vand.u32 %v80, 4294901760
  %860 = vmatmul.mubr.f32.gmra.mxu0 %v859
  %v861 = vpop.f32.mrf.mxu0
  %v862 = vadd.f32 %v753, %v861
  %v863 = vpop.f32.mrf.mxu0
  %v864 = vadd.f32 %v755, %v863
  %865 = vmatprep.mubr.f32.mxu0 0.0
  %v866 = vand.u32 %v82, 4294901760
  %867 = vmatmul.mubr.f32.gmra.mxu0 %v866
  %v868 = vpop.f32.mrf.mxu0
  %v869 = vadd.f32 %v760, %v868
  %v870 = vpop.f32.mrf.mxu0
  %v871 = vadd.f32 %v762, %v870
  %872 = vmatprep.mubr.f32.mxu0 0.0
  %v873 = vand.u32 %v84, 4294901760
  %874 = vmatmul.mubr.f32.gmra.mxu0 %v873
  %v875 = vpop.f32.mrf.mxu0
  %v876 = vadd.f32 %v767, %v875
  %v877 = vpop.f32.mrf.mxu0
  %v878 = vadd.f32 %v769, %v877
  %879 = vdwg.mxu0
  %v880 = vsel %vm77, %v20, 0
  %v882 = vsel %vm77, %v21, 0
  %v884 = vsel %vm77, %v23, 0
  %v886 = vsel %vm77, %v24, 0
  %888 = vmatprep.subr.mxu0 0.0
  %889 = vmatpush1.msra.mxu0 0.0
  %890 = vmatprep.subr.mxu0 0.0
  %891 = vmatpush1.msra.mxu0 0.0
  %892 = vmatprep.subr.mxu0 0.0
  %893 = vmatpush1.msra.mxu0 0.0
  %894 = vmatprep.subr.mxu0 0.0
  %895 = vmatpush1.msra.mxu0 0.0
  %896 = vmatprep.subr.mxu0 0.0
  %897 = vmatpush1.msra.mxu0 0.0
  %898 = vmatprep.subr.mxu0 0.0
  %899 = vmatpush1.msra.mxu0 0.0
  %900 = vmatprep.subr.mxu0 0.0
  %901 = vmatpush1.msra.mxu0 0.0
  %902 = vmatprep.subr.mxu0 0.0
  %903 = vmatpush1.msra.mxu0 0.0
  %v904 = vand.u32 %v42, 4294901760
  %905 = vmatprep.subr.mxu0 %v904
  %v906 = vand.u32 %v41, 4294901760
  %907 = vmatpush1.msra.mxu0 %v906
  %v908 = vand.u32 %v40, 4294901760
  %909 = vmatprep.subr.mxu0 %v908
  %v910 = vand.u32 %v39, 4294901760
  %911 = vmatpush1.msra.mxu0 %v910
  %v912 = vand.u32 %v38, 4294901760
  %913 = vmatprep.subr.mxu0 %v912
  %v914 = vand.u32 %v37, 4294901760
  %915 = vmatpush1.msra.mxu0 %v914
  %v916 = vand.u32 %v36, 4294901760
  %917 = vmatprep.subr.mxu0 %v916
  %v918 = vand.u32 %v35, 4294901760
  %919 = vmatpush1.msra.mxu0 %v918
  %v920 = vand.u32 %v34, 4294901760
  %921 = vmatprep.subr.mxu0 %v920
  %v922 = vand.u32 %v33, 4294901760
  %923 = vmatpush1.msra.mxu0 %v922
  %v924 = vand.u32 %v32, 4294901760
  %925 = vmatprep.subr.mxu0 %v924
  %v926 = vand.u32 %v31, 4294901760
  %927 = vmatpush1.msra.mxu0 %v926
  %v928 = vand.u32 %v30, 4294901760
  %929 = vmatprep.subr.mxu0 %v928
  %v930 = vand.u32 %v29, 4294901760
  %931 = vmatpush1.msra.mxu0 %v930
  %v932 = vand.u32 %v28, 4294901760
  %933 = vmatprep.subr.mxu0 %v932
  %v934 = vand.u32 %v27, 4294901760
  %935 = vmatpush1.msra.mxu0 %v934
  %936 = vmatprep.subr.mxu0 0.0
  %937 = vmatpush2.msra.mxu0 0.0
  %938 = vmatprep.subr.mxu0 0.0
  %939 = vmatpush2.msra.mxu0 0.0
  %940 = vmatprep.subr.mxu0 0.0
  %941 = vmatpush2.msra.mxu0 0.0
  %942 = vmatprep.subr.mxu0 0.0
  %943 = vmatpush2.msra.mxu0 0.0
  %944 = vmatprep.subr.mxu0 0.0
  %945 = vmatpush2.msra.mxu0 0.0
  %946 = vmatprep.subr.mxu0 0.0
  %947 = vmatpush2.msra.mxu0 0.0
  %948 = vmatprep.subr.mxu0 0.0
  %949 = vmatpush2.msra.mxu0 0.0
  %950 = vmatprep.subr.mxu0 0.0
  %951 = vmatpush2.msra.mxu0 0.0
  %952 = vmatprep.subr.mxu0 0.0
  %953 = vmatpush2.msra.mxu0 0.0
  %954 = vmatprep.subr.mxu0 0.0
  %955 = vmatpush2.msra.mxu0 0.0
  %956 = vmatprep.subr.mxu0 0.0
  %957 = vmatpush2.msra.mxu0 0.0
  %958 = vmatprep.subr.mxu0 0.0
  %959 = vmatpush2.msra.mxu0 0.0
  %960 = vmatprep.subr.mxu0 0.0
  %961 = vmatpush2.msra.mxu0 0.0
  %962 = vmatprep.subr.mxu0 0.0
  %963 = vmatpush2.msra.mxu0 0.0
  %964 = vmatprep.subr.mxu0 0.0
  %965 = vmatpush2.msra.mxu0 0.0
  %966 = vmatprep.subr.mxu0 0.0
  %967 = vmatpush2.msra.mxu0 0.0
  %968 = vmatprep.mubr.f32.mxu0 0.0
  %v969 = vand.u32 %v880, 4294901760
  %v970 = vsub.f32 %v880, %v969
  %v971 = vand.u32 %v970, 4294901760
  %v972 = vsub.f32 %v970, %v971
  %v973 = vand.u32 %v972, 4294901760
  %974 = vmatmul.mubr.f32.gmra.mxu0 %v973
  %v975 = vpop.f32.mrf.mxu0
  %v976 = vadd.f32 %v855, %v975
  %v977 = vpop.f32.mrf.mxu0
  %v978 = vadd.f32 %v857, %v977
  %979 = vmatprep.mubr.f32.mxu0 0.0
  %v980 = vand.u32 %v882, 4294901760
  %v981 = vsub.f32 %v882, %v980
  %v982 = vand.u32 %v981, 4294901760
  %v983 = vsub.f32 %v981, %v982
  %v984 = vand.u32 %v983, 4294901760
  %985 = vmatmul.mubr.f32.gmra.mxu0 %v984
  %v986 = vpop.f32.mrf.mxu0
  %v987 = vadd.f32 %v862, %v986
  %v988 = vpop.f32.mrf.mxu0
  %v989 = vadd.f32 %v864, %v988
  %990 = vmatprep.mubr.f32.mxu0 0.0
  %v991 = vand.u32 %v884, 4294901760
  %v992 = vsub.f32 %v884, %v991
  %v993 = vand.u32 %v992, 4294901760
  %v994 = vsub.f32 %v992, %v993
  %v995 = vand.u32 %v994, 4294901760
  %996 = vmatmul.mubr.f32.gmra.mxu0 %v995
  %v997 = vpop.f32.mrf.mxu0
  %v998 = vadd.f32 %v869, %v997
  %v999 = vpop.f32.mrf.mxu0
  %v1000 = vadd.f32 %v871, %v999
  %1001 = vmatprep.mubr.f32.mxu0 0.0
  %v1002 = vand.u32 %v886, 4294901760
  %v1003 = vsub.f32 %v886, %v1002
  %v1004 = vand.u32 %v1003, 4294901760
  %v1005 = vsub.f32 %v1003, %v1004
  %v1006 = vand.u32 %v1005, 4294901760
  %1007 = vmatmul.mubr.f32.gmra.mxu0 %v1006
  %v1008 = vpop.f32.mrf.mxu0
  %v1009 = vadd.f32 %v876, %v1008
  %v1010 = vpop.f32.mrf.mxu0
  %v1011 = vadd.f32 %v878, %v1010
  %1012 = vdwg.mxu0
  %1013 = vmatprep.subr.mxu0 0.0
  %1014 = vmatpush1.msra.mxu0 0.0
  %1015 = vmatprep.subr.mxu0 0.0
  %1016 = vmatpush1.msra.mxu0 0.0
  %1017 = vmatprep.subr.mxu0 0.0
  %1018 = vmatpush1.msra.mxu0 0.0
  %1019 = vmatprep.subr.mxu0 0.0
  %1020 = vmatpush1.msra.mxu0 0.0
  %1021 = vmatprep.subr.mxu0 0.0
  %1022 = vmatpush1.msra.mxu0 0.0
  %1023 = vmatprep.subr.mxu0 0.0
  %1024 = vmatpush1.msra.mxu0 0.0
  %1025 = vmatprep.subr.mxu0 0.0
  %1026 = vmatpush1.msra.mxu0 0.0
  %1027 = vmatprep.subr.mxu0 0.0
  %1028 = vmatpush1.msra.mxu0 0.0
  %v1029 = vand.u32 %v42, 4294901760
  %v1030 = vsub.f32 %v42, %v1029
  %v1031 = vand.u32 %v1030, 4294901760
  %v1032 = vsub.f32 %v1030, %v1031
  %v1033 = vand.u32 %v1032, 4294901760
  %1034 = vmatprep.subr.mxu0 %v1033
  %v1035 = vand.u32 %v41, 4294901760
  %v1036 = vsub.f32 %v41, %v1035
  %v1037 = vand.u32 %v1036, 4294901760
  %v1038 = vsub.f32 %v1036, %v1037
  %v1039 = vand.u32 %v1038, 4294901760
  %1040 = vmatpush1.msra.mxu0 %v1039
  %v1041 = vand.u32 %v40, 4294901760
  %v1042 = vsub.f32 %v40, %v1041
  %v1043 = vand.u32 %v1042, 4294901760
  %v1044 = vsub.f32 %v1042, %v1043
  %v1045 = vand.u32 %v1044, 4294901760
  %1046 = vmatprep.subr.mxu0 %v1045
  %v1047 = vand.u32 %v39, 4294901760
  %v1048 = vsub.f32 %v39, %v1047
  %v1049 = vand.u32 %v1048, 4294901760
  %v1050 = vsub.f32 %v1048, %v1049
  %v1051 = vand.u32 %v1050, 4294901760
  %1052 = vmatpush1.msra.mxu0 %v1051
  %v1053 = vand.u32 %v38, 4294901760
  %v1054 = vsub.f32 %v38, %v1053
  %v1055 = vand.u32 %v1054, 4294901760
  %v1056 = vsub.f32 %v1054, %v1055
  %v1057 = vand.u32 %v1056, 4294901760
  %1058 = vmatprep.subr.mxu0 %v1057
  %v1059 = vand.u32 %v37, 4294901760
  %v1060 = vsub.f32 %v37, %v1059
  %v1061 = vand.u32 %v1060, 4294901760
  %v1062 = vsub.f32 %v1060, %v1061
  %v1063 = vand.u32 %v1062, 4294901760
  %1064 = vmatpush1.msra.mxu0 %v1063
  %v1065 = vand.u32 %v36, 4294901760
  %v1066 = vsub.f32 %v36, %v1065
  %v1067 = vand.u32 %v1066, 4294901760
  %v1068 = vsub.f32 %v1066, %v1067
  %v1069 = vand.u32 %v1068, 4294901760
  %1070 = vmatprep.subr.mxu0 %v1069
  %v1071 = vand.u32 %v35, 4294901760
  %v1072 = vsub.f32 %v35, %v1071
  %v1073 = vand.u32 %v1072, 4294901760
  %v1074 = vsub.f32 %v1072, %v1073
  %v1075 = vand.u32 %v1074, 4294901760
  %1076 = vmatpush1.msra.mxu0 %v1075
  %v1077 = vand.u32 %v34, 4294901760
  %v1078 = vsub.f32 %v34, %v1077
  %v1079 = vand.u32 %v1078, 4294901760
  %v1080 = vsub.f32 %v1078, %v1079
  %v1081 = vand.u32 %v1080, 4294901760
  %1082 = vmatprep.subr.mxu0 %v1081
  %v1083 = vand.u32 %v33, 4294901760
  %v1084 = vsub.f32 %v33, %v1083
  %v1085 = vand.u32 %v1084, 4294901760
  %v1086 = vsub.f32 %v1084, %v1085
  %v1087 = vand.u32 %v1086, 4294901760
  %1088 = vmatpush1.msra.mxu0 %v1087
  %v1089 = vand.u32 %v32, 4294901760
  %v1090 = vsub.f32 %v32, %v1089
  %v1091 = vand.u32 %v1090, 4294901760
  %v1092 = vsub.f32 %v1090, %v1091
  %v1093 = vand.u32 %v1092, 4294901760
  %1094 = vmatprep.subr.mxu0 %v1093
  %v1095 = vand.u32 %v31, 4294901760
  %v1096 = vsub.f32 %v31, %v1095
  %v1097 = vand.u32 %v1096, 4294901760
  %v1098 = vsub.f32 %v1096, %v1097
  %v1099 = vand.u32 %v1098, 4294901760
  %1100 = vmatpush1.msra.mxu0 %v1099
  %v1101 = vand.u32 %v30, 4294901760
  %v1102 = vsub.f32 %v30, %v1101
  %v1103 = vand.u32 %v1102, 4294901760
  %v1104 = vsub.f32 %v1102, %v1103
  %v1105 = vand.u32 %v1104, 4294901760
  %1106 = vmatprep.subr.mxu0 %v1105
  %v1107 = vand.u32 %v29, 4294901760
  %v1108 = vsub.f32 %v29, %v1107
  %v1109 = vand.u32 %v1108, 4294901760
  %v1110 = vsub.f32 %v1108, %v1109
  %v1111 = vand.u32 %v1110, 4294901760
  %1112 = vmatpush1.msra.mxu0 %v1111
  %v1113 = vand.u32 %v28, 4294901760
  %v1114 = vsub.f32 %v28, %v1113
  %v1115 = vand.u32 %v1114, 4294901760
  %v1116 = vsub.f32 %v1114, %v1115
  %v1117 = vand.u32 %v1116, 4294901760
  %1118 = vmatprep.subr.mxu0 %v1117
  %v1119 = vand.u32 %v27, 4294901760
  %v1120 = vsub.f32 %v27, %v1119
  %v1121 = vand.u32 %v1120, 4294901760
  %v1122 = vsub.f32 %v1120, %v1121
  %v1123 = vand.u32 %v1122, 4294901760
  %1124 = vmatpush1.msra.mxu0 %v1123
  %1125 = vmatprep.subr.mxu0 0.0
  %1126 = vmatpush2.msra.mxu0 0.0
  %1127 = vmatprep.subr.mxu0 0.0
  %1128 = vmatpush2.msra.mxu0 0.0
  %1129 = vmatprep.subr.mxu0 0.0
  %1130 = vmatpush2.msra.mxu0 0.0
  %1131 = vmatprep.subr.mxu0 0.0
  %1132 = vmatpush2.msra.mxu0 0.0
  %1133 = vmatprep.subr.mxu0 0.0
  %1134 = vmatpush2.msra.mxu0 0.0
  %1135 = vmatprep.subr.mxu0 0.0
  %1136 = vmatpush2.msra.mxu0 0.0
  %1137 = vmatprep.subr.mxu0 0.0
  %1138 = vmatpush2.msra.mxu0 0.0
  %1139 = vmatprep.subr.mxu0 0.0
  %1140 = vmatpush2.msra.mxu0 0.0
  %1141 = vmatprep.subr.mxu0 0.0
  %1142 = vmatpush2.msra.mxu0 0.0
  %1143 = vmatprep.subr.mxu0 0.0
  %1144 = vmatpush2.msra.mxu0 0.0
  %1145 = vmatprep.subr.mxu0 0.0
  %1146 = vmatpush2.msra.mxu0 0.0
  %1147 = vmatprep.subr.mxu0 0.0
  %1148 = vmatpush2.msra.mxu0 0.0
  %1149 = vmatprep.subr.mxu0 0.0
  %1150 = vmatpush2.msra.mxu0 0.0
  %1151 = vmatprep.subr.mxu0 0.0
  %1152 = vmatpush2.msra.mxu0 0.0
  %1153 = vmatprep.subr.mxu0 0.0
  %1154 = vmatpush2.msra.mxu0 0.0
  %1155 = vmatprep.subr.mxu0 0.0
  %1156 = vmatpush2.msra.mxu0 0.0
  %1157 = vmatprep.mubr.f32.mxu0 0.0
  %v1158 = vand.u32 %v880, 4294901760
  %1159 = vmatmul.mubr.f32.gmra.mxu0 %v1158
  %v1160 = vpop.f32.mrf.mxu0
  %v1161 = vadd.f32 %v976, %v1160
  %v1162 = vpop.f32.mrf.mxu0
  %v1163 = vadd.f32 %v978, %v1162
  %1164 = vmatprep.mubr.f32.mxu0 0.0
  %v1165 = vand.u32 %v882, 4294901760
  %1166 = vmatmul.mubr.f32.gmra.mxu0 %v1165
  %v1167 = vpop.f32.mrf.mxu0
  %v1168 = vadd.f32 %v987, %v1167
  %v1169 = vpop.f32.mrf.mxu0
  %v1170 = vadd.f32 %v989, %v1169
  %1171 = vmatprep.mubr.f32.mxu0 0.0
  %v1172 = vand.u32 %v884, 4294901760
  %1173 = vmatmul.mubr.f32.gmra.mxu0 %v1172
  %v1174 = vpop.f32.mrf.mxu0
  %v1175 = vadd.f32 %v998, %v1174
  %v1176 = vpop.f32.mrf.mxu0
  %v1177 = vadd.f32 %v1000, %v1176
  %1178 = vmatprep.mubr.f32.mxu0 0.0
  %v1179 = vand.u32 %v886, 4294901760
  %1180 = vmatmul.mubr.f32.gmra.mxu0 %v1179
  %v1181 = vpop.f32.mrf.mxu0
  %v1182 = vadd.f32 %v1009, %v1181
  %v1183 = vpop.f32.mrf.mxu0
  %v1184 = vadd.f32 %v1011, %v1183
  %1185 = vdwg.mxu0
  %1186 = vmatprep.subr.mxu0 0.0
  %1187 = vmatpush1.msra.mxu0 0.0
  %1188 = vmatprep.subr.mxu0 0.0
  %1189 = vmatpush1.msra.mxu0 0.0
  %1190 = vmatprep.subr.mxu0 0.0
  %1191 = vmatpush1.msra.mxu0 0.0
  %1192 = vmatprep.subr.mxu0 0.0
  %1193 = vmatpush1.msra.mxu0 0.0
  %1194 = vmatprep.subr.mxu0 0.0
  %1195 = vmatpush1.msra.mxu0 0.0
  %1196 = vmatprep.subr.mxu0 0.0
  %1197 = vmatpush1.msra.mxu0 0.0
  %1198 = vmatprep.subr.mxu0 0.0
  %1199 = vmatpush1.msra.mxu0 0.0
  %1200 = vmatprep.subr.mxu0 0.0
  %1201 = vmatpush1.msra.mxu0 0.0
  %v1202 = vand.u32 %v42, 4294901760
  %v1203 = vsub.f32 %v42, %v1202
  %1204 = vmatprep.subr.mxu0 %v1203
  %v1205 = vand.u32 %v41, 4294901760
  %v1206 = vsub.f32 %v41, %v1205
  %1207 = vmatpush1.msra.mxu0 %v1206
  %v1208 = vand.u32 %v40, 4294901760
  %v1209 = vsub.f32 %v40, %v1208
  %1210 = vmatprep.subr.mxu0 %v1209
  %v1211 = vand.u32 %v39, 4294901760
  %v1212 = vsub.f32 %v39, %v1211
  %1213 = vmatpush1.msra.mxu0 %v1212
  %v1214 = vand.u32 %v38, 4294901760
  %v1215 = vsub.f32 %v38, %v1214
  %1216 = vmatprep.subr.mxu0 %v1215
  %v1217 = vand.u32 %v37, 4294901760
  %v1218 = vsub.f32 %v37, %v1217
  %1219 = vmatpush1.msra.mxu0 %v1218
  %v1220 = vand.u32 %v36, 4294901760
  %v1221 = vsub.f32 %v36, %v1220
  %1222 = vmatprep.subr.mxu0 %v1221
  %v1223 = vand.u32 %v35, 4294901760
  %v1224 = vsub.f32 %v35, %v1223
  %1225 = vmatpush1.msra.mxu0 %v1224
  %v1226 = vand.u32 %v34, 4294901760
  %v1227 = vsub.f32 %v34, %v1226
  %1228 = vmatprep.subr.mxu0 %v1227
  %v1229 = vand.u32 %v33, 4294901760
  %v1230 = vsub.f32 %v33, %v1229
  %1231 = vmatpush1.msra.mxu0 %v1230
  %v1232 = vand.u32 %v32, 4294901760
  %v1233 = vsub.f32 %v32, %v1232
  %1234 = vmatprep.subr.mxu0 %v1233
  %v1235 = vand.u32 %v31, 4294901760
  %v1236 = vsub.f32 %v31, %v1235
  %1237 = vmatpush1.msra.mxu0 %v1236
  %v1238 = vand.u32 %v30, 4294901760
  %v1239 = vsub.f32 %v30, %v1238
  %1240 = vmatprep.subr.mxu0 %v1239
  %v1241 = vand.u32 %v29, 4294901760
  %v1242 = vsub.f32 %v29, %v1241
  %1243 = vmatpush1.msra.mxu0 %v1242
  %v1244 = vand.u32 %v28, 4294901760
  %v1245 = vsub.f32 %v28, %v1244
  %1246 = vmatprep.subr.mxu0 %v1245
  %v1247 = vand.u32 %v27, 4294901760
  %v1248 = vsub.f32 %v27, %v1247
  %1249 = vmatpush1.msra.mxu0 %v1248
  %1250 = vmatprep.subr.mxu0 0.0
  %1251 = vmatpush2.msra.mxu0 0.0
  %1252 = vmatprep.subr.mxu0 0.0
  %1253 = vmatpush2.msra.mxu0 0.0
  %1254 = vmatprep.subr.mxu0 0.0
  %1255 = vmatpush2.msra.mxu0 0.0
  %1256 = vmatprep.subr.mxu0 0.0
  %1257 = vmatpush2.msra.mxu0 0.0
  %1258 = vmatprep.subr.mxu0 0.0
  %1259 = vmatpush2.msra.mxu0 0.0
  %1260 = vmatprep.subr.mxu0 0.0
  %1261 = vmatpush2.msra.mxu0 0.0
  %1262 = vmatprep.subr.mxu0 0.0
  %1263 = vmatpush2.msra.mxu0 0.0
  %1264 = vmatprep.subr.mxu0 0.0
  %1265 = vmatpush2.msra.mxu0 0.0
  %1266 = vmatprep.subr.mxu0 0.0
  %1267 = vmatpush2.msra.mxu0 0.0
  %1268 = vmatprep.subr.mxu0 0.0
  %1269 = vmatpush2.msra.mxu0 0.0
  %1270 = vmatprep.subr.mxu0 0.0
  %1271 = vmatpush2.msra.mxu0 0.0
  %1272 = vmatprep.subr.mxu0 0.0
  %1273 = vmatpush2.msra.mxu0 0.0
  %1274 = vmatprep.subr.mxu0 0.0
  %1275 = vmatpush2.msra.mxu0 0.0
  %1276 = vmatprep.subr.mxu0 0.0
  %1277 = vmatpush2.msra.mxu0 0.0
  %1278 = vmatprep.subr.mxu0 0.0
  %1279 = vmatpush2.msra.mxu0 0.0
  %1280 = vmatprep.subr.mxu0 0.0
  %1281 = vmatpush2.msra.mxu0 0.0
  %1282 = vmatprep.mubr.f32.mxu0 0.0
  %v1283 = vand.u32 %v880, 4294901760
  %v1284 = vsub.f32 %v880, %v1283
  %1285 = vmatmul.mubr.f32.gmra.mxu0 %v1284
  %v1286 = vpop.f32.mrf.mxu0
  %v1287 = vadd.f32 %v1161, %v1286
  %v1288 = vpop.f32.mrf.mxu0
  %v1289 = vadd.f32 %v1163, %v1288
  %1290 = vmatprep.mubr.f32.mxu0 0.0
  %v1291 = vand.u32 %v882, 4294901760
  %v1292 = vsub.f32 %v882, %v1291
  %1293 = vmatmul.mubr.f32.gmra.mxu0 %v1292
  %v1294 = vpop.f32.mrf.mxu0
  %v1295 = vadd.f32 %v1168, %v1294
  %v1296 = vpop.f32.mrf.mxu0
  %v1297 = vadd.f32 %v1170, %v1296
  %1298 = vmatprep.mubr.f32.mxu0 0.0
  %v1299 = vand.u32 %v884, 4294901760
  %v1300 = vsub.f32 %v884, %v1299
  %1301 = vmatmul.mubr.f32.gmra.mxu0 %v1300
  %v1302 = vpop.f32.mrf.mxu0
  %v1303 = vadd.f32 %v1175, %v1302
  %v1304 = vpop.f32.mrf.mxu0
  %v1305 = vadd.f32 %v1177, %v1304
  %1306 = vmatprep.mubr.f32.mxu0 0.0
  %v1307 = vand.u32 %v886, 4294901760
  %v1308 = vsub.f32 %v886, %v1307
  %1309 = vmatmul.mubr.f32.gmra.mxu0 %v1308
  %v1310 = vpop.f32.mrf.mxu0
  %v1311 = vadd.f32 %v1182, %v1310
  %v1312 = vpop.f32.mrf.mxu0
  %v1313 = vadd.f32 %v1184, %v1312
  %1314 = vdwg.mxu0
  %1315 = vmatprep.subr.mxu0 0.0
  %1316 = vmatpush1.msra.mxu0 0.0
  %1317 = vmatprep.subr.mxu0 0.0
  %1318 = vmatpush1.msra.mxu0 0.0
  %1319 = vmatprep.subr.mxu0 0.0
  %1320 = vmatpush1.msra.mxu0 0.0
  %1321 = vmatprep.subr.mxu0 0.0
  %1322 = vmatpush1.msra.mxu0 0.0
  %1323 = vmatprep.subr.mxu0 0.0
  %1324 = vmatpush1.msra.mxu0 0.0
  %1325 = vmatprep.subr.mxu0 0.0
  %1326 = vmatpush1.msra.mxu0 0.0
  %1327 = vmatprep.subr.mxu0 0.0
  %1328 = vmatpush1.msra.mxu0 0.0
  %1329 = vmatprep.subr.mxu0 0.0
  %1330 = vmatpush1.msra.mxu0 0.0
  %v1331 = vand.u32 %v42, 4294901760
  %1332 = vmatprep.subr.mxu0 %v1331
  %v1333 = vand.u32 %v41, 4294901760
  %1334 = vmatpush1.msra.mxu0 %v1333
  %v1335 = vand.u32 %v40, 4294901760
  %1336 = vmatprep.subr.mxu0 %v1335
  %v1337 = vand.u32 %v39, 4294901760
  %1338 = vmatpush1.msra.mxu0 %v1337
  %v1339 = vand.u32 %v38, 4294901760
  %1340 = vmatprep.subr.mxu0 %v1339
  %v1341 = vand.u32 %v37, 4294901760
  %1342 = vmatpush1.msra.mxu0 %v1341
  %v1343 = vand.u32 %v36, 4294901760
  %1344 = vmatprep.subr.mxu0 %v1343
  %v1345 = vand.u32 %v35, 4294901760
  %1346 = vmatpush1.msra.mxu0 %v1345
  %v1347 = vand.u32 %v34, 4294901760
  %1348 = vmatprep.subr.mxu0 %v1347
  %v1349 = vand.u32 %v33, 4294901760
  %1350 = vmatpush1.msra.mxu0 %v1349
  %v1351 = vand.u32 %v32, 4294901760
  %1352 = vmatprep.subr.mxu0 %v1351
  %v1353 = vand.u32 %v31, 4294901760
  %1354 = vmatpush1.msra.mxu0 %v1353
  %v1355 = vand.u32 %v30, 4294901760
  %1356 = vmatprep.subr.mxu0 %v1355
  %v1357 = vand.u32 %v29, 4294901760
  %1358 = vmatpush1.msra.mxu0 %v1357
  %v1359 = vand.u32 %v28, 4294901760
  %1360 = vmatprep.subr.mxu0 %v1359
  %v1361 = vand.u32 %v27, 4294901760
  %1362 = vmatpush1.msra.mxu0 %v1361
  %1363 = vmatprep.subr.mxu0 0.0
  %1364 = vmatpush2.msra.mxu0 0.0
  %1365 = vmatprep.subr.mxu0 0.0
  %1366 = vmatpush2.msra.mxu0 0.0
  %1367 = vmatprep.subr.mxu0 0.0
  %1368 = vmatpush2.msra.mxu0 0.0
  %1369 = vmatprep.subr.mxu0 0.0
  %1370 = vmatpush2.msra.mxu0 0.0
  %1371 = vmatprep.subr.mxu0 0.0
  %1372 = vmatpush2.msra.mxu0 0.0
  %1373 = vmatprep.subr.mxu0 0.0
  %1374 = vmatpush2.msra.mxu0 0.0
  %1375 = vmatprep.subr.mxu0 0.0
  %1376 = vmatpush2.msra.mxu0 0.0
  %1377 = vmatprep.subr.mxu0 0.0
  %1378 = vmatpush2.msra.mxu0 0.0
  %1379 = vmatprep.subr.mxu0 0.0
  %1380 = vmatpush2.msra.mxu0 0.0
  %1381 = vmatprep.subr.mxu0 0.0
  %1382 = vmatpush2.msra.mxu0 0.0
  %1383 = vmatprep.subr.mxu0 0.0
  %1384 = vmatpush2.msra.mxu0 0.0
  %1385 = vmatprep.subr.mxu0 0.0
  %1386 = vmatpush2.msra.mxu0 0.0
  %1387 = vmatprep.subr.mxu0 0.0
  %1388 = vmatpush2.msra.mxu0 0.0
  %1389 = vmatprep.subr.mxu0 0.0
  %1390 = vmatpush2.msra.mxu0 0.0
  %1391 = vmatprep.subr.mxu0 0.0
  %1392 = vmatpush2.msra.mxu0 0.0
  %1393 = vmatprep.subr.mxu0 0.0
  %1394 = vmatpush2.msra.mxu0 0.0
  %1395 = vmatprep.mubr.f32.mxu0 0.0
  %v1396 = vand.u32 %v880, 4294901760
  %v1397 = vsub.f32 %v880, %v1396
  %v1398 = vand.u32 %v1397, 4294901760
  %1399 = vmatmul.mubr.f32.gmra.mxu0 %v1398
  %v1400 = vpop.f32.mrf.mxu0
  %v1401 = vadd.f32 %v1287, %v1400
  %v1402 = vpop.f32.mrf.mxu0
  %v1403 = vadd.f32 %v1289, %v1402
  %1404 = vmatprep.mubr.f32.mxu0 0.0
  %v1405 = vand.u32 %v882, 4294901760
  %v1406 = vsub.f32 %v882, %v1405
  %v1407 = vand.u32 %v1406, 4294901760
  %1408 = vmatmul.mubr.f32.gmra.mxu0 %v1407
  %v1409 = vpop.f32.mrf.mxu0
  %v1410 = vadd.f32 %v1295, %v1409
  %v1411 = vpop.f32.mrf.mxu0
  %v1412 = vadd.f32 %v1297, %v1411
  %1413 = vmatprep.mubr.f32.mxu0 0.0
  %v1414 = vand.u32 %v884, 4294901760
  %v1415 = vsub.f32 %v884, %v1414
  %v1416 = vand.u32 %v1415, 4294901760
  %1417 = vmatmul.mubr.f32.gmra.mxu0 %v1416
  %v1418 = vpop.f32.mrf.mxu0
  %v1419 = vadd.f32 %v1303, %v1418
  %v1420 = vpop.f32.mrf.mxu0
  %v1421 = vadd.f32 %v1305, %v1420
  %1422 = vmatprep.mubr.f32.mxu0 0.0
  %v1423 = vand.u32 %v886, 4294901760
  %v1424 = vsub.f32 %v886, %v1423
  %v1425 = vand.u32 %v1424, 4294901760
  %1426 = vmatmul.mubr.f32.gmra.mxu0 %v1425
  %v1427 = vpop.f32.mrf.mxu0
  %v1428 = vadd.f32 %v1311, %v1427
  %v1429 = vpop.f32.mrf.mxu0
  %v1430 = vadd.f32 %v1313, %v1429
  %1431 = vdwg.mxu0
  %1432 = vmatprep.subr.mxu0 0.0
  %1433 = vmatpush1.msra.mxu0 0.0
  %1434 = vmatprep.subr.mxu0 0.0
  %1435 = vmatpush1.msra.mxu0 0.0
  %1436 = vmatprep.subr.mxu0 0.0
  %1437 = vmatpush1.msra.mxu0 0.0
  %1438 = vmatprep.subr.mxu0 0.0
  %1439 = vmatpush1.msra.mxu0 0.0
  %1440 = vmatprep.subr.mxu0 0.0
  %1441 = vmatpush1.msra.mxu0 0.0
  %1442 = vmatprep.subr.mxu0 0.0
  %1443 = vmatpush1.msra.mxu0 0.0
  %1444 = vmatprep.subr.mxu0 0.0
  %1445 = vmatpush1.msra.mxu0 0.0
  %1446 = vmatprep.subr.mxu0 0.0
  %1447 = vmatpush1.msra.mxu0 0.0
  %v1448 = vand.u32 %v42, 4294901760
  %v1449 = vsub.f32 %v42, %v1448
  %v1450 = vand.u32 %v1449, 4294901760
  %1451 = vmatprep.subr.mxu0 %v1450
  %v1452 = vand.u32 %v41, 4294901760
  %v1453 = vsub.f32 %v41, %v1452
  %v1454 = vand.u32 %v1453, 4294901760
  %1455 = vmatpush1.msra.mxu0 %v1454
  %v1456 = vand.u32 %v40, 4294901760
  %v1457 = vsub.f32 %v40, %v1456
  %v1458 = vand.u32 %v1457, 4294901760
  %1459 = vmatprep.subr.mxu0 %v1458
  %v1460 = vand.u32 %v39, 4294901760
  %v1461 = vsub.f32 %v39, %v1460
  %v1462 = vand.u32 %v1461, 4294901760
  %1463 = vmatpush1.msra.mxu0 %v1462
  %v1464 = vand.u32 %v38, 4294901760
  %v1465 = vsub.f32 %v38, %v1464
  %v1466 = vand.u32 %v1465, 4294901760
  %1467 = vmatprep.subr.mxu0 %v1466
  %v1468 = vand.u32 %v37, 4294901760
  %v1469 = vsub.f32 %v37, %v1468
  %v1470 = vand.u32 %v1469, 4294901760
  %1471 = vmatpush1.msra.mxu0 %v1470
  %v1472 = vand.u32 %v36, 4294901760
  %v1473 = vsub.f32 %v36, %v1472
  %v1474 = vand.u32 %v1473, 4294901760
  %1475 = vmatprep.subr.mxu0 %v1474
  %v1476 = vand.u32 %v35, 4294901760
  %v1477 = vsub.f32 %v35, %v1476
  %v1478 = vand.u32 %v1477, 4294901760
  %1479 = vmatpush1.msra.mxu0 %v1478
  %v1480 = vand.u32 %v34, 4294901760
  %v1481 = vsub.f32 %v34, %v1480
  %v1482 = vand.u32 %v1481, 4294901760
  %1483 = vmatprep.subr.mxu0 %v1482
  %v1484 = vand.u32 %v33, 4294901760
  %v1485 = vsub.f32 %v33, %v1484
  %v1486 = vand.u32 %v1485, 4294901760
  %1487 = vmatpush1.msra.mxu0 %v1486
  %v1488 = vand.u32 %v32, 4294901760
  %v1489 = vsub.f32 %v32, %v1488
  %v1490 = vand.u32 %v1489, 4294901760
  %1491 = vmatprep.subr.mxu0 %v1490
  %v1492 = vand.u32 %v31, 4294901760
  %v1493 = vsub.f32 %v31, %v1492
  %v1494 = vand.u32 %v1493, 4294901760
  %1495 = vmatpush1.msra.mxu0 %v1494
  %v1496 = vand.u32 %v30, 4294901760
  %v1497 = vsub.f32 %v30, %v1496
  %v1498 = vand.u32 %v1497, 4294901760
  %1499 = vmatprep.subr.mxu0 %v1498
  %v1500 = vand.u32 %v29, 4294901760
  %v1501 = vsub.f32 %v29, %v1500
  %v1502 = vand.u32 %v1501, 4294901760
  %1503 = vmatpush1.msra.mxu0 %v1502
  %v1504 = vand.u32 %v28, 4294901760
  %v1505 = vsub.f32 %v28, %v1504
  %v1506 = vand.u32 %v1505, 4294901760
  %1507 = vmatprep.subr.mxu0 %v1506
  %v1508 = vand.u32 %v27, 4294901760
  %v1509 = vsub.f32 %v27, %v1508
  %v1510 = vand.u32 %v1509, 4294901760
  %1511 = vmatpush1.msra.mxu0 %v1510
  %1512 = vmatprep.subr.mxu0 0.0
  %1513 = vmatpush2.msra.mxu0 0.0
  %1514 = vmatprep.subr.mxu0 0.0
  %1515 = vmatpush2.msra.mxu0 0.0
  %1516 = vmatprep.subr.mxu0 0.0
  %1517 = vmatpush2.msra.mxu0 0.0
  %1518 = vmatprep.subr.mxu0 0.0
  %1519 = vmatpush2.msra.mxu0 0.0
  %1520 = vmatprep.subr.mxu0 0.0
  %1521 = vmatpush2.msra.mxu0 0.0
  %1522 = vmatprep.subr.mxu0 0.0
  %1523 = vmatpush2.msra.mxu0 0.0
  %1524 = vmatprep.subr.mxu0 0.0
  %1525 = vmatpush2.msra.mxu0 0.0
  %1526 = vmatprep.subr.mxu0 0.0
  %1527 = vmatpush2.msra.mxu0 0.0
  %1528 = vmatprep.subr.mxu0 0.0
  %1529 = vmatpush2.msra.mxu0 0.0
  %1530 = vmatprep.subr.mxu0 0.0
  %1531 = vmatpush2.msra.mxu0 0.0
  %1532 = vmatprep.subr.mxu0 0.0
  %1533 = vmatpush2.msra.mxu0 0.0
  %1534 = vmatprep.subr.mxu0 0.0
  %1535 = vmatpush2.msra.mxu0 0.0
  %1536 = vmatprep.subr.mxu0 0.0
  %1537 = vmatpush2.msra.mxu0 0.0
  %1538 = vmatprep.subr.mxu0 0.0
  %1539 = vmatpush2.msra.mxu0 0.0
  %1540 = vmatprep.subr.mxu0 0.0
  %1541 = vmatpush2.msra.mxu0 0.0
  %1542 = vmatprep.subr.mxu0 0.0
  %1543 = vmatpush2.msra.mxu0 0.0
  %1544 = vmatprep.mubr.f32.mxu0 0.0
  %v1545 = vand.u32 %v880, 4294901760
  %1546 = vmatmul.mubr.f32.gmra.mxu0 %v1545
  %v1547 = vpop.f32.mrf.mxu0
  %v1548 = vadd.f32 %v1401, %v1547
  %v1549 = vpop.f32.mrf.mxu0
  %v1550 = vadd.f32 %v1403, %v1549
  %1551 = vmatprep.mubr.f32.mxu0 0.0
  %v1552 = vand.u32 %v882, 4294901760
  %1553 = vmatmul.mubr.f32.gmra.mxu0 %v1552
  %v1554 = vpop.f32.mrf.mxu0
  %v1555 = vadd.f32 %v1410, %v1554
  %v1556 = vpop.f32.mrf.mxu0
  %v1557 = vadd.f32 %v1412, %v1556
  %1558 = vmatprep.mubr.f32.mxu0 0.0
  %v1559 = vand.u32 %v884, 4294901760
  %1560 = vmatmul.mubr.f32.gmra.mxu0 %v1559
  %v1561 = vpop.f32.mrf.mxu0
  %v1562 = vadd.f32 %v1419, %v1561
  %v1563 = vpop.f32.mrf.mxu0
  %v1564 = vadd.f32 %v1421, %v1563
  %1565 = vmatprep.mubr.f32.mxu0 0.0
  %v1566 = vand.u32 %v886, 4294901760
  %1567 = vmatmul.mubr.f32.gmra.mxu0 %v1566
  %v1568 = vpop.f32.mrf.mxu0
  %v1569 = vadd.f32 %v1428, %v1568
  %v1570 = vpop.f32.mrf.mxu0
  %v1571 = vadd.f32 %v1430, %v1570
  %1572 = vdwg.mxu0
  %1573 = vmatprep.subr.mxu0 0.0
  %1574 = vmatpush1.msra.mxu0 0.0
  %1575 = vmatprep.subr.mxu0 0.0
  %1576 = vmatpush1.msra.mxu0 0.0
  %1577 = vmatprep.subr.mxu0 0.0
  %1578 = vmatpush1.msra.mxu0 0.0
  %1579 = vmatprep.subr.mxu0 0.0
  %1580 = vmatpush1.msra.mxu0 0.0
  %1581 = vmatprep.subr.mxu0 0.0
  %1582 = vmatpush1.msra.mxu0 0.0
  %1583 = vmatprep.subr.mxu0 0.0
  %1584 = vmatpush1.msra.mxu0 0.0
  %1585 = vmatprep.subr.mxu0 0.0
  %1586 = vmatpush1.msra.mxu0 0.0
  %1587 = vmatprep.subr.mxu0 0.0
  %1588 = vmatpush1.msra.mxu0 0.0
  %v1589 = vand.u32 %v42, 4294901760
  %1590 = vmatprep.subr.mxu0 %v1589
  %v1591 = vand.u32 %v41, 4294901760
  %1592 = vmatpush1.msra.mxu0 %v1591
  %v1593 = vand.u32 %v40, 4294901760
  %1594 = vmatprep.subr.mxu0 %v1593
  %v1595 = vand.u32 %v39, 4294901760
  %1596 = vmatpush1.msra.mxu0 %v1595
  %v1597 = vand.u32 %v38, 4294901760
  %1598 = vmatprep.subr.mxu0 %v1597
  %v1599 = vand.u32 %v37, 4294901760
  %1600 = vmatpush1.msra.mxu0 %v1599
  %v1601 = vand.u32 %v36, 4294901760
  %1602 = vmatprep.subr.mxu0 %v1601
  %v1603 = vand.u32 %v35, 4294901760
  %1604 = vmatpush1.msra.mxu0 %v1603
  %v1605 = vand.u32 %v34, 4294901760
  %1606 = vmatprep.subr.mxu0 %v1605
  %v1607 = vand.u32 %v33, 4294901760
  %1608 = vmatpush1.msra.mxu0 %v1607
  %v1609 = vand.u32 %v32, 4294901760
  %1610 = vmatprep.subr.mxu0 %v1609
  %v1611 = vand.u32 %v31, 4294901760
  %1612 = vmatpush1.msra.mxu0 %v1611
  %v1613 = vand.u32 %v30, 4294901760
  %1614 = vmatprep.subr.mxu0 %v1613
  %v1615 = vand.u32 %v29, 4294901760
  %1616 = vmatpush1.msra.mxu0 %v1615
  %v1617 = vand.u32 %v28, 4294901760
  %1618 = vmatprep.subr.mxu0 %v1617
  %v1619 = vand.u32 %v27, 4294901760
  %1620 = vmatpush1.msra.mxu0 %v1619
  %1621 = vmatprep.subr.mxu0 0.0
  %1622 = vmatpush2.msra.mxu0 0.0
  %1623 = vmatprep.subr.mxu0 0.0
  %1624 = vmatpush2.msra.mxu0 0.0
  %1625 = vmatprep.subr.mxu0 0.0
  %1626 = vmatpush2.msra.mxu0 0.0
  %1627 = vmatprep.subr.mxu0 0.0
  %1628 = vmatpush2.msra.mxu0 0.0
  %1629 = vmatprep.subr.mxu0 0.0
  %1630 = vmatpush2.msra.mxu0 0.0
  %1631 = vmatprep.subr.mxu0 0.0
  %1632 = vmatpush2.msra.mxu0 0.0
  %1633 = vmatprep.subr.mxu0 0.0
  %1634 = vmatpush2.msra.mxu0 0.0
  %1635 = vmatprep.subr.mxu0 0.0
  %1636 = vmatpush2.msra.mxu0 0.0
  %1637 = vmatprep.subr.mxu0 0.0
  %1638 = vmatpush2.msra.mxu0 0.0
  %1639 = vmatprep.subr.mxu0 0.0
  %1640 = vmatpush2.msra.mxu0 0.0
  %1641 = vmatprep.subr.mxu0 0.0
  %1642 = vmatpush2.msra.mxu0 0.0
  %1643 = vmatprep.subr.mxu0 0.0
  %1644 = vmatpush2.msra.mxu0 0.0
  %1645 = vmatprep.subr.mxu0 0.0
  %1646 = vmatpush2.msra.mxu0 0.0
  %1647 = vmatprep.subr.mxu0 0.0
  %1648 = vmatpush2.msra.mxu0 0.0
  %1649 = vmatprep.subr.mxu0 0.0
  %1650 = vmatpush2.msra.mxu0 0.0
  %1651 = vmatprep.subr.mxu0 0.0
  %1652 = vmatpush2.msra.mxu0 0.0
  %1653 = vmatprep.mubr.f32.mxu0 0.0
  %v1654 = vand.u32 %v880, 4294901760
  %1655 = vmatmul.mubr.f32.gmra.mxu0 %v1654
  %v1656 = vpop.f32.mrf.mxu0
  %v1657 = vadd.f32 %v1548, %v1656
  %v1658 = vpop.f32.mrf.mxu0
  %v1659 = vadd.f32 %v1550, %v1658
  %1660 = vmatprep.mubr.f32.mxu0 0.0
  %v1661 = vand.u32 %v882, 4294901760
  %1662 = vmatmul.mubr.f32.gmra.mxu0 %v1661
  %v1663 = vpop.f32.mrf.mxu0
  %v1664 = vadd.f32 %v1555, %v1663
  %v1665 = vpop.f32.mrf.mxu0
  %v1666 = vadd.f32 %v1557, %v1665
  %1667 = vmatprep.mubr.f32.mxu0 0.0
  %v1668 = vand.u32 %v884, 4294901760
  %1669 = vmatmul.mubr.f32.gmra.mxu0 %v1668
  %v1670 = vpop.f32.mrf.mxu0
  %v1671 = vadd.f32 %v1562, %v1670
  %v1672 = vpop.f32.mrf.mxu0
  %v1673 = vadd.f32 %v1564, %v1672
  %1674 = vmatprep.mubr.f32.mxu0 0.0
  %v1675 = vand.u32 %v886, 4294901760
  %1676 = vmatmul.mubr.f32.gmra.mxu0 %v1675
  %v1677 = vpop.f32.mrf.mxu0
  %v1678 = vadd.f32 %v1569, %v1677
  %v1679 = vpop.f32.mrf.mxu0
  %v1680 = vadd.f32 %v1571, %v1679
  %1681 = vdwg.mxu0
  %vm1682 = vcmask 1045504
  %v1683 = vrot.slane %v20, 2
  %v1684 = vrot.slane %v21, 2
  %v1685 = vsel %vm1682, %v1683, %v1684
  %v1686 = vrot.slane %v22, 2
  %v1687 = vsel %vm1682, %v1684, %v1686
  %v1688 = vrot.slane %v23, 2
  %v1689 = vrot.slane %v24, 2
  %v1690 = vsel %vm1682, %v1688, %v1689
  %v1691 = vrot.slane %v25, 2
  %v1692 = vsel %vm1682, %v1689, %v1691
  %s1693 = scalar_lea.vmem %s1, 256
  %v1694 = vld [vmem:[%s1693] sm:$0xff]
  %v1695 = vld [vmem:[%s1693 + $0x8] sm:$0xff]
  %v1696 = vld [vmem:[%s1693 + $0x10] sm:$0xff]
  %v1697 = vld [vmem:[%s1693 + $0x18] sm:$0xff]
  %v1698 = vld [vmem:[%s1693 + $0x20] sm:$0xff]
  %v1699 = vld [vmem:[%s1693 + $0x28] sm:$0xff]
  %v1700 = vld [vmem:[%s1693 + $0x30] sm:$0xff]
  %v1701 = vld [vmem:[%s1693 + $0x38] sm:$0xff]
  %v1702 = vld [vmem:[%s1693 + $0x40] sm:$0xff]
  %v1703 = vld [vmem:[%s1693 + $0x48] sm:$0xff]
  %v1704 = vld [vmem:[%s1693 + $0x50] sm:$0xff]
  %v1705 = vld [vmem:[%s1693 + $0x58] sm:$0xff]
  %v1706 = vld [vmem:[%s1693 + $0x60] sm:$0xff]
  %v1707 = vld [vmem:[%s1693 + $0x68] sm:$0xff]
  %v1708 = vld [vmem:[%s1693 + $0x70] sm:$0xff]
  %v1709 = vld [vmem:[%s1693 + $0x78] sm:$0xff]
  %v1710 = vsel %vm77, %v1685, 0
  %v1712 = vsel %vm77, %v1687, 0
  %v1714 = vsel %vm77, %v1690, 0
  %v1716 = vsel %vm77, %v1692, 0
  %1718 = vmatprep.subr.mxu0 0.0
  %1719 = vmatpush1.msra.mxu0 0.0
  %1720 = vmatprep.subr.mxu0 0.0
  %1721 = vmatpush1.msra.mxu0 0.0
  %1722 = vmatprep.subr.mxu0 0.0
  %1723 = vmatpush1.msra.mxu0 0.0
  %1724 = vmatprep.subr.mxu0 0.0
  %1725 = vmatpush1.msra.mxu0 0.0
  %1726 = vmatprep.subr.mxu0 0.0
  %1727 = vmatpush1.msra.mxu0 0.0
  %1728 = vmatprep.subr.mxu0 0.0
  %1729 = vmatpush1.msra.mxu0 0.0
  %1730 = vmatprep.subr.mxu0 0.0
  %1731 = vmatpush1.msra.mxu0 0.0
  %1732 = vmatprep.subr.mxu0 0.0
  %1733 = vmatpush1.msra.mxu0 0.0
  %v1734 = vand.u32 %v1709, 4294901760
  %1735 = vmatprep.subr.mxu0 %v1734
  %v1736 = vand.u32 %v1708, 4294901760
  %1737 = vmatpush1.msra.mxu0 %v1736
  %v1738 = vand.u32 %v1707, 4294901760
  %1739 = vmatprep.subr.mxu0 %v1738
  %v1740 = vand.u32 %v1706, 4294901760
  %1741 = vmatpush1.msra.mxu0 %v1740
  %v1742 = vand.u32 %v1705, 4294901760
  %1743 = vmatprep.subr.mxu0 %v1742
  %v1744 = vand.u32 %v1704, 4294901760
  %1745 = vmatpush1.msra.mxu0 %v1744
  %v1746 = vand.u32 %v1703, 4294901760
  %1747 = vmatprep.subr.mxu0 %v1746
  %v1748 = vand.u32 %v1702, 4294901760
  %1749 = vmatpush1.msra.mxu0 %v1748
  %v1750 = vand.u32 %v1701, 4294901760
  %1751 = vmatprep.subr.mxu0 %v1750
  %v1752 = vand.u32 %v1700, 4294901760
  %1753 = vmatpush1.msra.mxu0 %v1752
  %v1754 = vand.u32 %v1699, 4294901760
  %1755 = vmatprep.subr.mxu0 %v1754
  %v1756 = vand.u32 %v1698, 4294901760
  %1757 = vmatpush1.msra.mxu0 %v1756
  %v1758 = vand.u32 %v1697, 4294901760
  %1759 = vmatprep.subr.mxu0 %v1758
  %v1760 = vand.u32 %v1696, 4294901760
  %1761 = vmatpush1.msra.mxu0 %v1760
  %v1762 = vand.u32 %v1695, 4294901760
  %1763 = vmatprep.subr.mxu0 %v1762
  %v1764 = vand.u32 %v1694, 4294901760
  %1765 = vmatpush1.msra.mxu0 %v1764
  %1766 = vmatprep.subr.mxu0 0.0
  %1767 = vmatpush2.msra.mxu0 0.0
  %1768 = vmatprep.subr.mxu0 0.0
  %1769 = vmatpush2.msra.mxu0 0.0
  %1770 = vmatprep.subr.mxu0 0.0
  %1771 = vmatpush2.msra.mxu0 0.0
  %1772 = vmatprep.subr.mxu0 0.0
  %1773 = vmatpush2.msra.mxu0 0.0
  %1774 = vmatprep.subr.mxu0 0.0
  %1775 = vmatpush2.msra.mxu0 0.0
  %1776 = vmatprep.subr.mxu0 0.0
  %1777 = vmatpush2.msra.mxu0 0.0
  %1778 = vmatprep.subr.mxu0 0.0
  %1779 = vmatpush2.msra.mxu0 0.0
  %1780 = vmatprep.subr.mxu0 0.0
  %1781 = vmatpush2.msra.mxu0 0.0
  %1782 = vmatprep.subr.mxu0 0.0
  %1783 = vmatpush2.msra.mxu0 0.0
  %1784 = vmatprep.subr.mxu0 0.0
  %1785 = vmatpush2.msra.mxu0 0.0
  %1786 = vmatprep.subr.mxu0 0.0
  %1787 = vmatpush2.msra.mxu0 0.0
  %1788 = vmatprep.subr.mxu0 0.0
  %1789 = vmatpush2.msra.mxu0 0.0
  %1790 = vmatprep.subr.mxu0 0.0
  %1791 = vmatpush2.msra.mxu0 0.0
  %1792 = vmatprep.subr.mxu0 0.0
  %1793 = vmatpush2.msra.mxu0 0.0
  %1794 = vmatprep.subr.mxu0 0.0
  %1795 = vmatpush2.msra.mxu0 0.0
  %1796 = vmatprep.subr.mxu0 0.0
  %1797 = vmatpush2.msra.mxu0 0.0
  %1798 = vmatprep.mubr.f32.mxu0 0.0
  %v1799 = vand.u32 %v1710, 4294901760
  %v1800 = vsub.f32 %v1710, %v1799
  %v1801 = vand.u32 %v1800, 4294901760
  %v1802 = vsub.f32 %v1800, %v1801
  %v1803 = vand.u32 %v1802, 4294901760
  %1804 = vmatmul.mubr.f32.gmra.mxu0 %v1803
  %v1805 = vpop.f32.mrf.mxu0
  %v1806 = vadd.f32 0.0, %v1805
  %v1807 = vpop.f32.mrf.mxu0
  %v1808 = vadd.f32 0.0, %v1807
  %1809 = vmatprep.mubr.f32.mxu0 0.0
  %v1810 = vand.u32 %v1712, 4294901760
  %v1811 = vsub.f32 %v1712, %v1810
  %v1812 = vand.u32 %v1811, 4294901760
  %v1813 = vsub.f32 %v1811, %v1812
  %v1814 = vand.u32 %v1813, 4294901760
  %1815 = vmatmul.mubr.f32.gmra.mxu0 %v1814
  %v1816 = vpop.f32.mrf.mxu0
  %v1817 = vadd.f32 0.0, %v1816
  %v1818 = vpop.f32.mrf.mxu0
  %v1819 = vadd.f32 0.0, %v1818
  %1820 = vmatprep.mubr.f32.mxu0 0.0
  %v1821 = vand.u32 %v1714, 4294901760
  %v1822 = vsub.f32 %v1714, %v1821
  %v1823 = vand.u32 %v1822, 4294901760
  %v1824 = vsub.f32 %v1822, %v1823
  %v1825 = vand.u32 %v1824, 4294901760
  %1826 = vmatmul.mubr.f32.gmra.mxu0 %v1825
  %v1827 = vpop.f32.mrf.mxu0
  %v1828 = vadd.f32 0.0, %v1827
  %v1829 = vpop.f32.mrf.mxu0
  %v1830 = vadd.f32 0.0, %v1829
  %1831 = vmatprep.mubr.f32.mxu0 0.0
  %v1832 = vand.u32 %v1716, 4294901760
  %v1833 = vsub.f32 %v1716, %v1832
  %v1834 = vand.u32 %v1833, 4294901760
  %v1835 = vsub.f32 %v1833, %v1834
  %v1836 = vand.u32 %v1835, 4294901760
  %1837 = vmatmul.mubr.f32.gmra.mxu0 %v1836
  %v1838 = vpop.f32.mrf.mxu0
  %v1839 = vadd.f32 0.0, %v1838
  %v1840 = vpop.f32.mrf.mxu0
  %v1841 = vadd.f32 0.0, %v1840
  %1842 = vdwg.mxu0
  %1843 = vmatprep.subr.mxu0 0.0
  %1844 = vmatpush1.msra.mxu0 0.0
  %1845 = vmatprep.subr.mxu0 0.0
  %1846 = vmatpush1.msra.mxu0 0.0
  %1847 = vmatprep.subr.mxu0 0.0
  %1848 = vmatpush1.msra.mxu0 0.0
  %1849 = vmatprep.subr.mxu0 0.0
  %1850 = vmatpush1.msra.mxu0 0.0
  %1851 = vmatprep.subr.mxu0 0.0
  %1852 = vmatpush1.msra.mxu0 0.0
  %1853 = vmatprep.subr.mxu0 0.0
  %1854 = vmatpush1.msra.mxu0 0.0
  %1855 = vmatprep.subr.mxu0 0.0
  %1856 = vmatpush1.msra.mxu0 0.0
  %1857 = vmatprep.subr.mxu0 0.0
  %1858 = vmatpush1.msra.mxu0 0.0
  %v1859 = vand.u32 %v1709, 4294901760
  %v1860 = vsub.f32 %v1709, %v1859
  %v1861 = vand.u32 %v1860, 4294901760
  %v1862 = vsub.f32 %v1860, %v1861
  %v1863 = vand.u32 %v1862, 4294901760
  %1864 = vmatprep.subr.mxu0 %v1863
  %v1865 = vand.u32 %v1708, 4294901760
  %v1866 = vsub.f32 %v1708, %v1865
  %v1867 = vand.u32 %v1866, 4294901760
  %v1868 = vsub.f32 %v1866, %v1867
  %v1869 = vand.u32 %v1868, 4294901760
  %1870 = vmatpush1.msra.mxu0 %v1869
  %v1871 = vand.u32 %v1707, 4294901760
  %v1872 = vsub.f32 %v1707, %v1871
  %v1873 = vand.u32 %v1872, 4294901760
  %v1874 = vsub.f32 %v1872, %v1873
  %v1875 = vand.u32 %v1874, 4294901760
  %1876 = vmatprep.subr.mxu0 %v1875
  %v1877 = vand.u32 %v1706, 4294901760
  %v1878 = vsub.f32 %v1706, %v1877
  %v1879 = vand.u32 %v1878, 4294901760
  %v1880 = vsub.f32 %v1878, %v1879
  %v1881 = vand.u32 %v1880, 4294901760
  %1882 = vmatpush1.msra.mxu0 %v1881
  %v1883 = vand.u32 %v1705, 4294901760
  %v1884 = vsub.f32 %v1705, %v1883
  %v1885 = vand.u32 %v1884, 4294901760
  %v1886 = vsub.f32 %v1884, %v1885
  %v1887 = vand.u32 %v1886, 4294901760
  %1888 = vmatprep.subr.mxu0 %v1887
  %v1889 = vand.u32 %v1704, 4294901760
  %v1890 = vsub.f32 %v1704, %v1889
  %v1891 = vand.u32 %v1890, 4294901760
  %v1892 = vsub.f32 %v1890, %v1891
  %v1893 = vand.u32 %v1892, 4294901760
  %1894 = vmatpush1.msra.mxu0 %v1893
  %v1895 = vand.u32 %v1703, 4294901760
  %v1896 = vsub.f32 %v1703, %v1895
  %v1897 = vand.u32 %v1896, 4294901760
  %v1898 = vsub.f32 %v1896, %v1897
  %v1899 = vand.u32 %v1898, 4294901760
  %1900 = vmatprep.subr.mxu0 %v1899
  %v1901 = vand.u32 %v1702, 4294901760
  %v1902 = vsub.f32 %v1702, %v1901
  %v1903 = vand.u32 %v1902, 4294901760
  %v1904 = vsub.f32 %v1902, %v1903
  %v1905 = vand.u32 %v1904, 4294901760
  %1906 = vmatpush1.msra.mxu0 %v1905
  %v1907 = vand.u32 %v1701, 4294901760
  %v1908 = vsub.f32 %v1701, %v1907
  %v1909 = vand.u32 %v1908, 4294901760
  %v1910 = vsub.f32 %v1908, %v1909
  %v1911 = vand.u32 %v1910, 4294901760
  %1912 = vmatprep.subr.mxu0 %v1911
  %v1913 = vand.u32 %v1700, 4294901760
  %v1914 = vsub.f32 %v1700, %v1913
  %v1915 = vand.u32 %v1914, 4294901760
  %v1916 = vsub.f32 %v1914, %v1915
  %v1917 = vand.u32 %v1916, 4294901760
  %1918 = vmatpush1.msra.mxu0 %v1917
  %v1919 = vand.u32 %v1699, 4294901760
  %v1920 = vsub.f32 %v1699, %v1919
  %v1921 = vand.u32 %v1920, 4294901760
  %v1922 = vsub.f32 %v1920, %v1921
  %v1923 = vand.u32 %v1922, 4294901760
  %1924 = vmatprep.subr.mxu0 %v1923
  %v1925 = vand.u32 %v1698, 4294901760
  %v1926 = vsub.f32 %v1698, %v1925
  %v1927 = vand.u32 %v1926, 4294901760
  %v1928 = vsub.f32 %v1926, %v1927
  %v1929 = vand.u32 %v1928, 4294901760
  %1930 = vmatpush1.msra.mxu0 %v1929
  %v1931 = vand.u32 %v1697, 4294901760
  %v1932 = vsub.f32 %v1697, %v1931
  %v1933 = vand.u32 %v1932, 4294901760
  %v1934 = vsub.f32 %v1932, %v1933
  %v1935 = vand.u32 %v1934, 4294901760
  %1936 = vmatprep.subr.mxu0 %v1935
  %v1937 = vand.u32 %v1696, 4294901760
  %v1938 = vsub.f32 %v1696, %v1937
  %v1939 = vand.u32 %v1938, 4294901760
  %v1940 = vsub.f32 %v1938, %v1939
  %v1941 = vand.u32 %v1940, 4294901760
  %1942 = vmatpush1.msra.mxu0 %v1941
  %v1943 = vand.u32 %v1695, 4294901760
  %v1944 = vsub.f32 %v1695, %v1943
  %v1945 = vand.u32 %v1944, 4294901760
  %v1946 = vsub.f32 %v1944, %v1945
  %v1947 = vand.u32 %v1946, 4294901760
  %1948 = vmatprep.subr.mxu0 %v1947
  %v1949 = vand.u32 %v1694, 4294901760
  %v1950 = vsub.f32 %v1694, %v1949
  %v1951 = vand.u32 %v1950, 4294901760
  %v1952 = vsub.f32 %v1950, %v1951
  %v1953 = vand.u32 %v1952, 4294901760
  %1954 = vmatpush1.msra.mxu0 %v1953
  %1955 = vmatprep.subr.mxu0 0.0
  %1956 = vmatpush2.msra.mxu0 0.0
  %1957 = vmatprep.subr.mxu0 0.0
  %1958 = vmatpush2.msra.mxu0 0.0
  %1959 = vmatprep.subr.mxu0 0.0
  %1960 = vmatpush2.msra.mxu0 0.0
  %1961 = vmatprep.subr.mxu0 0.0
  %1962 = vmatpush2.msra.mxu0 0.0
  %1963 = vmatprep.subr.mxu0 0.0
  %1964 = vmatpush2.msra.mxu0 0.0
  %1965 = vmatprep.subr.mxu0 0.0
  %1966 = vmatpush2.msra.mxu0 0.0
  %1967 = vmatprep.subr.mxu0 0.0
  %1968 = vmatpush2.msra.mxu0 0.0
  %1969 = vmatprep.subr.mxu0 0.0
  %1970 = vmatpush2.msra.mxu0 0.0
  %1971 = vmatprep.subr.mxu0 0.0
  %1972 = vmatpush2.msra.mxu0 0.0
  %1973 = vmatprep.subr.mxu0 0.0
  %1974 = vmatpush2.msra.mxu0 0.0
  %1975 = vmatprep.subr.mxu0 0.0
  %1976 = vmatpush2.msra.mxu0 0.0
  %1977 = vmatprep.subr.mxu0 0.0
  %1978 = vmatpush2.msra.mxu0 0.0
  %1979 = vmatprep.subr.mxu0 0.0
  %1980 = vmatpush2.msra.mxu0 0.0
  %1981 = vmatprep.subr.mxu0 0.0
  %1982 = vmatpush2.msra.mxu0 0.0
  %1983 = vmatprep.subr.mxu0 0.0
  %1984 = vmatpush2.msra.mxu0 0.0
  %1985 = vmatprep.subr.mxu0 0.0
  %1986 = vmatpush2.msra.mxu0 0.0
  %1987 = vmatprep.mubr.f32.mxu0 0.0
  %v1988 = vand.u32 %v1710, 4294901760
  %1989 = vmatmul.mubr.f32.gmra.mxu0 %v1988
  %v1990 = vpop.f32.mrf.mxu0
  %v1991 = vadd.f32 %v1806, %v1990
  %v1992 = vpop.f32.mrf.mxu0
  %v1993 = vadd.f32 %v1808, %v1992
  %1994 = vmatprep.mubr.f32.mxu0 0.0
  %v1995 = vand.u32 %v1712, 4294901760
  %1996 = vmatmul.mubr.f32.gmra.mxu0 %v1995
  %v1997 = vpop.f32.mrf.mxu0
  %v1998 = vadd.f32 %v1817, %v1997
  %v1999 = vpop.f32.mrf.mxu0
  %v2000 = vadd.f32 %v1819, %v1999
  %2001 = vmatprep.mubr.f32.mxu0 0.0
  %v2002 = vand.u32 %v1714, 4294901760
  %2003 = vmatmul.mubr.f32.gmra.mxu0 %v2002
  %v2004 = vpop.f32.mrf.mxu0
  %v2005 = vadd.f32 %v1828, %v2004
  %v2006 = vpop.f32.mrf.mxu0
  %v2007 = vadd.f32 %v1830, %v2006
  %2008 = vmatprep.mubr.f32.mxu0 0.0
  %v2009 = vand.u32 %v1716, 4294901760
  %2010 = vmatmul.mubr.f32.gmra.mxu0 %v2009
  %v2011 = vpop.f32.mrf.mxu0
  %v2012 = vadd.f32 %v1839, %v2011
  %v2013 = vpop.f32.mrf.mxu0
  %v2014 = vadd.f32 %v1841, %v2013
  %2015 = vdwg.mxu0
  %2016 = vmatprep.subr.mxu0 0.0
  %2017 = vmatpush1.msra.mxu0 0.0
  %2018 = vmatprep.subr.mxu0 0.0
  %2019 = vmatpush1.msra.mxu0 0.0
  %2020 = vmatprep.subr.mxu0 0.0
  %2021 = vmatpush1.msra.mxu0 0.0
  %2022 = vmatprep.subr.mxu0 0.0
  %2023 = vmatpush1.msra.mxu0 0.0
  %2024 = vmatprep.subr.mxu0 0.0
  %2025 = vmatpush1.msra.mxu0 0.0
  %2026 = vmatprep.subr.mxu0 0.0
  %2027 = vmatpush1.msra.mxu0 0.0
  %2028 = vmatprep.subr.mxu0 0.0
  %2029 = vmatpush1.msra.mxu0 0.0
  %2030 = vmatprep.subr.mxu0 0.0
  %2031 = vmatpush1.msra.mxu0 0.0
  %v2032 = vand.u32 %v1709, 4294901760
  %v2033 = vsub.f32 %v1709, %v2032
  %2034 = vmatprep.subr.mxu0 %v2033
  %v2035 = vand.u32 %v1708, 4294901760
  %v2036 = vsub.f32 %v1708, %v2035
  %2037 = vmatpush1.msra.mxu0 %v2036
  %v2038 = vand.u32 %v1707, 4294901760
  %v2039 = vsub.f32 %v1707, %v2038
  %2040 = vmatprep.subr.mxu0 %v2039
  %v2041 = vand.u32 %v1706, 4294901760
  %v2042 = vsub.f32 %v1706, %v2041
  %2043 = vmatpush1.msra.mxu0 %v2042
  %v2044 = vand.u32 %v1705, 4294901760
  %v2045 = vsub.f32 %v1705, %v2044
  %2046 = vmatprep.subr.mxu0 %v2045
  %v2047 = vand.u32 %v1704, 4294901760
  %v2048 = vsub.f32 %v1704, %v2047
  %2049 = vmatpush1.msra.mxu0 %v2048
  %v2050 = vand.u32 %v1703, 4294901760
  %v2051 = vsub.f32 %v1703, %v2050
  %2052 = vmatprep.subr.mxu0 %v2051
  %v2053 = vand.u32 %v1702, 4294901760
  %v2054 = vsub.f32 %v1702, %v2053
  %2055 = vmatpush1.msra.mxu0 %v2054
  %v2056 = vand.u32 %v1701, 4294901760
  %v2057 = vsub.f32 %v1701, %v2056
  %2058 = vmatprep.subr.mxu0 %v2057
  %v2059 = vand.u32 %v1700, 4294901760
  %v2060 = vsub.f32 %v1700, %v2059
  %2061 = vmatpush1.msra.mxu0 %v2060
  %v2062 = vand.u32 %v1699, 4294901760
  %v2063 = vsub.f32 %v1699, %v2062
  %2064 = vmatprep.subr.mxu0 %v2063
  %v2065 = vand.u32 %v1698, 4294901760
  %v2066 = vsub.f32 %v1698, %v2065
  %2067 = vmatpush1.msra.mxu0 %v2066
  %v2068 = vand.u32 %v1697, 4294901760
  %v2069 = vsub.f32 %v1697, %v2068
  %2070 = vmatprep.subr.mxu0 %v2069
  %v2071 = vand.u32 %v1696, 4294901760
  %v2072 = vsub.f32 %v1696, %v2071
  %2073 = vmatpush1.msra.mxu0 %v2072
  %v2074 = vand.u32 %v1695, 4294901760
  %v2075 = vsub.f32 %v1695, %v2074
  %2076 = vmatprep.subr.mxu0 %v2075
  %v2077 = vand.u32 %v1694, 4294901760
  %v2078 = vsub.f32 %v1694, %v2077
  %2079 = vmatpush1.msra.mxu0 %v2078
  %2080 = vmatprep.subr.mxu0 0.0
  %2081 = vmatpush2.msra.mxu0 0.0
  %2082 = vmatprep.subr.mxu0 0.0
  %2083 = vmatpush2.msra.mxu0 0.0
  %2084 = vmatprep.subr.mxu0 0.0
  %2085 = vmatpush2.msra.mxu0 0.0
  %2086 = vmatprep.subr.mxu0 0.0
  %2087 = vmatpush2.msra.mxu0 0.0
  %2088 = vmatprep.subr.mxu0 0.0
  %2089 = vmatpush2.msra.mxu0 0.0
  %2090 = vmatprep.subr.mxu0 0.0
  %2091 = vmatpush2.msra.mxu0 0.0
  %2092 = vmatprep.subr.mxu0 0.0
  %2093 = vmatpush2.msra.mxu0 0.0
  %2094 = vmatprep.subr.mxu0 0.0
  %2095 = vmatpush2.msra.mxu0 0.0
  %2096 = vmatprep.subr.mxu0 0.0
  %2097 = vmatpush2.msra.mxu0 0.0
  %2098 = vmatprep.subr.mxu0 0.0
  %2099 = vmatpush2.msra.mxu0 0.0
  %2100 = vmatprep.subr.mxu0 0.0
  %2101 = vmatpush2.msra.mxu0 0.0
  %2102 = vmatprep.subr.mxu0 0.0
  %2103 = vmatpush2.msra.mxu0 0.0
  %2104 = vmatprep.subr.mxu0 0.0
  %2105 = vmatpush2.msra.mxu0 0.0
  %2106 = vmatprep.subr.mxu0 0.0
  %2107 = vmatpush2.msra.mxu0 0.0
  %2108 = vmatprep.subr.mxu0 0.0
  %2109 = vmatpush2.msra.mxu0 0.0
  %2110 = vmatprep.subr.mxu0 0.0
  %2111 = vmatpush2.msra.mxu0 0.0
  %2112 = vmatprep.mubr.f32.mxu0 0.0
  %v2113 = vand.u32 %v1710, 4294901760
  %v2114 = vsub.f32 %v1710, %v2113
  %2115 = vmatmul.mubr.f32.gmra.mxu0 %v2114
  %v2116 = vpop.f32.mrf.mxu0
  %v2117 = vadd.f32 %v1991, %v2116
  %v2118 = vpop.f32.mrf.mxu0
  %v2119 = vadd.f32 %v1993, %v2118
  %2120 = vmatprep.mubr.f32.mxu0 0.0
  %v2121 = vand.u32 %v1712, 4294901760
  %v2122 = vsub.f32 %v1712, %v2121
  %2123 = vmatmul.mubr.f32.gmra.mxu0 %v2122
  %v2124 = vpop.f32.mrf.mxu0
  %v2125 = vadd.f32 %v1998, %v2124
  %v2126 = vpop.f32.mrf.mxu0
  %v2127 = vadd.f32 %v2000, %v2126
  %2128 = vmatprep.mubr.f32.mxu0 0.0
  %v2129 = vand.u32 %v1714, 4294901760
  %v2130 = vsub.f32 %v1714, %v2129
  %2131 = vmatmul.mubr.f32.gmra.mxu0 %v2130
  %v2132 = vpop.f32.mrf.mxu0
  %v2133 = vadd.f32 %v2005, %v2132
  %v2134 = vpop.f32.mrf.mxu0
  %v2135 = vadd.f32 %v2007, %v2134
  %2136 = vmatprep.mubr.f32.mxu0 0.0
  %v2137 = vand.u32 %v1716, 4294901760
  %v2138 = vsub.f32 %v1716, %v2137
  %2139 = vmatmul.mubr.f32.gmra.mxu0 %v2138
  %v2140 = vpop.f32.mrf.mxu0
  %v2141 = vadd.f32 %v2012, %v2140
  %v2142 = vpop.f32.mrf.mxu0
  %v2143 = vadd.f32 %v2014, %v2142
  %2144 = vdwg.mxu0
  %2145 = vmatprep.subr.mxu0 0.0
  %2146 = vmatpush1.msra.mxu0 0.0
  %2147 = vmatprep.subr.mxu0 0.0
  %2148 = vmatpush1.msra.mxu0 0.0
  %2149 = vmatprep.subr.mxu0 0.0
  %2150 = vmatpush1.msra.mxu0 0.0
  %2151 = vmatprep.subr.mxu0 0.0
  %2152 = vmatpush1.msra.mxu0 0.0
  %2153 = vmatprep.subr.mxu0 0.0
  %2154 = vmatpush1.msra.mxu0 0.0
  %2155 = vmatprep.subr.mxu0 0.0
  %2156 = vmatpush1.msra.mxu0 0.0
  %2157 = vmatprep.subr.mxu0 0.0
  %2158 = vmatpush1.msra.mxu0 0.0
  %2159 = vmatprep.subr.mxu0 0.0
  %2160 = vmatpush1.msra.mxu0 0.0
  %v2161 = vand.u32 %v1709, 4294901760
  %2162 = vmatprep.subr.mxu0 %v2161
  %v2163 = vand.u32 %v1708, 4294901760
  %2164 = vmatpush1.msra.mxu0 %v2163
  %v2165 = vand.u32 %v1707, 4294901760
  %2166 = vmatprep.subr.mxu0 %v2165
  %v2167 = vand.u32 %v1706, 4294901760
  %2168 = vmatpush1.msra.mxu0 %v2167
  %v2169 = vand.u32 %v1705, 4294901760
  %2170 = vmatprep.subr.mxu0 %v2169
  %v2171 = vand.u32 %v1704, 4294901760
  %2172 = vmatpush1.msra.mxu0 %v2171
  %v2173 = vand.u32 %v1703, 4294901760
  %2174 = vmatprep.subr.mxu0 %v2173
  %v2175 = vand.u32 %v1702, 4294901760
  %2176 = vmatpush1.msra.mxu0 %v2175
  %v2177 = vand.u32 %v1701, 4294901760
  %2178 = vmatprep.subr.mxu0 %v2177
  %v2179 = vand.u32 %v1700, 4294901760
  %2180 = vmatpush1.msra.mxu0 %v2179
  %v2181 = vand.u32 %v1699, 4294901760
  %2182 = vmatprep.subr.mxu0 %v2181
  %v2183 = vand.u32 %v1698, 4294901760
  %2184 = vmatpush1.msra.mxu0 %v2183
  %v2185 = vand.u32 %v1697, 4294901760
  %2186 = vmatprep.subr.mxu0 %v2185
  %v2187 = vand.u32 %v1696, 4294901760
  %2188 = vmatpush1.msra.mxu0 %v2187
  %v2189 = vand.u32 %v1695, 4294901760
  %2190 = vmatprep.subr.mxu0 %v2189
  %v2191 = vand.u32 %v1694, 4294901760
  %2192 = vmatpush1.msra.mxu0 %v2191
  %2193 = vmatprep.subr.mxu0 0.0
  %2194 = vmatpush2.msra.mxu0 0.0
  %2195 = vmatprep.subr.mxu0 0.0
  %2196 = vmatpush2.msra.mxu0 0.0
  %2197 = vmatprep.subr.mxu0 0.0
  %2198 = vmatpush2.msra.mxu0 0.0
  %2199 = vmatprep.subr.mxu0 0.0
  %2200 = vmatpush2.msra.mxu0 0.0
  %2201 = vmatprep.subr.mxu0 0.0
  %2202 = vmatpush2.msra.mxu0 0.0
  %2203 = vmatprep.subr.mxu0 0.0
  %2204 = vmatpush2.msra.mxu0 0.0
  %2205 = vmatprep.subr.mxu0 0.0
  %2206 = vmatpush2.msra.mxu0 0.0
  %2207 = vmatprep.subr.mxu0 0.0
  %2208 = vmatpush2.msra.mxu0 0.0
  %2209 = vmatprep.subr.mxu0 0.0
  %2210 = vmatpush2.msra.mxu0 0.0
  %2211 = vmatprep.subr.mxu0 0.0
  %2212 = vmatpush2.msra.mxu0 0.0
  %2213 = vmatprep.subr.mxu0 0.0
  %2214 = vmatpush2.msra.mxu0 0.0
  %2215 = vmatprep.subr.mxu0 0.0
  %2216 = vmatpush2.msra.mxu0 0.0
  %2217 = vmatprep.subr.mxu0 0.0
  %2218 = vmatpush2.msra.mxu0 0.0
  %2219 = vmatprep.subr.mxu0 0.0
  %2220 = vmatpush2.msra.mxu0 0.0
  %2221 = vmatprep.subr.mxu0 0.0
  %2222 = vmatpush2.msra.mxu0 0.0
  %2223 = vmatprep.subr.mxu0 0.0
  %2224 = vmatpush2.msra.mxu0 0.0
  %2225 = vmatprep.mubr.f32.mxu0 0.0
  %v2226 = vand.u32 %v1710, 4294901760
  %v2227 = vsub.f32 %v1710, %v2226
  %v2228 = vand.u32 %v2227, 4294901760
  %2229 = vmatmul.mubr.f32.gmra.mxu0 %v2228
  %v2230 = vpop.f32.mrf.mxu0
  %v2231 = vadd.f32 %v2117, %v2230
  %v2232 = vpop.f32.mrf.mxu0
  %v2233 = vadd.f32 %v2119, %v2232
  %2234 = vmatprep.mubr.f32.mxu0 0.0
  %v2235 = vand.u32 %v1712, 4294901760
  %v2236 = vsub.f32 %v1712, %v2235
  %v2237 = vand.u32 %v2236, 4294901760
  %2238 = vmatmul.mubr.f32.gmra.mxu0 %v2237
  %v2239 = vpop.f32.mrf.mxu0
  %v2240 = vadd.f32 %v2125, %v2239
  %v2241 = vpop.f32.mrf.mxu0
  %v2242 = vadd.f32 %v2127, %v2241
  %2243 = vmatprep.mubr.f32.mxu0 0.0
  %v2244 = vand.u32 %v1714, 4294901760
  %v2245 = vsub.f32 %v1714, %v2244
  %v2246 = vand.u32 %v2245, 4294901760
  %2247 = vmatmul.mubr.f32.gmra.mxu0 %v2246
  %v2248 = vpop.f32.mrf.mxu0
  %v2249 = vadd.f32 %v2133, %v2248
  %v2250 = vpop.f32.mrf.mxu0
  %v2251 = vadd.f32 %v2135, %v2250
  %2252 = vmatprep.mubr.f32.mxu0 0.0
  %v2253 = vand.u32 %v1716, 4294901760
  %v2254 = vsub.f32 %v1716, %v2253
  %v2255 = vand.u32 %v2254, 4294901760
  %2256 = vmatmul.mubr.f32.gmra.mxu0 %v2255
  %v2257 = vpop.f32.mrf.mxu0
  %v2258 = vadd.f32 %v2141, %v2257
  %v2259 = vpop.f32.mrf.mxu0
  %v2260 = vadd.f32 %v2143, %v2259
  %2261 = vdwg.mxu0
  %2262 = vmatprep.subr.mxu0 0.0
  %2263 = vmatpush1.msra.mxu0 0.0
  %2264 = vmatprep.subr.mxu0 0.0
  %2265 = vmatpush1.msra.mxu0 0.0
  %2266 = vmatprep.subr.mxu0 0.0
  %2267 = vmatpush1.msra.mxu0 0.0
  %2268 = vmatprep.subr.mxu0 0.0
  %2269 = vmatpush1.msra.mxu0 0.0
  %2270 = vmatprep.subr.mxu0 0.0
  %2271 = vmatpush1.msra.mxu0 0.0
  %2272 = vmatprep.subr.mxu0 0.0
  %2273 = vmatpush1.msra.mxu0 0.0
  %2274 = vmatprep.subr.mxu0 0.0
  %2275 = vmatpush1.msra.mxu0 0.0
  %2276 = vmatprep.subr.mxu0 0.0
  %2277 = vmatpush1.msra.mxu0 0.0
  %v2278 = vand.u32 %v1709, 4294901760
  %v2279 = vsub.f32 %v1709, %v2278
  %v2280 = vand.u32 %v2279, 4294901760
  %2281 = vmatprep.subr.mxu0 %v2280
  %v2282 = vand.u32 %v1708, 4294901760
  %v2283 = vsub.f32 %v1708, %v2282
  %v2284 = vand.u32 %v2283, 4294901760
  %2285 = vmatpush1.msra.mxu0 %v2284
  %v2286 = vand.u32 %v1707, 4294901760
  %v2287 = vsub.f32 %v1707, %v2286
  %v2288 = vand.u32 %v2287, 4294901760
  %2289 = vmatprep.subr.mxu0 %v2288
  %v2290 = vand.u32 %v1706, 4294901760
  %v2291 = vsub.f32 %v1706, %v2290
  %v2292 = vand.u32 %v2291, 4294901760
  %2293 = vmatpush1.msra.mxu0 %v2292
  %v2294 = vand.u32 %v1705, 4294901760
  %v2295 = vsub.f32 %v1705, %v2294
  %v2296 = vand.u32 %v2295, 4294901760
  %2297 = vmatprep.subr.mxu0 %v2296
  %v2298 = vand.u32 %v1704, 4294901760
  %v2299 = vsub.f32 %v1704, %v2298
  %v2300 = vand.u32 %v2299, 4294901760
  %2301 = vmatpush1.msra.mxu0 %v2300
  %v2302 = vand.u32 %v1703, 4294901760
  %v2303 = vsub.f32 %v1703, %v2302
  %v2304 = vand.u32 %v2303, 4294901760
  %2305 = vmatprep.subr.mxu0 %v2304
  %v2306 = vand.u32 %v1702, 4294901760
  %v2307 = vsub.f32 %v1702, %v2306
  %v2308 = vand.u32 %v2307, 4294901760
  %2309 = vmatpush1.msra.mxu0 %v2308
  %v2310 = vand.u32 %v1701, 4294901760
  %v2311 = vsub.f32 %v1701, %v2310
  %v2312 = vand.u32 %v2311, 4294901760
  %2313 = vmatprep.subr.mxu0 %v2312
  %v2314 = vand.u32 %v1700, 4294901760
  %v2315 = vsub.f32 %v1700, %v2314
  %v2316 = vand.u32 %v2315, 4294901760
  %2317 = vmatpush1.msra.mxu0 %v2316
  %v2318 = vand.u32 %v1699, 4294901760
  %v2319 = vsub.f32 %v1699, %v2318
  %v2320 = vand.u32 %v2319, 4294901760
  %2321 = vmatprep.subr.mxu0 %v2320
  %v2322 = vand.u32 %v1698, 4294901760
  %v2323 = vsub.f32 %v1698, %v2322
  %v2324 = vand.u32 %v2323, 4294901760
  %2325 = vmatpush1.msra.mxu0 %v2324
  %v2326 = vand.u32 %v1697, 4294901760
  %v2327 = vsub.f32 %v1697, %v2326
  %v2328 = vand.u32 %v2327, 4294901760
  %2329 = vmatprep.subr.mxu0 %v2328
  %v2330 = vand.u32 %v1696, 4294901760
  %v2331 = vsub.f32 %v1696, %v2330
  %v2332 = vand.u32 %v2331, 4294901760
  %2333 = vmatpush1.msra.mxu0 %v2332
  %v2334 = vand.u32 %v1695, 4294901760
  %v2335 = vsub.f32 %v1695, %v2334
  %v2336 = vand.u32 %v2335, 4294901760
  %2337 = vmatprep.subr.mxu0 %v2336
  %v2338 = vand.u32 %v1694, 4294901760
  %v2339 = vsub.f32 %v1694, %v2338
  %v2340 = vand.u32 %v2339, 4294901760
  %2341 = vmatpush1.msra.mxu0 %v2340
  %2342 = vmatprep.subr.mxu0 0.0
  %2343 = vmatpush2.msra.mxu0 0.0
  %2344 = vmatprep.subr.mxu0 0.0
  %2345 = vmatpush2.msra.mxu0 0.0
  %2346 = vmatprep.subr.mxu0 0.0
  %2347 = vmatpush2.msra.mxu0 0.0
  %2348 = vmatprep.subr.mxu0 0.0
  %2349 = vmatpush2.msra.mxu0 0.0
  %2350 = vmatprep.subr.mxu0 0.0
  %2351 = vmatpush2.msra.mxu0 0.0
  %2352 = vmatprep.subr.mxu0 0.0
  %2353 = vmatpush2.msra.mxu0 0.0
  %2354 = vmatprep.subr.mxu0 0.0
  %2355 = vmatpush2.msra.mxu0 0.0
  %2356 = vmatprep.subr.mxu0 0.0
  %2357 = vmatpush2.msra.mxu0 0.0
  %2358 = vmatprep.subr.mxu0 0.0
  %2359 = vmatpush2.msra.mxu0 0.0
  %2360 = vmatprep.subr.mxu0 0.0
  %2361 = vmatpush2.msra.mxu0 0.0
  %2362 = vmatprep.subr.mxu0 0.0
  %2363 = vmatpush2.msra.mxu0 0.0
  %2364 = vmatprep.subr.mxu0 0.0
  %2365 = vmatpush2.msra.mxu0 0.0
  %2366 = vmatprep.subr.mxu0 0.0
  %2367 = vmatpush2.msra.mxu0 0.0
  %2368 = vmatprep.subr.mxu0 0.0
  %2369 = vmatpush2.msra.mxu0 0.0
  %2370 = vmatprep.subr.mxu0 0.0
  %2371 = vmatpush2.msra.mxu0 0.0
  %2372 = vmatprep.subr.mxu0 0.0
  %2373 = vmatpush2.msra.mxu0 0.0
  %2374 = vmatprep.mubr.f32.mxu0 0.0
  %v2375 = vand.u32 %v1710, 4294901760
  %2376 = vmatmul.mubr.f32.gmra.mxu0 %v2375
  %v2377 = vpop.f32.mrf.mxu0
  %v2378 = vadd.f32 %v2231, %v2377
  %v2379 = vpop.f32.mrf.mxu0
  %v2380 = vadd.f32 %v2233, %v2379
  %2381 = vmatprep.mubr.f32.mxu0 0.0
  %v2382 = vand.u32 %v1712, 4294901760
  %2383 = vmatmul.mubr.f32.gmra.mxu0 %v2382
  %v2384 = vpop.f32.mrf.mxu0
  %v2385 = vadd.f32 %v2240, %v2384
  %v2386 = vpop.f32.mrf.mxu0
  %v2387 = vadd.f32 %v2242, %v2386
  %2388 = vmatprep.mubr.f32.mxu0 0.0
  %v2389 = vand.u32 %v1714, 4294901760
  %2390 = vmatmul.mubr.f32.gmra.mxu0 %v2389
  %v2391 = vpop.f32.mrf.mxu0
  %v2392 = vadd.f32 %v2249, %v2391
  %v2393 = vpop.f32.mrf.mxu0
  %v2394 = vadd.f32 %v2251, %v2393
  %2395 = vmatprep.mubr.f32.mxu0 0.0
  %v2396 = vand.u32 %v1716, 4294901760
  %2397 = vmatmul.mubr.f32.gmra.mxu0 %v2396
  %v2398 = vpop.f32.mrf.mxu0
  %v2399 = vadd.f32 %v2258, %v2398
  %v2400 = vpop.f32.mrf.mxu0
  %v2401 = vadd.f32 %v2260, %v2400
  %2402 = vdwg.mxu0
  %2403 = vmatprep.subr.mxu0 0.0
  %2404 = vmatpush1.msra.mxu0 0.0
  %2405 = vmatprep.subr.mxu0 0.0
  %2406 = vmatpush1.msra.mxu0 0.0
  %2407 = vmatprep.subr.mxu0 0.0
  %2408 = vmatpush1.msra.mxu0 0.0
  %2409 = vmatprep.subr.mxu0 0.0
  %2410 = vmatpush1.msra.mxu0 0.0
  %2411 = vmatprep.subr.mxu0 0.0
  %2412 = vmatpush1.msra.mxu0 0.0
  %2413 = vmatprep.subr.mxu0 0.0
  %2414 = vmatpush1.msra.mxu0 0.0
  %2415 = vmatprep.subr.mxu0 0.0
  %2416 = vmatpush1.msra.mxu0 0.0
  %2417 = vmatprep.subr.mxu0 0.0
  %2418 = vmatpush1.msra.mxu0 0.0
  %v2419 = vand.u32 %v1709, 4294901760
  %2420 = vmatprep.subr.mxu0 %v2419
  %v2421 = vand.u32 %v1708, 4294901760
  %2422 = vmatpush1.msra.mxu0 %v2421
  %v2423 = vand.u32 %v1707, 4294901760
  %2424 = vmatprep.subr.mxu0 %v2423
  %v2425 = vand.u32 %v1706, 4294901760
  %2426 = vmatpush1.msra.mxu0 %v2425
  %v2427 = vand.u32 %v1705, 4294901760
  %2428 = vmatprep.subr.mxu0 %v2427
  %v2429 = vand.u32 %v1704, 4294901760
  %2430 = vmatpush1.msra.mxu0 %v2429
  %v2431 = vand.u32 %v1703, 4294901760
  %2432 = vmatprep.subr.mxu0 %v2431
  %v2433 = vand.u32 %v1702, 4294901760
  %2434 = vmatpush1.msra.mxu0 %v2433
  %v2435 = vand.u32 %v1701, 4294901760
  %2436 = vmatprep.subr.mxu0 %v2435
  %v2437 = vand.u32 %v1700, 4294901760
  %2438 = vmatpush1.msra.mxu0 %v2437
  %v2439 = vand.u32 %v1699, 4294901760
  %2440 = vmatprep.subr.mxu0 %v2439
  %v2441 = vand.u32 %v1698, 4294901760
  %2442 = vmatpush1.msra.mxu0 %v2441
  %v2443 = vand.u32 %v1697, 4294901760
  %2444 = vmatprep.subr.mxu0 %v2443
  %v2445 = vand.u32 %v1696, 4294901760
  %2446 = vmatpush1.msra.mxu0 %v2445
  %v2447 = vand.u32 %v1695, 4294901760
  %2448 = vmatprep.subr.mxu0 %v2447
  %v2449 = vand.u32 %v1694, 4294901760
  %2450 = vmatpush1.msra.mxu0 %v2449
  %2451 = vmatprep.subr.mxu0 0.0
  %2452 = vmatpush2.msra.mxu0 0.0
  %2453 = vmatprep.subr.mxu0 0.0
  %2454 = vmatpush2.msra.mxu0 0.0
  %2455 = vmatprep.subr.mxu0 0.0
  %2456 = vmatpush2.msra.mxu0 0.0
  %2457 = vmatprep.subr.mxu0 0.0
  %2458 = vmatpush2.msra.mxu0 0.0
  %2459 = vmatprep.subr.mxu0 0.0
  %2460 = vmatpush2.msra.mxu0 0.0
  %2461 = vmatprep.subr.mxu0 0.0
  %2462 = vmatpush2.msra.mxu0 0.0
  %2463 = vmatprep.subr.mxu0 0.0
  %2464 = vmatpush2.msra.mxu0 0.0
  %2465 = vmatprep.subr.mxu0 0.0
  %2466 = vmatpush2.msra.mxu0 0.0
  %2467 = vmatprep.subr.mxu0 0.0
  %2468 = vmatpush2.msra.mxu0 0.0
  %2469 = vmatprep.subr.mxu0 0.0
  %2470 = vmatpush2.msra.mxu0 0.0
  %2471 = vmatprep.subr.mxu0 0.0
  %2472 = vmatpush2.msra.mxu0 0.0
  %2473 = vmatprep.subr.mxu0 0.0
  %2474 = vmatpush2.msra.mxu0 0.0
  %2475 = vmatprep.subr.mxu0 0.0
  %2476 = vmatpush2.msra.mxu0 0.0
  %2477 = vmatprep.subr.mxu0 0.0
  %2478 = vmatpush2.msra.mxu0 0.0
  %2479 = vmatprep.subr.mxu0 0.0
  %2480 = vmatpush2.msra.mxu0 0.0
  %2481 = vmatprep.subr.mxu0 0.0
  %2482 = vmatpush2.msra.mxu0 0.0
  %2483 = vmatprep.mubr.f32.mxu0 0.0
  %v2484 = vand.u32 %v1710, 4294901760
  %2485 = vmatmul.mubr.f32.gmra.mxu0 %v2484
  %v2486 = vpop.f32.mrf.mxu0
  %v2487 = vadd.f32 %v2378, %v2486
  %v2488 = vpop.f32.mrf.mxu0
  %v2489 = vadd.f32 %v2380, %v2488
  %2490 = vmatprep.mubr.f32.mxu0 0.0
  %v2491 = vand.u32 %v1712, 4294901760
  %2492 = vmatmul.mubr.f32.gmra.mxu0 %v2491
  %v2493 = vpop.f32.mrf.mxu0
  %v2494 = vadd.f32 %v2385, %v2493
  %v2495 = vpop.f32.mrf.mxu0
  %v2496 = vadd.f32 %v2387, %v2495
  %2497 = vmatprep.mubr.f32.mxu0 0.0
  %v2498 = vand.u32 %v1714, 4294901760
  %2499 = vmatmul.mubr.f32.gmra.mxu0 %v2498
  %v2500 = vpop.f32.mrf.mxu0
  %v2501 = vadd.f32 %v2392, %v2500
  %v2502 = vpop.f32.mrf.mxu0
  %v2503 = vadd.f32 %v2394, %v2502
  %2504 = vmatprep.mubr.f32.mxu0 0.0
  %v2505 = vand.u32 %v1716, 4294901760
  %2506 = vmatmul.mubr.f32.gmra.mxu0 %v2505
  %v2507 = vpop.f32.mrf.mxu0
  %v2508 = vadd.f32 %v2399, %v2507
  %v2509 = vpop.f32.mrf.mxu0
  %v2510 = vadd.f32 %v2401, %v2509
  %2511 = vdwg.mxu0
  %v2512 = vadd.f32 %v1657, %v2487
  %v2513 = vadd.f32 %v1659, %v2489
  %v2514 = vadd.f32 %v1664, %v2494
  %v2515 = vadd.f32 %v1666, %v2496
  %v2516 = vadd.f32 %v1671, %v2501
  %v2517 = vadd.f32 %v1673, %v2503
  %v2518 = vadd.f32 %v1678, %v2508
  %v2519 = vadd.f32 %v1680, %v2510
  %v2521 = vlaneseq
  %v2522 = vshrl.u32 %v2521, 7
  %v2523 = vsub.s32 0, %v2522
  %v2524 = vrot.slane %v26, %v2523
  %v2525 = vlaneseq
  %v2526 = vshrl.u32 %v2525, 7
  %v2527 = vsub.s32 1, %v2526
  %v2528 = vrot.slane %v26, %v2527
  %v2531 = vadd.f32 %v2512, %v2524
  %v2532 = vadd.f32 %v2513, %v2528
  %v2533 = vadd.f32 %v2514, %v2524
  %v2534 = vadd.f32 %v2515, %v2528
  %v2535 = vadd.f32 %v2516, %v2524
  %v2536 = vadd.f32 %v2517, %v2528
  %v2537 = vadd.f32 %v2518, %v2524
  %v2538 = vadd.f32 %v2519, %v2528
  %vm2547 = vcmask 1040384
  %v2548 = vrot.slane %v2531, 7
  %v2549 = vrot.slane %v2532, 7
  %v2550 = vrot.slane %v2533, 7
  %v2551 = vsel %vm2547, %v2548, %v2550
  %v2552 = vrot.slane %v2534, 7
  %v2553 = vsel %vm2547, %v2549, %v2552
  %v2554 = vrot.slane %v2535, 7
  %v2555 = vrot.slane %v2536, 7
  %v2556 = vrot.slane %v2537, 7
  %v2557 = vsel %vm2547, %v2554, %v2556
  %v2558 = vrot.slane %v2538, 7
  %v2559 = vsel %vm2547, %v2555, %v2558
  %v2572 = vsel %vm2547, -inf, %v2548
  %v2573 = vsel %vm2547, -inf, %v2549
  %v2574 = vsel %vm2547, -inf, %v2554
  %v2575 = vsel %vm2547, -inf, %v2555
  %v2576 = vsel %vm2547, %v2550, -inf
  %v2577 = vsel %vm2547, %v2552, -inf
  %v2578 = vsel %vm2547, %v2556, -inf
  %v2579 = vsel %vm2547, %v2558, -inf
  %v2588 = vrot.slane %v2572, 1
  %v2589 = vrot.slane %v2551, 1
  %v2590 = vsel %vm49, %v2588, %v2589
  %v2591 = vrot.slane %v2573, 1
  %v2592 = vrot.slane %v2553, 1
  %v2593 = vsel %vm49, %v2591, %v2592
  %v2594 = vrot.slane %v2576, 1
  %v2595 = vsel %vm49, %v2589, %v2594
  %v2596 = vrot.slane %v2577, 1
  %v2597 = vsel %vm49, %v2592, %v2596
  %v2598 = vrot.slane %v2574, 1
  %v2599 = vrot.slane %v2557, 1
  %v2600 = vsel %vm49, %v2598, %v2599
  %v2601 = vrot.slane %v2575, 1
  %v2602 = vrot.slane %v2559, 1
  %v2603 = vsel %vm49, %v2601, %v2602
  %v2604 = vrot.slane %v2578, 1
  %v2605 = vsel %vm49, %v2599, %v2604
  %v2606 = vrot.slane %v2579, 1
  %v2607 = vsel %vm49, %v2602, %v2606
  %v2616 = vmax.f32 %v2572, %v2590
  %v2617 = vmax.f32 %v2573, %v2593
  %v2618 = vmax.f32 %v2551, %v2595
  %v2619 = vmax.f32 %v2553, %v2597
  %v2620 = vmax.f32 %v2574, %v2600
  %v2621 = vmax.f32 %v2575, %v2603
  %v2622 = vmax.f32 %v2557, %v2605
  %v2623 = vmax.f32 %v2559, %v2607
  %v2624 = vrot.slane %v2572, 2
  %v2625 = vrot.slane %v2551, 2
  %v2626 = vsel %vm1682, %v2624, %v2625
  %v2627 = vrot.slane %v2573, 2
  %v2628 = vrot.slane %v2553, 2
  %v2629 = vsel %vm1682, %v2627, %v2628
  %v2630 = vrot.slane %v2576, 2
  %v2631 = vsel %vm1682, %v2625, %v2630
  %v2632 = vrot.slane %v2577, 2
  %v2633 = vsel %vm1682, %v2628, %v2632
  %v2634 = vrot.slane %v2574, 2
  %v2635 = vrot.slane %v2557, 2
  %v2636 = vsel %vm1682, %v2634, %v2635
  %v2637 = vrot.slane %v2575, 2
  %v2638 = vrot.slane %v2559, 2
  %v2639 = vsel %vm1682, %v2637, %v2638
  %v2640 = vrot.slane %v2578, 2
  %v2641 = vsel %vm1682, %v2635, %v2640
  %v2642 = vrot.slane %v2579, 2
  %v2643 = vsel %vm1682, %v2638, %v2642
  %v2652 = vmax.f32 %v2616, %v2626
  %v2653 = vmax.f32 %v2617, %v2629
  %v2654 = vmax.f32 %v2618, %v2631
  %v2655 = vmax.f32 %v2619, %v2633
  %v2656 = vmax.f32 %v2620, %v2636
  %v2657 = vmax.f32 %v2621, %v2639
  %v2658 = vmax.f32 %v2622, %v2641
  %v2659 = vmax.f32 %v2623, %v2643
  %v2664 = vcombine.low %v2652, %v2653
  %v2666 = vunpack.c.l.s4 1966171168
  %v2667 = vunpack.c.0.s8 %v2666
  %v2668 = vlaneseq
  %v2669 = vshrl.u32 %v2668, 7
  %v2670 = vsub.s32 %v2667, %v2669
  %v2671 = vrot.slane %v2664, %v2670
  %v2673 = vunpack.c.l.s4 1966171168
  %v2674 = vunpack.c.0.s8 %v2673
  %v2675 = vlaneseq
  %v2676 = vshrl.u32 %v2675, 7
  %v2677 = vsub.s32 %v2674, %v2676
  %v2678 = vrot.slane %v2671, %v2677
  %v2679 = vcombine.low %v2656, %v2657
  %v2681 = vunpack.c.l.s4 1966171168
  %v2682 = vunpack.c.0.s8 %v2681
  %v2683 = vlaneseq
  %v2684 = vshrl.u32 %v2683, 7
  %v2685 = vsub.s32 %v2682, %v2684
  %v2686 = vrot.slane %v2679, %v2685
  %v2688 = vunpack.c.l.s4 1966171168
  %v2689 = vunpack.c.0.s8 %v2688
  %v2690 = vlaneseq
  %v2691 = vshrl.u32 %v2690, 7
  %v2692 = vsub.s32 %v2689, %v2691
  %v2693 = vrot.slane %v2686, %v2692
  %v2696 = vlaneseq
  %vm2697 = vcmp.ge.s32.totalorder %v2696, 0
  %vm2698 = vcmp.lt.s32.totalorder %v2696, 256
  %vm2699 = vmand %vm2697, %vm2698
  %2700 = vst.msk [vmem:[#allocation2] ss:$8 sm:$0x3] %vm2699, %v2678
  %2701 = vst.msk [vmem:[#allocation2] ss:$8 sm:$0x0] %vm2699, %v2678
  %s2702 = scalar_lea.vmem [#allocation2], 16
  %2703 = vst.msk [vmem:[%s2702] ss:$8 sm:$0x3] %vm2699, %v2693
  %2704 = vst.msk [vmem:[%s2702] ss:$8 sm:$0x0] %vm2699, %v2693
  %v2705 = vcombine.high %v2678, %v2678
  %v2706 = vcombine.high %v2693, %v2693
  %s2709 = scalar_lea.vmem [#allocation2], 1
  %2710 = vst.msk [vmem:[%s2709] ss:$8 sm:$0x3] %vm2699, %v2705
  %2711 = vst.msk [vmem:[%s2709] ss:$8 sm:$0x0] %vm2699, %v2705
  %s2712 = scalar_lea.vmem [#allocation2], 17
  %2713 = vst.msk [vmem:[%s2712] ss:$8 sm:$0x3] %vm2699, %v2706
  %2714 = vst.msk [vmem:[%s2712] ss:$8 sm:$0x0] %vm2699, %v2706
  %v2715 = vcombine.high %v2652, %v2653
  %v2717 = vunpack.c.l.s4 1966171168
  %v2718 = vunpack.c.0.s8 %v2717
  %v2719 = vlaneseq
  %v2720 = vshrl.u32 %v2719, 7
  %v2721 = vsub.s32 %v2718, %v2720
  %v2722 = vrot.slane %v2715, %v2721
  %v2724 = vunpack.c.l.s4 1966171168
  %v2725 = vunpack.c.0.s8 %v2724
  %v2726 = vlaneseq
  %v2727 = vshrl.u32 %v2726, 7
  %v2728 = vsub.s32 %v2725, %v2727
  %v2729 = vrot.slane %v2722, %v2728
  %v2730 = vcombine.high %v2656, %v2657
  %v2732 = vunpack.c.l.s4 1966171168
  %v2733 = vunpack.c.0.s8 %v2732
  %v2734 = vlaneseq
  %v2735 = vshrl.u32 %v2734, 7
  %v2736 = vsub.s32 %v2733, %v2735
  %v2737 = vrot.slane %v2730, %v2736
  %v2739 = vunpack.c.l.s4 1966171168
  %v2740 = vunpack.c.0.s8 %v2739
  %v2741 = vlaneseq
  %v2742 = vshrl.u32 %v2741, 7
  %v2743 = vsub.s32 %v2740, %v2742
  %v2744 = vrot.slane %v2737, %v2743
  %s2747 = scalar_lea.vmem [#allocation2], 2
  %2748 = vst.msk [vmem:[%s2747] ss:$8 sm:$0x3] %vm2699, %v2729
  %2749 = vst.msk [vmem:[%s2747] ss:$8 sm:$0x0] %vm2699, %v2729
  %s2750 = scalar_lea.vmem [#allocation2], 18
  %2751 = vst.msk [vmem:[%s2750] ss:$8 sm:$0x3] %vm2699, %v2744
  %2752 = vst.msk [vmem:[%s2750] ss:$8 sm:$0x0] %vm2699, %v2744
  %v2753 = vcombine.high %v2729, %v2729
  %v2754 = vcombine.high %v2744, %v2744
  %s2757 = scalar_lea.vmem [#allocation2], 3
  %2758 = vst.msk [vmem:[%s2757] ss:$8 sm:$0x3] %vm2699, %v2753
  %2759 = vst.msk [vmem:[%s2757] ss:$8 sm:$0x0] %vm2699, %v2753
  %s2760 = scalar_lea.vmem [#allocation2], 19
  %2761 = vst.msk [vmem:[%s2760] ss:$8 sm:$0x3] %vm2699, %v2754
  %2762 = vst.msk [vmem:[%s2760] ss:$8 sm:$0x0] %vm2699, %v2754
  %v2767 = vcombine.low %v2654, %v2655
  %v2769 = vunpack.c.l.s4 1966171168
  %v2770 = vunpack.c.0.s8 %v2769
  %v2771 = vlaneseq
  %v2772 = vshrl.u32 %v2771, 7
  %v2773 = vsub.s32 %v2770, %v2772
  %v2774 = vrot.slane %v2767, %v2773
  %v2776 = vunpack.c.l.s4 1966171168
  %v2777 = vunpack.c.0.s8 %v2776
  %v2778 = vlaneseq
  %v2779 = vshrl.u32 %v2778, 7
  %v2780 = vsub.s32 %v2777, %v2779
  %v2781 = vrot.slane %v2774, %v2780
  %v2782 = vcombine.low %v2658, %v2659
  %v2784 = vunpack.c.l.s4 1966171168
  %v2785 = vunpack.c.0.s8 %v2784
  %v2786 = vlaneseq
  %v2787 = vshrl.u32 %v2786, 7
  %v2788 = vsub.s32 %v2785, %v2787
  %v2789 = vrot.slane %v2782, %v2788
  %v2791 = vunpack.c.l.s4 1966171168
  %v2792 = vunpack.c.0.s8 %v2791
  %v2793 = vlaneseq
  %v2794 = vshrl.u32 %v2793, 7
  %v2795 = vsub.s32 %v2792, %v2794
  %v2796 = vrot.slane %v2789, %v2795
  %s2799 = scalar_lea.vmem [#allocation2], 4
  %2800 = vst.msk [vmem:[%s2799] ss:$8 sm:$0x3] %vm2699, %v2781
  %2801 = vst.msk [vmem:[%s2799] ss:$8 sm:$0x0] %vm2699, %v2781
  %s2802 = scalar_lea.vmem [#allocation2], 20
  %2803 = vst.msk [vmem:[%s2802] ss:$8 sm:$0x3] %vm2699, %v2796
  %2804 = vst.msk [vmem:[%s2802] ss:$8 sm:$0x0] %vm2699, %v2796
  %v2805 = vcombine.high %v2781, %v2781
  %v2806 = vcombine.high %v2796, %v2796
  %s2809 = scalar_lea.vmem [#allocation2], 5
  %2810 = vst.msk [vmem:[%s2809] ss:$8 sm:$0x3] %vm2699, %v2805
  %2811 = vst.msk [vmem:[%s2809] ss:$8 sm:$0x0] %vm2699, %v2805
  %s2812 = scalar_lea.vmem [#allocation2], 21
  %2813 = vst.msk [vmem:[%s2812] ss:$8 sm:$0x3] %vm2699, %v2806
  %2814 = vst.msk [vmem:[%s2812] ss:$8 sm:$0x0] %vm2699, %v2806
  %v2815 = vcombine.high %v2654, %v2655
  %v2817 = vunpack.c.l.s4 1966171168
  %v2818 = vunpack.c.0.s8 %v2817
  %v2819 = vlaneseq
  %v2820 = vshrl.u32 %v2819, 7
  %v2821 = vsub.s32 %v2818, %v2820
  %v2822 = vrot.slane %v2815, %v2821
  %v2824 = vunpack.c.l.s4 1966171168
  %v2825 = vunpack.c.0.s8 %v2824
  %v2826 = vlaneseq
  %v2827 = vshrl.u32 %v2826, 7
  %v2828 = vsub.s32 %v2825, %v2827
  %v2829 = vrot.slane %v2822, %v2828
  %v2830 = vcombine.high %v2658, %v2659
  %v2832 = vunpack.c.l.s4 1966171168
  %v2833 = vunpack.c.0.s8 %v2832
  %v2834 = vlaneseq
  %v2835 = vshrl.u32 %v2834, 7
  %v2836 = vsub.s32 %v2833, %v2835
  %v2837 = vrot.slane %v2830, %v2836
  %v2839 = vunpack.c.l.s4 1966171168
  %v2840 = vunpack.c.0.s8 %v2839
  %v2841 = vlaneseq
  %v2842 = vshrl.u32 %v2841, 7
  %v2843 = vsub.s32 %v2840, %v2842
  %v2844 = vrot.slane %v2837, %v2843
  %s2847 = scalar_lea.vmem [#allocation2], 6
  %2848 = vst.msk [vmem:[%s2847] ss:$8 sm:$0x3] %vm2699, %v2829
  %2849 = vst.msk [vmem:[%s2847] ss:$8 sm:$0x0] %vm2699, %v2829
  %s2850 = scalar_lea.vmem [#allocation2], 22
  %2851 = vst.msk [vmem:[%s2850] ss:$8 sm:$0x3] %vm2699, %v2844
  %2852 = vst.msk [vmem:[%s2850] ss:$8 sm:$0x0] %vm2699, %v2844
  %v2853 = vcombine.high %v2829, %v2829
  %v2854 = vcombine.high %v2844, %v2844
  %s2857 = scalar_lea.vmem [#allocation2], 7
  %2858 = vst.msk [vmem:[%s2857] ss:$8 sm:$0x3] %vm2699, %v2853
  %2859 = vst.msk [vmem:[%s2857] ss:$8 sm:$0x0] %vm2699, %v2853
  %s2860 = scalar_lea.vmem [#allocation2], 23
  %2861 = vst.msk [vmem:[%s2860] ss:$8 sm:$0x3] %vm2699, %v2854
  %2862 = vst.msk [vmem:[%s2860] ss:$8 sm:$0x0] %vm2699, %v2854
  %v2863 = vld [vmem:[#allocation2] sm:$0xff]
  %v2864 = vld [vmem:[#allocation2 + $0x8] sm:$0xff]
  %v2865 = vld [vmem:[#allocation2 + $0x10] sm:$0xff]
  %v2866 = vld [vmem:[#allocation2 + $0x18] sm:$0xff]
  %vm2867 = vcmask 130048
  %2868 = vst.msk [vmem:[#allocation5] sm:$0xff] %vm2867, -inf
  %2869 = vst.msk [vmem:[#allocation5 + $0x8] sm:$0xff] %vm2867, -inf
  %2870 = vst.msk [vmem:[#allocation3] sm:$0xff] %vm2867, %v2863
  %2871 = vst.msk [vmem:[#allocation3 + $0x8] sm:$0xff] %vm2867, %v2865
  %2874 = vrot.lane.b32.xlu0 %v2863, 112
  %v2875 = vpop.permute.xlu0 %2874
  %2876 = vrot.lane.b32.xlu0 %v2865, 112
  %v2877 = vpop.permute.xlu0 %2876
  %2880 = vst.msk [vmem:[#allocation4] sm:$0xff] %vm2867, %v2875
  %2881 = vst.msk [vmem:[#allocation4 + $0x8] sm:$0xff] %vm2867, %v2877
  %vm2882 = vcmask 261248
  %2883 = vst.msk [vmem:[#allocation3] sm:$0xff] %vm2882, %v2875
  %2884 = vst.msk [vmem:[#allocation3 + $0x8] sm:$0xff] %vm2882, %v2877
  %2885 = vrot.lane.b32.xlu0 %v2863, 96
  %v2886 = vpop.permute.xlu0 %2885
  %2887 = vrot.lane.b32.xlu0 %v2865, 96
  %v2888 = vpop.permute.xlu0 %2887
  %2891 = vst.msk [vmem:[#allocation4] sm:$0xff] %vm2882, %v2886
  %2892 = vst.msk [vmem:[#allocation4 + $0x8] sm:$0xff] %vm2882, %v2888
  %2893 = vst.msk [vmem:[#allocation5] sm:$0xff] %vm2882, %v2863
  %2894 = vst.msk [vmem:[#allocation5 + $0x8] sm:$0xff] %vm2882, %v2865
  %vm2895 = vcmask 392448
  %2896 = vst.msk [vmem:[#allocation3] sm:$0xff] %vm2895, %v2886
  %2897 = vst.msk [vmem:[#allocation3 + $0x8] sm:$0xff] %vm2895, %v2888
  %2898 = vrot.lane.b32.xlu0 %v2863, 80
  %v2899 = vpop.permute.xlu0 %2898
  %2900 = vrot.lane.b32.xlu0 %v2865, 80
  %v2901 = vpop.permute.xlu0 %2900
  %2904 = vst.msk [vmem:[#allocation4] sm:$0xff] %vm2895, %v2899
  %2905 = vst.msk [vmem:[#allocation4 + $0x8] sm:$0xff] %vm2895, %v2901
  %2906 = vst.msk [vmem:[#allocation5] sm:$0xff] %vm2895, %v2875
  %2907 = vst.msk [vmem:[#allocation5 + $0x8] sm:$0xff] %vm2895, %v2877
  %vm2908 = vcmask 523648
  %2909 = vst.msk [vmem:[#allocation3] sm:$0xff] %vm2908, %v2899
  %2910 = vst.msk [vmem:[#allocation3 + $0x8] sm:$0xff] %vm2908, %v2901
  %2911 = vrot.lane.b32.xlu0 %v2863, 64
  %v2912 = vpop.permute.xlu0 %2911
  %2913 = vrot.lane.b32.xlu0 %v2865, 64
  %v2914 = vpop.permute.xlu0 %2913
  %2917 = vst.msk [vmem:[#allocation4] sm:$0xff] %vm2908, %v2912
  %2918 = vst.msk [vmem:[#allocation4 + $0x8] sm:$0xff] %vm2908, %v2914
  %2919 = vst.msk [vmem:[#allocation5] sm:$0xff] %vm2908, %v2886
  %2920 = vst.msk [vmem:[#allocation5 + $0x8] sm:$0xff] %vm2908, %v2888
  %2923 = vrot.lane.b32.xlu0 %v2864, 64
  %v2924 = vpop.permute.xlu0 %2923
  %2925 = vrot.lane.b32.xlu0 %v2866, 64
  %v2926 = vpop.permute.xlu0 %2925
  %vm2929 = vcmask 654848
  %2930 = vst.msk [vmem:[#allocation3] sm:$0xff] %vm2929, %v2924
  %2931 = vst.msk [vmem:[#allocation3 + $0x8] sm:$0xff] %vm2929, %v2926
  %2932 = vrot.lane.b32.xlu0 %v2864, 48
  %v2933 = vpop.permute.xlu0 %2932
  %2934 = vrot.lane.b32.xlu0 %v2866, 48
  %v2935 = vpop.permute.xlu0 %2934
  %2938 = vst.msk [vmem:[#allocation4] sm:$0xff] %vm2929, %v2933
  %2939 = vst.msk [vmem:[#allocation4 + $0x8] sm:$0xff] %vm2929, %v2935
  %2940 = vst.msk [vmem:[#allocation5] sm:$0xff] %vm2929, %v2899
  %2941 = vst.msk [vmem:[#allocation5 + $0x8] sm:$0xff] %vm2929, %v2901
  %vm2942 = vcmask 786048
  %2943 = vst.msk [vmem:[#allocation3] sm:$0xff] %vm2942, %v2933
  %2944 = vst.msk [vmem:[#allocation3 + $0x8] sm:$0xff] %vm2942, %v2935
  %2945 = vrot.lane.b32.xlu0 %v2864, 32
  %v2946 = vpop.permute.xlu0 %2945
  %2947 = vrot.lane.b32.xlu0 %v2866, 32
  %v2948 = vpop.permute.xlu0 %2947
  %2951 = vst.msk [vmem:[#allocation4] sm:$0xff] %vm2942, %v2946
  %2952 = vst.msk [vmem:[#allocation4 + $0x8] sm:$0xff] %vm2942, %v2948
  %2953 = vst.msk [vmem:[#allocation5] sm:$0xff] %vm2942, %v2924
  %2954 = vst.msk [vmem:[#allocation5 + $0x8] sm:$0xff] %vm2942, %v2926
  %vm2955 = vcmask 917248
  %2956 = vst.msk [vmem:[#allocation3] sm:$0xff] %vm2955, %v2946
  %2957 = vst.msk [vmem:[#allocation3 + $0x8] sm:$0xff] %vm2955, %v2948
  %2958 = vrot.lane.b32.xlu0 %v2864, 16
  %v2959 = vpop.permute.xlu0 %2958
  %2960 = vrot.lane.b32.xlu0 %v2866, 16
  %v2961 = vpop.permute.xlu0 %2960
  %2964 = vst.msk [vmem:[#allocation4] sm:$0xff] %vm2955, %v2959
  %2965 = vst.msk [vmem:[#allocation4 + $0x8] sm:$0xff] %vm2955, %v2961
  %2966 = vst.msk [vmem:[#allocation5] sm:$0xff] %vm2955, %v2933
  %2967 = vst.msk [vmem:[#allocation5 + $0x8] sm:$0xff] %vm2955, %v2935
  %vm2968 = vcmask 1048448
  %2969 = vst.msk [vmem:[#allocation3] sm:$0xff] %vm2968, %v2959
  %2970 = vst.msk [vmem:[#allocation3 + $0x8] sm:$0xff] %vm2968, %v2961
  %2971 = vst.msk [vmem:[#allocation4] sm:$0xff] %vm2968, %v2864
  %2972 = vst.msk [vmem:[#allocation4 + $0x8] sm:$0xff] %vm2968, %v2866
  %2973 = vst.msk [vmem:[#allocation5] sm:$0xff] %vm2968, %v2946
  %2974 = vst.msk [vmem:[#allocation5 + $0x8] sm:$0xff] %vm2968, %v2948
  %v2975 = vld [vmem:[#allocation3] sm:$0xff]
  %v2976 = vld [vmem:[#allocation3 + $0x8] sm:$0xff]
  %v2977 = vld [vmem:[#allocation4] sm:$0xff]
  %v2978 = vld [vmem:[#allocation4 + $0x8] sm:$0xff]
  %v2979 = vld [vmem:[#allocation5] sm:$0xff]
  %v2980 = vld [vmem:[#allocation5 + $0x8] sm:$0xff]
  %v2981 = vmax.f32 %v2977, %v2979
  %v2982 = vmax.f32 %v2978, %v2980
  %v2983 = vmax.f32 %v2975, %v2981
  %v2984 = vmax.f32 %v2976, %v2982
  %v2985 = vmax.f32 %v2983, 0.0
  %v2986 = vmax.f32 %v2984, 0.0
  %v2989 = vrot.slane %v2985, 7
  %v2990 = vrot.slane %v2986, 7
  %v2993 = vsel %vm2547, 0.0, %v2989
  %v2994 = vsel %vm2547, 0.0, %v2990
  %v2995 = vsel %vm2547, %v2989, 0.0
  %v2996 = vsel %vm2547, %v2990, 0.0
  %v2997 = vld [vmem:[%s4] sm:$0x1]
  %v2998 = vld [vmem:[%s3] sm:$0xff]
  %v2999 = vld [vmem:[%s3 + $0x8] sm:$0xff]
  %v3000 = vld [vmem:[%s3 + $0x10] sm:$0xff]
  %v3001 = vld [vmem:[%s3 + $0x18] sm:$0xff]
  %v3002 = vld [vmem:[%s3 + $0x20] sm:$0xff]
  %v3003 = vld [vmem:[%s3 + $0x28] sm:$0xff]
  %v3004 = vld [vmem:[%s3 + $0x30] sm:$0xff]
  %v3005 = vld [vmem:[%s3 + $0x38] sm:$0xff]
  %v3006 = vld [vmem:[%s3 + $0x40] sm:$0xff]
  %v3007 = vld [vmem:[%s3 + $0x48] sm:$0xff]
  %v3008 = vld [vmem:[%s3 + $0x50] sm:$0xff]
  %v3009 = vld [vmem:[%s3 + $0x58] sm:$0xff]
  %v3010 = vld [vmem:[%s3 + $0x60] sm:$0xff]
  %v3011 = vld [vmem:[%s3 + $0x68] sm:$0xff]
  %v3012 = vld [vmem:[%s3 + $0x70] sm:$0xff]
  %v3013 = vld [vmem:[%s3 + $0x78] sm:$0xff]
  %v3018 = vrot.slane %v2993, 1
  %v3019 = vrot.slane %v2995, 1
  %v3020 = vsel %vm49, %v3018, %v3019
  %v3021 = vrot.slane %v2994, 1
  %v3022 = vrot.slane %v2996, 1
  %v3023 = vsel %vm49, %v3021, %v3022
  %s3026 = scalar_lea.vmem %s3, 128
  %v3027 = vld [vmem:[%s3026] sm:$0xff]
  %v3028 = vld [vmem:[%s3026 + $0x8] sm:$0xff]
  %v3029 = vld [vmem:[%s3026 + $0x10] sm:$0xff]
  %v3030 = vld [vmem:[%s3026 + $0x18] sm:$0xff]
  %v3031 = vld [vmem:[%s3026 + $0x20] sm:$0xff]
  %v3032 = vld [vmem:[%s3026 + $0x28] sm:$0xff]
  %v3033 = vld [vmem:[%s3026 + $0x30] sm:$0xff]
  %v3034 = vld [vmem:[%s3026 + $0x38] sm:$0xff]
  %v3035 = vld [vmem:[%s3026 + $0x40] sm:$0xff]
  %v3036 = vld [vmem:[%s3026 + $0x48] sm:$0xff]
  %v3037 = vld [vmem:[%s3026 + $0x50] sm:$0xff]
  %v3038 = vld [vmem:[%s3026 + $0x58] sm:$0xff]
  %v3039 = vld [vmem:[%s3026 + $0x60] sm:$0xff]
  %v3040 = vld [vmem:[%s3026 + $0x68] sm:$0xff]
  %v3041 = vld [vmem:[%s3026 + $0x70] sm:$0xff]
  %v3042 = vld [vmem:[%s3026 + $0x78] sm:$0xff]
  %3043 = vmatprep.subr.mxu0 0.0
  %v3044 = vand.u32 %v3042, 4294901760
  %3045 = vmatpush1.msra.mxu0 %v3044
  %3046 = vmatprep.subr.mxu0 0.0
  %v3047 = vand.u32 %v3041, 4294901760
  %3048 = vmatpush1.msra.mxu0 %v3047
  %3049 = vmatprep.subr.mxu0 0.0
  %v3050 = vand.u32 %v3040, 4294901760
  %3051 = vmatpush1.msra.mxu0 %v3050
  %3052 = vmatprep.subr.mxu0 0.0
  %v3053 = vand.u32 %v3039, 4294901760
  %3054 = vmatpush1.msra.mxu0 %v3053
  %3055 = vmatprep.subr.mxu0 0.0
  %v3056 = vand.u32 %v3038, 4294901760
  %3057 = vmatpush1.msra.mxu0 %v3056
  %3058 = vmatprep.subr.mxu0 0.0
  %v3059 = vand.u32 %v3037, 4294901760
  %3060 = vmatpush1.msra.mxu0 %v3059
  %3061 = vmatprep.subr.mxu0 0.0
  %v3062 = vand.u32 %v3036, 4294901760
  %3063 = vmatpush1.msra.mxu0 %v3062
  %3064 = vmatprep.subr.mxu0 0.0
  %v3065 = vand.u32 %v3035, 4294901760
  %3066 = vmatpush1.msra.mxu0 %v3065
  %3067 = vmatprep.subr.mxu0 0.0
  %v3068 = vand.u32 %v3034, 4294901760
  %3069 = vmatpush1.msra.mxu0 %v3068
  %3070 = vmatprep.subr.mxu0 0.0
  %v3071 = vand.u32 %v3033, 4294901760
  %3072 = vmatpush1.msra.mxu0 %v3071
  %3073 = vmatprep.subr.mxu0 0.0
  %v3074 = vand.u32 %v3032, 4294901760
  %3075 = vmatpush1.msra.mxu0 %v3074
  %3076 = vmatprep.subr.mxu0 0.0
  %v3077 = vand.u32 %v3031, 4294901760
  %3078 = vmatpush1.msra.mxu0 %v3077
  %3079 = vmatprep.subr.mxu0 0.0
  %v3080 = vand.u32 %v3030, 4294901760
  %3081 = vmatpush1.msra.mxu0 %v3080
  %3082 = vmatprep.subr.mxu0 0.0
  %v3083 = vand.u32 %v3029, 4294901760
  %3084 = vmatpush1.msra.mxu0 %v3083
  %3085 = vmatprep.subr.mxu0 0.0
  %v3086 = vand.u32 %v3028, 4294901760
  %3087 = vmatpush1.msra.mxu0 %v3086
  %3088 = vmatprep.subr.mxu0 0.0
  %v3089 = vand.u32 %v3027, 4294901760
  %3090 = vmatpush1.msra.mxu0 %v3089
  %3091 = vmatprep.subr.mxu0 0.0
  %3092 = vmatpush2.msra.mxu0 0.0
  %3093 = vmatprep.subr.mxu0 0.0
  %3094 = vmatpush2.msra.mxu0 0.0
  %3095 = vmatprep.subr.mxu0 0.0
  %3096 = vmatpush2.msra.mxu0 0.0
  %3097 = vmatprep.subr.mxu0 0.0
  %3098 = vmatpush2.msra.mxu0 0.0
  %3099 = vmatprep.subr.mxu0 0.0
  %3100 = vmatpush2.msra.mxu0 0.0
  %3101 = vmatprep.subr.mxu0 0.0
  %3102 = vmatpush2.msra.mxu0 0.0
  %3103 = vmatprep.subr.mxu0 0.0
  %3104 = vmatpush2.msra.mxu0 0.0
  %3105 = vmatprep.subr.mxu0 0.0
  %3106 = vmatpush2.msra.mxu0 0.0
  %3107 = vmatprep.subr.mxu0 0.0
  %3108 = vmatpush2.msra.mxu0 0.0
  %3109 = vmatprep.subr.mxu0 0.0
  %3110 = vmatpush2.msra.mxu0 0.0
  %3111 = vmatprep.subr.mxu0 0.0
  %3112 = vmatpush2.msra.mxu0 0.0
  %3113 = vmatprep.subr.mxu0 0.0
  %3114 = vmatpush2.msra.mxu0 0.0
  %3115 = vmatprep.subr.mxu0 0.0
  %3116 = vmatpush2.msra.mxu0 0.0
  %3117 = vmatprep.subr.mxu0 0.0
  %3118 = vmatpush2.msra.mxu0 0.0
  %3119 = vmatprep.subr.mxu0 0.0
  %3120 = vmatpush2.msra.mxu0 0.0
  %3121 = vmatprep.subr.mxu0 0.0
  %3122 = vmatpush2.msra.mxu0 0.0
  %3123 = vmatprep.mubr.f32.mxu0 0.0
  %v3124 = vand.u32 %v3020, 4294901760
  %v3125 = vsub.f32 %v3020, %v3124
  %v3126 = vand.u32 %v3125, 4294901760
  %v3127 = vsub.f32 %v3125, %v3126
  %v3128 = vand.u32 %v3127, 4294901760
  %3129 = vmatmul.mubr.f32.gmra.mxu0 %v3128
  %v3130 = vpop.f32.mrf.mxu0
  %v3131 = vadd.f32 0.0, %v3130
  %v3132 = vpop.f32.mrf.mxu0
  %3133 = vmatprep.mubr.f32.mxu0 0.0
  %v3134 = vand.u32 %v3023, 4294901760
  %v3135 = vsub.f32 %v3023, %v3134
  %v3136 = vand.u32 %v3135, 4294901760
  %v3137 = vsub.f32 %v3135, %v3136
  %v3138 = vand.u32 %v3137, 4294901760
  %3139 = vmatmul.mubr.f32.gmra.mxu0 %v3138
  %v3140 = vpop.f32.mrf.mxu0
  %v3141 = vadd.f32 0.0, %v3140
  %v3142 = vpop.f32.mrf.mxu0
  %3143 = vdwg.mxu0
  %3144 = vmatprep.subr.mxu0 0.0
  %v3145 = vand.u32 %v3042, 4294901760
  %v3146 = vsub.f32 %v3042, %v3145
  %v3147 = vand.u32 %v3146, 4294901760
  %v3148 = vsub.f32 %v3146, %v3147
  %v3149 = vand.u32 %v3148, 4294901760
  %3150 = vmatpush1.msra.mxu0 %v3149
  %3151 = vmatprep.subr.mxu0 0.0
  %v3152 = vand.u32 %v3041, 4294901760
  %v3153 = vsub.f32 %v3041, %v3152
  %v3154 = vand.u32 %v3153, 4294901760
  %v3155 = vsub.f32 %v3153, %v3154
  %v3156 = vand.u32 %v3155, 4294901760
  %3157 = vmatpush1.msra.mxu0 %v3156
  %3158 = vmatprep.subr.mxu0 0.0
  %v3159 = vand.u32 %v3040, 4294901760
  %v3160 = vsub.f32 %v3040, %v3159
  %v3161 = vand.u32 %v3160, 4294901760
  %v3162 = vsub.f32 %v3160, %v3161
  %v3163 = vand.u32 %v3162, 4294901760
  %3164 = vmatpush1.msra.mxu0 %v3163
  %3165 = vmatprep.subr.mxu0 0.0
  %v3166 = vand.u32 %v3039, 4294901760
  %v3167 = vsub.f32 %v3039, %v3166
  %v3168 = vand.u32 %v3167, 4294901760
  %v3169 = vsub.f32 %v3167, %v3168
  %v3170 = vand.u32 %v3169, 4294901760
  %3171 = vmatpush1.msra.mxu0 %v3170
  %3172 = vmatprep.subr.mxu0 0.0
  %v3173 = vand.u32 %v3038, 4294901760
  %v3174 = vsub.f32 %v3038, %v3173
  %v3175 = vand.u32 %v3174, 4294901760
  %v3176 = vsub.f32 %v3174, %v3175
  %v3177 = vand.u32 %v3176, 4294901760
  %3178 = vmatpush1.msra.mxu0 %v3177
  %3179 = vmatprep.subr.mxu0 0.0
  %v3180 = vand.u32 %v3037, 4294901760
  %v3181 = vsub.f32 %v3037, %v3180
  %v3182 = vand.u32 %v3181, 4294901760
  %v3183 = vsub.f32 %v3181, %v3182
  %v3184 = vand.u32 %v3183, 4294901760
  %3185 = vmatpush1.msra.mxu0 %v3184
  %3186 = vmatprep.subr.mxu0 0.0
  %v3187 = vand.u32 %v3036, 4294901760
  %v3188 = vsub.f32 %v3036, %v3187
  %v3189 = vand.u32 %v3188, 4294901760
  %v3190 = vsub.f32 %v3188, %v3189
  %v3191 = vand.u32 %v3190, 4294901760
  %3192 = vmatpush1.msra.mxu0 %v3191
  %3193 = vmatprep.subr.mxu0 0.0
  %v3194 = vand.u32 %v3035, 4294901760
  %v3195 = vsub.f32 %v3035, %v3194
  %v3196 = vand.u32 %v3195, 4294901760
  %v3197 = vsub.f32 %v3195, %v3196
  %v3198 = vand.u32 %v3197, 4294901760
  %3199 = vmatpush1.msra.mxu0 %v3198
  %3200 = vmatprep.subr.mxu0 0.0
  %v3201 = vand.u32 %v3034, 4294901760
  %v3202 = vsub.f32 %v3034, %v3201
  %v3203 = vand.u32 %v3202, 4294901760
  %v3204 = vsub.f32 %v3202, %v3203
  %v3205 = vand.u32 %v3204, 4294901760
  %3206 = vmatpush1.msra.mxu0 %v3205
  %3207 = vmatprep.subr.mxu0 0.0
  %v3208 = vand.u32 %v3033, 4294901760
  %v3209 = vsub.f32 %v3033, %v3208
  %v3210 = vand.u32 %v3209, 4294901760
  %v3211 = vsub.f32 %v3209, %v3210
  %v3212 = vand.u32 %v3211, 4294901760
  %3213 = vmatpush1.msra.mxu0 %v3212
  %3214 = vmatprep.subr.mxu0 0.0
  %v3215 = vand.u32 %v3032, 4294901760
  %v3216 = vsub.f32 %v3032, %v3215
  %v3217 = vand.u32 %v3216, 4294901760
  %v3218 = vsub.f32 %v3216, %v3217
  %v3219 = vand.u32 %v3218, 4294901760
  %3220 = vmatpush1.msra.mxu0 %v3219
  %3221 = vmatprep.subr.mxu0 0.0
  %v3222 = vand.u32 %v3031, 4294901760
  %v3223 = vsub.f32 %v3031, %v3222
  %v3224 = vand.u32 %v3223, 4294901760
  %v3225 = vsub.f32 %v3223, %v3224
  %v3226 = vand.u32 %v3225, 4294901760
  %3227 = vmatpush1.msra.mxu0 %v3226
  %3228 = vmatprep.subr.mxu0 0.0
  %v3229 = vand.u32 %v3030, 4294901760
  %v3230 = vsub.f32 %v3030, %v3229
  %v3231 = vand.u32 %v3230, 4294901760
  %v3232 = vsub.f32 %v3230, %v3231
  %v3233 = vand.u32 %v3232, 4294901760
  %3234 = vmatpush1.msra.mxu0 %v3233
  %3235 = vmatprep.subr.mxu0 0.0
  %v3236 = vand.u32 %v3029, 4294901760
  %v3237 = vsub.f32 %v3029, %v3236
  %v3238 = vand.u32 %v3237, 4294901760
  %v3239 = vsub.f32 %v3237, %v3238
  %v3240 = vand.u32 %v3239, 4294901760
  %3241 = vmatpush1.msra.mxu0 %v3240
  %3242 = vmatprep.subr.mxu0 0.0
  %v3243 = vand.u32 %v3028, 4294901760
  %v3244 = vsub.f32 %v3028, %v3243
  %v3245 = vand.u32 %v3244, 4294901760
  %v3246 = vsub.f32 %v3244, %v3245
  %v3247 = vand.u32 %v3246, 4294901760
  %3248 = vmatpush1.msra.mxu0 %v3247
  %3249 = vmatprep.subr.mxu0 0.0
  %v3250 = vand.u32 %v3027, 4294901760
  %v3251 = vsub.f32 %v3027, %v3250
  %v3252 = vand.u32 %v3251, 4294901760
  %v3253 = vsub.f32 %v3251, %v3252
  %v3254 = vand.u32 %v3253, 4294901760
  %3255 = vmatpush1.msra.mxu0 %v3254
  %3256 = vmatprep.subr.mxu0 0.0
  %3257 = vmatpush2.msra.mxu0 0.0
  %3258 = vmatprep.subr.mxu0 0.0
  %3259 = vmatpush2.msra.mxu0 0.0
  %3260 = vmatprep.subr.mxu0 0.0
  %3261 = vmatpush2.msra.mxu0 0.0
  %3262 = vmatprep.subr.mxu0 0.0
  %3263 = vmatpush2.msra.mxu0 0.0
  %3264 = vmatprep.subr.mxu0 0.0
  %3265 = vmatpush2.msra.mxu0 0.0
  %3266 = vmatprep.subr.mxu0 0.0
  %3267 = vmatpush2.msra.mxu0 0.0
  %3268 = vmatprep.subr.mxu0 0.0
  %3269 = vmatpush2.msra.mxu0 0.0
  %3270 = vmatprep.subr.mxu0 0.0
  %3271 = vmatpush2.msra.mxu0 0.0
  %3272 = vmatprep.subr.mxu0 0.0
  %3273 = vmatpush2.msra.mxu0 0.0
  %3274 = vmatprep.subr.mxu0 0.0
  %3275 = vmatpush2.msra.mxu0 0.0
  %3276 = vmatprep.subr.mxu0 0.0
  %3277 = vmatpush2.msra.mxu0 0.0
  %3278 = vmatprep.subr.mxu0 0.0
  %3279 = vmatpush2.msra.mxu0 0.0
  %3280 = vmatprep.subr.mxu0 0.0
  %3281 = vmatpush2.msra.mxu0 0.0
  %3282 = vmatprep.subr.mxu0 0.0
  %3283 = vmatpush2.msra.mxu0 0.0
  %3284 = vmatprep.subr.mxu0 0.0
  %3285 = vmatpush2.msra.mxu0 0.0
  %3286 = vmatprep.subr.mxu0 0.0
  %3287 = vmatpush2.msra.mxu0 0.0
  %3288 = vmatprep.mubr.f32.mxu0 0.0
  %v3289 = vand.u32 %v3020, 4294901760
  %3290 = vmatmul.mubr.f32.gmra.mxu0 %v3289
  %v3291 = vpop.f32.mrf.mxu0
  %v3292 = vadd.f32 %v3131, %v3291
  %v3293 = vpop.f32.mrf.mxu0
  %3294 = vmatprep.mubr.f32.mxu0 0.0
  %v3295 = vand.u32 %v3023, 4294901760
  %3296 = vmatmul.mubr.f32.gmra.mxu0 %v3295
  %v3297 = vpop.f32.mrf.mxu0
  %v3298 = vadd.f32 %v3141, %v3297
  %v3299 = vpop.f32.mrf.mxu0
  %3300 = vdwg.mxu0
  %3301 = vmatprep.subr.mxu0 0.0
  %v3302 = vand.u32 %v3042, 4294901760
  %v3303 = vsub.f32 %v3042, %v3302
  %3304 = vmatpush1.msra.mxu0 %v3303
  %3305 = vmatprep.subr.mxu0 0.0
  %v3306 = vand.u32 %v3041, 4294901760
  %v3307 = vsub.f32 %v3041, %v3306
  %3308 = vmatpush1.msra.mxu0 %v3307
  %3309 = vmatprep.subr.mxu0 0.0
  %v3310 = vand.u32 %v3040, 4294901760
  %v3311 = vsub.f32 %v3040, %v3310
  %3312 = vmatpush1.msra.mxu0 %v3311
  %3313 = vmatprep.subr.mxu0 0.0
  %v3314 = vand.u32 %v3039, 4294901760
  %v3315 = vsub.f32 %v3039, %v3314
  %3316 = vmatpush1.msra.mxu0 %v3315
  %3317 = vmatprep.subr.mxu0 0.0
  %v3318 = vand.u32 %v3038, 4294901760
  %v3319 = vsub.f32 %v3038, %v3318
  %3320 = vmatpush1.msra.mxu0 %v3319
  %3321 = vmatprep.subr.mxu0 0.0
  %v3322 = vand.u32 %v3037, 4294901760
  %v3323 = vsub.f32 %v3037, %v3322
  %3324 = vmatpush1.msra.mxu0 %v3323
  %3325 = vmatprep.subr.mxu0 0.0
  %v3326 = vand.u32 %v3036, 4294901760
  %v3327 = vsub.f32 %v3036, %v3326
  %3328 = vmatpush1.msra.mxu0 %v3327
  %3329 = vmatprep.subr.mxu0 0.0
  %v3330 = vand.u32 %v3035, 4294901760
  %v3331 = vsub.f32 %v3035, %v3330
  %3332 = vmatpush1.msra.mxu0 %v3331
  %3333 = vmatprep.subr.mxu0 0.0
  %v3334 = vand.u32 %v3034, 4294901760
  %v3335 = vsub.f32 %v3034, %v3334
  %3336 = vmatpush1.msra.mxu0 %v3335
  %3337 = vmatprep.subr.mxu0 0.0
  %v3338 = vand.u32 %v3033, 4294901760
  %v3339 = vsub.f32 %v3033, %v3338
  %3340 = vmatpush1.msra.mxu0 %v3339
  %3341 = vmatprep.subr.mxu0 0.0
  %v3342 = vand.u32 %v3032, 4294901760
  %v3343 = vsub.f32 %v3032, %v3342
  %3344 = vmatpush1.msra.mxu0 %v3343
  %3345 = vmatprep.subr.mxu0 0.0
  %v3346 = vand.u32 %v3031, 4294901760
  %v3347 = vsub.f32 %v3031, %v3346
  %3348 = vmatpush1.msra.mxu0 %v3347
  %3349 = vmatprep.subr.mxu0 0.0
  %v3350 = vand.u32 %v3030, 4294901760
  %v3351 = vsub.f32 %v3030, %v3350
  %3352 = vmatpush1.msra.mxu0 %v3351
  %3353 = vmatprep.subr.mxu0 0.0
  %v3354 = vand.u32 %v3029, 4294901760
  %v3355 = vsub.f32 %v3029, %v3354
  %3356 = vmatpush1.msra.mxu0 %v3355
  %3357 = vmatprep.subr.mxu0 0.0
  %v3358 = vand.u32 %v3028, 4294901760
  %v3359 = vsub.f32 %v3028, %v3358
  %3360 = vmatpush1.msra.mxu0 %v3359
  %3361 = vmatprep.subr.mxu0 0.0
  %v3362 = vand.u32 %v3027, 4294901760
  %v3363 = vsub.f32 %v3027, %v3362
  %3364 = vmatpush1.msra.mxu0 %v3363
  %3365 = vmatprep.subr.mxu0 0.0
  %3366 = vmatpush2.msra.mxu0 0.0
  %3367 = vmatprep.subr.mxu0 0.0
  %3368 = vmatpush2.msra.mxu0 0.0
  %3369 = vmatprep.subr.mxu0 0.0
  %3370 = vmatpush2.msra.mxu0 0.0
  %3371 = vmatprep.subr.mxu0 0.0
  %3372 = vmatpush2.msra.mxu0 0.0
  %3373 = vmatprep.subr.mxu0 0.0
  %3374 = vmatpush2.msra.mxu0 0.0
  %3375 = vmatprep.subr.mxu0 0.0
  %3376 = vmatpush2.msra.mxu0 0.0
  %3377 = vmatprep.subr.mxu0 0.0
  %3378 = vmatpush2.msra.mxu0 0.0
  %3379 = vmatprep.subr.mxu0 0.0
  %3380 = vmatpush2.msra.mxu0 0.0
  %3381 = vmatprep.subr.mxu0 0.0
  %3382 = vmatpush2.msra.mxu0 0.0
  %3383 = vmatprep.subr.mxu0 0.0
  %3384 = vmatpush2.msra.mxu0 0.0
  %3385 = vmatprep.subr.mxu0 0.0
  %3386 = vmatpush2.msra.mxu0 0.0
  %3387 = vmatprep.subr.mxu0 0.0
  %3388 = vmatpush2.msra.mxu0 0.0
  %3389 = vmatprep.subr.mxu0 0.0
  %3390 = vmatpush2.msra.mxu0 0.0
  %3391 = vmatprep.subr.mxu0 0.0
  %3392 = vmatpush2.msra.mxu0 0.0
  %3393 = vmatprep.subr.mxu0 0.0
  %3394 = vmatpush2.msra.mxu0 0.0
  %3395 = vmatprep.subr.mxu0 0.0
  %3396 = vmatpush2.msra.mxu0 0.0
  %3397 = vmatprep.mubr.f32.mxu0 0.0
  %v3398 = vand.u32 %v3020, 4294901760
  %v3399 = vsub.f32 %v3020, %v3398
  %3400 = vmatmul.mubr.f32.gmra.mxu0 %v3399
  %v3401 = vpop.f32.mrf.mxu0
  %v3402 = vadd.f32 %v3292, %v3401
  %v3403 = vpop.f32.mrf.mxu0
  %3404 = vmatprep.mubr.f32.mxu0 0.0
  %v3405 = vand.u32 %v3023, 4294901760
  %v3406 = vsub.f32 %v3023, %v3405
  %3407 = vmatmul.mubr.f32.gmra.mxu0 %v3406
  %v3408 = vpop.f32.mrf.mxu0
  %v3409 = vadd.f32 %v3298, %v3408
  %v3410 = vpop.f32.mrf.mxu0
  %3411 = vdwg.mxu0
  %3412 = vmatprep.subr.mxu0 0.0
  %v3413 = vand.u32 %v3042, 4294901760
  %3414 = vmatpush1.msra.mxu0 %v3413
  %3415 = vmatprep.subr.mxu0 0.0
  %v3416 = vand.u32 %v3041, 4294901760
  %3417 = vmatpush1.msra.mxu0 %v3416
  %3418 = vmatprep.subr.mxu0 0.0
  %v3419 = vand.u32 %v3040, 4294901760
  %3420 = vmatpush1.msra.mxu0 %v3419
  %3421 = vmatprep.subr.mxu0 0.0
  %v3422 = vand.u32 %v3039, 4294901760
  %3423 = vmatpush1.msra.mxu0 %v3422
  %3424 = vmatprep.subr.mxu0 0.0
  %v3425 = vand.u32 %v3038, 4294901760
  %3426 = vmatpush1.msra.mxu0 %v3425
  %3427 = vmatprep.subr.mxu0 0.0
  %v3428 = vand.u32 %v3037, 4294901760
  %3429 = vmatpush1.msra.mxu0 %v3428
  %3430 = vmatprep.subr.mxu0 0.0
  %v3431 = vand.u32 %v3036, 4294901760
  %3432 = vmatpush1.msra.mxu0 %v3431
  %3433 = vmatprep.subr.mxu0 0.0
  %v3434 = vand.u32 %v3035, 4294901760
  %3435 = vmatpush1.msra.mxu0 %v3434
  %3436 = vmatprep.subr.mxu0 0.0
  %v3437 = vand.u32 %v3034, 4294901760
  %3438 = vmatpush1.msra.mxu0 %v3437
  %3439 = vmatprep.subr.mxu0 0.0
  %v3440 = vand.u32 %v3033, 4294901760
  %3441 = vmatpush1.msra.mxu0 %v3440
  %3442 = vmatprep.subr.mxu0 0.0
  %v3443 = vand.u32 %v3032, 4294901760
  %3444 = vmatpush1.msra.mxu0 %v3443
  %3445 = vmatprep.subr.mxu0 0.0
  %v3446 = vand.u32 %v3031, 4294901760
  %3447 = vmatpush1.msra.mxu0 %v3446
  %3448 = vmatprep.subr.mxu0 0.0
  %v3449 = vand.u32 %v3030, 4294901760
  %3450 = vmatpush1.msra.mxu0 %v3449
  %3451 = vmatprep.subr.mxu0 0.0
  %v3452 = vand.u32 %v3029, 4294901760
  %3453 = vmatpush1.msra.mxu0 %v3452
  %3454 = vmatprep.subr.mxu0 0.0
  %v3455 = vand.u32 %v3028, 4294901760
  %3456 = vmatpush1.msra.mxu0 %v3455
  %3457 = vmatprep.subr.mxu0 0.0
  %v3458 = vand.u32 %v3027, 4294901760
  %3459 = vmatpush1.msra.mxu0 %v3458
  %3460 = vmatprep.subr.mxu0 0.0
  %3461 = vmatpush2.msra.mxu0 0.0
  %3462 = vmatprep.subr.mxu0 0.0
  %3463 = vmatpush2.msra.mxu0 0.0
  %3464 = vmatprep.subr.mxu0 0.0
  %3465 = vmatpush2.msra.mxu0 0.0
  %3466 = vmatprep.subr.mxu0 0.0
  %3467 = vmatpush2.msra.mxu0 0.0
  %3468 = vmatprep.subr.mxu0 0.0
  %3469 = vmatpush2.msra.mxu0 0.0
  %3470 = vmatprep.subr.mxu0 0.0
  %3471 = vmatpush2.msra.mxu0 0.0
  %3472 = vmatprep.subr.mxu0 0.0
  %3473 = vmatpush2.msra.mxu0 0.0
  %3474 = vmatprep.subr.mxu0 0.0
  %3475 = vmatpush2.msra.mxu0 0.0
  %3476 = vmatprep.subr.mxu0 0.0
  %3477 = vmatpush2.msra.mxu0 0.0
  %3478 = vmatprep.subr.mxu0 0.0
  %3479 = vmatpush2.msra.mxu0 0.0
  %3480 = vmatprep.subr.mxu0 0.0
  %3481 = vmatpush2.msra.mxu0 0.0
  %3482 = vmatprep.subr.mxu0 0.0
  %3483 = vmatpush2.msra.mxu0 0.0
  %3484 = vmatprep.subr.mxu0 0.0
  %3485 = vmatpush2.msra.mxu0 0.0
  %3486 = vmatprep.subr.mxu0 0.0
  %3487 = vmatpush2.msra.mxu0 0.0
  %3488 = vmatprep.subr.mxu0 0.0
  %3489 = vmatpush2.msra.mxu0 0.0
  %3490 = vmatprep.subr.mxu0 0.0
  %3491 = vmatpush2.msra.mxu0 0.0
  %3492 = vmatprep.mubr.f32.mxu0 0.0
  %v3493 = vand.u32 %v3020, 4294901760
  %v3494 = vsub.f32 %v3020, %v3493
  %v3495 = vand.u32 %v3494, 4294901760
  %3496 = vmatmul.mubr.f32.gmra.mxu0 %v3495
  %v3497 = vpop.f32.mrf.mxu0
  %v3498 = vadd.f32 %v3402, %v3497
  %v3499 = vpop.f32.mrf.mxu0
  %3500 = vmatprep.mubr.f32.mxu0 0.0
  %v3501 = vand.u32 %v3023, 4294901760
  %v3502 = vsub.f32 %v3023, %v3501
  %v3503 = vand.u32 %v3502, 4294901760
  %3504 = vmatmul.mubr.f32.gmra.mxu0 %v3503
  %v3505 = vpop.f32.mrf.mxu0
  %v3506 = vadd.f32 %v3409, %v3505
  %v3507 = vpop.f32.mrf.mxu0
  %3508 = vdwg.mxu0
  %3509 = vmatprep.subr.mxu0 0.0
  %v3510 = vand.u32 %v3042, 4294901760
  %v3511 = vsub.f32 %v3042, %v3510
  %v3512 = vand.u32 %v3511, 4294901760
  %3513 = vmatpush1.msra.mxu0 %v3512
  %3514 = vmatprep.subr.mxu0 0.0
  %v3515 = vand.u32 %v3041, 4294901760
  %v3516 = vsub.f32 %v3041, %v3515
  %v3517 = vand.u32 %v3516, 4294901760
  %3518 = vmatpush1.msra.mxu0 %v3517
  %3519 = vmatprep.subr.mxu0 0.0
  %v3520 = vand.u32 %v3040, 4294901760
  %v3521 = vsub.f32 %v3040, %v3520
  %v3522 = vand.u32 %v3521, 4294901760
  %3523 = vmatpush1.msra.mxu0 %v3522
  %3524 = vmatprep.subr.mxu0 0.0
  %v3525 = vand.u32 %v3039, 4294901760
  %v3526 = vsub.f32 %v3039, %v3525
  %v3527 = vand.u32 %v3526, 4294901760
  %3528 = vmatpush1.msra.mxu0 %v3527
  %3529 = vmatprep.subr.mxu0 0.0
  %v3530 = vand.u32 %v3038, 4294901760
  %v3531 = vsub.f32 %v3038, %v3530
  %v3532 = vand.u32 %v3531, 4294901760
  %3533 = vmatpush1.msra.mxu0 %v3532
  %3534 = vmatprep.subr.mxu0 0.0
  %v3535 = vand.u32 %v3037, 4294901760
  %v3536 = vsub.f32 %v3037, %v3535
  %v3537 = vand.u32 %v3536, 4294901760
  %3538 = vmatpush1.msra.mxu0 %v3537
  %3539 = vmatprep.subr.mxu0 0.0
  %v3540 = vand.u32 %v3036, 4294901760
  %v3541 = vsub.f32 %v3036, %v3540
  %v3542 = vand.u32 %v3541, 4294901760
  %3543 = vmatpush1.msra.mxu0 %v3542
  %3544 = vmatprep.subr.mxu0 0.0
  %v3545 = vand.u32 %v3035, 4294901760
  %v3546 = vsub.f32 %v3035, %v3545
  %v3547 = vand.u32 %v3546, 4294901760
  %3548 = vmatpush1.msra.mxu0 %v3547
  %3549 = vmatprep.subr.mxu0 0.0
  %v3550 = vand.u32 %v3034, 4294901760
  %v3551 = vsub.f32 %v3034, %v3550
  %v3552 = vand.u32 %v3551, 4294901760
  %3553 = vmatpush1.msra.mxu0 %v3552
  %3554 = vmatprep.subr.mxu0 0.0
  %v3555 = vand.u32 %v3033, 4294901760
  %v3556 = vsub.f32 %v3033, %v3555
  %v3557 = vand.u32 %v3556, 4294901760
  %3558 = vmatpush1.msra.mxu0 %v3557
  %3559 = vmatprep.subr.mxu0 0.0
  %v3560 = vand.u32 %v3032, 4294901760
  %v3561 = vsub.f32 %v3032, %v3560
  %v3562 = vand.u32 %v3561, 4294901760
  %3563 = vmatpush1.msra.mxu0 %v3562
  %3564 = vmatprep.subr.mxu0 0.0
  %v3565 = vand.u32 %v3031, 4294901760
  %v3566 = vsub.f32 %v3031, %v3565
  %v3567 = vand.u32 %v3566, 4294901760
  %3568 = vmatpush1.msra.mxu0 %v3567
  %3569 = vmatprep.subr.mxu0 0.0
  %v3570 = vand.u32 %v3030, 4294901760
  %v3571 = vsub.f32 %v3030, %v3570
  %v3572 = vand.u32 %v3571, 4294901760
  %3573 = vmatpush1.msra.mxu0 %v3572
  %3574 = vmatprep.subr.mxu0 0.0
  %v3575 = vand.u32 %v3029, 4294901760
  %v3576 = vsub.f32 %v3029, %v3575
  %v3577 = vand.u32 %v3576, 4294901760
  %3578 = vmatpush1.msra.mxu0 %v3577
  %3579 = vmatprep.subr.mxu0 0.0
  %v3580 = vand.u32 %v3028, 4294901760
  %v3581 = vsub.f32 %v3028, %v3580
  %v3582 = vand.u32 %v3581, 4294901760
  %3583 = vmatpush1.msra.mxu0 %v3582
  %3584 = vmatprep.subr.mxu0 0.0
  %v3585 = vand.u32 %v3027, 4294901760
  %v3586 = vsub.f32 %v3027, %v3585
  %v3587 = vand.u32 %v3586, 4294901760
  %3588 = vmatpush1.msra.mxu0 %v3587
  %3589 = vmatprep.subr.mxu0 0.0
  %3590 = vmatpush2.msra.mxu0 0.0
  %3591 = vmatprep.subr.mxu0 0.0
  %3592 = vmatpush2.msra.mxu0 0.0
  %3593 = vmatprep.subr.mxu0 0.0
  %3594 = vmatpush2.msra.mxu0 0.0
  %3595 = vmatprep.subr.mxu0 0.0
  %3596 = vmatpush2.msra.mxu0 0.0
  %3597 = vmatprep.subr.mxu0 0.0
  %3598 = vmatpush2.msra.mxu0 0.0
  %3599 = vmatprep.subr.mxu0 0.0
  %3600 = vmatpush2.msra.mxu0 0.0
  %3601 = vmatprep.subr.mxu0 0.0
  %3602 = vmatpush2.msra.mxu0 0.0
  %3603 = vmatprep.subr.mxu0 0.0
  %3604 = vmatpush2.msra.mxu0 0.0
  %3605 = vmatprep.subr.mxu0 0.0
  %3606 = vmatpush2.msra.mxu0 0.0
  %3607 = vmatprep.subr.mxu0 0.0
  %3608 = vmatpush2.msra.mxu0 0.0
  %3609 = vmatprep.subr.mxu0 0.0
  %3610 = vmatpush2.msra.mxu0 0.0
  %3611 = vmatprep.subr.mxu0 0.0
  %3612 = vmatpush2.msra.mxu0 0.0
  %3613 = vmatprep.subr.mxu0 0.0
  %3614 = vmatpush2.msra.mxu0 0.0
  %3615 = vmatprep.subr.mxu0 0.0
  %3616 = vmatpush2.msra.mxu0 0.0
  %3617 = vmatprep.subr.mxu0 0.0
  %3618 = vmatpush2.msra.mxu0 0.0
  %3619 = vmatprep.subr.mxu0 0.0
  %3620 = vmatpush2.msra.mxu0 0.0
  %3621 = vmatprep.mubr.f32.mxu0 0.0
  %v3622 = vand.u32 %v3020, 4294901760
  %3623 = vmatmul.mubr.f32.gmra.mxu0 %v3622
  %v3624 = vpop.f32.mrf.mxu0
  %v3625 = vadd.f32 %v3498, %v3624
  %v3626 = vpop.f32.mrf.mxu0
  %3627 = vmatprep.mubr.f32.mxu0 0.0
  %v3628 = vand.u32 %v3023, 4294901760
  %3629 = vmatmul.mubr.f32.gmra.mxu0 %v3628
  %v3630 = vpop.f32.mrf.mxu0
  %v3631 = vadd.f32 %v3506, %v3630
  %v3632 = vpop.f32.mrf.mxu0
  %3633 = vdwg.mxu0
  %3634 = vmatprep.subr.mxu0 0.0
  %v3635 = vand.u32 %v3042, 4294901760
  %3636 = vmatpush1.msra.mxu0 %v3635
  %3637 = vmatprep.subr.mxu0 0.0
  %v3638 = vand.u32 %v3041, 4294901760
  %3639 = vmatpush1.msra.mxu0 %v3638
  %3640 = vmatprep.subr.mxu0 0.0
  %v3641 = vand.u32 %v3040, 4294901760
  %3642 = vmatpush1.msra.mxu0 %v3641
  %3643 = vmatprep.subr.mxu0 0.0
  %v3644 = vand.u32 %v3039, 4294901760
  %3645 = vmatpush1.msra.mxu0 %v3644
  %3646 = vmatprep.subr.mxu0 0.0
  %v3647 = vand.u32 %v3038, 4294901760
  %3648 = vmatpush1.msra.mxu0 %v3647
  %3649 = vmatprep.subr.mxu0 0.0
  %v3650 = vand.u32 %v3037, 4294901760
  %3651 = vmatpush1.msra.mxu0 %v3650
  %3652 = vmatprep.subr.mxu0 0.0
  %v3653 = vand.u32 %v3036, 4294901760
  %3654 = vmatpush1.msra.mxu0 %v3653
  %3655 = vmatprep.subr.mxu0 0.0
  %v3656 = vand.u32 %v3035, 4294901760
  %3657 = vmatpush1.msra.mxu0 %v3656
  %3658 = vmatprep.subr.mxu0 0.0
  %v3659 = vand.u32 %v3034, 4294901760
  %3660 = vmatpush1.msra.mxu0 %v3659
  %3661 = vmatprep.subr.mxu0 0.0
  %v3662 = vand.u32 %v3033, 4294901760
  %3663 = vmatpush1.msra.mxu0 %v3662
  %3664 = vmatprep.subr.mxu0 0.0
  %v3665 = vand.u32 %v3032, 4294901760
  %3666 = vmatpush1.msra.mxu0 %v3665
  %3667 = vmatprep.subr.mxu0 0.0
  %v3668 = vand.u32 %v3031, 4294901760
  %3669 = vmatpush1.msra.mxu0 %v3668
  %3670 = vmatprep.subr.mxu0 0.0
  %v3671 = vand.u32 %v3030, 4294901760
  %3672 = vmatpush1.msra.mxu0 %v3671
  %3673 = vmatprep.subr.mxu0 0.0
  %v3674 = vand.u32 %v3029, 4294901760
  %3675 = vmatpush1.msra.mxu0 %v3674
  %3676 = vmatprep.subr.mxu0 0.0
  %v3677 = vand.u32 %v3028, 4294901760
  %3678 = vmatpush1.msra.mxu0 %v3677
  %3679 = vmatprep.subr.mxu0 0.0
  %v3680 = vand.u32 %v3027, 4294901760
  %3681 = vmatpush1.msra.mxu0 %v3680
  %3682 = vmatprep.subr.mxu0 0.0
  %3683 = vmatpush2.msra.mxu0 0.0
  %3684 = vmatprep.subr.mxu0 0.0
  %3685 = vmatpush2.msra.mxu0 0.0
  %3686 = vmatprep.subr.mxu0 0.0
  %3687 = vmatpush2.msra.mxu0 0.0
  %3688 = vmatprep.subr.mxu0 0.0
  %3689 = vmatpush2.msra.mxu0 0.0
  %3690 = vmatprep.subr.mxu0 0.0
  %3691 = vmatpush2.msra.mxu0 0.0
  %3692 = vmatprep.subr.mxu0 0.0
  %3693 = vmatpush2.msra.mxu0 0.0
  %3694 = vmatprep.subr.mxu0 0.0
  %3695 = vmatpush2.msra.mxu0 0.0
  %3696 = vmatprep.subr.mxu0 0.0
  %3697 = vmatpush2.msra.mxu0 0.0
  %3698 = vmatprep.subr.mxu0 0.0
  %3699 = vmatpush2.msra.mxu0 0.0
  %3700 = vmatprep.subr.mxu0 0.0
  %3701 = vmatpush2.msra.mxu0 0.0
  %3702 = vmatprep.subr.mxu0 0.0
  %3703 = vmatpush2.msra.mxu0 0.0
  %3704 = vmatprep.subr.mxu0 0.0
  %3705 = vmatpush2.msra.mxu0 0.0
  %3706 = vmatprep.subr.mxu0 0.0
  %3707 = vmatpush2.msra.mxu0 0.0
  %3708 = vmatprep.subr.mxu0 0.0
  %3709 = vmatpush2.msra.mxu0 0.0
  %3710 = vmatprep.subr.mxu0 0.0
  %3711 = vmatpush2.msra.mxu0 0.0
  %3712 = vmatprep.subr.mxu0 0.0
  %3713 = vmatpush2.msra.mxu0 0.0
  %3714 = vmatprep.mubr.f32.mxu0 0.0
  %v3715 = vand.u32 %v3020, 4294901760
  %3716 = vmatmul.mubr.f32.gmra.mxu0 %v3715
  %v3717 = vpop.f32.mrf.mxu0
  %v3718 = vadd.f32 %v3625, %v3717
  %v3719 = vpop.f32.mrf.mxu0
  %3720 = vmatprep.mubr.f32.mxu0 0.0
  %v3721 = vand.u32 %v3023, 4294901760
  %3722 = vmatmul.mubr.f32.gmra.mxu0 %v3721
  %v3723 = vpop.f32.mrf.mxu0
  %v3724 = vadd.f32 %v3631, %v3723
  %v3725 = vpop.f32.mrf.mxu0
  %3726 = vdwg.mxu0
  %3727 = vmatprep.subr.mxu0 0.0
  %v3728 = vand.u32 %v3013, 4294901760
  %3729 = vmatpush1.msra.mxu0 %v3728
  %3730 = vmatprep.subr.mxu0 0.0
  %v3731 = vand.u32 %v3012, 4294901760
  %3732 = vmatpush1.msra.mxu0 %v3731
  %3733 = vmatprep.subr.mxu0 0.0
  %v3734 = vand.u32 %v3011, 4294901760
  %3735 = vmatpush1.msra.mxu0 %v3734
  %3736 = vmatprep.subr.mxu0 0.0
  %v3737 = vand.u32 %v3010, 4294901760
  %3738 = vmatpush1.msra.mxu0 %v3737
  %3739 = vmatprep.subr.mxu0 0.0
  %v3740 = vand.u32 %v3009, 4294901760
  %3741 = vmatpush1.msra.mxu0 %v3740
  %3742 = vmatprep.subr.mxu0 0.0
  %v3743 = vand.u32 %v3008, 4294901760
  %3744 = vmatpush1.msra.mxu0 %v3743
  %3745 = vmatprep.subr.mxu0 0.0
  %v3746 = vand.u32 %v3007, 4294901760
  %3747 = vmatpush1.msra.mxu0 %v3746
  %3748 = vmatprep.subr.mxu0 0.0
  %v3749 = vand.u32 %v3006, 4294901760
  %3750 = vmatpush1.msra.mxu0 %v3749
  %3751 = vmatprep.subr.mxu0 0.0
  %v3752 = vand.u32 %v3005, 4294901760
  %3753 = vmatpush1.msra.mxu0 %v3752
  %3754 = vmatprep.subr.mxu0 0.0
  %v3755 = vand.u32 %v3004, 4294901760
  %3756 = vmatpush1.msra.mxu0 %v3755
  %3757 = vmatprep.subr.mxu0 0.0
  %v3758 = vand.u32 %v3003, 4294901760
  %3759 = vmatpush1.msra.mxu0 %v3758
  %3760 = vmatprep.subr.mxu0 0.0
  %v3761 = vand.u32 %v3002, 4294901760
  %3762 = vmatpush1.msra.mxu0 %v3761
  %3763 = vmatprep.subr.mxu0 0.0
  %v3764 = vand.u32 %v3001, 4294901760
  %3765 = vmatpush1.msra.mxu0 %v3764
  %3766 = vmatprep.subr.mxu0 0.0
  %v3767 = vand.u32 %v3000, 4294901760
  %3768 = vmatpush1.msra.mxu0 %v3767
  %3769 = vmatprep.subr.mxu0 0.0
  %v3770 = vand.u32 %v2999, 4294901760
  %3771 = vmatpush1.msra.mxu0 %v3770
  %3772 = vmatprep.subr.mxu0 0.0
  %v3773 = vand.u32 %v2998, 4294901760
  %3774 = vmatpush1.msra.mxu0 %v3773
  %3775 = vmatprep.subr.mxu0 0.0
  %3776 = vmatpush2.msra.mxu0 0.0
  %3777 = vmatprep.subr.mxu0 0.0
  %3778 = vmatpush2.msra.mxu0 0.0
  %3779 = vmatprep.subr.mxu0 0.0
  %3780 = vmatpush2.msra.mxu0 0.0
  %3781 = vmatprep.subr.mxu0 0.0
  %3782 = vmatpush2.msra.mxu0 0.0
  %3783 = vmatprep.subr.mxu0 0.0
  %3784 = vmatpush2.msra.mxu0 0.0
  %3785 = vmatprep.subr.mxu0 0.0
  %3786 = vmatpush2.msra.mxu0 0.0
  %3787 = vmatprep.subr.mxu0 0.0
  %3788 = vmatpush2.msra.mxu0 0.0
  %3789 = vmatprep.subr.mxu0 0.0
  %3790 = vmatpush2.msra.mxu0 0.0
  %3791 = vmatprep.subr.mxu0 0.0
  %3792 = vmatpush2.msra.mxu0 0.0
  %3793 = vmatprep.subr.mxu0 0.0
  %3794 = vmatpush2.msra.mxu0 0.0
  %3795 = vmatprep.subr.mxu0 0.0
  %3796 = vmatpush2.msra.mxu0 0.0
  %3797 = vmatprep.subr.mxu0 0.0
  %3798 = vmatpush2.msra.mxu0 0.0
  %3799 = vmatprep.subr.mxu0 0.0
  %3800 = vmatpush2.msra.mxu0 0.0
  %3801 = vmatprep.subr.mxu0 0.0
  %3802 = vmatpush2.msra.mxu0 0.0
  %3803 = vmatprep.subr.mxu0 0.0
  %3804 = vmatpush2.msra.mxu0 0.0
  %3805 = vmatprep.subr.mxu0 0.0
  %3806 = vmatpush2.msra.mxu0 0.0
  %3807 = vmatprep.mubr.f32.mxu0 0.0
  %v3808 = vand.u32 %v2993, 4294901760
  %v3809 = vsub.f32 %v2993, %v3808
  %v3810 = vand.u32 %v3809, 4294901760
  %v3811 = vsub.f32 %v3809, %v3810
  %v3812 = vand.u32 %v3811, 4294901760
  %3813 = vmatmul.mubr.f32.gmra.mxu0 %v3812
  %v3814 = vpop.f32.mrf.mxu0
  %v3815 = vadd.f32 %v3718, %v3814
  %v3816 = vpop.f32.mrf.mxu0
  %3817 = vmatprep.mubr.f32.mxu0 0.0
  %v3818 = vand.u32 %v2994, 4294901760
  %v3819 = vsub.f32 %v2994, %v3818
  %v3820 = vand.u32 %v3819, 4294901760
  %v3821 = vsub.f32 %v3819, %v3820
  %v3822 = vand.u32 %v3821, 4294901760
  %3823 = vmatmul.mubr.f32.gmra.mxu0 %v3822
  %v3824 = vpop.f32.mrf.mxu0
  %v3825 = vadd.f32 %v3724, %v3824
  %v3826 = vpop.f32.mrf.mxu0
  %3827 = vdwg.mxu0
  %3828 = vmatprep.subr.mxu0 0.0
  %v3829 = vand.u32 %v3013, 4294901760
  %v3830 = vsub.f32 %v3013, %v3829
  %v3831 = vand.u32 %v3830, 4294901760
  %v3832 = vsub.f32 %v3830, %v3831
  %v3833 = vand.u32 %v3832, 4294901760
  %3834 = vmatpush1.msra.mxu0 %v3833
  %3835 = vmatprep.subr.mxu0 0.0
  %v3836 = vand.u32 %v3012, 4294901760
  %v3837 = vsub.f32 %v3012, %v3836
  %v3838 = vand.u32 %v3837, 4294901760
  %v3839 = vsub.f32 %v3837, %v3838
  %v3840 = vand.u32 %v3839, 4294901760
  %3841 = vmatpush1.msra.mxu0 %v3840
  %3842 = vmatprep.subr.mxu0 0.0
  %v3843 = vand.u32 %v3011, 4294901760
  %v3844 = vsub.f32 %v3011, %v3843
  %v3845 = vand.u32 %v3844, 4294901760
  %v3846 = vsub.f32 %v3844, %v3845
  %v3847 = vand.u32 %v3846, 4294901760
  %3848 = vmatpush1.msra.mxu0 %v3847
  %3849 = vmatprep.subr.mxu0 0.0
  %v3850 = vand.u32 %v3010, 4294901760
  %v3851 = vsub.f32 %v3010, %v3850
  %v3852 = vand.u32 %v3851, 4294901760
  %v3853 = vsub.f32 %v3851, %v3852
  %v3854 = vand.u32 %v3853, 4294901760
  %3855 = vmatpush1.msra.mxu0 %v3854
  %3856 = vmatprep.subr.mxu0 0.0
  %v3857 = vand.u32 %v3009, 4294901760
  %v3858 = vsub.f32 %v3009, %v3857
  %v3859 = vand.u32 %v3858, 4294901760
  %v3860 = vsub.f32 %v3858, %v3859
  %v3861 = vand.u32 %v3860, 4294901760
  %3862 = vmatpush1.msra.mxu0 %v3861
  %3863 = vmatprep.subr.mxu0 0.0
  %v3864 = vand.u32 %v3008, 4294901760
  %v3865 = vsub.f32 %v3008, %v3864
  %v3866 = vand.u32 %v3865, 4294901760
  %v3867 = vsub.f32 %v3865, %v3866
  %v3868 = vand.u32 %v3867, 4294901760
  %3869 = vmatpush1.msra.mxu0 %v3868
  %3870 = vmatprep.subr.mxu0 0.0
  %v3871 = vand.u32 %v3007, 4294901760
  %v3872 = vsub.f32 %v3007, %v3871
  %v3873 = vand.u32 %v3872, 4294901760
  %v3874 = vsub.f32 %v3872, %v3873
  %v3875 = vand.u32 %v3874, 4294901760
  %3876 = vmatpush1.msra.mxu0 %v3875
  %3877 = vmatprep.subr.mxu0 0.0
  %v3878 = vand.u32 %v3006, 4294901760
  %v3879 = vsub.f32 %v3006, %v3878
  %v3880 = vand.u32 %v3879, 4294901760
  %v3881 = vsub.f32 %v3879, %v3880
  %v3882 = vand.u32 %v3881, 4294901760
  %3883 = vmatpush1.msra.mxu0 %v3882
  %3884 = vmatprep.subr.mxu0 0.0
  %v3885 = vand.u32 %v3005, 4294901760
  %v3886 = vsub.f32 %v3005, %v3885
  %v3887 = vand.u32 %v3886, 4294901760
  %v3888 = vsub.f32 %v3886, %v3887
  %v3889 = vand.u32 %v3888, 4294901760
  %3890 = vmatpush1.msra.mxu0 %v3889
  %3891 = vmatprep.subr.mxu0 0.0
  %v3892 = vand.u32 %v3004, 4294901760
  %v3893 = vsub.f32 %v3004, %v3892
  %v3894 = vand.u32 %v3893, 4294901760
  %v3895 = vsub.f32 %v3893, %v3894
  %v3896 = vand.u32 %v3895, 4294901760
  %3897 = vmatpush1.msra.mxu0 %v3896
  %3898 = vmatprep.subr.mxu0 0.0
  %v3899 = vand.u32 %v3003, 4294901760
  %v3900 = vsub.f32 %v3003, %v3899
  %v3901 = vand.u32 %v3900, 4294901760
  %v3902 = vsub.f32 %v3900, %v3901
  %v3903 = vand.u32 %v3902, 4294901760
  %3904 = vmatpush1.msra.mxu0 %v3903
  %3905 = vmatprep.subr.mxu0 0.0
  %v3906 = vand.u32 %v3002, 4294901760
  %v3907 = vsub.f32 %v3002, %v3906
  %v3908 = vand.u32 %v3907, 4294901760
  %v3909 = vsub.f32 %v3907, %v3908
  %v3910 = vand.u32 %v3909, 4294901760
  %3911 = vmatpush1.msra.mxu0 %v3910
  %3912 = vmatprep.subr.mxu0 0.0
  %v3913 = vand.u32 %v3001, 4294901760
  %v3914 = vsub.f32 %v3001, %v3913
  %v3915 = vand.u32 %v3914, 4294901760
  %v3916 = vsub.f32 %v3914, %v3915
  %v3917 = vand.u32 %v3916, 4294901760
  %3918 = vmatpush1.msra.mxu0 %v3917
  %3919 = vmatprep.subr.mxu0 0.0
  %v3920 = vand.u32 %v3000, 4294901760
  %v3921 = vsub.f32 %v3000, %v3920
  %v3922 = vand.u32 %v3921, 4294901760
  %v3923 = vsub.f32 %v3921, %v3922
  %v3924 = vand.u32 %v3923, 4294901760
  %3925 = vmatpush1.msra.mxu0 %v3924
  %3926 = vmatprep.subr.mxu0 0.0
  %v3927 = vand.u32 %v2999, 4294901760
  %v3928 = vsub.f32 %v2999, %v3927
  %v3929 = vand.u32 %v3928, 4294901760
  %v3930 = vsub.f32 %v3928, %v3929
  %v3931 = vand.u32 %v3930, 4294901760
  %3932 = vmatpush1.msra.mxu0 %v3931
  %3933 = vmatprep.subr.mxu0 0.0
  %v3934 = vand.u32 %v2998, 4294901760
  %v3935 = vsub.f32 %v2998, %v3934
  %v3936 = vand.u32 %v3935, 4294901760
  %v3937 = vsub.f32 %v3935, %v3936
  %v3938 = vand.u32 %v3937, 4294901760
  %3939 = vmatpush1.msra.mxu0 %v3938
  %3940 = vmatprep.subr.mxu0 0.0
  %3941 = vmatpush2.msra.mxu0 0.0
  %3942 = vmatprep.subr.mxu0 0.0
  %3943 = vmatpush2.msra.mxu0 0.0
  %3944 = vmatprep.subr.mxu0 0.0
  %3945 = vmatpush2.msra.mxu0 0.0
  %3946 = vmatprep.subr.mxu0 0.0
  %3947 = vmatpush2.msra.mxu0 0.0
  %3948 = vmatprep.subr.mxu0 0.0
  %3949 = vmatpush2.msra.mxu0 0.0
  %3950 = vmatprep.subr.mxu0 0.0
  %3951 = vmatpush2.msra.mxu0 0.0
  %3952 = vmatprep.subr.mxu0 0.0
  %3953 = vmatpush2.msra.mxu0 0.0
  %3954 = vmatprep.subr.mxu0 0.0
  %3955 = vmatpush2.msra.mxu0 0.0
  %3956 = vmatprep.subr.mxu0 0.0
  %3957 = vmatpush2.msra.mxu0 0.0
  %3958 = vmatprep.subr.mxu0 0.0
  %3959 = vmatpush2.msra.mxu0 0.0
  %3960 = vmatprep.subr.mxu0 0.0
  %3961 = vmatpush2.msra.mxu0 0.0
  %3962 = vmatprep.subr.mxu0 0.0
  %3963 = vmatpush2.msra.mxu0 0.0
  %3964 = vmatprep.subr.mxu0 0.0
  %3965 = vmatpush2.msra.mxu0 0.0
  %3966 = vmatprep.subr.mxu0 0.0
  %3967 = vmatpush2.msra.mxu0 0.0
  %3968 = vmatprep.subr.mxu0 0.0
  %3969 = vmatpush2.msra.mxu0 0.0
  %3970 = vmatprep.subr.mxu0 0.0
  %3971 = vmatpush2.msra.mxu0 0.0
  %3972 = vmatprep.mubr.f32.mxu0 0.0
  %v3973 = vand.u32 %v2993, 4294901760
  %3974 = vmatmul.mubr.f32.gmra.mxu0 %v3973
  %v3975 = vpop.f32.mrf.mxu0
  %v3976 = vadd.f32 %v3815, %v3975
  %v3977 = vpop.f32.mrf.mxu0
  %3978 = vmatprep.mubr.f32.mxu0 0.0
  %v3979 = vand.u32 %v2994, 4294901760
  %3980 = vmatmul.mubr.f32.gmra.mxu0 %v3979
  %v3981 = vpop.f32.mrf.mxu0
  %v3982 = vadd.f32 %v3825, %v3981
  %v3983 = vpop.f32.mrf.mxu0
  %3984 = vdwg.mxu0
  %3985 = vmatprep.subr.mxu0 0.0
  %v3986 = vand.u32 %v3013, 4294901760
  %v3987 = vsub.f32 %v3013, %v3986
  %3988 = vmatpush1.msra.mxu0 %v3987
  %3989 = vmatprep.subr.mxu0 0.0
  %v3990 = vand.u32 %v3012, 4294901760
  %v3991 = vsub.f32 %v3012, %v3990
  %3992 = vmatpush1.msra.mxu0 %v3991
  %3993 = vmatprep.subr.mxu0 0.0
  %v3994 = vand.u32 %v3011, 4294901760
  %v3995 = vsub.f32 %v3011, %v3994
  %3996 = vmatpush1.msra.mxu0 %v3995
  %3997 = vmatprep.subr.mxu0 0.0
  %v3998 = vand.u32 %v3010, 4294901760
  %v3999 = vsub.f32 %v3010, %v3998
  %4000 = vmatpush1.msra.mxu0 %v3999
  %4001 = vmatprep.subr.mxu0 0.0
  %v4002 = vand.u32 %v3009, 4294901760
  %v4003 = vsub.f32 %v3009, %v4002
  %4004 = vmatpush1.msra.mxu0 %v4003
  %4005 = vmatprep.subr.mxu0 0.0
  %v4006 = vand.u32 %v3008, 4294901760
  %v4007 = vsub.f32 %v3008, %v4006
  %4008 = vmatpush1.msra.mxu0 %v4007
  %4009 = vmatprep.subr.mxu0 0.0
  %v4010 = vand.u32 %v3007, 4294901760
  %v4011 = vsub.f32 %v3007, %v4010
  %4012 = vmatpush1.msra.mxu0 %v4011
  %4013 = vmatprep.subr.mxu0 0.0
  %v4014 = vand.u32 %v3006, 4294901760
  %v4015 = vsub.f32 %v3006, %v4014
  %4016 = vmatpush1.msra.mxu0 %v4015
  %4017 = vmatprep.subr.mxu0 0.0
  %v4018 = vand.u32 %v3005, 4294901760
  %v4019 = vsub.f32 %v3005, %v4018
  %4020 = vmatpush1.msra.mxu0 %v4019
  %4021 = vmatprep.subr.mxu0 0.0
  %v4022 = vand.u32 %v3004, 4294901760
  %v4023 = vsub.f32 %v3004, %v4022
  %4024 = vmatpush1.msra.mxu0 %v4023
  %4025 = vmatprep.subr.mxu0 0.0
  %v4026 = vand.u32 %v3003, 4294901760
  %v4027 = vsub.f32 %v3003, %v4026
  %4028 = vmatpush1.msra.mxu0 %v4027
  %4029 = vmatprep.subr.mxu0 0.0
  %v4030 = vand.u32 %v3002, 4294901760
  %v4031 = vsub.f32 %v3002, %v4030
  %4032 = vmatpush1.msra.mxu0 %v4031
  %4033 = vmatprep.subr.mxu0 0.0
  %v4034 = vand.u32 %v3001, 4294901760
  %v4035 = vsub.f32 %v3001, %v4034
  %4036 = vmatpush1.msra.mxu0 %v4035
  %4037 = vmatprep.subr.mxu0 0.0
  %v4038 = vand.u32 %v3000, 4294901760
  %v4039 = vsub.f32 %v3000, %v4038
  %4040 = vmatpush1.msra.mxu0 %v4039
  %4041 = vmatprep.subr.mxu0 0.0
  %v4042 = vand.u32 %v2999, 4294901760
  %v4043 = vsub.f32 %v2999, %v4042
  %4044 = vmatpush1.msra.mxu0 %v4043
  %4045 = vmatprep.subr.mxu0 0.0
  %v4046 = vand.u32 %v2998, 4294901760
  %v4047 = vsub.f32 %v2998, %v4046
  %4048 = vmatpush1.msra.mxu0 %v4047
  %4049 = vmatprep.subr.mxu0 0.0
  %4050 = vmatpush2.msra.mxu0 0.0
  %4051 = vmatprep.subr.mxu0 0.0
  %4052 = vmatpush2.msra.mxu0 0.0
  %4053 = vmatprep.subr.mxu0 0.0
  %4054 = vmatpush2.msra.mxu0 0.0
  %4055 = vmatprep.subr.mxu0 0.0
  %4056 = vmatpush2.msra.mxu0 0.0
  %4057 = vmatprep.subr.mxu0 0.0
  %4058 = vmatpush2.msra.mxu0 0.0
  %4059 = vmatprep.subr.mxu0 0.0
  %4060 = vmatpush2.msra.mxu0 0.0
  %4061 = vmatprep.subr.mxu0 0.0
  %4062 = vmatpush2.msra.mxu0 0.0
  %4063 = vmatprep.subr.mxu0 0.0
  %4064 = vmatpush2.msra.mxu0 0.0
  %4065 = vmatprep.subr.mxu0 0.0
  %4066 = vmatpush2.msra.mxu0 0.0
  %4067 = vmatprep.subr.mxu0 0.0
  %4068 = vmatpush2.msra.mxu0 0.0
  %4069 = vmatprep.subr.mxu0 0.0
  %4070 = vmatpush2.msra.mxu0 0.0
  %4071 = vmatprep.subr.mxu0 0.0
  %4072 = vmatpush2.msra.mxu0 0.0
  %4073 = vmatprep.subr.mxu0 0.0
  %4074 = vmatpush2.msra.mxu0 0.0
  %4075 = vmatprep.subr.mxu0 0.0
  %4076 = vmatpush2.msra.mxu0 0.0
  %4077 = vmatprep.subr.mxu0 0.0
  %4078 = vmatpush2.msra.mxu0 0.0
  %4079 = vmatprep.subr.mxu0 0.0
  %4080 = vmatpush2.msra.mxu0 0.0
  %4081 = vmatprep.mubr.f32.mxu0 0.0
  %v4082 = vand.u32 %v2993, 4294901760
  %v4083 = vsub.f32 %v2993, %v4082
  %4084 = vmatmul.mubr.f32.gmra.mxu0 %v4083
  %v4085 = vpop.f32.mrf.mxu0
  %v4086 = vadd.f32 %v3976, %v4085
  %v4087 = vpop.f32.mrf.mxu0
  %4088 = vmatprep.mubr.f32.mxu0 0.0
  %v4089 = vand.u32 %v2994, 4294901760
  %v4090 = vsub.f32 %v2994, %v4089
  %4091 = vmatmul.mubr.f32.gmra.mxu0 %v4090
  %v4092 = vpop.f32.mrf.mxu0
  %v4093 = vadd.f32 %v3982, %v4092
  %v4094 = vpop.f32.mrf.mxu0
  %4095 = vdwg.mxu0
  %4096 = vmatprep.subr.mxu0 0.0
  %v4097 = vand.u32 %v3013, 4294901760
  %4098 = vmatpush1.msra.mxu0 %v4097
  %4099 = vmatprep.subr.mxu0 0.0
  %v4100 = vand.u32 %v3012, 4294901760
  %4101 = vmatpush1.msra.mxu0 %v4100
  %4102 = vmatprep.subr.mxu0 0.0
  %v4103 = vand.u32 %v3011, 4294901760
  %4104 = vmatpush1.msra.mxu0 %v4103
  %4105 = vmatprep.subr.mxu0 0.0
  %v4106 = vand.u32 %v3010, 4294901760
  %4107 = vmatpush1.msra.mxu0 %v4106
  %4108 = vmatprep.subr.mxu0 0.0
  %v4109 = vand.u32 %v3009, 4294901760
  %4110 = vmatpush1.msra.mxu0 %v4109
  %4111 = vmatprep.subr.mxu0 0.0
  %v4112 = vand.u32 %v3008, 4294901760
  %4113 = vmatpush1.msra.mxu0 %v4112
  %4114 = vmatprep.subr.mxu0 0.0
  %v4115 = vand.u32 %v3007, 4294901760
  %4116 = vmatpush1.msra.mxu0 %v4115
  %4117 = vmatprep.subr.mxu0 0.0
  %v4118 = vand.u32 %v3006, 4294901760
  %4119 = vmatpush1.msra.mxu0 %v4118
  %4120 = vmatprep.subr.mxu0 0.0
  %v4121 = vand.u32 %v3005, 4294901760
  %4122 = vmatpush1.msra.mxu0 %v4121
  %4123 = vmatprep.subr.mxu0 0.0
  %v4124 = vand.u32 %v3004, 4294901760
  %4125 = vmatpush1.msra.mxu0 %v4124
  %4126 = vmatprep.subr.mxu0 0.0
  %v4127 = vand.u32 %v3003, 4294901760
  %4128 = vmatpush1.msra.mxu0 %v4127
  %4129 = vmatprep.subr.mxu0 0.0
  %v4130 = vand.u32 %v3002, 4294901760
  %4131 = vmatpush1.msra.mxu0 %v4130
  %4132 = vmatprep.subr.mxu0 0.0
  %v4133 = vand.u32 %v3001, 4294901760
  %4134 = vmatpush1.msra.mxu0 %v4133
  %4135 = vmatprep.subr.mxu0 0.0
  %v4136 = vand.u32 %v3000, 4294901760
  %4137 = vmatpush1.msra.mxu0 %v4136
  %4138 = vmatprep.subr.mxu0 0.0
  %v4139 = vand.u32 %v2999, 4294901760
  %4140 = vmatpush1.msra.mxu0 %v4139
  %4141 = vmatprep.subr.mxu0 0.0
  %v4142 = vand.u32 %v2998, 4294901760
  %4143 = vmatpush1.msra.mxu0 %v4142
  %4144 = vmatprep.subr.mxu0 0.0
  %4145 = vmatpush2.msra.mxu0 0.0
  %4146 = vmatprep.subr.mxu0 0.0
  %4147 = vmatpush2.msra.mxu0 0.0
  %4148 = vmatprep.subr.mxu0 0.0
  %4149 = vmatpush2.msra.mxu0 0.0
  %4150 = vmatprep.subr.mxu0 0.0
  %4151 = vmatpush2.msra.mxu0 0.0
  %4152 = vmatprep.subr.mxu0 0.0
  %4153 = vmatpush2.msra.mxu0 0.0
  %4154 = vmatprep.subr.mxu0 0.0
  %4155 = vmatpush2.msra.mxu0 0.0
  %4156 = vmatprep.subr.mxu0 0.0
  %4157 = vmatpush2.msra.mxu0 0.0
  %4158 = vmatprep.subr.mxu0 0.0
  %4159 = vmatpush2.msra.mxu0 0.0
  %4160 = vmatprep.subr.mxu0 0.0
  %4161 = vmatpush2.msra.mxu0 0.0
  %4162 = vmatprep.subr.mxu0 0.0
  %4163 = vmatpush2.msra.mxu0 0.0
  %4164 = vmatprep.subr.mxu0 0.0
  %4165 = vmatpush2.msra.mxu0 0.0
  %4166 = vmatprep.subr.mxu0 0.0
  %4167 = vmatpush2.msra.mxu0 0.0
  %4168 = vmatprep.subr.mxu0 0.0
  %4169 = vmatpush2.msra.mxu0 0.0
  %4170 = vmatprep.subr.mxu0 0.0
  %4171 = vmatpush2.msra.mxu0 0.0
  %4172 = vmatprep.subr.mxu0 0.0
  %4173 = vmatpush2.msra.mxu0 0.0
  %4174 = vmatprep.subr.mxu0 0.0
  %4175 = vmatpush2.msra.mxu0 0.0
  %4176 = vmatprep.mubr.f32.mxu0 0.0
  %v4177 = vand.u32 %v2993, 4294901760
  %v4178 = vsub.f32 %v2993, %v4177
  %v4179 = vand.u32 %v4178, 4294901760
  %4180 = vmatmul.mubr.f32.gmra.mxu0 %v4179
  %v4181 = vpop.f32.mrf.mxu0
  %v4182 = vadd.f32 %v4086, %v4181
  %v4183 = vpop.f32.mrf.mxu0
  %4184 = vmatprep.mubr.f32.mxu0 0.0
  %v4185 = vand.u32 %v2994, 4294901760
  %v4186 = vsub.f32 %v2994, %v4185
  %v4187 = vand.u32 %v4186, 4294901760
  %4188 = vmatmul.mubr.f32.gmra.mxu0 %v4187
  %v4189 = vpop.f32.mrf.mxu0
  %v4190 = vadd.f32 %v4093, %v4189
  %v4191 = vpop.f32.mrf.mxu0
  %4192 = vdwg.mxu0
  %4193 = vmatprep.subr.mxu0 0.0
  %v4194 = vand.u32 %v3013, 4294901760
  %v4195 = vsub.f32 %v3013, %v4194
  %v4196 = vand.u32 %v4195, 4294901760
  %4197 = vmatpush1.msra.mxu0 %v4196
  %4198 = vmatprep.subr.mxu0 0.0
  %v4199 = vand.u32 %v3012, 4294901760
  %v4200 = vsub.f32 %v3012, %v4199
  %v4201 = vand.u32 %v4200, 4294901760
  %4202 = vmatpush1.msra.mxu0 %v4201
  %4203 = vmatprep.subr.mxu0 0.0
  %v4204 = vand.u32 %v3011, 4294901760
  %v4205 = vsub.f32 %v3011, %v4204
  %v4206 = vand.u32 %v4205, 4294901760
  %4207 = vmatpush1.msra.mxu0 %v4206
  %4208 = vmatprep.subr.mxu0 0.0
  %v4209 = vand.u32 %v3010, 4294901760
  %v4210 = vsub.f32 %v3010, %v4209
  %v4211 = vand.u32 %v4210, 4294901760
  %4212 = vmatpush1.msra.mxu0 %v4211
  %4213 = vmatprep.subr.mxu0 0.0
  %v4214 = vand.u32 %v3009, 4294901760
  %v4215 = vsub.f32 %v3009, %v4214
  %v4216 = vand.u32 %v4215, 4294901760
  %4217 = vmatpush1.msra.mxu0 %v4216
  %4218 = vmatprep.subr.mxu0 0.0
  %v4219 = vand.u32 %v3008, 4294901760
  %v4220 = vsub.f32 %v3008, %v4219
  %v4221 = vand.u32 %v4220, 4294901760
  %4222 = vmatpush1.msra.mxu0 %v4221
  %4223 = vmatprep.subr.mxu0 0.0
  %v4224 = vand.u32 %v3007, 4294901760
  %v4225 = vsub.f32 %v3007, %v4224
  %v4226 = vand.u32 %v4225, 4294901760
  %4227 = vmatpush1.msra.mxu0 %v4226
  %4228 = vmatprep.subr.mxu0 0.0
  %v4229 = vand.u32 %v3006, 4294901760
  %v4230 = vsub.f32 %v3006, %v4229
  %v4231 = vand.u32 %v4230, 4294901760
  %4232 = vmatpush1.msra.mxu0 %v4231
  %4233 = vmatprep.subr.mxu0 0.0
  %v4234 = vand.u32 %v3005, 4294901760
  %v4235 = vsub.f32 %v3005, %v4234
  %v4236 = vand.u32 %v4235, 4294901760
  %4237 = vmatpush1.msra.mxu0 %v4236
  %4238 = vmatprep.subr.mxu0 0.0
  %v4239 = vand.u32 %v3004, 4294901760
  %v4240 = vsub.f32 %v3004, %v4239
  %v4241 = vand.u32 %v4240, 4294901760
  %4242 = vmatpush1.msra.mxu0 %v4241
  %4243 = vmatprep.subr.mxu0 0.0
  %v4244 = vand.u32 %v3003, 4294901760
  %v4245 = vsub.f32 %v3003, %v4244
  %v4246 = vand.u32 %v4245, 4294901760
  %4247 = vmatpush1.msra.mxu0 %v4246
  %4248 = vmatprep.subr.mxu0 0.0
  %v4249 = vand.u32 %v3002, 4294901760
  %v4250 = vsub.f32 %v3002, %v4249
  %v4251 = vand.u32 %v4250, 4294901760
  %4252 = vmatpush1.msra.mxu0 %v4251
  %4253 = vmatprep.subr.mxu0 0.0
  %v4254 = vand.u32 %v3001, 4294901760
  %v4255 = vsub.f32 %v3001, %v4254
  %v4256 = vand.u32 %v4255, 4294901760
  %4257 = vmatpush1.msra.mxu0 %v4256
  %4258 = vmatprep.subr.mxu0 0.0
  %v4259 = vand.u32 %v3000, 4294901760
  %v4260 = vsub.f32 %v3000, %v4259
  %v4261 = vand.u32 %v4260, 4294901760
  %4262 = vmatpush1.msra.mxu0 %v4261
  %4263 = vmatprep.subr.mxu0 0.0
  %v4264 = vand.u32 %v2999, 4294901760
  %v4265 = vsub.f32 %v2999, %v4264
  %v4266 = vand.u32 %v4265, 4294901760
  %4267 = vmatpush1.msra.mxu0 %v4266
  %4268 = vmatprep.subr.mxu0 0.0
  %v4269 = vand.u32 %v2998, 4294901760
  %v4270 = vsub.f32 %v2998, %v4269
  %v4271 = vand.u32 %v4270, 4294901760
  %4272 = vmatpush1.msra.mxu0 %v4271
  %4273 = vmatprep.subr.mxu0 0.0
  %4274 = vmatpush2.msra.mxu0 0.0
  %4275 = vmatprep.subr.mxu0 0.0
  %4276 = vmatpush2.msra.mxu0 0.0
  %4277 = vmatprep.subr.mxu0 0.0
  %4278 = vmatpush2.msra.mxu0 0.0
  %4279 = vmatprep.subr.mxu0 0.0
  %4280 = vmatpush2.msra.mxu0 0.0
  %4281 = vmatprep.subr.mxu0 0.0
  %4282 = vmatpush2.msra.mxu0 0.0
  %4283 = vmatprep.subr.mxu0 0.0
  %4284 = vmatpush2.msra.mxu0 0.0
  %4285 = vmatprep.subr.mxu0 0.0
  %4286 = vmatpush2.msra.mxu0 0.0
  %4287 = vmatprep.subr.mxu0 0.0
  %4288 = vmatpush2.msra.mxu0 0.0
  %4289 = vmatprep.subr.mxu0 0.0
  %4290 = vmatpush2.msra.mxu0 0.0
  %4291 = vmatprep.subr.mxu0 0.0
  %4292 = vmatpush2.msra.mxu0 0.0
  %4293 = vmatprep.subr.mxu0 0.0
  %4294 = vmatpush2.msra.mxu0 0.0
  %4295 = vmatprep.subr.mxu0 0.0
  %4296 = vmatpush2.msra.mxu0 0.0
  %4297 = vmatprep.subr.mxu0 0.0
  %4298 = vmatpush2.msra.mxu0 0.0
  %4299 = vmatprep.subr.mxu0 0.0
  %4300 = vmatpush2.msra.mxu0 0.0
  %4301 = vmatprep.subr.mxu0 0.0
  %4302 = vmatpush2.msra.mxu0 0.0
  %4303 = vmatprep.subr.mxu0 0.0
  %4304 = vmatpush2.msra.mxu0 0.0
  %4305 = vmatprep.mubr.f32.mxu0 0.0
  %v4306 = vand.u32 %v2993, 4294901760
  %4307 = vmatmul.mubr.f32.gmra.mxu0 %v4306
  %v4308 = vpop.f32.mrf.mxu0
  %v4309 = vadd.f32 %v4182, %v4308
  %v4310 = vpop.f32.mrf.mxu0
  %4311 = vmatprep.mubr.f32.mxu0 0.0
  %v4312 = vand.u32 %v2994, 4294901760
  %4313 = vmatmul.mubr.f32.gmra.mxu0 %v4312
  %v4314 = vpop.f32.mrf.mxu0
  %v4315 = vadd.f32 %v4190, %v4314
  %v4316 = vpop.f32.mrf.mxu0
  %4317 = vdwg.mxu0
  %4318 = vmatprep.subr.mxu0 0.0
  %v4319 = vand.u32 %v3013, 4294901760
  %4320 = vmatpush1.msra.mxu0 %v4319
  %4321 = vmatprep.subr.mxu0 0.0
  %v4322 = vand.u32 %v3012, 4294901760
  %4323 = vmatpush1.msra.mxu0 %v4322
  %4324 = vmatprep.subr.mxu0 0.0
  %v4325 = vand.u32 %v3011, 4294901760
  %4326 = vmatpush1.msra.mxu0 %v4325
  %4327 = vmatprep.subr.mxu0 0.0
  %v4328 = vand.u32 %v3010, 4294901760
  %4329 = vmatpush1.msra.mxu0 %v4328
  %4330 = vmatprep.subr.mxu0 0.0
  %v4331 = vand.u32 %v3009, 4294901760
  %4332 = vmatpush1.msra.mxu0 %v4331
  %4333 = vmatprep.subr.mxu0 0.0
  %v4334 = vand.u32 %v3008, 4294901760
  %4335 = vmatpush1.msra.mxu0 %v4334
  %4336 = vmatprep.subr.mxu0 0.0
  %v4337 = vand.u32 %v3007, 4294901760
  %4338 = vmatpush1.msra.mxu0 %v4337
  %4339 = vmatprep.subr.mxu0 0.0
  %v4340 = vand.u32 %v3006, 4294901760
  %4341 = vmatpush1.msra.mxu0 %v4340
  %4342 = vmatprep.subr.mxu0 0.0
  %v4343 = vand.u32 %v3005, 4294901760
  %4344 = vmatpush1.msra.mxu0 %v4343
  %4345 = vmatprep.subr.mxu0 0.0
  %v4346 = vand.u32 %v3004, 4294901760
  %4347 = vmatpush1.msra.mxu0 %v4346
  %4348 = vmatprep.subr.mxu0 0.0
  %v4349 = vand.u32 %v3003, 4294901760
  %4350 = vmatpush1.msra.mxu0 %v4349
  %4351 = vmatprep.subr.mxu0 0.0
  %v4352 = vand.u32 %v3002, 4294901760
  %4353 = vmatpush1.msra.mxu0 %v4352
  %4354 = vmatprep.subr.mxu0 0.0
  %v4355 = vand.u32 %v3001, 4294901760
  %4356 = vmatpush1.msra.mxu0 %v4355
  %4357 = vmatprep.subr.mxu0 0.0
  %v4358 = vand.u32 %v3000, 4294901760
  %4359 = vmatpush1.msra.mxu0 %v4358
  %4360 = vmatprep.subr.mxu0 0.0
  %v4361 = vand.u32 %v2999, 4294901760
  %4362 = vmatpush1.msra.mxu0 %v4361
  %4363 = vmatprep.subr.mxu0 0.0
  %v4364 = vand.u32 %v2998, 4294901760
  %4365 = vmatpush1.msra.mxu0 %v4364
  %4366 = vmatprep.subr.mxu0 0.0
  %4367 = vmatpush2.msra.mxu0 0.0
  %4368 = vmatprep.subr.mxu0 0.0
  %4369 = vmatpush2.msra.mxu0 0.0
  %4370 = vmatprep.subr.mxu0 0.0
  %4371 = vmatpush2.msra.mxu0 0.0
  %4372 = vmatprep.subr.mxu0 0.0
  %4373 = vmatpush2.msra.mxu0 0.0
  %4374 = vmatprep.subr.mxu0 0.0
  %4375 = vmatpush2.msra.mxu0 0.0
  %4376 = vmatprep.subr.mxu0 0.0
  %4377 = vmatpush2.msra.mxu0 0.0
  %4378 = vmatprep.subr.mxu0 0.0
  %4379 = vmatpush2.msra.mxu0 0.0
  %4380 = vmatprep.subr.mxu0 0.0
  %4381 = vmatpush2.msra.mxu0 0.0
  %4382 = vmatprep.subr.mxu0 0.0
  %4383 = vmatpush2.msra.mxu0 0.0
  %4384 = vmatprep.subr.mxu0 0.0
  %4385 = vmatpush2.msra.mxu0 0.0
  %4386 = vmatprep.subr.mxu0 0.0
  %4387 = vmatpush2.msra.mxu0 0.0
  %4388 = vmatprep.subr.mxu0 0.0
  %4389 = vmatpush2.msra.mxu0 0.0
  %4390 = vmatprep.subr.mxu0 0.0
  %4391 = vmatpush2.msra.mxu0 0.0
  %4392 = vmatprep.subr.mxu0 0.0
  %4393 = vmatpush2.msra.mxu0 0.0
  %4394 = vmatprep.subr.mxu0 0.0
  %4395 = vmatpush2.msra.mxu0 0.0
  %4396 = vmatprep.subr.mxu0 0.0
  %4397 = vmatpush2.msra.mxu0 0.0
  %4398 = vmatprep.mubr.f32.mxu0 0.0
  %v4399 = vand.u32 %v2993, 4294901760
  %4400 = vmatmul.mubr.f32.gmra.mxu0 %v4399
  %v4401 = vpop.f32.mrf.mxu0
  %v4402 = vadd.f32 %v4309, %v4401
  %v4403 = vpop.f32.mrf.mxu0
  %4404 = vmatprep.mubr.f32.mxu0 0.0
  %v4405 = vand.u32 %v2994, 4294901760
  %4406 = vmatmul.mubr.f32.gmra.mxu0 %v4405
  %v4407 = vpop.f32.mrf.mxu0
  %v4408 = vadd.f32 %v4315, %v4407
  %v4409 = vpop.f32.mrf.mxu0
  %4410 = vdwg.mxu0
  %v4411 = vrot.slane %v2993, 2
  %v4412 = vrot.slane %v2995, 2
  %v4413 = vsel %vm1682, %v4411, %v4412
  %v4414 = vrot.slane %v2994, 2
  %v4415 = vrot.slane %v2996, 2
  %v4416 = vsel %vm1682, %v4414, %v4415
  %s4419 = scalar_lea.vmem %s3, 256
  %v4420 = vld [vmem:[%s4419] sm:$0xff]
  %v4421 = vld [vmem:[%s4419 + $0x8] sm:$0xff]
  %v4422 = vld [vmem:[%s4419 + $0x10] sm:$0xff]
  %v4423 = vld [vmem:[%s4419 + $0x18] sm:$0xff]
  %v4424 = vld [vmem:[%s4419 + $0x20] sm:$0xff]
  %v4425 = vld [vmem:[%s4419 + $0x28] sm:$0xff]
  %v4426 = vld [vmem:[%s4419 + $0x30] sm:$0xff]
  %v4427 = vld [vmem:[%s4419 + $0x38] sm:$0xff]
  %v4428 = vld [vmem:[%s4419 + $0x40] sm:$0xff]
  %v4429 = vld [vmem:[%s4419 + $0x48] sm:$0xff]
  %v4430 = vld [vmem:[%s4419 + $0x50] sm:$0xff]
  %v4431 = vld [vmem:[%s4419 + $0x58] sm:$0xff]
  %v4432 = vld [vmem:[%s4419 + $0x60] sm:$0xff]
  %v4433 = vld [vmem:[%s4419 + $0x68] sm:$0xff]
  %v4434 = vld [vmem:[%s4419 + $0x70] sm:$0xff]
  %v4435 = vld [vmem:[%s4419 + $0x78] sm:$0xff]
  %4436 = vmatprep.subr.mxu0 0.0
  %v4437 = vand.u32 %v4435, 4294901760
  %4438 = vmatpush1.msra.mxu0 %v4437
  %4439 = vmatprep.subr.mxu0 0.0
  %v4440 = vand.u32 %v4434, 4294901760
  %4441 = vmatpush1.msra.mxu0 %v4440
  %4442 = vmatprep.subr.mxu0 0.0
  %v4443 = vand.u32 %v4433, 4294901760
  %4444 = vmatpush1.msra.mxu0 %v4443
  %4445 = vmatprep.subr.mxu0 0.0
  %v4446 = vand.u32 %v4432, 4294901760
  %4447 = vmatpush1.msra.mxu0 %v4446
  %4448 = vmatprep.subr.mxu0 0.0
  %v4449 = vand.u32 %v4431, 4294901760
  %4450 = vmatpush1.msra.mxu0 %v4449
  %4451 = vmatprep.subr.mxu0 0.0
  %v4452 = vand.u32 %v4430, 4294901760
  %4453 = vmatpush1.msra.mxu0 %v4452
  %4454 = vmatprep.subr.mxu0 0.0
  %v4455 = vand.u32 %v4429, 4294901760
  %4456 = vmatpush1.msra.mxu0 %v4455
  %4457 = vmatprep.subr.mxu0 0.0
  %v4458 = vand.u32 %v4428, 4294901760
  %4459 = vmatpush1.msra.mxu0 %v4458
  %4460 = vmatprep.subr.mxu0 0.0
  %v4461 = vand.u32 %v4427, 4294901760
  %4462 = vmatpush1.msra.mxu0 %v4461
  %4463 = vmatprep.subr.mxu0 0.0
  %v4464 = vand.u32 %v4426, 4294901760
  %4465 = vmatpush1.msra.mxu0 %v4464
  %4466 = vmatprep.subr.mxu0 0.0
  %v4467 = vand.u32 %v4425, 4294901760
  %4468 = vmatpush1.msra.mxu0 %v4467
  %4469 = vmatprep.subr.mxu0 0.0
  %v4470 = vand.u32 %v4424, 4294901760
  %4471 = vmatpush1.msra.mxu0 %v4470
  %4472 = vmatprep.subr.mxu0 0.0
  %v4473 = vand.u32 %v4423, 4294901760
  %4474 = vmatpush1.msra.mxu0 %v4473
  %4475 = vmatprep.subr.mxu0 0.0
  %v4476 = vand.u32 %v4422, 4294901760
  %4477 = vmatpush1.msra.mxu0 %v4476
  %4478 = vmatprep.subr.mxu0 0.0
  %v4479 = vand.u32 %v4421, 4294901760
  %4480 = vmatpush1.msra.mxu0 %v4479
  %4481 = vmatprep.subr.mxu0 0.0
  %v4482 = vand.u32 %v4420, 4294901760
  %4483 = vmatpush1.msra.mxu0 %v4482
  %4484 = vmatprep.subr.mxu0 0.0
  %4485 = vmatpush2.msra.mxu0 0.0
  %4486 = vmatprep.subr.mxu0 0.0
  %4487 = vmatpush2.msra.mxu0 0.0
  %4488 = vmatprep.subr.mxu0 0.0
  %4489 = vmatpush2.msra.mxu0 0.0
  %4490 = vmatprep.subr.mxu0 0.0
  %4491 = vmatpush2.msra.mxu0 0.0
  %4492 = vmatprep.subr.mxu0 0.0
  %4493 = vmatpush2.msra.mxu0 0.0
  %4494 = vmatprep.subr.mxu0 0.0
  %4495 = vmatpush2.msra.mxu0 0.0
  %4496 = vmatprep.subr.mxu0 0.0
  %4497 = vmatpush2.msra.mxu0 0.0
  %4498 = vmatprep.subr.mxu0 0.0
  %4499 = vmatpush2.msra.mxu0 0.0
  %4500 = vmatprep.subr.mxu0 0.0
  %4501 = vmatpush2.msra.mxu0 0.0
  %4502 = vmatprep.subr.mxu0 0.0
  %4503 = vmatpush2.msra.mxu0 0.0
  %4504 = vmatprep.subr.mxu0 0.0
  %4505 = vmatpush2.msra.mxu0 0.0
  %4506 = vmatprep.subr.mxu0 0.0
  %4507 = vmatpush2.msra.mxu0 0.0
  %4508 = vmatprep.subr.mxu0 0.0
  %4509 = vmatpush2.msra.mxu0 0.0
  %4510 = vmatprep.subr.mxu0 0.0
  %4511 = vmatpush2.msra.mxu0 0.0
  %4512 = vmatprep.subr.mxu0 0.0
  %4513 = vmatpush2.msra.mxu0 0.0
  %4514 = vmatprep.subr.mxu0 0.0
  %4515 = vmatpush2.msra.mxu0 0.0
  %4516 = vmatprep.mubr.f32.mxu0 0.0
  %v4517 = vand.u32 %v4413, 4294901760
  %v4518 = vsub.f32 %v4413, %v4517
  %v4519 = vand.u32 %v4518, 4294901760
  %v4520 = vsub.f32 %v4518, %v4519
  %v4521 = vand.u32 %v4520, 4294901760
  %4522 = vmatmul.mubr.f32.gmra.mxu0 %v4521
  %v4523 = vpop.f32.mrf.mxu0
  %v4524 = vadd.f32 0.0, %v4523
  %v4525 = vpop.f32.mrf.mxu0
  %4526 = vmatprep.mubr.f32.mxu0 0.0
  %v4527 = vand.u32 %v4416, 4294901760
  %v4528 = vsub.f32 %v4416, %v4527
  %v4529 = vand.u32 %v4528, 4294901760
  %v4530 = vsub.f32 %v4528, %v4529
  %v4531 = vand.u32 %v4530, 4294901760
  %4532 = vmatmul.mubr.f32.gmra.mxu0 %v4531
  %v4533 = vpop.f32.mrf.mxu0
  %v4534 = vadd.f32 0.0, %v4533
  %v4535 = vpop.f32.mrf.mxu0
  %4536 = vdwg.mxu0
  %4537 = vmatprep.subr.mxu0 0.0
  %v4538 = vand.u32 %v4435, 4294901760
  %v4539 = vsub.f32 %v4435, %v4538
  %v4540 = vand.u32 %v4539, 4294901760
  %v4541 = vsub.f32 %v4539, %v4540
  %v4542 = vand.u32 %v4541, 4294901760
  %4543 = vmatpush1.msra.mxu0 %v4542
  %4544 = vmatprep.subr.mxu0 0.0
  %v4545 = vand.u32 %v4434, 4294901760
  %v4546 = vsub.f32 %v4434, %v4545
  %v4547 = vand.u32 %v4546, 4294901760
  %v4548 = vsub.f32 %v4546, %v4547
  %v4549 = vand.u32 %v4548, 4294901760
  %4550 = vmatpush1.msra.mxu0 %v4549
  %4551 = vmatprep.subr.mxu0 0.0
  %v4552 = vand.u32 %v4433, 4294901760
  %v4553 = vsub.f32 %v4433, %v4552
  %v4554 = vand.u32 %v4553, 4294901760
  %v4555 = vsub.f32 %v4553, %v4554
  %v4556 = vand.u32 %v4555, 4294901760
  %4557 = vmatpush1.msra.mxu0 %v4556
  %4558 = vmatprep.subr.mxu0 0.0
  %v4559 = vand.u32 %v4432, 4294901760
  %v4560 = vsub.f32 %v4432, %v4559
  %v4561 = vand.u32 %v4560, 4294901760
  %v4562 = vsub.f32 %v4560, %v4561
  %v4563 = vand.u32 %v4562, 4294901760
  %4564 = vmatpush1.msra.mxu0 %v4563
  %4565 = vmatprep.subr.mxu0 0.0
  %v4566 = vand.u32 %v4431, 4294901760
  %v4567 = vsub.f32 %v4431, %v4566
  %v4568 = vand.u32 %v4567, 4294901760
  %v4569 = vsub.f32 %v4567, %v4568
  %v4570 = vand.u32 %v4569, 4294901760
  %4571 = vmatpush1.msra.mxu0 %v4570
  %4572 = vmatprep.subr.mxu0 0.0
  %v4573 = vand.u32 %v4430, 4294901760
  %v4574 = vsub.f32 %v4430, %v4573
  %v4575 = vand.u32 %v4574, 4294901760
  %v4576 = vsub.f32 %v4574, %v4575
  %v4577 = vand.u32 %v4576, 4294901760
  %4578 = vmatpush1.msra.mxu0 %v4577
  %4579 = vmatprep.subr.mxu0 0.0
  %v4580 = vand.u32 %v4429, 4294901760
  %v4581 = vsub.f32 %v4429, %v4580
  %v4582 = vand.u32 %v4581, 4294901760
  %v4583 = vsub.f32 %v4581, %v4582
  %v4584 = vand.u32 %v4583, 4294901760
  %4585 = vmatpush1.msra.mxu0 %v4584
  %4586 = vmatprep.subr.mxu0 0.0
  %v4587 = vand.u32 %v4428, 4294901760
  %v4588 = vsub.f32 %v4428, %v4587
  %v4589 = vand.u32 %v4588, 4294901760
  %v4590 = vsub.f32 %v4588, %v4589
  %v4591 = vand.u32 %v4590, 4294901760
  %4592 = vmatpush1.msra.mxu0 %v4591
  %4593 = vmatprep.subr.mxu0 0.0
  %v4594 = vand.u32 %v4427, 4294901760
  %v4595 = vsub.f32 %v4427, %v4594
  %v4596 = vand.u32 %v4595, 4294901760
  %v4597 = vsub.f32 %v4595, %v4596
  %v4598 = vand.u32 %v4597, 4294901760
  %4599 = vmatpush1.msra.mxu0 %v4598
  %4600 = vmatprep.subr.mxu0 0.0
  %v4601 = vand.u32 %v4426, 4294901760
  %v4602 = vsub.f32 %v4426, %v4601
  %v4603 = vand.u32 %v4602, 4294901760
  %v4604 = vsub.f32 %v4602, %v4603
  %v4605 = vand.u32 %v4604, 4294901760
  %4606 = vmatpush1.msra.mxu0 %v4605
  %4607 = vmatprep.subr.mxu0 0.0
  %v4608 = vand.u32 %v4425, 4294901760
  %v4609 = vsub.f32 %v4425, %v4608
  %v4610 = vand.u32 %v4609, 4294901760
  %v4611 = vsub.f32 %v4609, %v4610
  %v4612 = vand.u32 %v4611, 4294901760
  %4613 = vmatpush1.msra.mxu0 %v4612
  %4614 = vmatprep.subr.mxu0 0.0
  %v4615 = vand.u32 %v4424, 4294901760
  %v4616 = vsub.f32 %v4424, %v4615
  %v4617 = vand.u32 %v4616, 4294901760
  %v4618 = vsub.f32 %v4616, %v4617
  %v4619 = vand.u32 %v4618, 4294901760
  %4620 = vmatpush1.msra.mxu0 %v4619
  %4621 = vmatprep.subr.mxu0 0.0
  %v4622 = vand.u32 %v4423, 4294901760
  %v4623 = vsub.f32 %v4423, %v4622
  %v4624 = vand.u32 %v4623, 4294901760
  %v4625 = vsub.f32 %v4623, %v4624
  %v4626 = vand.u32 %v4625, 4294901760
  %4627 = vmatpush1.msra.mxu0 %v4626
  %4628 = vmatprep.subr.mxu0 0.0
  %v4629 = vand.u32 %v4422, 4294901760
  %v4630 = vsub.f32 %v4422, %v4629
  %v4631 = vand.u32 %v4630, 4294901760
  %v4632 = vsub.f32 %v4630, %v4631
  %v4633 = vand.u32 %v4632, 4294901760
  %4634 = vmatpush1.msra.mxu0 %v4633
  %4635 = vmatprep.subr.mxu0 0.0
  %v4636 = vand.u32 %v4421, 4294901760
  %v4637 = vsub.f32 %v4421, %v4636
  %v4638 = vand.u32 %v4637, 4294901760
  %v4639 = vsub.f32 %v4637, %v4638
  %v4640 = vand.u32 %v4639, 4294901760
  %4641 = vmatpush1.msra.mxu0 %v4640
  %4642 = vmatprep.subr.mxu0 0.0
  %v4643 = vand.u32 %v4420, 4294901760
  %v4644 = vsub.f32 %v4420, %v4643
  %v4645 = vand.u32 %v4644, 4294901760
  %v4646 = vsub.f32 %v4644, %v4645
  %v4647 = vand.u32 %v4646, 4294901760
  %4648 = vmatpush1.msra.mxu0 %v4647
  %4649 = vmatprep.subr.mxu0 0.0
  %4650 = vmatpush2.msra.mxu0 0.0
  %4651 = vmatprep.subr.mxu0 0.0
  %4652 = vmatpush2.msra.mxu0 0.0
  %4653 = vmatprep.subr.mxu0 0.0
  %4654 = vmatpush2.msra.mxu0 0.0
  %4655 = vmatprep.subr.mxu0 0.0
  %4656 = vmatpush2.msra.mxu0 0.0
  %4657 = vmatprep.subr.mxu0 0.0
  %4658 = vmatpush2.msra.mxu0 0.0
  %4659 = vmatprep.subr.mxu0 0.0
  %4660 = vmatpush2.msra.mxu0 0.0
  %4661 = vmatprep.subr.mxu0 0.0
  %4662 = vmatpush2.msra.mxu0 0.0
  %4663 = vmatprep.subr.mxu0 0.0
  %4664 = vmatpush2.msra.mxu0 0.0
  %4665 = vmatprep.subr.mxu0 0.0
  %4666 = vmatpush2.msra.mxu0 0.0
  %4667 = vmatprep.subr.mxu0 0.0
  %4668 = vmatpush2.msra.mxu0 0.0
  %4669 = vmatprep.subr.mxu0 0.0
  %4670 = vmatpush2.msra.mxu0 0.0
  %4671 = vmatprep.subr.mxu0 0.0
  %4672 = vmatpush2.msra.mxu0 0.0
  %4673 = vmatprep.subr.mxu0 0.0
  %4674 = vmatpush2.msra.mxu0 0.0
  %4675 = vmatprep.subr.mxu0 0.0
  %4676 = vmatpush2.msra.mxu0 0.0
  %4677 = vmatprep.subr.mxu0 0.0
  %4678 = vmatpush2.msra.mxu0 0.0
  %4679 = vmatprep.subr.mxu0 0.0
  %4680 = vmatpush2.msra.mxu0 0.0
  %4681 = vmatprep.mubr.f32.mxu0 0.0
  %v4682 = vand.u32 %v4413, 4294901760
  %4683 = vmatmul.mubr.f32.gmra.mxu0 %v4682
  %v4684 = vpop.f32.mrf.mxu0
  %v4685 = vadd.f32 %v4524, %v4684
  %v4686 = vpop.f32.mrf.mxu0
  %4687 = vmatprep.mubr.f32.mxu0 0.0
  %v4688 = vand.u32 %v4416, 4294901760
  %4689 = vmatmul.mubr.f32.gmra.mxu0 %v4688
  %v4690 = vpop.f32.mrf.mxu0
  %v4691 = vadd.f32 %v4534, %v4690
  %v4692 = vpop.f32.mrf.mxu0
  %4693 = vdwg.mxu0
  %4694 = vmatprep.subr.mxu0 0.0
  %v4695 = vand.u32 %v4435, 4294901760
  %v4696 = vsub.f32 %v4435, %v4695
  %4697 = vmatpush1.msra.mxu0 %v4696
  %4698 = vmatprep.subr.mxu0 0.0
  %v4699 = vand.u32 %v4434, 4294901760
  %v4700 = vsub.f32 %v4434, %v4699
  %4701 = vmatpush1.msra.mxu0 %v4700
  %4702 = vmatprep.subr.mxu0 0.0
  %v4703 = vand.u32 %v4433, 4294901760
  %v4704 = vsub.f32 %v4433, %v4703
  %4705 = vmatpush1.msra.mxu0 %v4704
  %4706 = vmatprep.subr.mxu0 0.0
  %v4707 = vand.u32 %v4432, 4294901760
  %v4708 = vsub.f32 %v4432, %v4707
  %4709 = vmatpush1.msra.mxu0 %v4708
  %4710 = vmatprep.subr.mxu0 0.0
  %v4711 = vand.u32 %v4431, 4294901760
  %v4712 = vsub.f32 %v4431, %v4711
  %4713 = vmatpush1.msra.mxu0 %v4712
  %4714 = vmatprep.subr.mxu0 0.0
  %v4715 = vand.u32 %v4430, 4294901760
  %v4716 = vsub.f32 %v4430, %v4715
  %4717 = vmatpush1.msra.mxu0 %v4716
  %4718 = vmatprep.subr.mxu0 0.0
  %v4719 = vand.u32 %v4429, 4294901760
  %v4720 = vsub.f32 %v4429, %v4719
  %4721 = vmatpush1.msra.mxu0 %v4720
  %4722 = vmatprep.subr.mxu0 0.0
  %v4723 = vand.u32 %v4428, 4294901760
  %v4724 = vsub.f32 %v4428, %v4723
  %4725 = vmatpush1.msra.mxu0 %v4724
  %4726 = vmatprep.subr.mxu0 0.0
  %v4727 = vand.u32 %v4427, 4294901760
  %v4728 = vsub.f32 %v4427, %v4727
  %4729 = vmatpush1.msra.mxu0 %v4728
  %4730 = vmatprep.subr.mxu0 0.0
  %v4731 = vand.u32 %v4426, 4294901760
  %v4732 = vsub.f32 %v4426, %v4731
  %4733 = vmatpush1.msra.mxu0 %v4732
  %4734 = vmatprep.subr.mxu0 0.0
  %v4735 = vand.u32 %v4425, 4294901760
  %v4736 = vsub.f32 %v4425, %v4735
  %4737 = vmatpush1.msra.mxu0 %v4736
  %4738 = vmatprep.subr.mxu0 0.0
  %v4739 = vand.u32 %v4424, 4294901760
  %v4740 = vsub.f32 %v4424, %v4739
  %4741 = vmatpush1.msra.mxu0 %v4740
  %4742 = vmatprep.subr.mxu0 0.0
  %v4743 = vand.u32 %v4423, 4294901760
  %v4744 = vsub.f32 %v4423, %v4743
  %4745 = vmatpush1.msra.mxu0 %v4744
  %4746 = vmatprep.subr.mxu0 0.0
  %v4747 = vand.u32 %v4422, 4294901760
  %v4748 = vsub.f32 %v4422, %v4747
  %4749 = vmatpush1.msra.mxu0 %v4748
  %4750 = vmatprep.subr.mxu0 0.0
  %v4751 = vand.u32 %v4421, 4294901760
  %v4752 = vsub.f32 %v4421, %v4751
  %4753 = vmatpush1.msra.mxu0 %v4752
  %4754 = vmatprep.subr.mxu0 0.0
  %v4755 = vand.u32 %v4420, 4294901760
  %v4756 = vsub.f32 %v4420, %v4755
  %4757 = vmatpush1.msra.mxu0 %v4756
  %4758 = vmatprep.subr.mxu0 0.0
  %4759 = vmatpush2.msra.mxu0 0.0
  %4760 = vmatprep.subr.mxu0 0.0
  %4761 = vmatpush2.msra.mxu0 0.0
  %4762 = vmatprep.subr.mxu0 0.0
  %4763 = vmatpush2.msra.mxu0 0.0
  %4764 = vmatprep.subr.mxu0 0.0
  %4765 = vmatpush2.msra.mxu0 0.0
  %4766 = vmatprep.subr.mxu0 0.0
  %4767 = vmatpush2.msra.mxu0 0.0
  %4768 = vmatprep.subr.mxu0 0.0
  %4769 = vmatpush2.msra.mxu0 0.0
  %4770 = vmatprep.subr.mxu0 0.0
  %4771 = vmatpush2.msra.mxu0 0.0
  %4772 = vmatprep.subr.mxu0 0.0
  %4773 = vmatpush2.msra.mxu0 0.0
  %4774 = vmatprep.subr.mxu0 0.0
  %4775 = vmatpush2.msra.mxu0 0.0
  %4776 = vmatprep.subr.mxu0 0.0
  %4777 = vmatpush2.msra.mxu0 0.0
  %4778 = vmatprep.subr.mxu0 0.0
  %4779 = vmatpush2.msra.mxu0 0.0
  %4780 = vmatprep.subr.mxu0 0.0
  %4781 = vmatpush2.msra.mxu0 0.0
  %4782 = vmatprep.subr.mxu0 0.0
  %4783 = vmatpush2.msra.mxu0 0.0
  %4784 = vmatprep.subr.mxu0 0.0
  %4785 = vmatpush2.msra.mxu0 0.0
  %4786 = vmatprep.subr.mxu0 0.0
  %4787 = vmatpush2.msra.mxu0 0.0
  %4788 = vmatprep.subr.mxu0 0.0
  %4789 = vmatpush2.msra.mxu0 0.0
  %4790 = vmatprep.mubr.f32.mxu0 0.0
  %v4791 = vand.u32 %v4413, 4294901760
  %v4792 = vsub.f32 %v4413, %v4791
  %4793 = vmatmul.mubr.f32.gmra.mxu0 %v4792
  %v4794 = vpop.f32.mrf.mxu0
  %v4795 = vadd.f32 %v4685, %v4794
  %v4796 = vpop.f32.mrf.mxu0
  %4797 = vmatprep.mubr.f32.mxu0 0.0
  %v4798 = vand.u32 %v4416, 4294901760
  %v4799 = vsub.f32 %v4416, %v4798
  %4800 = vmatmul.mubr.f32.gmra.mxu0 %v4799
  %v4801 = vpop.f32.mrf.mxu0
  %v4802 = vadd.f32 %v4691, %v4801
  %v4803 = vpop.f32.mrf.mxu0
  %4804 = vdwg.mxu0
  %4805 = vmatprep.subr.mxu0 0.0
  %v4806 = vand.u32 %v4435, 4294901760
  %4807 = vmatpush1.msra.mxu0 %v4806
  %4808 = vmatprep.subr.mxu0 0.0
  %v4809 = vand.u32 %v4434, 4294901760
  %4810 = vmatpush1.msra.mxu0 %v4809
  %4811 = vmatprep.subr.mxu0 0.0
  %v4812 = vand.u32 %v4433, 4294901760
  %4813 = vmatpush1.msra.mxu0 %v4812
  %4814 = vmatprep.subr.mxu0 0.0
  %v4815 = vand.u32 %v4432, 4294901760
  %4816 = vmatpush1.msra.mxu0 %v4815
  %4817 = vmatprep.subr.mxu0 0.0
  %v4818 = vand.u32 %v4431, 4294901760
  %4819 = vmatpush1.msra.mxu0 %v4818
  %4820 = vmatprep.subr.mxu0 0.0
  %v4821 = vand.u32 %v4430, 4294901760
  %4822 = vmatpush1.msra.mxu0 %v4821
  %4823 = vmatprep.subr.mxu0 0.0
  %v4824 = vand.u32 %v4429, 4294901760
  %4825 = vmatpush1.msra.mxu0 %v4824
  %4826 = vmatprep.subr.mxu0 0.0
  %v4827 = vand.u32 %v4428, 4294901760
  %4828 = vmatpush1.msra.mxu0 %v4827
  %4829 = vmatprep.subr.mxu0 0.0
  %v4830 = vand.u32 %v4427, 4294901760
  %4831 = vmatpush1.msra.mxu0 %v4830
  %4832 = vmatprep.subr.mxu0 0.0
  %v4833 = vand.u32 %v4426, 4294901760
  %4834 = vmatpush1.msra.mxu0 %v4833
  %4835 = vmatprep.subr.mxu0 0.0
  %v4836 = vand.u32 %v4425, 4294901760
  %4837 = vmatpush1.msra.mxu0 %v4836
  %4838 = vmatprep.subr.mxu0 0.0
  %v4839 = vand.u32 %v4424, 4294901760
  %4840 = vmatpush1.msra.mxu0 %v4839
  %4841 = vmatprep.subr.mxu0 0.0
  %v4842 = vand.u32 %v4423, 4294901760
  %4843 = vmatpush1.msra.mxu0 %v4842
  %4844 = vmatprep.subr.mxu0 0.0
  %v4845 = vand.u32 %v4422, 4294901760
  %4846 = vmatpush1.msra.mxu0 %v4845
  %4847 = vmatprep.subr.mxu0 0.0
  %v4848 = vand.u32 %v4421, 4294901760
  %4849 = vmatpush1.msra.mxu0 %v4848
  %4850 = vmatprep.subr.mxu0 0.0
  %v4851 = vand.u32 %v4420, 4294901760
  %4852 = vmatpush1.msra.mxu0 %v4851
  %4853 = vmatprep.subr.mxu0 0.0
  %4854 = vmatpush2.msra.mxu0 0.0
  %4855 = vmatprep.subr.mxu0 0.0
  %4856 = vmatpush2.msra.mxu0 0.0
  %4857 = vmatprep.subr.mxu0 0.0
  %4858 = vmatpush2.msra.mxu0 0.0
  %4859 = vmatprep.subr.mxu0 0.0
  %4860 = vmatpush2.msra.mxu0 0.0
  %4861 = vmatprep.subr.mxu0 0.0
  %4862 = vmatpush2.msra.mxu0 0.0
  %4863 = vmatprep.subr.mxu0 0.0
  %4864 = vmatpush2.msra.mxu0 0.0
  %4865 = vmatprep.subr.mxu0 0.0
  %4866 = vmatpush2.msra.mxu0 0.0
  %4867 = vmatprep.subr.mxu0 0.0
  %4868 = vmatpush2.msra.mxu0 0.0
  %4869 = vmatprep.subr.mxu0 0.0
  %4870 = vmatpush2.msra.mxu0 0.0
  %4871 = vmatprep.subr.mxu0 0.0
  %4872 = vmatpush2.msra.mxu0 0.0
  %4873 = vmatprep.subr.mxu0 0.0
  %4874 = vmatpush2.msra.mxu0 0.0
  %4875 = vmatprep.subr.mxu0 0.0
  %4876 = vmatpush2.msra.mxu0 0.0
  %4877 = vmatprep.subr.mxu0 0.0
  %4878 = vmatpush2.msra.mxu0 0.0
  %4879 = vmatprep.subr.mxu0 0.0
  %4880 = vmatpush2.msra.mxu0 0.0
  %4881 = vmatprep.subr.mxu0 0.0
  %4882 = vmatpush2.msra.mxu0 0.0
  %4883 = vmatprep.subr.mxu0 0.0
  %4884 = vmatpush2.msra.mxu0 0.0
  %4885 = vmatprep.mubr.f32.mxu0 0.0
  %v4886 = vand.u32 %v4413, 4294901760
  %v4887 = vsub.f32 %v4413, %v4886
  %v4888 = vand.u32 %v4887, 4294901760
  %4889 = vmatmul.mubr.f32.gmra.mxu0 %v4888
  %v4890 = vpop.f32.mrf.mxu0
  %v4891 = vadd.f32 %v4795, %v4890
  %v4892 = vpop.f32.mrf.mxu0
  %4893 = vmatprep.mubr.f32.mxu0 0.0
  %v4894 = vand.u32 %v4416, 4294901760
  %v4895 = vsub.f32 %v4416, %v4894
  %v4896 = vand.u32 %v4895, 4294901760
  %4897 = vmatmul.mubr.f32.gmra.mxu0 %v4896
  %v4898 = vpop.f32.mrf.mxu0
  %v4899 = vadd.f32 %v4802, %v4898
  %v4900 = vpop.f32.mrf.mxu0
  %4901 = vdwg.mxu0
  %4902 = vmatprep.subr.mxu0 0.0
  %v4903 = vand.u32 %v4435, 4294901760
  %v4904 = vsub.f32 %v4435, %v4903
  %v4905 = vand.u32 %v4904, 4294901760
  %4906 = vmatpush1.msra.mxu0 %v4905
  %4907 = vmatprep.subr.mxu0 0.0
  %v4908 = vand.u32 %v4434, 4294901760
  %v4909 = vsub.f32 %v4434, %v4908
  %v4910 = vand.u32 %v4909, 4294901760
  %4911 = vmatpush1.msra.mxu0 %v4910
  %4912 = vmatprep.subr.mxu0 0.0
  %v4913 = vand.u32 %v4433, 4294901760
  %v4914 = vsub.f32 %v4433, %v4913
  %v4915 = vand.u32 %v4914, 4294901760
  %4916 = vmatpush1.msra.mxu0 %v4915
  %4917 = vmatprep.subr.mxu0 0.0
  %v4918 = vand.u32 %v4432, 4294901760
  %v4919 = vsub.f32 %v4432, %v4918
  %v4920 = vand.u32 %v4919, 4294901760
  %4921 = vmatpush1.msra.mxu0 %v4920
  %4922 = vmatprep.subr.mxu0 0.0
  %v4923 = vand.u32 %v4431, 4294901760
  %v4924 = vsub.f32 %v4431, %v4923
  %v4925 = vand.u32 %v4924, 4294901760
  %4926 = vmatpush1.msra.mxu0 %v4925
  %4927 = vmatprep.subr.mxu0 0.0
  %v4928 = vand.u32 %v4430, 4294901760
  %v4929 = vsub.f32 %v4430, %v4928
  %v4930 = vand.u32 %v4929, 4294901760
  %4931 = vmatpush1.msra.mxu0 %v4930
  %4932 = vmatprep.subr.mxu0 0.0
  %v4933 = vand.u32 %v4429, 4294901760
  %v4934 = vsub.f32 %v4429, %v4933
  %v4935 = vand.u32 %v4934, 4294901760
  %4936 = vmatpush1.msra.mxu0 %v4935
  %4937 = vmatprep.subr.mxu0 0.0
  %v4938 = vand.u32 %v4428, 4294901760
  %v4939 = vsub.f32 %v4428, %v4938
  %v4940 = vand.u32 %v4939, 4294901760
  %4941 = vmatpush1.msra.mxu0 %v4940
  %4942 = vmatprep.subr.mxu0 0.0
  %v4943 = vand.u32 %v4427, 4294901760
  %v4944 = vsub.f32 %v4427, %v4943
  %v4945 = vand.u32 %v4944, 4294901760
  %4946 = vmatpush1.msra.mxu0 %v4945
  %4947 = vmatprep.subr.mxu0 0.0
  %v4948 = vand.u32 %v4426, 4294901760
  %v4949 = vsub.f32 %v4426, %v4948
  %v4950 = vand.u32 %v4949, 4294901760
  %4951 = vmatpush1.msra.mxu0 %v4950
  %4952 = vmatprep.subr.mxu0 0.0
  %v4953 = vand.u32 %v4425, 4294901760
  %v4954 = vsub.f32 %v4425, %v4953
  %v4955 = vand.u32 %v4954, 4294901760
  %4956 = vmatpush1.msra.mxu0 %v4955
  %4957 = vmatprep.subr.mxu0 0.0
  %v4958 = vand.u32 %v4424, 4294901760
  %v4959 = vsub.f32 %v4424, %v4958
  %v4960 = vand.u32 %v4959, 4294901760
  %4961 = vmatpush1.msra.mxu0 %v4960
  %4962 = vmatprep.subr.mxu0 0.0
  %v4963 = vand.u32 %v4423, 4294901760
  %v4964 = vsub.f32 %v4423, %v4963
  %v4965 = vand.u32 %v4964, 4294901760
  %4966 = vmatpush1.msra.mxu0 %v4965
  %4967 = vmatprep.subr.mxu0 0.0
  %v4968 = vand.u32 %v4422, 4294901760
  %v4969 = vsub.f32 %v4422, %v4968
  %v4970 = vand.u32 %v4969, 4294901760
  %4971 = vmatpush1.msra.mxu0 %v4970
  %4972 = vmatprep.subr.mxu0 0.0
  %v4973 = vand.u32 %v4421, 4294901760
  %v4974 = vsub.f32 %v4421, %v4973
  %v4975 = vand.u32 %v4974, 4294901760
  %4976 = vmatpush1.msra.mxu0 %v4975
  %4977 = vmatprep.subr.mxu0 0.0
  %v4978 = vand.u32 %v4420, 4294901760
  %v4979 = vsub.f32 %v4420, %v4978
  %v4980 = vand.u32 %v4979, 4294901760
  %4981 = vmatpush1.msra.mxu0 %v4980
  %4982 = vmatprep.subr.mxu0 0.0
  %4983 = vmatpush2.msra.mxu0 0.0
  %4984 = vmatprep.subr.mxu0 0.0
  %4985 = vmatpush2.msra.mxu0 0.0
  %4986 = vmatprep.subr.mxu0 0.0
  %4987 = vmatpush2.msra.mxu0 0.0
  %4988 = vmatprep.subr.mxu0 0.0
  %4989 = vmatpush2.msra.mxu0 0.0
  %4990 = vmatprep.subr.mxu0 0.0
  %4991 = vmatpush2.msra.mxu0 0.0
  %4992 = vmatprep.subr.mxu0 0.0
  %4993 = vmatpush2.msra.mxu0 0.0
  %4994 = vmatprep.subr.mxu0 0.0
  %4995 = vmatpush2.msra.mxu0 0.0
  %4996 = vmatprep.subr.mxu0 0.0
  %4997 = vmatpush2.msra.mxu0 0.0
  %4998 = vmatprep.subr.mxu0 0.0
  %4999 = vmatpush2.msra.mxu0 0.0
  %5000 = vmatprep.subr.mxu0 0.0
  %5001 = vmatpush2.msra.mxu0 0.0
  %5002 = vmatprep.subr.mxu0 0.0
  %5003 = vmatpush2.msra.mxu0 0.0
  %5004 = vmatprep.subr.mxu0 0.0
  %5005 = vmatpush2.msra.mxu0 0.0
  %5006 = vmatprep.subr.mxu0 0.0
  %5007 = vmatpush2.msra.mxu0 0.0
  %5008 = vmatprep.subr.mxu0 0.0
  %5009 = vmatpush2.msra.mxu0 0.0
  %5010 = vmatprep.subr.mxu0 0.0
  %5011 = vmatpush2.msra.mxu0 0.0
  %5012 = vmatprep.subr.mxu0 0.0
  %5013 = vmatpush2.msra.mxu0 0.0
  %5014 = vmatprep.mubr.f32.mxu0 0.0
  %v5015 = vand.u32 %v4413, 4294901760
  %5016 = vmatmul.mubr.f32.gmra.mxu0 %v5015
  %v5017 = vpop.f32.mrf.mxu0
  %v5018 = vadd.f32 %v4891, %v5017
  %v5019 = vpop.f32.mrf.mxu0
  %5020 = vmatprep.mubr.f32.mxu0 0.0
  %v5021 = vand.u32 %v4416, 4294901760
  %5022 = vmatmul.mubr.f32.gmra.mxu0 %v5021
  %v5023 = vpop.f32.mrf.mxu0
  %v5024 = vadd.f32 %v4899, %v5023
  %v5025 = vpop.f32.mrf.mxu0
  %5026 = vdwg.mxu0
  %5027 = vmatprep.subr.mxu0 0.0
  %v5028 = vand.u32 %v4435, 4294901760
  %5029 = vmatpush1.msra.mxu0 %v5028
  %5030 = vmatprep.subr.mxu0 0.0
  %v5031 = vand.u32 %v4434, 4294901760
  %5032 = vmatpush1.msra.mxu0 %v5031
  %5033 = vmatprep.subr.mxu0 0.0
  %v5034 = vand.u32 %v4433, 4294901760
  %5035 = vmatpush1.msra.mxu0 %v5034
  %5036 = vmatprep.subr.mxu0 0.0
  %v5037 = vand.u32 %v4432, 4294901760
  %5038 = vmatpush1.msra.mxu0 %v5037
  %5039 = vmatprep.subr.mxu0 0.0
  %v5040 = vand.u32 %v4431, 4294901760
  %5041 = vmatpush1.msra.mxu0 %v5040
  %5042 = vmatprep.subr.mxu0 0.0
  %v5043 = vand.u32 %v4430, 4294901760
  %5044 = vmatpush1.msra.mxu0 %v5043
  %5045 = vmatprep.subr.mxu0 0.0
  %v5046 = vand.u32 %v4429, 4294901760
  %5047 = vmatpush1.msra.mxu0 %v5046
  %5048 = vmatprep.subr.mxu0 0.0
  %v5049 = vand.u32 %v4428, 4294901760
  %5050 = vmatpush1.msra.mxu0 %v5049
  %5051 = vmatprep.subr.mxu0 0.0
  %v5052 = vand.u32 %v4427, 4294901760
  %5053 = vmatpush1.msra.mxu0 %v5052
  %5054 = vmatprep.subr.mxu0 0.0
  %v5055 = vand.u32 %v4426, 4294901760
  %5056 = vmatpush1.msra.mxu0 %v5055
  %5057 = vmatprep.subr.mxu0 0.0
  %v5058 = vand.u32 %v4425, 4294901760
  %5059 = vmatpush1.msra.mxu0 %v5058
  %5060 = vmatprep.subr.mxu0 0.0
  %v5061 = vand.u32 %v4424, 4294901760
  %5062 = vmatpush1.msra.mxu0 %v5061
  %5063 = vmatprep.subr.mxu0 0.0
  %v5064 = vand.u32 %v4423, 4294901760
  %5065 = vmatpush1.msra.mxu0 %v5064
  %5066 = vmatprep.subr.mxu0 0.0
  %v5067 = vand.u32 %v4422, 4294901760
  %5068 = vmatpush1.msra.mxu0 %v5067
  %5069 = vmatprep.subr.mxu0 0.0
  %v5070 = vand.u32 %v4421, 4294901760
  %5071 = vmatpush1.msra.mxu0 %v5070
  %5072 = vmatprep.subr.mxu0 0.0
  %v5073 = vand.u32 %v4420, 4294901760
  %5074 = vmatpush1.msra.mxu0 %v5073
  %5075 = vmatprep.subr.mxu0 0.0
  %5076 = vmatpush2.msra.mxu0 0.0
  %5077 = vmatprep.subr.mxu0 0.0
  %5078 = vmatpush2.msra.mxu0 0.0
  %5079 = vmatprep.subr.mxu0 0.0
  %5080 = vmatpush2.msra.mxu0 0.0
  %5081 = vmatprep.subr.mxu0 0.0
  %5082 = vmatpush2.msra.mxu0 0.0
  %5083 = vmatprep.subr.mxu0 0.0
  %5084 = vmatpush2.msra.mxu0 0.0
  %5085 = vmatprep.subr.mxu0 0.0
  %5086 = vmatpush2.msra.mxu0 0.0
  %5087 = vmatprep.subr.mxu0 0.0
  %5088 = vmatpush2.msra.mxu0 0.0
  %5089 = vmatprep.subr.mxu0 0.0
  %5090 = vmatpush2.msra.mxu0 0.0
  %5091 = vmatprep.subr.mxu0 0.0
  %5092 = vmatpush2.msra.mxu0 0.0
  %5093 = vmatprep.subr.mxu0 0.0
  %5094 = vmatpush2.msra.mxu0 0.0
  %5095 = vmatprep.subr.mxu0 0.0
  %5096 = vmatpush2.msra.mxu0 0.0
  %5097 = vmatprep.subr.mxu0 0.0
  %5098 = vmatpush2.msra.mxu0 0.0
  %5099 = vmatprep.subr.mxu0 0.0
  %5100 = vmatpush2.msra.mxu0 0.0
  %5101 = vmatprep.subr.mxu0 0.0
  %5102 = vmatpush2.msra.mxu0 0.0
  %5103 = vmatprep.subr.mxu0 0.0
  %5104 = vmatpush2.msra.mxu0 0.0
  %5105 = vmatprep.subr.mxu0 0.0
  %5106 = vmatpush2.msra.mxu0 0.0
  %5107 = vmatprep.mubr.f32.mxu0 0.0
  %v5108 = vand.u32 %v4413, 4294901760
  %5109 = vmatmul.mubr.f32.gmra.mxu0 %v5108
  %v5110 = vpop.f32.mrf.mxu0
  %v5111 = vadd.f32 %v5018, %v5110
  %v5112 = vpop.f32.mrf.mxu0
  %5113 = vmatprep.mubr.f32.mxu0 0.0
  %v5114 = vand.u32 %v4416, 4294901760
  %5115 = vmatmul.mubr.f32.gmra.mxu0 %v5114
  %v5116 = vpop.f32.mrf.mxu0
  %v5117 = vadd.f32 %v5024, %v5116
  %v5118 = vpop.f32.mrf.mxu0
  %5119 = vdwg.mxu0
  %v5120 = vadd.f32 %v4402, %v5111
  %v5121 = vadd.f32 %v4408, %v5117
  %v5123 = vlaneseq
  %v5124 = vshrl.u32 %v5123, 7
  %v5125 = vsub.s32 0, %v5124
  %v5126 = vrot.slane %v2997, %v5125
  %v5128 = vadd.f32 %v5120, %v5126
  %v5129 = vadd.f32 %v5121, %v5126
  %v5130 = vmax.f32 %v5128, 0.0
  %v5131 = vmax.f32 %v5129, 0.0
  %v5134 = vrot.slane %v5130, 7
  %v5135 = vrot.slane %v5131, 7
  %v5138 = vsel %vm2547, 0.0, %v5134
  %v5139 = vsel %vm2547, 0.0, %v5135
  %v5140 = vsel %vm2547, %v5134, 0.0
  %v5141 = vsel %vm2547, %v5135, 0.0
  %s5142 = scalar_lea.vmem %s4, 1
  %v5143 = vld [vmem:[%s5142] sm:$0x1]
  %s5144 = scalar_lea.vmem %s3, 384
  %v5145 = vld [vmem:[%s5144] sm:$0xff]
  %v5146 = vld [vmem:[%s5144 + $0x8] sm:$0xff]
  %v5147 = vld [vmem:[%s5144 + $0x10] sm:$0xff]
  %v5148 = vld [vmem:[%s5144 + $0x18] sm:$0xff]
  %v5149 = vld [vmem:[%s5144 + $0x20] sm:$0xff]
  %v5150 = vld [vmem:[%s5144 + $0x28] sm:$0xff]
  %v5151 = vld [vmem:[%s5144 + $0x30] sm:$0xff]
  %v5152 = vld [vmem:[%s5144 + $0x38] sm:$0xff]
  %v5153 = vld [vmem:[%s5144 + $0x40] sm:$0xff]
  %v5154 = vld [vmem:[%s5144 + $0x48] sm:$0xff]
  %v5155 = vld [vmem:[%s5144 + $0x50] sm:$0xff]
  %v5156 = vld [vmem:[%s5144 + $0x58] sm:$0xff]
  %v5157 = vld [vmem:[%s5144 + $0x60] sm:$0xff]
  %v5158 = vld [vmem:[%s5144 + $0x68] sm:$0xff]
  %v5159 = vld [vmem:[%s5144 + $0x70] sm:$0xff]
  %v5160 = vld [vmem:[%s5144 + $0x78] sm:$0xff]
  %v5165 = vrot.slane %v5138, 1
  %v5166 = vrot.slane %v5140, 1
  %v5167 = vsel %vm49, %v5165, %v5166
  %v5168 = vrot.slane %v5139, 1
  %v5169 = vrot.slane %v5141, 1
  %v5170 = vsel %vm49, %v5168, %v5169
  %s5173 = scalar_lea.vmem %s3, 512
  %v5174 = vld [vmem:[%s5173] sm:$0xff]
  %v5175 = vld [vmem:[%s5173 + $0x8] sm:$0xff]
  %v5176 = vld [vmem:[%s5173 + $0x10] sm:$0xff]
  %v5177 = vld [vmem:[%s5173 + $0x18] sm:$0xff]
  %v5178 = vld [vmem:[%s5173 + $0x20] sm:$0xff]
  %v5179 = vld [vmem:[%s5173 + $0x28] sm:$0xff]
  %v5180 = vld [vmem:[%s5173 + $0x30] sm:$0xff]
  %v5181 = vld [vmem:[%s5173 + $0x38] sm:$0xff]
  %v5182 = vld [vmem:[%s5173 + $0x40] sm:$0xff]
  %v5183 = vld [vmem:[%s5173 + $0x48] sm:$0xff]
  %v5184 = vld [vmem:[%s5173 + $0x50] sm:$0xff]
  %v5185 = vld [vmem:[%s5173 + $0x58] sm:$0xff]
  %v5186 = vld [vmem:[%s5173 + $0x60] sm:$0xff]
  %v5187 = vld [vmem:[%s5173 + $0x68] sm:$0xff]
  %v5188 = vld [vmem:[%s5173 + $0x70] sm:$0xff]
  %v5189 = vld [vmem:[%s5173 + $0x78] sm:$0xff]
  %5190 = vmatprep.subr.mxu0 0.0
  %v5191 = vand.u32 %v5189, 4294901760
  %5192 = vmatpush1.msra.mxu0 %v5191
  %5193 = vmatprep.subr.mxu0 0.0
  %v5194 = vand.u32 %v5188, 4294901760
  %5195 = vmatpush1.msra.mxu0 %v5194
  %5196 = vmatprep.subr.mxu0 0.0
  %v5197 = vand.u32 %v5187, 4294901760
  %5198 = vmatpush1.msra.mxu0 %v5197
  %5199 = vmatprep.subr.mxu0 0.0
  %v5200 = vand.u32 %v5186, 4294901760
  %5201 = vmatpush1.msra.mxu0 %v5200
  %5202 = vmatprep.subr.mxu0 0.0
  %v5203 = vand.u32 %v5185, 4294901760
  %5204 = vmatpush1.msra.mxu0 %v5203
  %5205 = vmatprep.subr.mxu0 0.0
  %v5206 = vand.u32 %v5184, 4294901760
  %5207 = vmatpush1.msra.mxu0 %v5206
  %5208 = vmatprep.subr.mxu0 0.0
  %v5209 = vand.u32 %v5183, 4294901760
  %5210 = vmatpush1.msra.mxu0 %v5209
  %5211 = vmatprep.subr.mxu0 0.0
  %v5212 = vand.u32 %v5182, 4294901760
  %5213 = vmatpush1.msra.mxu0 %v5212
  %5214 = vmatprep.subr.mxu0 0.0
  %v5215 = vand.u32 %v5181, 4294901760
  %5216 = vmatpush1.msra.mxu0 %v5215
  %5217 = vmatprep.subr.mxu0 0.0
  %v5218 = vand.u32 %v5180, 4294901760
  %5219 = vmatpush1.msra.mxu0 %v5218
  %5220 = vmatprep.subr.mxu0 0.0
  %v5221 = vand.u32 %v5179, 4294901760
  %5222 = vmatpush1.msra.mxu0 %v5221
  %5223 = vmatprep.subr.mxu0 0.0
  %v5224 = vand.u32 %v5178, 4294901760
  %5225 = vmatpush1.msra.mxu0 %v5224
  %5226 = vmatprep.subr.mxu0 0.0
  %v5227 = vand.u32 %v5177, 4294901760
  %5228 = vmatpush1.msra.mxu0 %v5227
  %5229 = vmatprep.subr.mxu0 0.0
  %v5230 = vand.u32 %v5176, 4294901760
  %5231 = vmatpush1.msra.mxu0 %v5230
  %5232 = vmatprep.subr.mxu0 0.0
  %v5233 = vand.u32 %v5175, 4294901760
  %5234 = vmatpush1.msra.mxu0 %v5233
  %5235 = vmatprep.subr.mxu0 0.0
  %v5236 = vand.u32 %v5174, 4294901760
  %5237 = vmatpush1.msra.mxu0 %v5236
  %5238 = vmatprep.subr.mxu0 0.0
  %5239 = vmatpush2.msra.mxu0 0.0
  %5240 = vmatprep.subr.mxu0 0.0
  %5241 = vmatpush2.msra.mxu0 0.0
  %5242 = vmatprep.subr.mxu0 0.0
  %5243 = vmatpush2.msra.mxu0 0.0
  %5244 = vmatprep.subr.mxu0 0.0
  %5245 = vmatpush2.msra.mxu0 0.0
  %5246 = vmatprep.subr.mxu0 0.0
  %5247 = vmatpush2.msra.mxu0 0.0
  %5248 = vmatprep.subr.mxu0 0.0
  %5249 = vmatpush2.msra.mxu0 0.0
  %5250 = vmatprep.subr.mxu0 0.0
  %5251 = vmatpush2.msra.mxu0 0.0
  %5252 = vmatprep.subr.mxu0 0.0
  %5253 = vmatpush2.msra.mxu0 0.0
  %5254 = vmatprep.subr.mxu0 0.0
  %5255 = vmatpush2.msra.mxu0 0.0
  %5256 = vmatprep.subr.mxu0 0.0
  %5257 = vmatpush2.msra.mxu0 0.0
  %5258 = vmatprep.subr.mxu0 0.0
  %5259 = vmatpush2.msra.mxu0 0.0
  %5260 = vmatprep.subr.mxu0 0.0
  %5261 = vmatpush2.msra.mxu0 0.0
  %5262 = vmatprep.subr.mxu0 0.0
  %5263 = vmatpush2.msra.mxu0 0.0
  %5264 = vmatprep.subr.mxu0 0.0
  %5265 = vmatpush2.msra.mxu0 0.0
  %5266 = vmatprep.subr.mxu0 0.0
  %5267 = vmatpush2.msra.mxu0 0.0
  %5268 = vmatprep.subr.mxu0 0.0
  %5269 = vmatpush2.msra.mxu0 0.0
  %5270 = vmatprep.mubr.f32.mxu0 0.0
  %v5271 = vand.u32 %v5167, 4294901760
  %v5272 = vsub.f32 %v5167, %v5271
  %v5273 = vand.u32 %v5272, 4294901760
  %v5274 = vsub.f32 %v5272, %v5273
  %v5275 = vand.u32 %v5274, 4294901760
  %5276 = vmatmul.mubr.f32.gmra.mxu0 %v5275
  %v5277 = vpop.f32.mrf.mxu0
  %v5278 = vadd.f32 0.0, %v5277
  %v5279 = vpop.f32.mrf.mxu0
  %5280 = vmatprep.mubr.f32.mxu0 0.0
  %v5281 = vand.u32 %v5170, 4294901760
  %v5282 = vsub.f32 %v5170, %v5281
  %v5283 = vand.u32 %v5282, 4294901760
  %v5284 = vsub.f32 %v5282, %v5283
  %v5285 = vand.u32 %v5284, 4294901760
  %5286 = vmatmul.mubr.f32.gmra.mxu0 %v5285
  %v5287 = vpop.f32.mrf.mxu0
  %v5288 = vadd.f32 0.0, %v5287
  %v5289 = vpop.f32.mrf.mxu0
  %5290 = vdwg.mxu0
  %5291 = vmatprep.subr.mxu0 0.0
  %v5292 = vand.u32 %v5189, 4294901760
  %v5293 = vsub.f32 %v5189, %v5292
  %v5294 = vand.u32 %v5293, 4294901760
  %v5295 = vsub.f32 %v5293, %v5294
  %v5296 = vand.u32 %v5295, 4294901760
  %5297 = vmatpush1.msra.mxu0 %v5296
  %5298 = vmatprep.subr.mxu0 0.0
  %v5299 = vand.u32 %v5188, 4294901760
  %v5300 = vsub.f32 %v5188, %v5299
  %v5301 = vand.u32 %v5300, 4294901760
  %v5302 = vsub.f32 %v5300, %v5301
  %v5303 = vand.u32 %v5302, 4294901760
  %5304 = vmatpush1.msra.mxu0 %v5303
  %5305 = vmatprep.subr.mxu0 0.0
  %v5306 = vand.u32 %v5187, 4294901760
  %v5307 = vsub.f32 %v5187, %v5306
  %v5308 = vand.u32 %v5307, 4294901760
  %v5309 = vsub.f32 %v5307, %v5308
  %v5310 = vand.u32 %v5309, 4294901760
  %5311 = vmatpush1.msra.mxu0 %v5310
  %5312 = vmatprep.subr.mxu0 0.0
  %v5313 = vand.u32 %v5186, 4294901760
  %v5314 = vsub.f32 %v5186, %v5313
  %v5315 = vand.u32 %v5314, 4294901760
  %v5316 = vsub.f32 %v5314, %v5315
  %v5317 = vand.u32 %v5316, 4294901760
  %5318 = vmatpush1.msra.mxu0 %v5317
  %5319 = vmatprep.subr.mxu0 0.0
  %v5320 = vand.u32 %v5185, 4294901760
  %v5321 = vsub.f32 %v5185, %v5320
  %v5322 = vand.u32 %v5321, 4294901760
  %v5323 = vsub.f32 %v5321, %v5322
  %v5324 = vand.u32 %v5323, 4294901760
  %5325 = vmatpush1.msra.mxu0 %v5324
  %5326 = vmatprep.subr.mxu0 0.0
  %v5327 = vand.u32 %v5184, 4294901760
  %v5328 = vsub.f32 %v5184, %v5327
  %v5329 = vand.u32 %v5328, 4294901760
  %v5330 = vsub.f32 %v5328, %v5329
  %v5331 = vand.u32 %v5330, 4294901760
  %5332 = vmatpush1.msra.mxu0 %v5331
  %5333 = vmatprep.subr.mxu0 0.0
  %v5334 = vand.u32 %v5183, 4294901760
  %v5335 = vsub.f32 %v5183, %v5334
  %v5336 = vand.u32 %v5335, 4294901760
  %v5337 = vsub.f32 %v5335, %v5336
  %v5338 = vand.u32 %v5337, 4294901760
  %5339 = vmatpush1.msra.mxu0 %v5338
  %5340 = vmatprep.subr.mxu0 0.0
  %v5341 = vand.u32 %v5182, 4294901760
  %v5342 = vsub.f32 %v5182, %v5341
  %v5343 = vand.u32 %v5342, 4294901760
  %v5344 = vsub.f32 %v5342, %v5343
  %v5345 = vand.u32 %v5344, 4294901760
  %5346 = vmatpush1.msra.mxu0 %v5345
  %5347 = vmatprep.subr.mxu0 0.0
  %v5348 = vand.u32 %v5181, 4294901760
  %v5349 = vsub.f32 %v5181, %v5348
  %v5350 = vand.u32 %v5349, 4294901760
  %v5351 = vsub.f32 %v5349, %v5350
  %v5352 = vand.u32 %v5351, 4294901760
  %5353 = vmatpush1.msra.mxu0 %v5352
  %5354 = vmatprep.subr.mxu0 0.0
  %v5355 = vand.u32 %v5180, 4294901760
  %v5356 = vsub.f32 %v5180, %v5355
  %v5357 = vand.u32 %v5356, 4294901760
  %v5358 = vsub.f32 %v5356, %v5357
  %v5359 = vand.u32 %v5358, 4294901760
  %5360 = vmatpush1.msra.mxu0 %v5359
  %5361 = vmatprep.subr.mxu0 0.0
  %v5362 = vand.u32 %v5179, 4294901760
  %v5363 = vsub.f32 %v5179, %v5362
  %v5364 = vand.u32 %v5363, 4294901760
  %v5365 = vsub.f32 %v5363, %v5364
  %v5366 = vand.u32 %v5365, 4294901760
  %5367 = vmatpush1.msra.mxu0 %v5366
  %5368 = vmatprep.subr.mxu0 0.0
  %v5369 = vand.u32 %v5178, 4294901760
  %v5370 = vsub.f32 %v5178, %v5369
  %v5371 = vand.u32 %v5370, 4294901760
  %v5372 = vsub.f32 %v5370, %v5371
  %v5373 = vand.u32 %v5372, 4294901760
  %5374 = vmatpush1.msra.mxu0 %v5373
  %5375 = vmatprep.subr.mxu0 0.0
  %v5376 = vand.u32 %v5177, 4294901760
  %v5377 = vsub.f32 %v5177, %v5376
  %v5378 = vand.u32 %v5377, 4294901760
  %v5379 = vsub.f32 %v5377, %v5378
  %v5380 = vand.u32 %v5379, 4294901760
  %5381 = vmatpush1.msra.mxu0 %v5380
  %5382 = vmatprep.subr.mxu0 0.0
  %v5383 = vand.u32 %v5176, 4294901760
  %v5384 = vsub.f32 %v5176, %v5383
  %v5385 = vand.u32 %v5384, 4294901760
  %v5386 = vsub.f32 %v5384, %v5385
  %v5387 = vand.u32 %v5386, 4294901760
  %5388 = vmatpush1.msra.mxu0 %v5387
  %5389 = vmatprep.subr.mxu0 0.0
  %v5390 = vand.u32 %v5175, 4294901760
  %v5391 = vsub.f32 %v5175, %v5390
  %v5392 = vand.u32 %v5391, 4294901760
  %v5393 = vsub.f32 %v5391, %v5392
  %v5394 = vand.u32 %v5393, 4294901760
  %5395 = vmatpush1.msra.mxu0 %v5394
  %5396 = vmatprep.subr.mxu0 0.0
  %v5397 = vand.u32 %v5174, 4294901760
  %v5398 = vsub.f32 %v5174, %v5397
  %v5399 = vand.u32 %v5398, 4294901760
  %v5400 = vsub.f32 %v5398, %v5399
  %v5401 = vand.u32 %v5400, 4294901760
  %5402 = vmatpush1.msra.mxu0 %v5401
  %5403 = vmatprep.subr.mxu0 0.0
  %5404 = vmatpush2.msra.mxu0 0.0
  %5405 = vmatprep.subr.mxu0 0.0
  %5406 = vmatpush2.msra.mxu0 0.0
  %5407 = vmatprep.subr.mxu0 0.0
  %5408 = vmatpush2.msra.mxu0 0.0
  %5409 = vmatprep.subr.mxu0 0.0
  %5410 = vmatpush2.msra.mxu0 0.0
  %5411 = vmatprep.subr.mxu0 0.0
  %5412 = vmatpush2.msra.mxu0 0.0
  %5413 = vmatprep.subr.mxu0 0.0
  %5414 = vmatpush2.msra.mxu0 0.0
  %5415 = vmatprep.subr.mxu0 0.0
  %5416 = vmatpush2.msra.mxu0 0.0
  %5417 = vmatprep.subr.mxu0 0.0
  %5418 = vmatpush2.msra.mxu0 0.0
  %5419 = vmatprep.subr.mxu0 0.0
  %5420 = vmatpush2.msra.mxu0 0.0
  %5421 = vmatprep.subr.mxu0 0.0
  %5422 = vmatpush2.msra.mxu0 0.0
  %5423 = vmatprep.subr.mxu0 0.0
  %5424 = vmatpush2.msra.mxu0 0.0
  %5425 = vmatprep.subr.mxu0 0.0
  %5426 = vmatpush2.msra.mxu0 0.0
  %5427 = vmatprep.subr.mxu0 0.0
  %5428 = vmatpush2.msra.mxu0 0.0
  %5429 = vmatprep.subr.mxu0 0.0
  %5430 = vmatpush2.msra.mxu0 0.0
  %5431 = vmatprep.subr.mxu0 0.0
  %5432 = vmatpush2.msra.mxu0 0.0
  %5433 = vmatprep.subr.mxu0 0.0
  %5434 = vmatpush2.msra.mxu0 0.0
  %5435 = vmatprep.mubr.f32.mxu0 0.0
  %v5436 = vand.u32 %v5167, 4294901760
  %5437 = vmatmul.mubr.f32.gmra.mxu0 %v5436
  %v5438 = vpop.f32.mrf.mxu0
  %v5439 = vadd.f32 %v5278, %v5438
  %v5440 = vpop.f32.mrf.mxu0
  %5441 = vmatprep.mubr.f32.mxu0 0.0
  %v5442 = vand.u32 %v5170, 4294901760
  %5443 = vmatmul.mubr.f32.gmra.mxu0 %v5442
  %v5444 = vpop.f32.mrf.mxu0
  %v5445 = vadd.f32 %v5288, %v5444
  %v5446 = vpop.f32.mrf.mxu0
  %5447 = vdwg.mxu0
  %5448 = vmatprep.subr.mxu0 0.0
  %v5449 = vand.u32 %v5189, 4294901760
  %v5450 = vsub.f32 %v5189, %v5449
  %5451 = vmatpush1.msra.mxu0 %v5450
  %5452 = vmatprep.subr.mxu0 0.0
  %v5453 = vand.u32 %v5188, 4294901760
  %v5454 = vsub.f32 %v5188, %v5453
  %5455 = vmatpush1.msra.mxu0 %v5454
  %5456 = vmatprep.subr.mxu0 0.0
  %v5457 = vand.u32 %v5187, 4294901760
  %v5458 = vsub.f32 %v5187, %v5457
  %5459 = vmatpush1.msra.mxu0 %v5458
  %5460 = vmatprep.subr.mxu0 0.0
  %v5461 = vand.u32 %v5186, 4294901760
  %v5462 = vsub.f32 %v5186, %v5461
  %5463 = vmatpush1.msra.mxu0 %v5462
  %5464 = vmatprep.subr.mxu0 0.0
  %v5465 = vand.u32 %v5185, 4294901760
  %v5466 = vsub.f32 %v5185, %v5465
  %5467 = vmatpush1.msra.mxu0 %v5466
  %5468 = vmatprep.subr.mxu0 0.0
  %v5469 = vand.u32 %v5184, 4294901760
  %v5470 = vsub.f32 %v5184, %v5469
  %5471 = vmatpush1.msra.mxu0 %v5470
  %5472 = vmatprep.subr.mxu0 0.0
  %v5473 = vand.u32 %v5183, 4294901760
  %v5474 = vsub.f32 %v5183, %v5473
  %5475 = vmatpush1.msra.mxu0 %v5474
  %5476 = vmatprep.subr.mxu0 0.0
  %v5477 = vand.u32 %v5182, 4294901760
  %v5478 = vsub.f32 %v5182, %v5477
  %5479 = vmatpush1.msra.mxu0 %v5478
  %5480 = vmatprep.subr.mxu0 0.0
  %v5481 = vand.u32 %v5181, 4294901760
  %v5482 = vsub.f32 %v5181, %v5481
  %5483 = vmatpush1.msra.mxu0 %v5482
  %5484 = vmatprep.subr.mxu0 0.0
  %v5485 = vand.u32 %v5180, 4294901760
  %v5486 = vsub.f32 %v5180, %v5485
  %5487 = vmatpush1.msra.mxu0 %v5486
  %5488 = vmatprep.subr.mxu0 0.0
  %v5489 = vand.u32 %v5179, 4294901760
  %v5490 = vsub.f32 %v5179, %v5489
  %5491 = vmatpush1.msra.mxu0 %v5490
  %5492 = vmatprep.subr.mxu0 0.0
  %v5493 = vand.u32 %v5178, 4294901760
  %v5494 = vsub.f32 %v5178, %v5493
  %5495 = vmatpush1.msra.mxu0 %v5494
  %5496 = vmatprep.subr.mxu0 0.0
  %v5497 = vand.u32 %v5177, 4294901760
  %v5498 = vsub.f32 %v5177, %v5497
  %5499 = vmatpush1.msra.mxu0 %v5498
  %5500 = vmatprep.subr.mxu0 0.0
  %v5501 = vand.u32 %v5176, 4294901760
  %v5502 = vsub.f32 %v5176, %v5501
  %5503 = vmatpush1.msra.mxu0 %v5502
  %5504 = vmatprep.subr.mxu0 0.0
  %v5505 = vand.u32 %v5175, 4294901760
  %v5506 = vsub.f32 %v5175, %v5505
  %5507 = vmatpush1.msra.mxu0 %v5506
  %5508 = vmatprep.subr.mxu0 0.0
  %v5509 = vand.u32 %v5174, 4294901760
  %v5510 = vsub.f32 %v5174, %v5509
  %5511 = vmatpush1.msra.mxu0 %v5510
  %5512 = vmatprep.subr.mxu0 0.0
  %5513 = vmatpush2.msra.mxu0 0.0
  %5514 = vmatprep.subr.mxu0 0.0
  %5515 = vmatpush2.msra.mxu0 0.0
  %5516 = vmatprep.subr.mxu0 0.0
  %5517 = vmatpush2.msra.mxu0 0.0
  %5518 = vmatprep.subr.mxu0 0.0
  %5519 = vmatpush2.msra.mxu0 0.0
  %5520 = vmatprep.subr.mxu0 0.0
  %5521 = vmatpush2.msra.mxu0 0.0
  %5522 = vmatprep.subr.mxu0 0.0
  %5523 = vmatpush2.msra.mxu0 0.0
  %5524 = vmatprep.subr.mxu0 0.0
  %5525 = vmatpush2.msra.mxu0 0.0
  %5526 = vmatprep.subr.mxu0 0.0
  %5527 = vmatpush2.msra.mxu0 0.0
  %5528 = vmatprep.subr.mxu0 0.0
  %5529 = vmatpush2.msra.mxu0 0.0
  %5530 = vmatprep.subr.mxu0 0.0
  %5531 = vmatpush2.msra.mxu0 0.0
  %5532 = vmatprep.subr.mxu0 0.0
  %5533 = vmatpush2.msra.mxu0 0.0
  %5534 = vmatprep.subr.mxu0 0.0
  %5535 = vmatpush2.msra.mxu0 0.0
  %5536 = vmatprep.subr.mxu0 0.0
  %5537 = vmatpush2.msra.mxu0 0.0
  %5538 = vmatprep.subr.mxu0 0.0
  %5539 = vmatpush2.msra.mxu0 0.0
  %5540 = vmatprep.subr.mxu0 0.0
  %5541 = vmatpush2.msra.mxu0 0.0
  %5542 = vmatprep.subr.mxu0 0.0
  %5543 = vmatpush2.msra.mxu0 0.0
  %5544 = vmatprep.mubr.f32.mxu0 0.0
  %v5545 = vand.u32 %v5167, 4294901760
  %v5546 = vsub.f32 %v5167, %v5545
  %5547 = vmatmul.mubr.f32.gmra.mxu0 %v5546
  %v5548 = vpop.f32.mrf.mxu0
  %v5549 = vadd.f32 %v5439, %v5548
  %v5550 = vpop.f32.mrf.mxu0
  %5551 = vmatprep.mubr.f32.mxu0 0.0
  %v5552 = vand.u32 %v5170, 4294901760
  %v5553 = vsub.f32 %v5170, %v5552
  %5554 = vmatmul.mubr.f32.gmra.mxu0 %v5553
  %v5555 = vpop.f32.mrf.mxu0
  %v5556 = vadd.f32 %v5445, %v5555
  %v5557 = vpop.f32.mrf.mxu0
  %5558 = vdwg.mxu0
  %5559 = vmatprep.subr.mxu0 0.0
  %v5560 = vand.u32 %v5189, 4294901760
  %5561 = vmatpush1.msra.mxu0 %v5560
  %5562 = vmatprep.subr.mxu0 0.0
  %v5563 = vand.u32 %v5188, 4294901760
  %5564 = vmatpush1.msra.mxu0 %v5563
  %5565 = vmatprep.subr.mxu0 0.0
  %v5566 = vand.u32 %v5187, 4294901760
  %5567 = vmatpush1.msra.mxu0 %v5566
  %5568 = vmatprep.subr.mxu0 0.0
  %v5569 = vand.u32 %v5186, 4294901760
  %5570 = vmatpush1.msra.mxu0 %v5569
  %5571 = vmatprep.subr.mxu0 0.0
  %v5572 = vand.u32 %v5185, 4294901760
  %5573 = vmatpush1.msra.mxu0 %v5572
  %5574 = vmatprep.subr.mxu0 0.0
  %v5575 = vand.u32 %v5184, 4294901760
  %5576 = vmatpush1.msra.mxu0 %v5575
  %5577 = vmatprep.subr.mxu0 0.0
  %v5578 = vand.u32 %v5183, 4294901760
  %5579 = vmatpush1.msra.mxu0 %v5578
  %5580 = vmatprep.subr.mxu0 0.0
  %v5581 = vand.u32 %v5182, 4294901760
  %5582 = vmatpush1.msra.mxu0 %v5581
  %5583 = vmatprep.subr.mxu0 0.0
  %v5584 = vand.u32 %v5181, 4294901760
  %5585 = vmatpush1.msra.mxu0 %v5584
  %5586 = vmatprep.subr.mxu0 0.0
  %v5587 = vand.u32 %v5180, 4294901760
  %5588 = vmatpush1.msra.mxu0 %v5587
  %5589 = vmatprep.subr.mxu0 0.0
  %v5590 = vand.u32 %v5179, 4294901760
  %5591 = vmatpush1.msra.mxu0 %v5590
  %5592 = vmatprep.subr.mxu0 0.0
  %v5593 = vand.u32 %v5178, 4294901760
  %5594 = vmatpush1.msra.mxu0 %v5593
  %5595 = vmatprep.subr.mxu0 0.0
  %v5596 = vand.u32 %v5177, 4294901760
  %5597 = vmatpush1.msra.mxu0 %v5596
  %5598 = vmatprep.subr.mxu0 0.0
  %v5599 = vand.u32 %v5176, 4294901760
  %5600 = vmatpush1.msra.mxu0 %v5599
  %5601 = vmatprep.subr.mxu0 0.0
  %v5602 = vand.u32 %v5175, 4294901760
  %5603 = vmatpush1.msra.mxu0 %v5602
  %5604 = vmatprep.subr.mxu0 0.0
  %v5605 = vand.u32 %v5174, 4294901760
  %5606 = vmatpush1.msra.mxu0 %v5605
  %5607 = vmatprep.subr.mxu0 0.0
  %5608 = vmatpush2.msra.mxu0 0.0
  %5609 = vmatprep.subr.mxu0 0.0
  %5610 = vmatpush2.msra.mxu0 0.0
  %5611 = vmatprep.subr.mxu0 0.0
  %5612 = vmatpush2.msra.mxu0 0.0
  %5613 = vmatprep.subr.mxu0 0.0
  %5614 = vmatpush2.msra.mxu0 0.0
  %5615 = vmatprep.subr.mxu0 0.0
  %5616 = vmatpush2.msra.mxu0 0.0
  %5617 = vmatprep.subr.mxu0 0.0
  %5618 = vmatpush2.msra.mxu0 0.0
  %5619 = vmatprep.subr.mxu0 0.0
  %5620 = vmatpush2.msra.mxu0 0.0
  %5621 = vmatprep.subr.mxu0 0.0
  %5622 = vmatpush2.msra.mxu0 0.0
  %5623 = vmatprep.subr.mxu0 0.0
  %5624 = vmatpush2.msra.mxu0 0.0
  %5625 = vmatprep.subr.mxu0 0.0
  %5626 = vmatpush2.msra.mxu0 0.0
  %5627 = vmatprep.subr.mxu0 0.0
  %5628 = vmatpush2.msra.mxu0 0.0
  %5629 = vmatprep.subr.mxu0 0.0
  %5630 = vmatpush2.msra.mxu0 0.0
  %5631 = vmatprep.subr.mxu0 0.0
  %5632 = vmatpush2.msra.mxu0 0.0
  %5633 = vmatprep.subr.mxu0 0.0
  %5634 = vmatpush2.msra.mxu0 0.0
  %5635 = vmatprep.subr.mxu0 0.0
  %5636 = vmatpush2.msra.mxu0 0.0
  %5637 = vmatprep.subr.mxu0 0.0
  %5638 = vmatpush2.msra.mxu0 0.0
  %5639 = vmatprep.mubr.f32.mxu0 0.0
  %v5640 = vand.u32 %v5167, 4294901760
  %v5641 = vsub.f32 %v5167, %v5640
  %v5642 = vand.u32 %v5641, 4294901760
  %5643 = vmatmul.mubr.f32.gmra.mxu0 %v5642
  %v5644 = vpop.f32.mrf.mxu0
  %v5645 = vadd.f32 %v5549, %v5644
  %v5646 = vpop.f32.mrf.mxu0
  %5647 = vmatprep.mubr.f32.mxu0 0.0
  %v5648 = vand.u32 %v5170, 4294901760
  %v5649 = vsub.f32 %v5170, %v5648
  %v5650 = vand.u32 %v5649, 4294901760
  %5651 = vmatmul.mubr.f32.gmra.mxu0 %v5650
  %v5652 = vpop.f32.mrf.mxu0
  %v5653 = vadd.f32 %v5556, %v5652
  %v5654 = vpop.f32.mrf.mxu0
  %5655 = vdwg.mxu0
  %5656 = vmatprep.subr.mxu0 0.0
  %v5657 = vand.u32 %v5189, 4294901760
  %v5658 = vsub.f32 %v5189, %v5657
  %v5659 = vand.u32 %v5658, 4294901760
  %5660 = vmatpush1.msra.mxu0 %v5659
  %5661 = vmatprep.subr.mxu0 0.0
  %v5662 = vand.u32 %v5188, 4294901760
  %v5663 = vsub.f32 %v5188, %v5662
  %v5664 = vand.u32 %v5663, 4294901760
  %5665 = vmatpush1.msra.mxu0 %v5664
  %5666 = vmatprep.subr.mxu0 0.0
  %v5667 = vand.u32 %v5187, 4294901760
  %v5668 = vsub.f32 %v5187, %v5667
  %v5669 = vand.u32 %v5668, 4294901760
  %5670 = vmatpush1.msra.mxu0 %v5669
  %5671 = vmatprep.subr.mxu0 0.0
  %v5672 = vand.u32 %v5186, 4294901760
  %v5673 = vsub.f32 %v5186, %v5672
  %v5674 = vand.u32 %v5673, 4294901760
  %5675 = vmatpush1.msra.mxu0 %v5674
  %5676 = vmatprep.subr.mxu0 0.0
  %v5677 = vand.u32 %v5185, 4294901760
  %v5678 = vsub.f32 %v5185, %v5677
  %v5679 = vand.u32 %v5678, 4294901760
  %5680 = vmatpush1.msra.mxu0 %v5679
  %5681 = vmatprep.subr.mxu0 0.0
  %v5682 = vand.u32 %v5184, 4294901760
  %v5683 = vsub.f32 %v5184, %v5682
  %v5684 = vand.u32 %v5683, 4294901760
  %5685 = vmatpush1.msra.mxu0 %v5684
  %5686 = vmatprep.subr.mxu0 0.0
  %v5687 = vand.u32 %v5183, 4294901760
  %v5688 = vsub.f32 %v5183, %v5687
  %v5689 = vand.u32 %v5688, 4294901760
  %5690 = vmatpush1.msra.mxu0 %v5689
  %5691 = vmatprep.subr.mxu0 0.0
  %v5692 = vand.u32 %v5182, 4294901760
  %v5693 = vsub.f32 %v5182, %v5692
  %v5694 = vand.u32 %v5693, 4294901760
  %5695 = vmatpush1.msra.mxu0 %v5694
  %5696 = vmatprep.subr.mxu0 0.0
  %v5697 = vand.u32 %v5181, 4294901760
  %v5698 = vsub.f32 %v5181, %v5697
  %v5699 = vand.u32 %v5698, 4294901760
  %5700 = vmatpush1.msra.mxu0 %v5699
  %5701 = vmatprep.subr.mxu0 0.0
  %v5702 = vand.u32 %v5180, 4294901760
  %v5703 = vsub.f32 %v5180, %v5702
  %v5704 = vand.u32 %v5703, 4294901760
  %5705 = vmatpush1.msra.mxu0 %v5704
  %5706 = vmatprep.subr.mxu0 0.0
  %v5707 = vand.u32 %v5179, 4294901760
  %v5708 = vsub.f32 %v5179, %v5707
  %v5709 = vand.u32 %v5708, 4294901760
  %5710 = vmatpush1.msra.mxu0 %v5709
  %5711 = vmatprep.subr.mxu0 0.0
  %v5712 = vand.u32 %v5178, 4294901760
  %v5713 = vsub.f32 %v5178, %v5712
  %v5714 = vand.u32 %v5713, 4294901760
  %5715 = vmatpush1.msra.mxu0 %v5714
  %5716 = vmatprep.subr.mxu0 0.0
  %v5717 = vand.u32 %v5177, 4294901760
  %v5718 = vsub.f32 %v5177, %v5717
  %v5719 = vand.u32 %v5718, 4294901760
  %5720 = vmatpush1.msra.mxu0 %v5719
  %5721 = vmatprep.subr.mxu0 0.0
  %v5722 = vand.u32 %v5176, 4294901760
  %v5723 = vsub.f32 %v5176, %v5722
  %v5724 = vand.u32 %v5723, 4294901760
  %5725 = vmatpush1.msra.mxu0 %v5724
  %5726 = vmatprep.subr.mxu0 0.0
  %v5727 = vand.u32 %v5175, 4294901760
  %v5728 = vsub.f32 %v5175, %v5727
  %v5729 = vand.u32 %v5728, 4294901760
  %5730 = vmatpush1.msra.mxu0 %v5729
  %5731 = vmatprep.subr.mxu0 0.0
  %v5732 = vand.u32 %v5174, 4294901760
  %v5733 = vsub.f32 %v5174, %v5732
  %v5734 = vand.u32 %v5733, 4294901760
  %5735 = vmatpush1.msra.mxu0 %v5734
  %5736 = vmatprep.subr.mxu0 0.0
  %5737 = vmatpush2.msra.mxu0 0.0
  %5738 = vmatprep.subr.mxu0 0.0
  %5739 = vmatpush2.msra.mxu0 0.0
  %5740 = vmatprep.subr.mxu0 0.0
  %5741 = vmatpush2.msra.mxu0 0.0
  %5742 = vmatprep.subr.mxu0 0.0
  %5743 = vmatpush2.msra.mxu0 0.0
  %5744 = vmatprep.subr.mxu0 0.0
  %5745 = vmatpush2.msra.mxu0 0.0
  %5746 = vmatprep.subr.mxu0 0.0
  %5747 = vmatpush2.msra.mxu0 0.0
  %5748 = vmatprep.subr.mxu0 0.0
  %5749 = vmatpush2.msra.mxu0 0.0
  %5750 = vmatprep.subr.mxu0 0.0
  %5751 = vmatpush2.msra.mxu0 0.0
  %5752 = vmatprep.subr.mxu0 0.0
  %5753 = vmatpush2.msra.mxu0 0.0
  %5754 = vmatprep.subr.mxu0 0.0
  %5755 = vmatpush2.msra.mxu0 0.0
  %5756 = vmatprep.subr.mxu0 0.0
  %5757 = vmatpush2.msra.mxu0 0.0
  %5758 = vmatprep.subr.mxu0 0.0
  %5759 = vmatpush2.msra.mxu0 0.0
  %5760 = vmatprep.subr.mxu0 0.0
  %5761 = vmatpush2.msra.mxu0 0.0
  %5762 = vmatprep.subr.mxu0 0.0
  %5763 = vmatpush2.msra.mxu0 0.0
  %5764 = vmatprep.subr.mxu0 0.0
  %5765 = vmatpush2.msra.mxu0 0.0
  %5766 = vmatprep.subr.mxu0 0.0
  %5767 = vmatpush2.msra.mxu0 0.0
  %5768 = vmatprep.mubr.f32.mxu0 0.0
  %v5769 = vand.u32 %v5167, 4294901760
  %5770 = vmatmul.mubr.f32.gmra.mxu0 %v5769
  %v5771 = vpop.f32.mrf.mxu0
  %v5772 = vadd.f32 %v5645, %v5771
  %v5773 = vpop.f32.mrf.mxu0
  %5774 = vmatprep.mubr.f32.mxu0 0.0
  %v5775 = vand.u32 %v5170, 4294901760
  %5776 = vmatmul.mubr.f32.gmra.mxu0 %v5775
  %v5777 = vpop.f32.mrf.mxu0
  %v5778 = vadd.f32 %v5653, %v5777
  %v5779 = vpop.f32.mrf.mxu0
  %5780 = vdwg.mxu0
  %5781 = vmatprep.subr.mxu0 0.0
  %v5782 = vand.u32 %v5189, 4294901760
  %5783 = vmatpush1.msra.mxu0 %v5782
  %5784 = vmatprep.subr.mxu0 0.0
  %v5785 = vand.u32 %v5188, 4294901760
  %5786 = vmatpush1.msra.mxu0 %v5785
  %5787 = vmatprep.subr.mxu0 0.0
  %v5788 = vand.u32 %v5187, 4294901760
  %5789 = vmatpush1.msra.mxu0 %v5788
  %5790 = vmatprep.subr.mxu0 0.0
  %v5791 = vand.u32 %v5186, 4294901760
  %5792 = vmatpush1.msra.mxu0 %v5791
  %5793 = vmatprep.subr.mxu0 0.0
  %v5794 = vand.u32 %v5185, 4294901760
  %5795 = vmatpush1.msra.mxu0 %v5794
  %5796 = vmatprep.subr.mxu0 0.0
  %v5797 = vand.u32 %v5184, 4294901760
  %5798 = vmatpush1.msra.mxu0 %v5797
  %5799 = vmatprep.subr.mxu0 0.0
  %v5800 = vand.u32 %v5183, 4294901760
  %5801 = vmatpush1.msra.mxu0 %v5800
  %5802 = vmatprep.subr.mxu0 0.0
  %v5803 = vand.u32 %v5182, 4294901760
  %5804 = vmatpush1.msra.mxu0 %v5803
  %5805 = vmatprep.subr.mxu0 0.0
  %v5806 = vand.u32 %v5181, 4294901760
  %5807 = vmatpush1.msra.mxu0 %v5806
  %5808 = vmatprep.subr.mxu0 0.0
  %v5809 = vand.u32 %v5180, 4294901760
  %5810 = vmatpush1.msra.mxu0 %v5809
  %5811 = vmatprep.subr.mxu0 0.0
  %v5812 = vand.u32 %v5179, 4294901760
  %5813 = vmatpush1.msra.mxu0 %v5812
  %5814 = vmatprep.subr.mxu0 0.0
  %v5815 = vand.u32 %v5178, 4294901760
  %5816 = vmatpush1.msra.mxu0 %v5815
  %5817 = vmatprep.subr.mxu0 0.0
  %v5818 = vand.u32 %v5177, 4294901760
  %5819 = vmatpush1.msra.mxu0 %v5818
  %5820 = vmatprep.subr.mxu0 0.0
  %v5821 = vand.u32 %v5176, 4294901760
  %5822 = vmatpush1.msra.mxu0 %v5821
  %5823 = vmatprep.subr.mxu0 0.0
  %v5824 = vand.u32 %v5175, 4294901760
  %5825 = vmatpush1.msra.mxu0 %v5824
  %5826 = vmatprep.subr.mxu0 0.0
  %v5827 = vand.u32 %v5174, 4294901760
  %5828 = vmatpush1.msra.mxu0 %v5827
  %5829 = vmatprep.subr.mxu0 0.0
  %5830 = vmatpush2.msra.mxu0 0.0
  %5831 = vmatprep.subr.mxu0 0.0
  %5832 = vmatpush2.msra.mxu0 0.0
  %5833 = vmatprep.subr.mxu0 0.0
  %5834 = vmatpush2.msra.mxu0 0.0
  %5835 = vmatprep.subr.mxu0 0.0
  %5836 = vmatpush2.msra.mxu0 0.0
  %5837 = vmatprep.subr.mxu0 0.0
  %5838 = vmatpush2.msra.mxu0 0.0
  %5839 = vmatprep.subr.mxu0 0.0
  %5840 = vmatpush2.msra.mxu0 0.0
  %5841 = vmatprep.subr.mxu0 0.0
  %5842 = vmatpush2.msra.mxu0 0.0
  %5843 = vmatprep.subr.mxu0 0.0
  %5844 = vmatpush2.msra.mxu0 0.0
  %5845 = vmatprep.subr.mxu0 0.0
  %5846 = vmatpush2.msra.mxu0 0.0
  %5847 = vmatprep.subr.mxu0 0.0
  %5848 = vmatpush2.msra.mxu0 0.0
  %5849 = vmatprep.subr.mxu0 0.0
  %5850 = vmatpush2.msra.mxu0 0.0
  %5851 = vmatprep.subr.mxu0 0.0
  %5852 = vmatpush2.msra.mxu0 0.0
  %5853 = vmatprep.subr.mxu0 0.0
  %5854 = vmatpush2.msra.mxu0 0.0
  %5855 = vmatprep.subr.mxu0 0.0
  %5856 = vmatpush2.msra.mxu0 0.0
  %5857 = vmatprep.subr.mxu0 0.0
  %5858 = vmatpush2.msra.mxu0 0.0
  %5859 = vmatprep.subr.mxu0 0.0
  %5860 = vmatpush2.msra.mxu0 0.0
  %5861 = vmatprep.mubr.f32.mxu0 0.0
  %v5862 = vand.u32 %v5167, 4294901760
  %5863 = vmatmul.mubr.f32.gmra.mxu0 %v5862
  %v5864 = vpop.f32.mrf.mxu0
  %v5865 = vadd.f32 %v5772, %v5864
  %v5866 = vpop.f32.mrf.mxu0
  %5867 = vmatprep.mubr.f32.mxu0 0.0
  %v5868 = vand.u32 %v5170, 4294901760
  %5869 = vmatmul.mubr.f32.gmra.mxu0 %v5868
  %v5870 = vpop.f32.mrf.mxu0
  %v5871 = vadd.f32 %v5778, %v5870
  %v5872 = vpop.f32.mrf.mxu0
  %5873 = vdwg.mxu0
  %5874 = vmatprep.subr.mxu0 0.0
  %v5875 = vand.u32 %v5160, 4294901760
  %5876 = vmatpush1.msra.mxu0 %v5875
  %5877 = vmatprep.subr.mxu0 0.0
  %v5878 = vand.u32 %v5159, 4294901760
  %5879 = vmatpush1.msra.mxu0 %v5878
  %5880 = vmatprep.subr.mxu0 0.0
  %v5881 = vand.u32 %v5158, 4294901760
  %5882 = vmatpush1.msra.mxu0 %v5881
  %5883 = vmatprep.subr.mxu0 0.0
  %v5884 = vand.u32 %v5157, 4294901760
  %5885 = vmatpush1.msra.mxu0 %v5884
  %5886 = vmatprep.subr.mxu0 0.0
  %v5887 = vand.u32 %v5156, 4294901760
  %5888 = vmatpush1.msra.mxu0 %v5887
  %5889 = vmatprep.subr.mxu0 0.0
  %v5890 = vand.u32 %v5155, 4294901760
  %5891 = vmatpush1.msra.mxu0 %v5890
  %5892 = vmatprep.subr.mxu0 0.0
  %v5893 = vand.u32 %v5154, 4294901760
  %5894 = vmatpush1.msra.mxu0 %v5893
  %5895 = vmatprep.subr.mxu0 0.0
  %v5896 = vand.u32 %v5153, 4294901760
  %5897 = vmatpush1.msra.mxu0 %v5896
  %5898 = vmatprep.subr.mxu0 0.0
  %v5899 = vand.u32 %v5152, 4294901760
  %5900 = vmatpush1.msra.mxu0 %v5899
  %5901 = vmatprep.subr.mxu0 0.0
  %v5902 = vand.u32 %v5151, 4294901760
  %5903 = vmatpush1.msra.mxu0 %v5902
  %5904 = vmatprep.subr.mxu0 0.0
  %v5905 = vand.u32 %v5150, 4294901760
  %5906 = vmatpush1.msra.mxu0 %v5905
  %5907 = vmatprep.subr.mxu0 0.0
  %v5908 = vand.u32 %v5149, 4294901760
  %5909 = vmatpush1.msra.mxu0 %v5908
  %5910 = vmatprep.subr.mxu0 0.0
  %v5911 = vand.u32 %v5148, 4294901760
  %5912 = vmatpush1.msra.mxu0 %v5911
  %5913 = vmatprep.subr.mxu0 0.0
  %v5914 = vand.u32 %v5147, 4294901760
  %5915 = vmatpush1.msra.mxu0 %v5914
  %5916 = vmatprep.subr.mxu0 0.0
  %v5917 = vand.u32 %v5146, 4294901760
  %5918 = vmatpush1.msra.mxu0 %v5917
  %5919 = vmatprep.subr.mxu0 0.0
  %v5920 = vand.u32 %v5145, 4294901760
  %5921 = vmatpush1.msra.mxu0 %v5920
  %5922 = vmatprep.subr.mxu0 0.0
  %5923 = vmatpush2.msra.mxu0 0.0
  %5924 = vmatprep.subr.mxu0 0.0
  %5925 = vmatpush2.msra.mxu0 0.0
  %5926 = vmatprep.subr.mxu0 0.0
  %5927 = vmatpush2.msra.mxu0 0.0
  %5928 = vmatprep.subr.mxu0 0.0
  %5929 = vmatpush2.msra.mxu0 0.0
  %5930 = vmatprep.subr.mxu0 0.0
  %5931 = vmatpush2.msra.mxu0 0.0
  %5932 = vmatprep.subr.mxu0 0.0
  %5933 = vmatpush2.msra.mxu0 0.0
  %5934 = vmatprep.subr.mxu0 0.0
  %5935 = vmatpush2.msra.mxu0 0.0
  %5936 = vmatprep.subr.mxu0 0.0
  %5937 = vmatpush2.msra.mxu0 0.0
  %5938 = vmatprep.subr.mxu0 0.0
  %5939 = vmatpush2.msra.mxu0 0.0
  %5940 = vmatprep.subr.mxu0 0.0
  %5941 = vmatpush2.msra.mxu0 0.0
  %5942 = vmatprep.subr.mxu0 0.0
  %5943 = vmatpush2.msra.mxu0 0.0
  %5944 = vmatprep.subr.mxu0 0.0
  %5945 = vmatpush2.msra.mxu0 0.0
  %5946 = vmatprep.subr.mxu0 0.0
  %5947 = vmatpush2.msra.mxu0 0.0
  %5948 = vmatprep.subr.mxu0 0.0
  %5949 = vmatpush2.msra.mxu0 0.0
  %5950 = vmatprep.subr.mxu0 0.0
  %5951 = vmatpush2.msra.mxu0 0.0
  %5952 = vmatprep.subr.mxu0 0.0
  %5953 = vmatpush2.msra.mxu0 0.0
  %5954 = vmatprep.mubr.f32.mxu0 0.0
  %v5955 = vand.u32 %v5138, 4294901760
  %v5956 = vsub.f32 %v5138, %v5955
  %v5957 = vand.u32 %v5956, 4294901760
  %v5958 = vsub.f32 %v5956, %v5957
  %v5959 = vand.u32 %v5958, 4294901760
  %5960 = vmatmul.mubr.f32.gmra.mxu0 %v5959
  %v5961 = vpop.f32.mrf.mxu0
  %v5962 = vadd.f32 %v5865, %v5961
  %v5963 = vpop.f32.mrf.mxu0
  %5964 = vmatprep.mubr.f32.mxu0 0.0
  %v5965 = vand.u32 %v5139, 4294901760
  %v5966 = vsub.f32 %v5139, %v5965
  %v5967 = vand.u32 %v5966, 4294901760
  %v5968 = vsub.f32 %v5966, %v5967
  %v5969 = vand.u32 %v5968, 4294901760
  %5970 = vmatmul.mubr.f32.gmra.mxu0 %v5969
  %v5971 = vpop.f32.mrf.mxu0
  %v5972 = vadd.f32 %v5871, %v5971
  %v5973 = vpop.f32.mrf.mxu0
  %5974 = vdwg.mxu0
  %5975 = vmatprep.subr.mxu0 0.0
  %v5976 = vand.u32 %v5160, 4294901760
  %v5977 = vsub.f32 %v5160, %v5976
  %v5978 = vand.u32 %v5977, 4294901760
  %v5979 = vsub.f32 %v5977, %v5978
  %v5980 = vand.u32 %v5979, 4294901760
  %5981 = vmatpush1.msra.mxu0 %v5980
  %5982 = vmatprep.subr.mxu0 0.0
  %v5983 = vand.u32 %v5159, 4294901760
  %v5984 = vsub.f32 %v5159, %v5983
  %v5985 = vand.u32 %v5984, 4294901760
  %v5986 = vsub.f32 %v5984, %v5985
  %v5987 = vand.u32 %v5986, 4294901760
  %5988 = vmatpush1.msra.mxu0 %v5987
  %5989 = vmatprep.subr.mxu0 0.0
  %v5990 = vand.u32 %v5158, 4294901760
  %v5991 = vsub.f32 %v5158, %v5990
  %v5992 = vand.u32 %v5991, 4294901760
  %v5993 = vsub.f32 %v5991, %v5992
  %v5994 = vand.u32 %v5993, 4294901760
  %5995 = vmatpush1.msra.mxu0 %v5994
  %5996 = vmatprep.subr.mxu0 0.0
  %v5997 = vand.u32 %v5157, 4294901760
  %v5998 = vsub.f32 %v5157, %v5997
  %v5999 = vand.u32 %v5998, 4294901760
  %v6000 = vsub.f32 %v5998, %v5999
  %v6001 = vand.u32 %v6000, 4294901760
  %6002 = vmatpush1.msra.mxu0 %v6001
  %6003 = vmatprep.subr.mxu0 0.0
  %v6004 = vand.u32 %v5156, 4294901760
  %v6005 = vsub.f32 %v5156, %v6004
  %v6006 = vand.u32 %v6005, 4294901760
  %v6007 = vsub.f32 %v6005, %v6006
  %v6008 = vand.u32 %v6007, 4294901760
  %6009 = vmatpush1.msra.mxu0 %v6008
  %6010 = vmatprep.subr.mxu0 0.0
  %v6011 = vand.u32 %v5155, 4294901760
  %v6012 = vsub.f32 %v5155, %v6011
  %v6013 = vand.u32 %v6012, 4294901760
  %v6014 = vsub.f32 %v6012, %v6013
  %v6015 = vand.u32 %v6014, 4294901760
  %6016 = vmatpush1.msra.mxu0 %v6015
  %6017 = vmatprep.subr.mxu0 0.0
  %v6018 = vand.u32 %v5154, 4294901760
  %v6019 = vsub.f32 %v5154, %v6018
  %v6020 = vand.u32 %v6019, 4294901760
  %v6021 = vsub.f32 %v6019, %v6020
  %v6022 = vand.u32 %v6021, 4294901760
  %6023 = vmatpush1.msra.mxu0 %v6022
  %6024 = vmatprep.subr.mxu0 0.0
  %v6025 = vand.u32 %v5153, 4294901760
  %v6026 = vsub.f32 %v5153, %v6025
  %v6027 = vand.u32 %v6026, 4294901760
  %v6028 = vsub.f32 %v6026, %v6027
  %v6029 = vand.u32 %v6028, 4294901760
  %6030 = vmatpush1.msra.mxu0 %v6029
  %6031 = vmatprep.subr.mxu0 0.0
  %v6032 = vand.u32 %v5152, 4294901760
  %v6033 = vsub.f32 %v5152, %v6032
  %v6034 = vand.u32 %v6033, 4294901760
  %v6035 = vsub.f32 %v6033, %v6034
  %v6036 = vand.u32 %v6035, 4294901760
  %6037 = vmatpush1.msra.mxu0 %v6036
  %6038 = vmatprep.subr.mxu0 0.0
  %v6039 = vand.u32 %v5151, 4294901760
  %v6040 = vsub.f32 %v5151, %v6039
  %v6041 = vand.u32 %v6040, 4294901760
  %v6042 = vsub.f32 %v6040, %v6041
  %v6043 = vand.u32 %v6042, 4294901760
  %6044 = vmatpush1.msra.mxu0 %v6043
  %6045 = vmatprep.subr.mxu0 0.0
  %v6046 = vand.u32 %v5150, 4294901760
  %v6047 = vsub.f32 %v5150, %v6046
  %v6048 = vand.u32 %v6047, 4294901760
  %v6049 = vsub.f32 %v6047, %v6048
  %v6050 = vand.u32 %v6049, 4294901760
  %6051 = vmatpush1.msra.mxu0 %v6050
  %6052 = vmatprep.subr.mxu0 0.0
  %v6053 = vand.u32 %v5149, 4294901760
  %v6054 = vsub.f32 %v5149, %v6053
  %v6055 = vand.u32 %v6054, 4294901760
  %v6056 = vsub.f32 %v6054, %v6055
  %v6057 = vand.u32 %v6056, 4294901760
  %6058 = vmatpush1.msra.mxu0 %v6057
  %6059 = vmatprep.subr.mxu0 0.0
  %v6060 = vand.u32 %v5148, 4294901760
  %v6061 = vsub.f32 %v5148, %v6060
  %v6062 = vand.u32 %v6061, 4294901760
  %v6063 = vsub.f32 %v6061, %v6062
  %v6064 = vand.u32 %v6063, 4294901760
  %6065 = vmatpush1.msra.mxu0 %v6064
  %6066 = vmatprep.subr.mxu0 0.0
  %v6067 = vand.u32 %v5147, 4294901760
  %v6068 = vsub.f32 %v5147, %v6067
  %v6069 = vand.u32 %v6068, 4294901760
  %v6070 = vsub.f32 %v6068, %v6069
  %v6071 = vand.u32 %v6070, 4294901760
  %6072 = vmatpush1.msra.mxu0 %v6071
  %6073 = vmatprep.subr.mxu0 0.0
  %v6074 = vand.u32 %v5146, 4294901760
  %v6075 = vsub.f32 %v5146, %v6074
  %v6076 = vand.u32 %v6075, 4294901760
  %v6077 = vsub.f32 %v6075, %v6076
  %v6078 = vand.u32 %v6077, 4294901760
  %6079 = vmatpush1.msra.mxu0 %v6078
  %6080 = vmatprep.subr.mxu0 0.0
  %v6081 = vand.u32 %v5145, 4294901760
  %v6082 = vsub.f32 %v5145, %v6081
  %v6083 = vand.u32 %v6082, 4294901760
  %v6084 = vsub.f32 %v6082, %v6083
  %v6085 = vand.u32 %v6084, 4294901760
  %6086 = vmatpush1.msra.mxu0 %v6085
  %6087 = vmatprep.subr.mxu0 0.0
  %6088 = vmatpush2.msra.mxu0 0.0
  %6089 = vmatprep.subr.mxu0 0.0
  %6090 = vmatpush2.msra.mxu0 0.0
  %6091 = vmatprep.subr.mxu0 0.0
  %6092 = vmatpush2.msra.mxu0 0.0
  %6093 = vmatprep.subr.mxu0 0.0
  %6094 = vmatpush2.msra.mxu0 0.0
  %6095 = vmatprep.subr.mxu0 0.0
  %6096 = vmatpush2.msra.mxu0 0.0
  %6097 = vmatprep.subr.mxu0 0.0
  %6098 = vmatpush2.msra.mxu0 0.0
  %6099 = vmatprep.subr.mxu0 0.0
  %6100 = vmatpush2.msra.mxu0 0.0
  %6101 = vmatprep.subr.mxu0 0.0
  %6102 = vmatpush2.msra.mxu0 0.0
  %6103 = vmatprep.subr.mxu0 0.0
  %6104 = vmatpush2.msra.mxu0 0.0
  %6105 = vmatprep.subr.mxu0 0.0
  %6106 = vmatpush2.msra.mxu0 0.0
  %6107 = vmatprep.subr.mxu0 0.0
  %6108 = vmatpush2.msra.mxu0 0.0
  %6109 = vmatprep.subr.mxu0 0.0
  %6110 = vmatpush2.msra.mxu0 0.0
  %6111 = vmatprep.subr.mxu0 0.0
  %6112 = vmatpush2.msra.mxu0 0.0
  %6113 = vmatprep.subr.mxu0 0.0
  %6114 = vmatpush2.msra.mxu0 0.0
  %6115 = vmatprep.subr.mxu0 0.0
  %6116 = vmatpush2.msra.mxu0 0.0
  %6117 = vmatprep.subr.mxu0 0.0
  %6118 = vmatpush2.msra.mxu0 0.0
  %6119 = vmatprep.mubr.f32.mxu0 0.0
  %v6120 = vand.u32 %v5138, 4294901760
  %6121 = vmatmul.mubr.f32.gmra.mxu0 %v6120
  %v6122 = vpop.f32.mrf.mxu0
  %v6123 = vadd.f32 %v5962, %v6122
  %v6124 = vpop.f32.mrf.mxu0
  %6125 = vmatprep.mubr.f32.mxu0 0.0
  %v6126 = vand.u32 %v5139, 4294901760
  %6127 = vmatmul.mubr.f32.gmra.mxu0 %v6126
  %v6128 = vpop.f32.mrf.mxu0
  %v6129 = vadd.f32 %v5972, %v6128
  %v6130 = vpop.f32.mrf.mxu0
  %6131 = vdwg.mxu0
  %6132 = vmatprep.subr.mxu0 0.0
  %v6133 = vand.u32 %v5160, 4294901760
  %v6134 = vsub.f32 %v5160, %v6133
  %6135 = vmatpush1.msra.mxu0 %v6134
  %6136 = vmatprep.subr.mxu0 0.0
  %v6137 = vand.u32 %v5159, 4294901760
  %v6138 = vsub.f32 %v5159, %v6137
  %6139 = vmatpush1.msra.mxu0 %v6138
  %6140 = vmatprep.subr.mxu0 0.0
  %v6141 = vand.u32 %v5158, 4294901760
  %v6142 = vsub.f32 %v5158, %v6141
  %6143 = vmatpush1.msra.mxu0 %v6142
  %6144 = vmatprep.subr.mxu0 0.0
  %v6145 = vand.u32 %v5157, 4294901760
  %v6146 = vsub.f32 %v5157, %v6145
  %6147 = vmatpush1.msra.mxu0 %v6146
  %6148 = vmatprep.subr.mxu0 0.0
  %v6149 = vand.u32 %v5156, 4294901760
  %v6150 = vsub.f32 %v5156, %v6149
  %6151 = vmatpush1.msra.mxu0 %v6150
  %6152 = vmatprep.subr.mxu0 0.0
  %v6153 = vand.u32 %v5155, 4294901760
  %v6154 = vsub.f32 %v5155, %v6153
  %6155 = vmatpush1.msra.mxu0 %v6154
  %6156 = vmatprep.subr.mxu0 0.0
  %v6157 = vand.u32 %v5154, 4294901760
  %v6158 = vsub.f32 %v5154, %v6157
  %6159 = vmatpush1.msra.mxu0 %v6158
  %6160 = vmatprep.subr.mxu0 0.0
  %v6161 = vand.u32 %v5153, 4294901760
  %v6162 = vsub.f32 %v5153, %v6161
  %6163 = vmatpush1.msra.mxu0 %v6162
  %6164 = vmatprep.subr.mxu0 0.0
  %v6165 = vand.u32 %v5152, 4294901760
  %v6166 = vsub.f32 %v5152, %v6165
  %6167 = vmatpush1.msra.mxu0 %v6166
  %6168 = vmatprep.subr.mxu0 0.0
  %v6169 = vand.u32 %v5151, 4294901760
  %v6170 = vsub.f32 %v5151, %v6169
  %6171 = vmatpush1.msra.mxu0 %v6170
  %6172 = vmatprep.subr.mxu0 0.0
  %v6173 = vand.u32 %v5150, 4294901760
  %v6174 = vsub.f32 %v5150, %v6173
  %6175 = vmatpush1.msra.mxu0 %v6174
  %6176 = vmatprep.subr.mxu0 0.0
  %v6177 = vand.u32 %v5149, 4294901760
  %v6178 = vsub.f32 %v5149, %v6177
  %6179 = vmatpush1.msra.mxu0 %v6178
  %6180 = vmatprep.subr.mxu0 0.0
  %v6181 = vand.u32 %v5148, 4294901760
  %v6182 = vsub.f32 %v5148, %v6181
  %6183 = vmatpush1.msra.mxu0 %v6182
  %6184 = vmatprep.subr.mxu0 0.0
  %v6185 = vand.u32 %v5147, 4294901760
  %v6186 = vsub.f32 %v5147, %v6185
  %6187 = vmatpush1.msra.mxu0 %v6186
  %6188 = vmatprep.subr.mxu0 0.0
  %v6189 = vand.u32 %v5146, 4294901760
  %v6190 = vsub.f32 %v5146, %v6189
  %6191 = vmatpush1.msra.mxu0 %v6190
  %6192 = vmatprep.subr.mxu0 0.0
  %v6193 = vand.u32 %v5145, 4294901760
  %v6194 = vsub.f32 %v5145, %v6193
  %6195 = vmatpush1.msra.mxu0 %v6194
  %6196 = vmatprep.subr.mxu0 0.0
  %6197 = vmatpush2.msra.mxu0 0.0
  %6198 = vmatprep.subr.mxu0 0.0
  %6199 = vmatpush2.msra.mxu0 0.0
  %6200 = vmatprep.subr.mxu0 0.0
  %6201 = vmatpush2.msra.mxu0 0.0
  %6202 = vmatprep.subr.mxu0 0.0
  %6203 = vmatpush2.msra.mxu0 0.0
  %6204 = vmatprep.subr.mxu0 0.0
  %6205 = vmatpush2.msra.mxu0 0.0
  %6206 = vmatprep.subr.mxu0 0.0
  %6207 = vmatpush2.msra.mxu0 0.0
  %6208 = vmatprep.subr.mxu0 0.0
  %6209 = vmatpush2.msra.mxu0 0.0
  %6210 = vmatprep.subr.mxu0 0.0
  %6211 = vmatpush2.msra.mxu0 0.0
  %6212 = vmatprep.subr.mxu0 0.0
  %6213 = vmatpush2.msra.mxu0 0.0
  %6214 = vmatprep.subr.mxu0 0.0
  %6215 = vmatpush2.msra.mxu0 0.0
  %6216 = vmatprep.subr.mxu0 0.0
  %6217 = vmatpush2.msra.mxu0 0.0
  %6218 = vmatprep.subr.mxu0 0.0
  %6219 = vmatpush2.msra.mxu0 0.0
  %6220 = vmatprep.subr.mxu0 0.0
  %6221 = vmatpush2.msra.mxu0 0.0
  %6222 = vmatprep.subr.mxu0 0.0
  %6223 = vmatpush2.msra.mxu0 0.0
  %6224 = vmatprep.subr.mxu0 0.0
  %6225 = vmatpush2.msra.mxu0 0.0
  %6226 = vmatprep.subr.mxu0 0.0
  %6227 = vmatpush2.msra.mxu0 0.0
  %6228 = vmatprep.mubr.f32.mxu0 0.0
  %v6229 = vand.u32 %v5138, 4294901760
  %v6230 = vsub.f32 %v5138, %v6229
  %6231 = vmatmul.mubr.f32.gmra.mxu0 %v6230
  %v6232 = vpop.f32.mrf.mxu0
  %v6233 = vadd.f32 %v6123, %v6232
  %v6234 = vpop.f32.mrf.mxu0
  %6235 = vmatprep.mubr.f32.mxu0 0.0
  %v6236 = vand.u32 %v5139, 4294901760
  %v6237 = vsub.f32 %v5139, %v6236
  %6238 = vmatmul.mubr.f32.gmra.mxu0 %v6237
  %v6239 = vpop.f32.mrf.mxu0
  %v6240 = vadd.f32 %v6129, %v6239
  %v6241 = vpop.f32.mrf.mxu0
  %6242 = vdwg.mxu0
  %6243 = vmatprep.subr.mxu0 0.0
  %v6244 = vand.u32 %v5160, 4294901760
  %6245 = vmatpush1.msra.mxu0 %v6244
  %6246 = vmatprep.subr.mxu0 0.0
  %v6247 = vand.u32 %v5159, 4294901760
  %6248 = vmatpush1.msra.mxu0 %v6247
  %6249 = vmatprep.subr.mxu0 0.0
  %v6250 = vand.u32 %v5158, 4294901760
  %6251 = vmatpush1.msra.mxu0 %v6250
  %6252 = vmatprep.subr.mxu0 0.0
  %v6253 = vand.u32 %v5157, 4294901760
  %6254 = vmatpush1.msra.mxu0 %v6253
  %6255 = vmatprep.subr.mxu0 0.0
  %v6256 = vand.u32 %v5156, 4294901760
  %6257 = vmatpush1.msra.mxu0 %v6256
  %6258 = vmatprep.subr.mxu0 0.0
  %v6259 = vand.u32 %v5155, 4294901760
  %6260 = vmatpush1.msra.mxu0 %v6259
  %6261 = vmatprep.subr.mxu0 0.0
  %v6262 = vand.u32 %v5154, 4294901760
  %6263 = vmatpush1.msra.mxu0 %v6262
  %6264 = vmatprep.subr.mxu0 0.0
  %v6265 = vand.u32 %v5153, 4294901760
  %6266 = vmatpush1.msra.mxu0 %v6265
  %6267 = vmatprep.subr.mxu0 0.0
  %v6268 = vand.u32 %v5152, 4294901760
  %6269 = vmatpush1.msra.mxu0 %v6268
  %6270 = vmatprep.subr.mxu0 0.0
  %v6271 = vand.u32 %v5151, 4294901760
  %6272 = vmatpush1.msra.mxu0 %v6271
  %6273 = vmatprep.subr.mxu0 0.0
  %v6274 = vand.u32 %v5150, 4294901760
  %6275 = vmatpush1.msra.mxu0 %v6274
  %6276 = vmatprep.subr.mxu0 0.0
  %v6277 = vand.u32 %v5149, 4294901760
  %6278 = vmatpush1.msra.mxu0 %v6277
  %6279 = vmatprep.subr.mxu0 0.0
  %v6280 = vand.u32 %v5148, 4294901760
  %6281 = vmatpush1.msra.mxu0 %v6280
  %6282 = vmatprep.subr.mxu0 0.0
  %v6283 = vand.u32 %v5147, 4294901760
  %6284 = vmatpush1.msra.mxu0 %v6283
  %6285 = vmatprep.subr.mxu0 0.0
  %v6286 = vand.u32 %v5146, 4294901760
  %6287 = vmatpush1.msra.mxu0 %v6286
  %6288 = vmatprep.subr.mxu0 0.0
  %v6289 = vand.u32 %v5145, 4294901760
  %6290 = vmatpush1.msra.mxu0 %v6289
  %6291 = vmatprep.subr.mxu0 0.0
  %6292 = vmatpush2.msra.mxu0 0.0
  %6293 = vmatprep.subr.mxu0 0.0
  %6294 = vmatpush2.msra.mxu0 0.0
  %6295 = vmatprep.subr.mxu0 0.0
  %6296 = vmatpush2.msra.mxu0 0.0
  %6297 = vmatprep.subr.mxu0 0.0
  %6298 = vmatpush2.msra.mxu0 0.0
  %6299 = vmatprep.subr.mxu0 0.0
  %6300 = vmatpush2.msra.mxu0 0.0
  %6301 = vmatprep.subr.mxu0 0.0
  %6302 = vmatpush2.msra.mxu0 0.0
  %6303 = vmatprep.subr.mxu0 0.0
  %6304 = vmatpush2.msra.mxu0 0.0
  %6305 = vmatprep.subr.mxu0 0.0
  %6306 = vmatpush2.msra.mxu0 0.0
  %6307 = vmatprep.subr.mxu0 0.0
  %6308 = vmatpush2.msra.mxu0 0.0
  %6309 = vmatprep.subr.mxu0 0.0
  %6310 = vmatpush2.msra.mxu0 0.0
  %6311 = vmatprep.subr.mxu0 0.0
  %6312 = vmatpush2.msra.mxu0 0.0
  %6313 = vmatprep.subr.mxu0 0.0
  %6314 = vmatpush2.msra.mxu0 0.0
  %6315 = vmatprep.subr.mxu0 0.0
  %6316 = vmatpush2.msra.mxu0 0.0
  %6317 = vmatprep.subr.mxu0 0.0
  %6318 = vmatpush2.msra.mxu0 0.0
  %6319 = vmatprep.subr.mxu0 0.0
  %6320 = vmatpush2.msra.mxu0 0.0
  %6321 = vmatprep.subr.mxu0 0.0
  %6322 = vmatpush2.msra.mxu0 0.0
  %6323 = vmatprep.mubr.f32.mxu0 0.0
  %v6324 = vand.u32 %v5138, 4294901760
  %v6325 = vsub.f32 %v5138, %v6324
  %v6326 = vand.u32 %v6325, 4294901760
  %6327 = vmatmul.mubr.f32.gmra.mxu0 %v6326
  %v6328 = vpop.f32.mrf.mxu0
  %v6329 = vadd.f32 %v6233, %v6328
  %v6330 = vpop.f32.mrf.mxu0
  %6331 = vmatprep.mubr.f32.mxu0 0.0
  %v6332 = vand.u32 %v5139, 4294901760
  %v6333 = vsub.f32 %v5139, %v6332
  %v6334 = vand.u32 %v6333, 4294901760
  %6335 = vmatmul.mubr.f32.gmra.mxu0 %v6334
  %v6336 = vpop.f32.mrf.mxu0
  %v6337 = vadd.f32 %v6240, %v6336
  %v6338 = vpop.f32.mrf.mxu0
  %6339 = vdwg.mxu0
  %6340 = vmatprep.subr.mxu0 0.0
  %v6341 = vand.u32 %v5160, 4294901760
  %v6342 = vsub.f32 %v5160, %v6341
  %v6343 = vand.u32 %v6342, 4294901760
  %6344 = vmatpush1.msra.mxu0 %v6343
  %6345 = vmatprep.subr.mxu0 0.0
  %v6346 = vand.u32 %v5159, 4294901760
  %v6347 = vsub.f32 %v5159, %v6346
  %v6348 = vand.u32 %v6347, 4294901760
  %6349 = vmatpush1.msra.mxu0 %v6348
  %6350 = vmatprep.subr.mxu0 0.0
  %v6351 = vand.u32 %v5158, 4294901760
  %v6352 = vsub.f32 %v5158, %v6351
  %v6353 = vand.u32 %v6352, 4294901760
  %6354 = vmatpush1.msra.mxu0 %v6353
  %6355 = vmatprep.subr.mxu0 0.0
  %v6356 = vand.u32 %v5157, 4294901760
  %v6357 = vsub.f32 %v5157, %v6356
  %v6358 = vand.u32 %v6357, 4294901760
  %6359 = vmatpush1.msra.mxu0 %v6358
  %6360 = vmatprep.subr.mxu0 0.0
  %v6361 = vand.u32 %v5156, 4294901760
  %v6362 = vsub.f32 %v5156, %v6361
  %v6363 = vand.u32 %v6362, 4294901760
  %6364 = vmatpush1.msra.mxu0 %v6363
  %6365 = vmatprep.subr.mxu0 0.0
  %v6366 = vand.u32 %v5155, 4294901760
  %v6367 = vsub.f32 %v5155, %v6366
  %v6368 = vand.u32 %v6367, 4294901760
  %6369 = vmatpush1.msra.mxu0 %v6368
  %6370 = vmatprep.subr.mxu0 0.0
  %v6371 = vand.u32 %v5154, 4294901760
  %v6372 = vsub.f32 %v5154, %v6371
  %v6373 = vand.u32 %v6372, 4294901760
  %6374 = vmatpush1.msra.mxu0 %v6373
  %6375 = vmatprep.subr.mxu0 0.0
  %v6376 = vand.u32 %v5153, 4294901760
  %v6377 = vsub.f32 %v5153, %v6376
  %v6378 = vand.u32 %v6377, 4294901760
  %6379 = vmatpush1.msra.mxu0 %v6378
  %6380 = vmatprep.subr.mxu0 0.0
  %v6381 = vand.u32 %v5152, 4294901760
  %v6382 = vsub.f32 %v5152, %v6381
  %v6383 = vand.u32 %v6382, 4294901760
  %6384 = vmatpush1.msra.mxu0 %v6383
  %6385 = vmatprep.subr.mxu0 0.0
  %v6386 = vand.u32 %v5151, 4294901760
  %v6387 = vsub.f32 %v5151, %v6386
  %v6388 = vand.u32 %v6387, 4294901760
  %6389 = vmatpush1.msra.mxu0 %v6388
  %6390 = vmatprep.subr.mxu0 0.0
  %v6391 = vand.u32 %v5150, 4294901760
  %v6392 = vsub.f32 %v5150, %v6391
  %v6393 = vand.u32 %v6392, 4294901760
  %6394 = vmatpush1.msra.mxu0 %v6393
  %6395 = vmatprep.subr.mxu0 0.0
  %v6396 = vand.u32 %v5149, 4294901760
  %v6397 = vsub.f32 %v5149, %v6396
  %v6398 = vand.u32 %v6397, 4294901760
  %6399 = vmatpush1.msra.mxu0 %v6398
  %6400 = vmatprep.subr.mxu0 0.0
  %v6401 = vand.u32 %v5148, 4294901760
  %v6402 = vsub.f32 %v5148, %v6401
  %v6403 = vand.u32 %v6402, 4294901760
  %6404 = vmatpush1.msra.mxu0 %v6403
  %6405 = vmatprep.subr.mxu0 0.0
  %v6406 = vand.u32 %v5147, 4294901760
  %v6407 = vsub.f32 %v5147, %v6406
  %v6408 = vand.u32 %v6407, 4294901760
  %6409 = vmatpush1.msra.mxu0 %v6408
  %6410 = vmatprep.subr.mxu0 0.0
  %v6411 = vand.u32 %v5146, 4294901760
  %v6412 = vsub.f32 %v5146, %v6411
  %v6413 = vand.u32 %v6412, 4294901760
  %6414 = vmatpush1.msra.mxu0 %v6413
  %6415 = vmatprep.subr.mxu0 0.0
  %v6416 = vand.u32 %v5145, 4294901760
  %v6417 = vsub.f32 %v5145, %v6416
  %v6418 = vand.u32 %v6417, 4294901760
  %6419 = vmatpush1.msra.mxu0 %v6418
  %6420 = vmatprep.subr.mxu0 0.0
  %6421 = vmatpush2.msra.mxu0 0.0
  %6422 = vmatprep.subr.mxu0 0.0
  %6423 = vmatpush2.msra.mxu0 0.0
  %6424 = vmatprep.subr.mxu0 0.0
  %6425 = vmatpush2.msra.mxu0 0.0
  %6426 = vmatprep.subr.mxu0 0.0
  %6427 = vmatpush2.msra.mxu0 0.0
  %6428 = vmatprep.subr.mxu0 0.0
  %6429 = vmatpush2.msra.mxu0 0.0
  %6430 = vmatprep.subr.mxu0 0.0
  %6431 = vmatpush2.msra.mxu0 0.0
  %6432 = vmatprep.subr.mxu0 0.0
  %6433 = vmatpush2.msra.mxu0 0.0
  %6434 = vmatprep.subr.mxu0 0.0
  %6435 = vmatpush2.msra.mxu0 0.0
  %6436 = vmatprep.subr.mxu0 0.0
  %6437 = vmatpush2.msra.mxu0 0.0
  %6438 = vmatprep.subr.mxu0 0.0
  %6439 = vmatpush2.msra.mxu0 0.0
  %6440 = vmatprep.subr.mxu0 0.0
  %6441 = vmatpush2.msra.mxu0 0.0
  %6442 = vmatprep.subr.mxu0 0.0
  %6443 = vmatpush2.msra.mxu0 0.0
  %6444 = vmatprep.subr.mxu0 0.0
  %6445 = vmatpush2.msra.mxu0 0.0
  %6446 = vmatprep.subr.mxu0 0.0
  %6447 = vmatpush2.msra.mxu0 0.0
  %6448 = vmatprep.subr.mxu0 0.0
  %6449 = vmatpush2.msra.mxu0 0.0
  %6450 = vmatprep.subr.mxu0 0.0
  %6451 = vmatpush2.msra.mxu0 0.0
  %6452 = vmatprep.mubr.f32.mxu0 0.0
  %v6453 = vand.u32 %v5138, 4294901760
  %6454 = vmatmul.mubr.f32.gmra.mxu0 %v6453
  %v6455 = vpop.f32.mrf.mxu0
  %v6456 = vadd.f32 %v6329, %v6455
  %v6457 = vpop.f32.mrf.mxu0
  %6458 = vmatprep.mubr.f32.mxu0 0.0
  %v6459 = vand.u32 %v5139, 4294901760
  %6460 = vmatmul.mubr.f32.gmra.mxu0 %v6459
  %v6461 = vpop.f32.mrf.mxu0
  %v6462 = vadd.f32 %v6337, %v6461
  %v6463 = vpop.f32.mrf.mxu0
  %6464 = vdwg.mxu0
  %6465 = vmatprep.subr.mxu0 0.0
  %v6466 = vand.u32 %v5160, 4294901760
  %6467 = vmatpush1.msra.mxu0 %v6466
  %6468 = vmatprep.subr.mxu0 0.0
  %v6469 = vand.u32 %v5159, 4294901760
  %6470 = vmatpush1.msra.mxu0 %v6469
  %6471 = vmatprep.subr.mxu0 0.0
  %v6472 = vand.u32 %v5158, 4294901760
  %6473 = vmatpush1.msra.mxu0 %v6472
  %6474 = vmatprep.subr.mxu0 0.0
  %v6475 = vand.u32 %v5157, 4294901760
  %6476 = vmatpush1.msra.mxu0 %v6475
  %6477 = vmatprep.subr.mxu0 0.0
  %v6478 = vand.u32 %v5156, 4294901760
  %6479 = vmatpush1.msra.mxu0 %v6478
  %6480 = vmatprep.subr.mxu0 0.0
  %v6481 = vand.u32 %v5155, 4294901760
  %6482 = vmatpush1.msra.mxu0 %v6481
  %6483 = vmatprep.subr.mxu0 0.0
  %v6484 = vand.u32 %v5154, 4294901760
  %6485 = vmatpush1.msra.mxu0 %v6484
  %6486 = vmatprep.subr.mxu0 0.0
  %v6487 = vand.u32 %v5153, 4294901760
  %6488 = vmatpush1.msra.mxu0 %v6487
  %6489 = vmatprep.subr.mxu0 0.0
  %v6490 = vand.u32 %v5152, 4294901760
  %6491 = vmatpush1.msra.mxu0 %v6490
  %6492 = vmatprep.subr.mxu0 0.0
  %v6493 = vand.u32 %v5151, 4294901760
  %6494 = vmatpush1.msra.mxu0 %v6493
  %6495 = vmatprep.subr.mxu0 0.0
  %v6496 = vand.u32 %v5150, 4294901760
  %6497 = vmatpush1.msra.mxu0 %v6496
  %6498 = vmatprep.subr.mxu0 0.0
  %v6499 = vand.u32 %v5149, 4294901760
  %6500 = vmatpush1.msra.mxu0 %v6499
  %6501 = vmatprep.subr.mxu0 0.0
  %v6502 = vand.u32 %v5148, 4294901760
  %6503 = vmatpush1.msra.mxu0 %v6502
  %6504 = vmatprep.subr.mxu0 0.0
  %v6505 = vand.u32 %v5147, 4294901760
  %6506 = vmatpush1.msra.mxu0 %v6505
  %6507 = vmatprep.subr.mxu0 0.0
  %v6508 = vand.u32 %v5146, 4294901760
  %6509 = vmatpush1.msra.mxu0 %v6508
  %6510 = vmatprep.subr.mxu0 0.0
  %v6511 = vand.u32 %v5145, 4294901760
  %6512 = vmatpush1.msra.mxu0 %v6511
  %6513 = vmatprep.subr.mxu0 0.0
  %6514 = vmatpush2.msra.mxu0 0.0
  %6515 = vmatprep.subr.mxu0 0.0
  %6516 = vmatpush2.msra.mxu0 0.0
  %6517 = vmatprep.subr.mxu0 0.0
  %6518 = vmatpush2.msra.mxu0 0.0
  %6519 = vmatprep.subr.mxu0 0.0
  %6520 = vmatpush2.msra.mxu0 0.0
  %6521 = vmatprep.subr.mxu0 0.0
  %6522 = vmatpush2.msra.mxu0 0.0
  %6523 = vmatprep.subr.mxu0 0.0
  %6524 = vmatpush2.msra.mxu0 0.0
  %6525 = vmatprep.subr.mxu0 0.0
  %6526 = vmatpush2.msra.mxu0 0.0
  %6527 = vmatprep.subr.mxu0 0.0
  %6528 = vmatpush2.msra.mxu0 0.0
  %6529 = vmatprep.subr.mxu0 0.0
  %6530 = vmatpush2.msra.mxu0 0.0
  %6531 = vmatprep.subr.mxu0 0.0
  %6532 = vmatpush2.msra.mxu0 0.0
  %6533 = vmatprep.subr.mxu0 0.0
  %6534 = vmatpush2.msra.mxu0 0.0
  %6535 = vmatprep.subr.mxu0 0.0
  %6536 = vmatpush2.msra.mxu0 0.0
  %6537 = vmatprep.subr.mxu0 0.0
  %6538 = vmatpush2.msra.mxu0 0.0
  %6539 = vmatprep.subr.mxu0 0.0
  %6540 = vmatpush2.msra.mxu0 0.0
  %6541 = vmatprep.subr.mxu0 0.0
  %6542 = vmatpush2.msra.mxu0 0.0
  %6543 = vmatprep.subr.mxu0 0.0
  %6544 = vmatpush2.msra.mxu0 0.0
  %6545 = vmatprep.mubr.f32.mxu0 0.0
  %v6546 = vand.u32 %v5138, 4294901760
  %6547 = vmatmul.mubr.f32.gmra.mxu0 %v6546
  %v6548 = vpop.f32.mrf.mxu0
  %v6549 = vadd.f32 %v6456, %v6548
  %v6550 = vpop.f32.mrf.mxu0
  %6551 = vmatprep.mubr.f32.mxu0 0.0
  %v6552 = vand.u32 %v5139, 4294901760
  %6553 = vmatmul.mubr.f32.gmra.mxu0 %v6552
  %v6554 = vpop.f32.mrf.mxu0
  %v6555 = vadd.f32 %v6462, %v6554
  %v6556 = vpop.f32.mrf.mxu0
  %6557 = vdwg.mxu0
  %v6558 = vrot.slane %v5138, 2
  %v6559 = vrot.slane %v5140, 2
  %v6560 = vsel %vm1682, %v6558, %v6559
  %v6561 = vrot.slane %v5139, 2
  %v6562 = vrot.slane %v5141, 2
  %v6563 = vsel %vm1682, %v6561, %v6562
  %s6566 = scalar_lea.vmem %s3, 640
  %v6567 = vld [vmem:[%s6566] sm:$0xff]
  %v6568 = vld [vmem:[%s6566 + $0x8] sm:$0xff]
  %v6569 = vld [vmem:[%s6566 + $0x10] sm:$0xff]
  %v6570 = vld [vmem:[%s6566 + $0x18] sm:$0xff]
  %v6571 = vld [vmem:[%s6566 + $0x20] sm:$0xff]
  %v6572 = vld [vmem:[%s6566 + $0x28] sm:$0xff]
  %v6573 = vld [vmem:[%s6566 + $0x30] sm:$0xff]
  %v6574 = vld [vmem:[%s6566 + $0x38] sm:$0xff]
  %v6575 = vld [vmem:[%s6566 + $0x40] sm:$0xff]
  %v6576 = vld [vmem:[%s6566 + $0x48] sm:$0xff]
  %v6577 = vld [vmem:[%s6566 + $0x50] sm:$0xff]
  %v6578 = vld [vmem:[%s6566 + $0x58] sm:$0xff]
  %v6579 = vld [vmem:[%s6566 + $0x60] sm:$0xff]
  %v6580 = vld [vmem:[%s6566 + $0x68] sm:$0xff]
  %v6581 = vld [vmem:[%s6566 + $0x70] sm:$0xff]
  %v6582 = vld [vmem:[%s6566 + $0x78] sm:$0xff]
  %6583 = vmatprep.subr.mxu0 0.0
  %v6584 = vand.u32 %v6582, 4294901760
  %6585 = vmatpush1.msra.mxu0 %v6584
  %6586 = vmatprep.subr.mxu0 0.0
  %v6587 = vand.u32 %v6581, 4294901760
  %6588 = vmatpush1.msra.mxu0 %v6587
  %6589 = vmatprep.subr.mxu0 0.0
  %v6590 = vand.u32 %v6580, 4294901760
  %6591 = vmatpush1.msra.mxu0 %v6590
  %6592 = vmatprep.subr.mxu0 0.0
  %v6593 = vand.u32 %v6579, 4294901760
  %6594 = vmatpush1.msra.mxu0 %v6593
  %6595 = vmatprep.subr.mxu0 0.0
  %v6596 = vand.u32 %v6578, 4294901760
  %6597 = vmatpush1.msra.mxu0 %v6596
  %6598 = vmatprep.subr.mxu0 0.0
  %v6599 = vand.u32 %v6577, 4294901760
  %6600 = vmatpush1.msra.mxu0 %v6599
  %6601 = vmatprep.subr.mxu0 0.0
  %v6602 = vand.u32 %v6576, 4294901760
  %6603 = vmatpush1.msra.mxu0 %v6602
  %6604 = vmatprep.subr.mxu0 0.0
  %v6605 = vand.u32 %v6575, 4294901760
  %6606 = vmatpush1.msra.mxu0 %v6605
  %6607 = vmatprep.subr.mxu0 0.0
  %v6608 = vand.u32 %v6574, 4294901760
  %6609 = vmatpush1.msra.mxu0 %v6608
  %6610 = vmatprep.subr.mxu0 0.0
  %v6611 = vand.u32 %v6573, 4294901760
  %6612 = vmatpush1.msra.mxu0 %v6611
  %6613 = vmatprep.subr.mxu0 0.0
  %v6614 = vand.u32 %v6572, 4294901760
  %6615 = vmatpush1.msra.mxu0 %v6614
  %6616 = vmatprep.subr.mxu0 0.0
  %v6617 = vand.u32 %v6571, 4294901760
  %6618 = vmatpush1.msra.mxu0 %v6617
  %6619 = vmatprep.subr.mxu0 0.0
  %v6620 = vand.u32 %v6570, 4294901760
  %6621 = vmatpush1.msra.mxu0 %v6620
  %6622 = vmatprep.subr.mxu0 0.0
  %v6623 = vand.u32 %v6569, 4294901760
  %6624 = vmatpush1.msra.mxu0 %v6623
  %6625 = vmatprep.subr.mxu0 0.0
  %v6626 = vand.u32 %v6568, 4294901760
  %6627 = vmatpush1.msra.mxu0 %v6626
  %6628 = vmatprep.subr.mxu0 0.0
  %v6629 = vand.u32 %v6567, 4294901760
  %6630 = vmatpush1.msra.mxu0 %v6629
  %6631 = vmatprep.subr.mxu0 0.0
  %6632 = vmatpush2.msra.mxu0 0.0
  %6633 = vmatprep.subr.mxu0 0.0
  %6634 = vmatpush2.msra.mxu0 0.0
  %6635 = vmatprep.subr.mxu0 0.0
  %6636 = vmatpush2.msra.mxu0 0.0
  %6637 = vmatprep.subr.mxu0 0.0
  %6638 = vmatpush2.msra.mxu0 0.0
  %6639 = vmatprep.subr.mxu0 0.0
  %6640 = vmatpush2.msra.mxu0 0.0
  %6641 = vmatprep.subr.mxu0 0.0
  %6642 = vmatpush2.msra.mxu0 0.0
  %6643 = vmatprep.subr.mxu0 0.0
  %6644 = vmatpush2.msra.mxu0 0.0
  %6645 = vmatprep.subr.mxu0 0.0
  %6646 = vmatpush2.msra.mxu0 0.0
  %6647 = vmatprep.subr.mxu0 0.0
  %6648 = vmatpush2.msra.mxu0 0.0
  %6649 = vmatprep.subr.mxu0 0.0
  %6650 = vmatpush2.msra.mxu0 0.0
  %6651 = vmatprep.subr.mxu0 0.0
  %6652 = vmatpush2.msra.mxu0 0.0
  %6653 = vmatprep.subr.mxu0 0.0
  %6654 = vmatpush2.msra.mxu0 0.0
  %6655 = vmatprep.subr.mxu0 0.0
  %6656 = vmatpush2.msra.mxu0 0.0
  %6657 = vmatprep.subr.mxu0 0.0
  %6658 = vmatpush2.msra.mxu0 0.0
  %6659 = vmatprep.subr.mxu0 0.0
  %6660 = vmatpush2.msra.mxu0 0.0
  %6661 = vmatprep.subr.mxu0 0.0
  %6662 = vmatpush2.msra.mxu0 0.0
  %6663 = vmatprep.mubr.f32.mxu0 0.0
  %v6664 = vand.u32 %v6560, 4294901760
  %v6665 = vsub.f32 %v6560, %v6664
  %v6666 = vand.u32 %v6665, 4294901760
  %v6667 = vsub.f32 %v6665, %v6666
  %v6668 = vand.u32 %v6667, 4294901760
  %6669 = vmatmul.mubr.f32.gmra.mxu0 %v6668
  %v6670 = vpop.f32.mrf.mxu0
  %v6671 = vadd.f32 0.0, %v6670
  %v6672 = vpop.f32.mrf.mxu0
  %6673 = vmatprep.mubr.f32.mxu0 0.0
  %v6674 = vand.u32 %v6563, 4294901760
  %v6675 = vsub.f32 %v6563, %v6674
  %v6676 = vand.u32 %v6675, 4294901760
  %v6677 = vsub.f32 %v6675, %v6676
  %v6678 = vand.u32 %v6677, 4294901760
  %6679 = vmatmul.mubr.f32.gmra.mxu0 %v6678
  %v6680 = vpop.f32.mrf.mxu0
  %v6681 = vadd.f32 0.0, %v6680
  %v6682 = vpop.f32.mrf.mxu0
  %6683 = vdwg.mxu0
  %6684 = vmatprep.subr.mxu0 0.0
  %v6685 = vand.u32 %v6582, 4294901760
  %v6686 = vsub.f32 %v6582, %v6685
  %v6687 = vand.u32 %v6686, 4294901760
  %v6688 = vsub.f32 %v6686, %v6687
  %v6689 = vand.u32 %v6688, 4294901760
  %6690 = vmatpush1.msra.mxu0 %v6689
  %6691 = vmatprep.subr.mxu0 0.0
  %v6692 = vand.u32 %v6581, 4294901760
  %v6693 = vsub.f32 %v6581, %v6692
  %v6694 = vand.u32 %v6693, 4294901760
  %v6695 = vsub.f32 %v6693, %v6694
  %v6696 = vand.u32 %v6695, 4294901760
  %6697 = vmatpush1.msra.mxu0 %v6696
  %6698 = vmatprep.subr.mxu0 0.0
  %v6699 = vand.u32 %v6580, 4294901760
  %v6700 = vsub.f32 %v6580, %v6699
  %v6701 = vand.u32 %v6700, 4294901760
  %v6702 = vsub.f32 %v6700, %v6701
  %v6703 = vand.u32 %v6702, 4294901760
  %6704 = vmatpush1.msra.mxu0 %v6703
  %6705 = vmatprep.subr.mxu0 0.0
  %v6706 = vand.u32 %v6579, 4294901760
  %v6707 = vsub.f32 %v6579, %v6706
  %v6708 = vand.u32 %v6707, 4294901760
  %v6709 = vsub.f32 %v6707, %v6708
  %v6710 = vand.u32 %v6709, 4294901760
  %6711 = vmatpush1.msra.mxu0 %v6710
  %6712 = vmatprep.subr.mxu0 0.0
  %v6713 = vand.u32 %v6578, 4294901760
  %v6714 = vsub.f32 %v6578, %v6713
  %v6715 = vand.u32 %v6714, 4294901760
  %v6716 = vsub.f32 %v6714, %v6715
  %v6717 = vand.u32 %v6716, 4294901760
  %6718 = vmatpush1.msra.mxu0 %v6717
  %6719 = vmatprep.subr.mxu0 0.0
  %v6720 = vand.u32 %v6577, 4294901760
  %v6721 = vsub.f32 %v6577, %v6720
  %v6722 = vand.u32 %v6721, 4294901760
  %v6723 = vsub.f32 %v6721, %v6722
  %v6724 = vand.u32 %v6723, 4294901760
  %6725 = vmatpush1.msra.mxu0 %v6724
  %6726 = vmatprep.subr.mxu0 0.0
  %v6727 = vand.u32 %v6576, 4294901760
  %v6728 = vsub.f32 %v6576, %v6727
  %v6729 = vand.u32 %v6728, 4294901760
  %v6730 = vsub.f32 %v6728, %v6729
  %v6731 = vand.u32 %v6730, 4294901760
  %6732 = vmatpush1.msra.mxu0 %v6731
  %6733 = vmatprep.subr.mxu0 0.0
  %v6734 = vand.u32 %v6575, 4294901760
  %v6735 = vsub.f32 %v6575, %v6734
  %v6736 = vand.u32 %v6735, 4294901760
  %v6737 = vsub.f32 %v6735, %v6736
  %v6738 = vand.u32 %v6737, 4294901760
  %6739 = vmatpush1.msra.mxu0 %v6738
  %6740 = vmatprep.subr.mxu0 0.0
  %v6741 = vand.u32 %v6574, 4294901760
  %v6742 = vsub.f32 %v6574, %v6741
  %v6743 = vand.u32 %v6742, 4294901760
  %v6744 = vsub.f32 %v6742, %v6743
  %v6745 = vand.u32 %v6744, 4294901760
  %6746 = vmatpush1.msra.mxu0 %v6745
  %6747 = vmatprep.subr.mxu0 0.0
  %v6748 = vand.u32 %v6573, 4294901760
  %v6749 = vsub.f32 %v6573, %v6748
  %v6750 = vand.u32 %v6749, 4294901760
  %v6751 = vsub.f32 %v6749, %v6750
  %v6752 = vand.u32 %v6751, 4294901760
  %6753 = vmatpush1.msra.mxu0 %v6752
  %6754 = vmatprep.subr.mxu0 0.0
  %v6755 = vand.u32 %v6572, 4294901760
  %v6756 = vsub.f32 %v6572, %v6755
  %v6757 = vand.u32 %v6756, 4294901760
  %v6758 = vsub.f32 %v6756, %v6757
  %v6759 = vand.u32 %v6758, 4294901760
  %6760 = vmatpush1.msra.mxu0 %v6759
  %6761 = vmatprep.subr.mxu0 0.0
  %v6762 = vand.u32 %v6571, 4294901760
  %v6763 = vsub.f32 %v6571, %v6762
  %v6764 = vand.u32 %v6763, 4294901760
  %v6765 = vsub.f32 %v6763, %v6764
  %v6766 = vand.u32 %v6765, 4294901760
  %6767 = vmatpush1.msra.mxu0 %v6766
  %6768 = vmatprep.subr.mxu0 0.0
  %v6769 = vand.u32 %v6570, 4294901760
  %v6770 = vsub.f32 %v6570, %v6769
  %v6771 = vand.u32 %v6770, 4294901760
  %v6772 = vsub.f32 %v6770, %v6771
  %v6773 = vand.u32 %v6772, 4294901760
  %6774 = vmatpush1.msra.mxu0 %v6773
  %6775 = vmatprep.subr.mxu0 0.0
  %v6776 = vand.u32 %v6569, 4294901760
  %v6777 = vsub.f32 %v6569, %v6776
  %v6778 = vand.u32 %v6777, 4294901760
  %v6779 = vsub.f32 %v6777, %v6778
  %v6780 = vand.u32 %v6779, 4294901760
  %6781 = vmatpush1.msra.mxu0 %v6780
  %6782 = vmatprep.subr.mxu0 0.0
  %v6783 = vand.u32 %v6568, 4294901760
  %v6784 = vsub.f32 %v6568, %v6783
  %v6785 = vand.u32 %v6784, 4294901760
  %v6786 = vsub.f32 %v6784, %v6785
  %v6787 = vand.u32 %v6786, 4294901760
  %6788 = vmatpush1.msra.mxu0 %v6787
  %6789 = vmatprep.subr.mxu0 0.0
  %v6790 = vand.u32 %v6567, 4294901760
  %v6791 = vsub.f32 %v6567, %v6790
  %v6792 = vand.u32 %v6791, 4294901760
  %v6793 = vsub.f32 %v6791, %v6792
  %v6794 = vand.u32 %v6793, 4294901760
  %6795 = vmatpush1.msra.mxu0 %v6794
  %6796 = vmatprep.subr.mxu0 0.0
  %6797 = vmatpush2.msra.mxu0 0.0
  %6798 = vmatprep.subr.mxu0 0.0
  %6799 = vmatpush2.msra.mxu0 0.0
  %6800 = vmatprep.subr.mxu0 0.0
  %6801 = vmatpush2.msra.mxu0 0.0
  %6802 = vmatprep.subr.mxu0 0.0
  %6803 = vmatpush2.msra.mxu0 0.0
  %6804 = vmatprep.subr.mxu0 0.0
  %6805 = vmatpush2.msra.mxu0 0.0
  %6806 = vmatprep.subr.mxu0 0.0
  %6807 = vmatpush2.msra.mxu0 0.0
  %6808 = vmatprep.subr.mxu0 0.0
  %6809 = vmatpush2.msra.mxu0 0.0
  %6810 = vmatprep.subr.mxu0 0.0
  %6811 = vmatpush2.msra.mxu0 0.0
  %6812 = vmatprep.subr.mxu0 0.0
  %6813 = vmatpush2.msra.mxu0 0.0
  %6814 = vmatprep.subr.mxu0 0.0
  %6815 = vmatpush2.msra.mxu0 0.0
  %6816 = vmatprep.subr.mxu0 0.0
  %6817 = vmatpush2.msra.mxu0 0.0
  %6818 = vmatprep.subr.mxu0 0.0
  %6819 = vmatpush2.msra.mxu0 0.0
  %6820 = vmatprep.subr.mxu0 0.0
  %6821 = vmatpush2.msra.mxu0 0.0
  %6822 = vmatprep.subr.mxu0 0.0
  %6823 = vmatpush2.msra.mxu0 0.0
  %6824 = vmatprep.subr.mxu0 0.0
  %6825 = vmatpush2.msra.mxu0 0.0
  %6826 = vmatprep.subr.mxu0 0.0
  %6827 = vmatpush2.msra.mxu0 0.0
  %6828 = vmatprep.mubr.f32.mxu0 0.0
  %v6829 = vand.u32 %v6560, 4294901760
  %6830 = vmatmul.mubr.f32.gmra.mxu0 %v6829
  %v6831 = vpop.f32.mrf.mxu0
  %v6832 = vadd.f32 %v6671, %v6831
  %v6833 = vpop.f32.mrf.mxu0
  %6834 = vmatprep.mubr.f32.mxu0 0.0
  %v6835 = vand.u32 %v6563, 4294901760
  %6836 = vmatmul.mubr.f32.gmra.mxu0 %v6835
  %v6837 = vpop.f32.mrf.mxu0
  %v6838 = vadd.f32 %v6681, %v6837
  %v6839 = vpop.f32.mrf.mxu0
  %6840 = vdwg.mxu0
  %6841 = vmatprep.subr.mxu0 0.0
  %v6842 = vand.u32 %v6582, 4294901760
  %v6843 = vsub.f32 %v6582, %v6842
  %6844 = vmatpush1.msra.mxu0 %v6843
  %6845 = vmatprep.subr.mxu0 0.0
  %v6846 = vand.u32 %v6581, 4294901760
  %v6847 = vsub.f32 %v6581, %v6846
  %6848 = vmatpush1.msra.mxu0 %v6847
  %6849 = vmatprep.subr.mxu0 0.0
  %v6850 = vand.u32 %v6580, 4294901760
  %v6851 = vsub.f32 %v6580, %v6850
  %6852 = vmatpush1.msra.mxu0 %v6851
  %6853 = vmatprep.subr.mxu0 0.0
  %v6854 = vand.u32 %v6579, 4294901760
  %v6855 = vsub.f32 %v6579, %v6854
  %6856 = vmatpush1.msra.mxu0 %v6855
  %6857 = vmatprep.subr.mxu0 0.0
  %v6858 = vand.u32 %v6578, 4294901760
  %v6859 = vsub.f32 %v6578, %v6858
  %6860 = vmatpush1.msra.mxu0 %v6859
  %6861 = vmatprep.subr.mxu0 0.0
  %v6862 = vand.u32 %v6577, 4294901760
  %v6863 = vsub.f32 %v6577, %v6862
  %6864 = vmatpush1.msra.mxu0 %v6863
  %6865 = vmatprep.subr.mxu0 0.0
  %v6866 = vand.u32 %v6576, 4294901760
  %v6867 = vsub.f32 %v6576, %v6866
  %6868 = vmatpush1.msra.mxu0 %v6867
  %6869 = vmatprep.subr.mxu0 0.0
  %v6870 = vand.u32 %v6575, 4294901760
  %v6871 = vsub.f32 %v6575, %v6870
  %6872 = vmatpush1.msra.mxu0 %v6871
  %6873 = vmatprep.subr.mxu0 0.0
  %v6874 = vand.u32 %v6574, 4294901760
  %v6875 = vsub.f32 %v6574, %v6874
  %6876 = vmatpush1.msra.mxu0 %v6875
  %6877 = vmatprep.subr.mxu0 0.0
  %v6878 = vand.u32 %v6573, 4294901760
  %v6879 = vsub.f32 %v6573, %v6878
  %6880 = vmatpush1.msra.mxu0 %v6879
  %6881 = vmatprep.subr.mxu0 0.0
  %v6882 = vand.u32 %v6572, 4294901760
  %v6883 = vsub.f32 %v6572, %v6882
  %6884 = vmatpush1.msra.mxu0 %v6883
  %6885 = vmatprep.subr.mxu0 0.0
  %v6886 = vand.u32 %v6571, 4294901760
  %v6887 = vsub.f32 %v6571, %v6886
  %6888 = vmatpush1.msra.mxu0 %v6887
  %6889 = vmatprep.subr.mxu0 0.0
  %v6890 = vand.u32 %v6570, 4294901760
  %v6891 = vsub.f32 %v6570, %v6890
  %6892 = vmatpush1.msra.mxu0 %v6891
  %6893 = vmatprep.subr.mxu0 0.0
  %v6894 = vand.u32 %v6569, 4294901760
  %v6895 = vsub.f32 %v6569, %v6894
  %6896 = vmatpush1.msra.mxu0 %v6895
  %6897 = vmatprep.subr.mxu0 0.0
  %v6898 = vand.u32 %v6568, 4294901760
  %v6899 = vsub.f32 %v6568, %v6898
  %6900 = vmatpush1.msra.mxu0 %v6899
  %6901 = vmatprep.subr.mxu0 0.0
  %v6902 = vand.u32 %v6567, 4294901760
  %v6903 = vsub.f32 %v6567, %v6902
  %6904 = vmatpush1.msra.mxu0 %v6903
  %6905 = vmatprep.subr.mxu0 0.0
  %6906 = vmatpush2.msra.mxu0 0.0
  %6907 = vmatprep.subr.mxu0 0.0
  %6908 = vmatpush2.msra.mxu0 0.0
  %6909 = vmatprep.subr.mxu0 0.0
  %6910 = vmatpush2.msra.mxu0 0.0
  %6911 = vmatprep.subr.mxu0 0.0
  %6912 = vmatpush2.msra.mxu0 0.0
  %6913 = vmatprep.subr.mxu0 0.0
  %6914 = vmatpush2.msra.mxu0 0.0
  %6915 = vmatprep.subr.mxu0 0.0
  %6916 = vmatpush2.msra.mxu0 0.0
  %6917 = vmatprep.subr.mxu0 0.0
  %6918 = vmatpush2.msra.mxu0 0.0
  %6919 = vmatprep.subr.mxu0 0.0
  %6920 = vmatpush2.msra.mxu0 0.0
  %6921 = vmatprep.subr.mxu0 0.0
  %6922 = vmatpush2.msra.mxu0 0.0
  %6923 = vmatprep.subr.mxu0 0.0
  %6924 = vmatpush2.msra.mxu0 0.0
  %6925 = vmatprep.subr.mxu0 0.0
  %6926 = vmatpush2.msra.mxu0 0.0
  %6927 = vmatprep.subr.mxu0 0.0
  %6928 = vmatpush2.msra.mxu0 0.0
  %6929 = vmatprep.subr.mxu0 0.0
  %6930 = vmatpush2.msra.mxu0 0.0
  %6931 = vmatprep.subr.mxu0 0.0
  %6932 = vmatpush2.msra.mxu0 0.0
  %6933 = vmatprep.subr.mxu0 0.0
  %6934 = vmatpush2.msra.mxu0 0.0
  %6935 = vmatprep.subr.mxu0 0.0
  %6936 = vmatpush2.msra.mxu0 0.0
  %6937 = vmatprep.mubr.f32.mxu0 0.0
  %v6938 = vand.u32 %v6560, 4294901760
  %v6939 = vsub.f32 %v6560, %v6938
  %6940 = vmatmul.mubr.f32.gmra.mxu0 %v6939
  %v6941 = vpop.f32.mrf.mxu0
  %v6942 = vadd.f32 %v6832, %v6941
  %v6943 = vpop.f32.mrf.mxu0
  %6944 = vmatprep.mubr.f32.mxu0 0.0
  %v6945 = vand.u32 %v6563, 4294901760
  %v6946 = vsub.f32 %v6563, %v6945
  %6947 = vmatmul.mubr.f32.gmra.mxu0 %v6946
  %v6948 = vpop.f32.mrf.mxu0
  %v6949 = vadd.f32 %v6838, %v6948
  %v6950 = vpop.f32.mrf.mxu0
  %6951 = vdwg.mxu0
  %6952 = vmatprep.subr.mxu0 0.0
  %v6953 = vand.u32 %v6582, 4294901760
  %6954 = vmatpush1.msra.mxu0 %v6953
  %6955 = vmatprep.subr.mxu0 0.0
  %v6956 = vand.u32 %v6581, 4294901760
  %6957 = vmatpush1.msra.mxu0 %v6956
  %6958 = vmatprep.subr.mxu0 0.0
  %v6959 = vand.u32 %v6580, 4294901760
  %6960 = vmatpush1.msra.mxu0 %v6959
  %6961 = vmatprep.subr.mxu0 0.0
  %v6962 = vand.u32 %v6579, 4294901760
  %6963 = vmatpush1.msra.mxu0 %v6962
  %6964 = vmatprep.subr.mxu0 0.0
  %v6965 = vand.u32 %v6578, 4294901760
  %6966 = vmatpush1.msra.mxu0 %v6965
  %6967 = vmatprep.subr.mxu0 0.0
  %v6968 = vand.u32 %v6577, 4294901760
  %6969 = vmatpush1.msra.mxu0 %v6968
  %6970 = vmatprep.subr.mxu0 0.0
  %v6971 = vand.u32 %v6576, 4294901760
  %6972 = vmatpush1.msra.mxu0 %v6971
  %6973 = vmatprep.subr.mxu0 0.0
  %v6974 = vand.u32 %v6575, 4294901760
  %6975 = vmatpush1.msra.mxu0 %v6974
  %6976 = vmatprep.subr.mxu0 0.0
  %v6977 = vand.u32 %v6574, 4294901760
  %6978 = vmatpush1.msra.mxu0 %v6977
  %6979 = vmatprep.subr.mxu0 0.0
  %v6980 = vand.u32 %v6573, 4294901760
  %6981 = vmatpush1.msra.mxu0 %v6980
  %6982 = vmatprep.subr.mxu0 0.0
  %v6983 = vand.u32 %v6572, 4294901760
  %6984 = vmatpush1.msra.mxu0 %v6983
  %6985 = vmatprep.subr.mxu0 0.0
  %v6986 = vand.u32 %v6571, 4294901760
  %6987 = vmatpush1.msra.mxu0 %v6986
  %6988 = vmatprep.subr.mxu0 0.0
  %v6989 = vand.u32 %v6570, 4294901760
  %6990 = vmatpush1.msra.mxu0 %v6989
  %6991 = vmatprep.subr.mxu0 0.0
  %v6992 = vand.u32 %v6569, 4294901760
  %6993 = vmatpush1.msra.mxu0 %v6992
  %6994 = vmatprep.subr.mxu0 0.0
  %v6995 = vand.u32 %v6568, 4294901760
  %6996 = vmatpush1.msra.mxu0 %v6995
  %6997 = vmatprep.subr.mxu0 0.0
  %v6998 = vand.u32 %v6567, 4294901760
  %6999 = vmatpush1.msra.mxu0 %v6998
  %7000 = vmatprep.subr.mxu0 0.0
  %7001 = vmatpush2.msra.mxu0 0.0
  %7002 = vmatprep.subr.mxu0 0.0
  %7003 = vmatpush2.msra.mxu0 0.0
  %7004 = vmatprep.subr.mxu0 0.0
  %7005 = vmatpush2.msra.mxu0 0.0
  %7006 = vmatprep.subr.mxu0 0.0
  %7007 = vmatpush2.msra.mxu0 0.0
  %7008 = vmatprep.subr.mxu0 0.0
  %7009 = vmatpush2.msra.mxu0 0.0
  %7010 = vmatprep.subr.mxu0 0.0
  %7011 = vmatpush2.msra.mxu0 0.0
  %7012 = vmatprep.subr.mxu0 0.0
  %7013 = vmatpush2.msra.mxu0 0.0
  %7014 = vmatprep.subr.mxu0 0.0
  %7015 = vmatpush2.msra.mxu0 0.0
  %7016 = vmatprep.subr.mxu0 0.0
  %7017 = vmatpush2.msra.mxu0 0.0
  %7018 = vmatprep.subr.mxu0 0.0
  %7019 = vmatpush2.msra.mxu0 0.0
  %7020 = vmatprep.subr.mxu0 0.0
  %7021 = vmatpush2.msra.mxu0 0.0
  %7022 = vmatprep.subr.mxu0 0.0
  %7023 = vmatpush2.msra.mxu0 0.0
  %7024 = vmatprep.subr.mxu0 0.0
  %7025 = vmatpush2.msra.mxu0 0.0
  %7026 = vmatprep.subr.mxu0 0.0
  %7027 = vmatpush2.msra.mxu0 0.0
  %7028 = vmatprep.subr.mxu0 0.0
  %7029 = vmatpush2.msra.mxu0 0.0
  %7030 = vmatprep.subr.mxu0 0.0
  %7031 = vmatpush2.msra.mxu0 0.0
  %7032 = vmatprep.mubr.f32.mxu0 0.0
  %v7033 = vand.u32 %v6560, 4294901760
  %v7034 = vsub.f32 %v6560, %v7033
  %v7035 = vand.u32 %v7034, 4294901760
  %7036 = vmatmul.mubr.f32.gmra.mxu0 %v7035
  %v7037 = vpop.f32.mrf.mxu0
  %v7038 = vadd.f32 %v6942, %v7037
  %v7039 = vpop.f32.mrf.mxu0
  %7040 = vmatprep.mubr.f32.mxu0 0.0
  %v7041 = vand.u32 %v6563, 4294901760
  %v7042 = vsub.f32 %v6563, %v7041
  %v7043 = vand.u32 %v7042, 4294901760
  %7044 = vmatmul.mubr.f32.gmra.mxu0 %v7043
  %v7045 = vpop.f32.mrf.mxu0
  %v7046 = vadd.f32 %v6949, %v7045
  %v7047 = vpop.f32.mrf.mxu0
  %7048 = vdwg.mxu0
  %7049 = vmatprep.subr.mxu0 0.0
  %v7050 = vand.u32 %v6582, 4294901760
  %v7051 = vsub.f32 %v6582, %v7050
  %v7052 = vand.u32 %v7051, 4294901760
  %7053 = vmatpush1.msra.mxu0 %v7052
  %7054 = vmatprep.subr.mxu0 0.0
  %v7055 = vand.u32 %v6581, 4294901760
  %v7056 = vsub.f32 %v6581, %v7055
  %v7057 = vand.u32 %v7056, 4294901760
  %7058 = vmatpush1.msra.mxu0 %v7057
  %7059 = vmatprep.subr.mxu0 0.0
  %v7060 = vand.u32 %v6580, 4294901760
  %v7061 = vsub.f32 %v6580, %v7060
  %v7062 = vand.u32 %v7061, 4294901760
  %7063 = vmatpush1.msra.mxu0 %v7062
  %7064 = vmatprep.subr.mxu0 0.0
  %v7065 = vand.u32 %v6579, 4294901760
  %v7066 = vsub.f32 %v6579, %v7065
  %v7067 = vand.u32 %v7066, 4294901760
  %7068 = vmatpush1.msra.mxu0 %v7067
  %7069 = vmatprep.subr.mxu0 0.0
  %v7070 = vand.u32 %v6578, 4294901760
  %v7071 = vsub.f32 %v6578, %v7070
  %v7072 = vand.u32 %v7071, 4294901760
  %7073 = vmatpush1.msra.mxu0 %v7072
  %7074 = vmatprep.subr.mxu0 0.0
  %v7075 = vand.u32 %v6577, 4294901760
  %v7076 = vsub.f32 %v6577, %v7075
  %v7077 = vand.u32 %v7076, 4294901760
  %7078 = vmatpush1.msra.mxu0 %v7077
  %7079 = vmatprep.subr.mxu0 0.0
  %v7080 = vand.u32 %v6576, 4294901760
  %v7081 = vsub.f32 %v6576, %v7080
  %v7082 = vand.u32 %v7081, 4294901760
  %7083 = vmatpush1.msra.mxu0 %v7082
  %7084 = vmatprep.subr.mxu0 0.0
  %v7085 = vand.u32 %v6575, 4294901760
  %v7086 = vsub.f32 %v6575, %v7085
  %v7087 = vand.u32 %v7086, 4294901760
  %7088 = vmatpush1.msra.mxu0 %v7087
  %7089 = vmatprep.subr.mxu0 0.0
  %v7090 = vand.u32 %v6574, 4294901760
  %v7091 = vsub.f32 %v6574, %v7090
  %v7092 = vand.u32 %v7091, 4294901760
  %7093 = vmatpush1.msra.mxu0 %v7092
  %7094 = vmatprep.subr.mxu0 0.0
  %v7095 = vand.u32 %v6573, 4294901760
  %v7096 = vsub.f32 %v6573, %v7095
  %v7097 = vand.u32 %v7096, 4294901760
  %7098 = vmatpush1.msra.mxu0 %v7097
  %7099 = vmatprep.subr.mxu0 0.0
  %v7100 = vand.u32 %v6572, 4294901760
  %v7101 = vsub.f32 %v6572, %v7100
  %v7102 = vand.u32 %v7101, 4294901760
  %7103 = vmatpush1.msra.mxu0 %v7102
  %7104 = vmatprep.subr.mxu0 0.0
  %v7105 = vand.u32 %v6571, 4294901760
  %v7106 = vsub.f32 %v6571, %v7105
  %v7107 = vand.u32 %v7106, 4294901760
  %7108 = vmatpush1.msra.mxu0 %v7107
  %7109 = vmatprep.subr.mxu0 0.0
  %v7110 = vand.u32 %v6570, 4294901760
  %v7111 = vsub.f32 %v6570, %v7110
  %v7112 = vand.u32 %v7111, 4294901760
  %7113 = vmatpush1.msra.mxu0 %v7112
  %7114 = vmatprep.subr.mxu0 0.0
  %v7115 = vand.u32 %v6569, 4294901760
  %v7116 = vsub.f32 %v6569, %v7115
  %v7117 = vand.u32 %v7116, 4294901760
  %7118 = vmatpush1.msra.mxu0 %v7117
  %7119 = vmatprep.subr.mxu0 0.0
  %v7120 = vand.u32 %v6568, 4294901760
  %v7121 = vsub.f32 %v6568, %v7120
  %v7122 = vand.u32 %v7121, 4294901760
  %7123 = vmatpush1.msra.mxu0 %v7122
  %7124 = vmatprep.subr.mxu0 0.0
  %v7125 = vand.u32 %v6567, 4294901760
  %v7126 = vsub.f32 %v6567, %v7125
  %v7127 = vand.u32 %v7126, 4294901760
  %7128 = vmatpush1.msra.mxu0 %v7127
  %7129 = vmatprep.subr.mxu0 0.0
  %7130 = vmatpush2.msra.mxu0 0.0
  %7131 = vmatprep.subr.mxu0 0.0
  %7132 = vmatpush2.msra.mxu0 0.0
  %7133 = vmatprep.subr.mxu0 0.0
  %7134 = vmatpush2.msra.mxu0 0.0
  %7135 = vmatprep.subr.mxu0 0.0
  %7136 = vmatpush2.msra.mxu0 0.0
  %7137 = vmatprep.subr.mxu0 0.0
  %7138 = vmatpush2.msra.mxu0 0.0
  %7139 = vmatprep.subr.mxu0 0.0
  %7140 = vmatpush2.msra.mxu0 0.0
  %7141 = vmatprep.subr.mxu0 0.0
  %7142 = vmatpush2.msra.mxu0 0.0
  %7143 = vmatprep.subr.mxu0 0.0
  %7144 = vmatpush2.msra.mxu0 0.0
  %7145 = vmatprep.subr.mxu0 0.0
  %7146 = vmatpush2.msra.mxu0 0.0
  %7147 = vmatprep.subr.mxu0 0.0
  %7148 = vmatpush2.msra.mxu0 0.0
  %7149 = vmatprep.subr.mxu0 0.0
  %7150 = vmatpush2.msra.mxu0 0.0
  %7151 = vmatprep.subr.mxu0 0.0
  %7152 = vmatpush2.msra.mxu0 0.0
  %7153 = vmatprep.subr.mxu0 0.0
  %7154 = vmatpush2.msra.mxu0 0.0
  %7155 = vmatprep.subr.mxu0 0.0
  %7156 = vmatpush2.msra.mxu0 0.0
  %7157 = vmatprep.subr.mxu0 0.0
  %7158 = vmatpush2.msra.mxu0 0.0
  %7159 = vmatprep.subr.mxu0 0.0
  %7160 = vmatpush2.msra.mxu0 0.0
  %7161 = vmatprep.mubr.f32.mxu0 0.0
  %v7162 = vand.u32 %v6560, 4294901760
  %7163 = vmatmul.mubr.f32.gmra.mxu0 %v7162
  %v7164 = vpop.f32.mrf.mxu0
  %v7165 = vadd.f32 %v7038, %v7164
  %v7166 = vpop.f32.mrf.mxu0
  %7167 = vmatprep.mubr.f32.mxu0 0.0
  %v7168 = vand.u32 %v6563, 4294901760
  %7169 = vmatmul.mubr.f32.gmra.mxu0 %v7168
  %v7170 = vpop.f32.mrf.mxu0
  %v7171 = vadd.f32 %v7046, %v7170
  %v7172 = vpop.f32.mrf.mxu0
  %7173 = vdwg.mxu0
  %7174 = vmatprep.subr.mxu0 0.0
  %v7175 = vand.u32 %v6582, 4294901760
  %7176 = vmatpush1.msra.mxu0 %v7175
  %7177 = vmatprep.subr.mxu0 0.0
  %v7178 = vand.u32 %v6581, 4294901760
  %7179 = vmatpush1.msra.mxu0 %v7178
  %7180 = vmatprep.subr.mxu0 0.0
  %v7181 = vand.u32 %v6580, 4294901760
  %7182 = vmatpush1.msra.mxu0 %v7181
  %7183 = vmatprep.subr.mxu0 0.0
  %v7184 = vand.u32 %v6579, 4294901760
  %7185 = vmatpush1.msra.mxu0 %v7184
  %7186 = vmatprep.subr.mxu0 0.0
  %v7187 = vand.u32 %v6578, 4294901760
  %7188 = vmatpush1.msra.mxu0 %v7187
  %7189 = vmatprep.subr.mxu0 0.0
  %v7190 = vand.u32 %v6577, 4294901760
  %7191 = vmatpush1.msra.mxu0 %v7190
  %7192 = vmatprep.subr.mxu0 0.0
  %v7193 = vand.u32 %v6576, 4294901760
  %7194 = vmatpush1.msra.mxu0 %v7193
  %7195 = vmatprep.subr.mxu0 0.0
  %v7196 = vand.u32 %v6575, 4294901760
  %7197 = vmatpush1.msra.mxu0 %v7196
  %7198 = vmatprep.subr.mxu0 0.0
  %v7199 = vand.u32 %v6574, 4294901760
  %7200 = vmatpush1.msra.mxu0 %v7199
  %7201 = vmatprep.subr.mxu0 0.0
  %v7202 = vand.u32 %v6573, 4294901760
  %7203 = vmatpush1.msra.mxu0 %v7202
  %7204 = vmatprep.subr.mxu0 0.0
  %v7205 = vand.u32 %v6572, 4294901760
  %7206 = vmatpush1.msra.mxu0 %v7205
  %7207 = vmatprep.subr.mxu0 0.0
  %v7208 = vand.u32 %v6571, 4294901760
  %7209 = vmatpush1.msra.mxu0 %v7208
  %7210 = vmatprep.subr.mxu0 0.0
  %v7211 = vand.u32 %v6570, 4294901760
  %7212 = vmatpush1.msra.mxu0 %v7211
  %7213 = vmatprep.subr.mxu0 0.0
  %v7214 = vand.u32 %v6569, 4294901760
  %7215 = vmatpush1.msra.mxu0 %v7214
  %7216 = vmatprep.subr.mxu0 0.0
  %v7217 = vand.u32 %v6568, 4294901760
  %7218 = vmatpush1.msra.mxu0 %v7217
  %7219 = vmatprep.subr.mxu0 0.0
  %v7220 = vand.u32 %v6567, 4294901760
  %7221 = vmatpush1.msra.mxu0 %v7220
  %7222 = vmatprep.subr.mxu0 0.0
  %7223 = vmatpush2.msra.mxu0 0.0
  %7224 = vmatprep.subr.mxu0 0.0
  %7225 = vmatpush2.msra.mxu0 0.0
  %7226 = vmatprep.subr.mxu0 0.0
  %7227 = vmatpush2.msra.mxu0 0.0
  %7228 = vmatprep.subr.mxu0 0.0
  %7229 = vmatpush2.msra.mxu0 0.0
  %7230 = vmatprep.subr.mxu0 0.0
  %7231 = vmatpush2.msra.mxu0 0.0
  %7232 = vmatprep.subr.mxu0 0.0
  %7233 = vmatpush2.msra.mxu0 0.0
  %7234 = vmatprep.subr.mxu0 0.0
  %7235 = vmatpush2.msra.mxu0 0.0
  %7236 = vmatprep.subr.mxu0 0.0
  %7237 = vmatpush2.msra.mxu0 0.0
  %7238 = vmatprep.subr.mxu0 0.0
  %7239 = vmatpush2.msra.mxu0 0.0
  %7240 = vmatprep.subr.mxu0 0.0
  %7241 = vmatpush2.msra.mxu0 0.0
  %7242 = vmatprep.subr.mxu0 0.0
  %7243 = vmatpush2.msra.mxu0 0.0
  %7244 = vmatprep.subr.mxu0 0.0
  %7245 = vmatpush2.msra.mxu0 0.0
  %7246 = vmatprep.subr.mxu0 0.0
  %7247 = vmatpush2.msra.mxu0 0.0
  %7248 = vmatprep.subr.mxu0 0.0
  %7249 = vmatpush2.msra.mxu0 0.0
  %7250 = vmatprep.subr.mxu0 0.0
  %7251 = vmatpush2.msra.mxu0 0.0
  %7252 = vmatprep.subr.mxu0 0.0
  %7253 = vmatpush2.msra.mxu0 0.0
  %7254 = vmatprep.mubr.f32.mxu0 0.0
  %v7255 = vand.u32 %v6560, 4294901760
  %7256 = vmatmul.mubr.f32.gmra.mxu0 %v7255
  %v7257 = vpop.f32.mrf.mxu0
  %v7258 = vadd.f32 %v7165, %v7257
  %v7259 = vpop.f32.mrf.mxu0
  %7260 = vmatprep.mubr.f32.mxu0 0.0
  %v7261 = vand.u32 %v6563, 4294901760
  %7262 = vmatmul.mubr.f32.gmra.mxu0 %v7261
  %v7263 = vpop.f32.mrf.mxu0
  %v7264 = vadd.f32 %v7171, %v7263
  %v7265 = vpop.f32.mrf.mxu0
  %7266 = vdwg.mxu0
  %v7267 = vadd.f32 %v6549, %v7258
  %v7268 = vadd.f32 %v6555, %v7264
  %v7270 = vlaneseq
  %v7271 = vshrl.u32 %v7270, 7
  %v7272 = vsub.s32 0, %v7271
  %v7273 = vrot.slane %v5143, %v7272
  %v7275 = vadd.f32 %v7267, %v7273
  %v7276 = vadd.f32 %v7268, %v7273
  %v7277 = vadd.f32 %v7275, %v2983
  %v7278 = vadd.f32 %v7276, %v2984
  %v7279 = vmax.f32 %v7277, 0.0
  %v7280 = vmax.f32 %v7278, 0.0
  %v7283 = vrot.slane %v7279, 7
  %v7284 = vrot.slane %v7280, 7
  %v7287 = vsel %vm2547, 0.0, %v7283
  %v7288 = vsel %vm2547, 0.0, %v7284
  %v7289 = vsel %vm2547, %v7283, 0.0
  %v7290 = vsel %vm2547, %v7284, 0.0
  %s7291 = scalar_lea.vmem %s4, 2
  %v7292 = vld [vmem:[%s7291] sm:$0x1]
  %s7293 = scalar_lea.vmem %s3, 768
  %v7294 = vld [vmem:[%s7293] sm:$0xff]
  %v7295 = vld [vmem:[%s7293 + $0x8] sm:$0xff]
  %v7296 = vld [vmem:[%s7293 + $0x10] sm:$0xff]
  %v7297 = vld [vmem:[%s7293 + $0x18] sm:$0xff]
  %v7298 = vld [vmem:[%s7293 + $0x20] sm:$0xff]
  %v7299 = vld [vmem:[%s7293 + $0x28] sm:$0xff]
  %v7300 = vld [vmem:[%s7293 + $0x30] sm:$0xff]
  %v7301 = vld [vmem:[%s7293 + $0x38] sm:$0xff]
  %v7302 = vld [vmem:[%s7293 + $0x40] sm:$0xff]
  %v7303 = vld [vmem:[%s7293 + $0x48] sm:$0xff]
  %v7304 = vld [vmem:[%s7293 + $0x50] sm:$0xff]
  %v7305 = vld [vmem:[%s7293 + $0x58] sm:$0xff]
  %v7306 = vld [vmem:[%s7293 + $0x60] sm:$0xff]
  %v7307 = vld [vmem:[%s7293 + $0x68] sm:$0xff]
  %v7308 = vld [vmem:[%s7293 + $0x70] sm:$0xff]
  %v7309 = vld [vmem:[%s7293 + $0x78] sm:$0xff]
  %v7314 = vrot.slane %v7287, 1
  %v7315 = vrot.slane %v7289, 1
  %v7316 = vsel %vm49, %v7314, %v7315
  %v7317 = vrot.slane %v7288, 1
  %v7318 = vrot.slane %v7290, 1
  %v7319 = vsel %vm49, %v7317, %v7318
  %s7322 = scalar_lea.vmem %s3, 896
  %v7323 = vld [vmem:[%s7322] sm:$0xff]
  %v7324 = vld [vmem:[%s7322 + $0x8] sm:$0xff]
  %v7325 = vld [vmem:[%s7322 + $0x10] sm:$0xff]
  %v7326 = vld [vmem:[%s7322 + $0x18] sm:$0xff]
  %v7327 = vld [vmem:[%s7322 + $0x20] sm:$0xff]
  %v7328 = vld [vmem:[%s7322 + $0x28] sm:$0xff]
  %v7329 = vld [vmem:[%s7322 + $0x30] sm:$0xff]
  %v7330 = vld [vmem:[%s7322 + $0x38] sm:$0xff]
  %v7331 = vld [vmem:[%s7322 + $0x40] sm:$0xff]
  %v7332 = vld [vmem:[%s7322 + $0x48] sm:$0xff]
  %v7333 = vld [vmem:[%s7322 + $0x50] sm:$0xff]
  %v7334 = vld [vmem:[%s7322 + $0x58] sm:$0xff]
  %v7335 = vld [vmem:[%s7322 + $0x60] sm:$0xff]
  %v7336 = vld [vmem:[%s7322 + $0x68] sm:$0xff]
  %v7337 = vld [vmem:[%s7322 + $0x70] sm:$0xff]
  %v7338 = vld [vmem:[%s7322 + $0x78] sm:$0xff]
  %7339 = vmatprep.subr.mxu0 0.0
  %v7340 = vand.u32 %v7338, 4294901760
  %7341 = vmatpush1.msra.mxu0 %v7340
  %7342 = vmatprep.subr.mxu0 0.0
  %v7343 = vand.u32 %v7337, 4294901760
  %7344 = vmatpush1.msra.mxu0 %v7343
  %7345 = vmatprep.subr.mxu0 0.0
  %v7346 = vand.u32 %v7336, 4294901760
  %7347 = vmatpush1.msra.mxu0 %v7346
  %7348 = vmatprep.subr.mxu0 0.0
  %v7349 = vand.u32 %v7335, 4294901760
  %7350 = vmatpush1.msra.mxu0 %v7349
  %7351 = vmatprep.subr.mxu0 0.0
  %v7352 = vand.u32 %v7334, 4294901760
  %7353 = vmatpush1.msra.mxu0 %v7352
  %7354 = vmatprep.subr.mxu0 0.0
  %v7355 = vand.u32 %v7333, 4294901760
  %7356 = vmatpush1.msra.mxu0 %v7355
  %7357 = vmatprep.subr.mxu0 0.0
  %v7358 = vand.u32 %v7332, 4294901760
  %7359 = vmatpush1.msra.mxu0 %v7358
  %7360 = vmatprep.subr.mxu0 0.0
  %v7361 = vand.u32 %v7331, 4294901760
  %7362 = vmatpush1.msra.mxu0 %v7361
  %7363 = vmatprep.subr.mxu0 0.0
  %v7364 = vand.u32 %v7330, 4294901760
  %7365 = vmatpush1.msra.mxu0 %v7364
  %7366 = vmatprep.subr.mxu0 0.0
  %v7367 = vand.u32 %v7329, 4294901760
  %7368 = vmatpush1.msra.mxu0 %v7367
  %7369 = vmatprep.subr.mxu0 0.0
  %v7370 = vand.u32 %v7328, 4294901760
  %7371 = vmatpush1.msra.mxu0 %v7370
  %7372 = vmatprep.subr.mxu0 0.0
  %v7373 = vand.u32 %v7327, 4294901760
  %7374 = vmatpush1.msra.mxu0 %v7373
  %7375 = vmatprep.subr.mxu0 0.0
  %v7376 = vand.u32 %v7326, 4294901760
  %7377 = vmatpush1.msra.mxu0 %v7376
  %7378 = vmatprep.subr.mxu0 0.0
  %v7379 = vand.u32 %v7325, 4294901760
  %7380 = vmatpush1.msra.mxu0 %v7379
  %7381 = vmatprep.subr.mxu0 0.0
  %v7382 = vand.u32 %v7324, 4294901760
  %7383 = vmatpush1.msra.mxu0 %v7382
  %7384 = vmatprep.subr.mxu0 0.0
  %v7385 = vand.u32 %v7323, 4294901760
  %7386 = vmatpush1.msra.mxu0 %v7385
  %7387 = vmatprep.subr.mxu0 0.0
  %7388 = vmatpush2.msra.mxu0 0.0
  %7389 = vmatprep.subr.mxu0 0.0
  %7390 = vmatpush2.msra.mxu0 0.0
  %7391 = vmatprep.subr.mxu0 0.0
  %7392 = vmatpush2.msra.mxu0 0.0
  %7393 = vmatprep.subr.mxu0 0.0
  %7394 = vmatpush2.msra.mxu0 0.0
  %7395 = vmatprep.subr.mxu0 0.0
  %7396 = vmatpush2.msra.mxu0 0.0
  %7397 = vmatprep.subr.mxu0 0.0
  %7398 = vmatpush2.msra.mxu0 0.0
  %7399 = vmatprep.subr.mxu0 0.0
  %7400 = vmatpush2.msra.mxu0 0.0
  %7401 = vmatprep.subr.mxu0 0.0
  %7402 = vmatpush2.msra.mxu0 0.0
  %7403 = vmatprep.subr.mxu0 0.0
  %7404 = vmatpush2.msra.mxu0 0.0
  %7405 = vmatprep.subr.mxu0 0.0
  %7406 = vmatpush2.msra.mxu0 0.0
  %7407 = vmatprep.subr.mxu0 0.0
  %7408 = vmatpush2.msra.mxu0 0.0
  %7409 = vmatprep.subr.mxu0 0.0
  %7410 = vmatpush2.msra.mxu0 0.0
  %7411 = vmatprep.subr.mxu0 0.0
  %7412 = vmatpush2.msra.mxu0 0.0
  %7413 = vmatprep.subr.mxu0 0.0
  %7414 = vmatpush2.msra.mxu0 0.0
  %7415 = vmatprep.subr.mxu0 0.0
  %7416 = vmatpush2.msra.mxu0 0.0
  %7417 = vmatprep.subr.mxu0 0.0
  %7418 = vmatpush2.msra.mxu0 0.0
  %7419 = vmatprep.mubr.f32.mxu0 0.0
  %v7420 = vand.u32 %v7316, 4294901760
  %v7421 = vsub.f32 %v7316, %v7420
  %v7422 = vand.u32 %v7421, 4294901760
  %v7423 = vsub.f32 %v7421, %v7422
  %v7424 = vand.u32 %v7423, 4294901760
  %7425 = vmatmul.mubr.f32.gmra.mxu0 %v7424
  %v7426 = vpop.f32.mrf.mxu0
  %v7427 = vadd.f32 0.0, %v7426
  %v7428 = vpop.f32.mrf.mxu0
  %7429 = vmatprep.mubr.f32.mxu0 0.0
  %v7430 = vand.u32 %v7319, 4294901760
  %v7431 = vsub.f32 %v7319, %v7430
  %v7432 = vand.u32 %v7431, 4294901760
  %v7433 = vsub.f32 %v7431, %v7432
  %v7434 = vand.u32 %v7433, 4294901760
  %7435 = vmatmul.mubr.f32.gmra.mxu0 %v7434
  %v7436 = vpop.f32.mrf.mxu0
  %v7437 = vadd.f32 0.0, %v7436
  %v7438 = vpop.f32.mrf.mxu0
  %7439 = vdwg.mxu0
  %7440 = vmatprep.subr.mxu0 0.0
  %v7441 = vand.u32 %v7338, 4294901760
  %v7442 = vsub.f32 %v7338, %v7441
  %v7443 = vand.u32 %v7442, 4294901760
  %v7444 = vsub.f32 %v7442, %v7443
  %v7445 = vand.u32 %v7444, 4294901760
  %7446 = vmatpush1.msra.mxu0 %v7445
  %7447 = vmatprep.subr.mxu0 0.0
  %v7448 = vand.u32 %v7337, 4294901760
  %v7449 = vsub.f32 %v7337, %v7448
  %v7450 = vand.u32 %v7449, 4294901760
  %v7451 = vsub.f32 %v7449, %v7450
  %v7452 = vand.u32 %v7451, 4294901760
  %7453 = vmatpush1.msra.mxu0 %v7452
  %7454 = vmatprep.subr.mxu0 0.0
  %v7455 = vand.u32 %v7336, 4294901760
  %v7456 = vsub.f32 %v7336, %v7455
  %v7457 = vand.u32 %v7456, 4294901760
  %v7458 = vsub.f32 %v7456, %v7457
  %v7459 = vand.u32 %v7458, 4294901760
  %7460 = vmatpush1.msra.mxu0 %v7459
  %7461 = vmatprep.subr.mxu0 0.0
  %v7462 = vand.u32 %v7335, 4294901760
  %v7463 = vsub.f32 %v7335, %v7462
  %v7464 = vand.u32 %v7463, 4294901760
  %v7465 = vsub.f32 %v7463, %v7464
  %v7466 = vand.u32 %v7465, 4294901760
  %7467 = vmatpush1.msra.mxu0 %v7466
  %7468 = vmatprep.subr.mxu0 0.0
  %v7469 = vand.u32 %v7334, 4294901760
  %v7470 = vsub.f32 %v7334, %v7469
  %v7471 = vand.u32 %v7470, 4294901760
  %v7472 = vsub.f32 %v7470, %v7471
  %v7473 = vand.u32 %v7472, 4294901760
  %7474 = vmatpush1.msra.mxu0 %v7473
  %7475 = vmatprep.subr.mxu0 0.0
  %v7476 = vand.u32 %v7333, 4294901760
  %v7477 = vsub.f32 %v7333, %v7476
  %v7478 = vand.u32 %v7477, 4294901760
  %v7479 = vsub.f32 %v7477, %v7478
  %v7480 = vand.u32 %v7479, 4294901760
  %7481 = vmatpush1.msra.mxu0 %v7480
  %7482 = vmatprep.subr.mxu0 0.0
  %v7483 = vand.u32 %v7332, 4294901760
  %v7484 = vsub.f32 %v7332, %v7483
  %v7485 = vand.u32 %v7484, 4294901760
  %v7486 = vsub.f32 %v7484, %v7485
  %v7487 = vand.u32 %v7486, 4294901760
  %7488 = vmatpush1.msra.mxu0 %v7487
  %7489 = vmatprep.subr.mxu0 0.0
  %v7490 = vand.u32 %v7331, 4294901760
  %v7491 = vsub.f32 %v7331, %v7490
  %v7492 = vand.u32 %v7491, 4294901760
  %v7493 = vsub.f32 %v7491, %v7492
  %v7494 = vand.u32 %v7493, 4294901760
  %7495 = vmatpush1.msra.mxu0 %v7494
  %7496 = vmatprep.subr.mxu0 0.0
  %v7497 = vand.u32 %v7330, 4294901760
  %v7498 = vsub.f32 %v7330, %v7497
  %v7499 = vand.u32 %v7498, 4294901760
  %v7500 = vsub.f32 %v7498, %v7499
  %v7501 = vand.u32 %v7500, 4294901760
  %7502 = vmatpush1.msra.mxu0 %v7501
  %7503 = vmatprep.subr.mxu0 0.0
  %v7504 = vand.u32 %v7329, 4294901760
  %v7505 = vsub.f32 %v7329, %v7504
  %v7506 = vand.u32 %v7505, 4294901760
  %v7507 = vsub.f32 %v7505, %v7506
  %v7508 = vand.u32 %v7507, 4294901760
  %7509 = vmatpush1.msra.mxu0 %v7508
  %7510 = vmatprep.subr.mxu0 0.0
  %v7511 = vand.u32 %v7328, 4294901760
  %v7512 = vsub.f32 %v7328, %v7511
  %v7513 = vand.u32 %v7512, 4294901760
  %v7514 = vsub.f32 %v7512, %v7513
  %v7515 = vand.u32 %v7514, 4294901760
  %7516 = vmatpush1.msra.mxu0 %v7515
  %7517 = vmatprep.subr.mxu0 0.0
  %v7518 = vand.u32 %v7327, 4294901760
  %v7519 = vsub.f32 %v7327, %v7518
  %v7520 = vand.u32 %v7519, 4294901760
  %v7521 = vsub.f32 %v7519, %v7520
  %v7522 = vand.u32 %v7521, 4294901760
  %7523 = vmatpush1.msra.mxu0 %v7522
  %7524 = vmatprep.subr.mxu0 0.0
  %v7525 = vand.u32 %v7326, 4294901760
  %v7526 = vsub.f32 %v7326, %v7525
  %v7527 = vand.u32 %v7526, 4294901760
  %v7528 = vsub.f32 %v7526, %v7527
  %v7529 = vand.u32 %v7528, 4294901760
  %7530 = vmatpush1.msra.mxu0 %v7529
  %7531 = vmatprep.subr.mxu0 0.0
  %v7532 = vand.u32 %v7325, 4294901760
  %v7533 = vsub.f32 %v7325, %v7532
  %v7534 = vand.u32 %v7533, 4294901760
  %v7535 = vsub.f32 %v7533, %v7534
  %v7536 = vand.u32 %v7535, 4294901760
  %7537 = vmatpush1.msra.mxu0 %v7536
  %7538 = vmatprep.subr.mxu0 0.0
  %v7539 = vand.u32 %v7324, 4294901760
  %v7540 = vsub.f32 %v7324, %v7539
  %v7541 = vand.u32 %v7540, 4294901760
  %v7542 = vsub.f32 %v7540, %v7541
  %v7543 = vand.u32 %v7542, 4294901760
  %7544 = vmatpush1.msra.mxu0 %v7543
  %7545 = vmatprep.subr.mxu0 0.0
  %v7546 = vand.u32 %v7323, 4294901760
  %v7547 = vsub.f32 %v7323, %v7546
  %v7548 = vand.u32 %v7547, 4294901760
  %v7549 = vsub.f32 %v7547, %v7548
  %v7550 = vand.u32 %v7549, 4294901760
  %7551 = vmatpush1.msra.mxu0 %v7550
  %7552 = vmatprep.subr.mxu0 0.0
  %7553 = vmatpush2.msra.mxu0 0.0
  %7554 = vmatprep.subr.mxu0 0.0
  %7555 = vmatpush2.msra.mxu0 0.0
  %7556 = vmatprep.subr.mxu0 0.0
  %7557 = vmatpush2.msra.mxu0 0.0
  %7558 = vmatprep.subr.mxu0 0.0
  %7559 = vmatpush2.msra.mxu0 0.0
  %7560 = vmatprep.subr.mxu0 0.0
  %7561 = vmatpush2.msra.mxu0 0.0
  %7562 = vmatprep.subr.mxu0 0.0
  %7563 = vmatpush2.msra.mxu0 0.0
  %7564 = vmatprep.subr.mxu0 0.0
  %7565 = vmatpush2.msra.mxu0 0.0
  %7566 = vmatprep.subr.mxu0 0.0
  %7567 = vmatpush2.msra.mxu0 0.0
  %7568 = vmatprep.subr.mxu0 0.0
  %7569 = vmatpush2.msra.mxu0 0.0
  %7570 = vmatprep.subr.mxu0 0.0
  %7571 = vmatpush2.msra.mxu0 0.0
  %7572 = vmatprep.subr.mxu0 0.0
  %7573 = vmatpush2.msra.mxu0 0.0
  %7574 = vmatprep.subr.mxu0 0.0
  %7575 = vmatpush2.msra.mxu0 0.0
  %7576 = vmatprep.subr.mxu0 0.0
  %7577 = vmatpush2.msra.mxu0 0.0
  %7578 = vmatprep.subr.mxu0 0.0
  %7579 = vmatpush2.msra.mxu0 0.0
  %7580 = vmatprep.subr.mxu0 0.0
  %7581 = vmatpush2.msra.mxu0 0.0
  %7582 = vmatprep.subr.mxu0 0.0
  %7583 = vmatpush2.msra.mxu0 0.0
  %7584 = vmatprep.mubr.f32.mxu0 0.0
  %v7585 = vand.u32 %v7316, 4294901760
  %7586 = vmatmul.mubr.f32.gmra.mxu0 %v7585
  %v7587 = vpop.f32.mrf.mxu0
  %v7588 = vadd.f32 %v7427, %v7587
  %v7589 = vpop.f32.mrf.mxu0
  %7590 = vmatprep.mubr.f32.mxu0 0.0
  %v7591 = vand.u32 %v7319, 4294901760
  %7592 = vmatmul.mubr.f32.gmra.mxu0 %v7591
  %v7593 = vpop.f32.mrf.mxu0
  %v7594 = vadd.f32 %v7437, %v7593
  %v7595 = vpop.f32.mrf.mxu0
  %7596 = vdwg.mxu0
  %7597 = vmatprep.subr.mxu0 0.0
  %v7598 = vand.u32 %v7338, 4294901760
  %v7599 = vsub.f32 %v7338, %v7598
  %7600 = vmatpush1.msra.mxu0 %v7599
  %7601 = vmatprep.subr.mxu0 0.0
  %v7602 = vand.u32 %v7337, 4294901760
  %v7603 = vsub.f32 %v7337, %v7602
  %7604 = vmatpush1.msra.mxu0 %v7603
  %7605 = vmatprep.subr.mxu0 0.0
  %v7606 = vand.u32 %v7336, 4294901760
  %v7607 = vsub.f32 %v7336, %v7606
  %7608 = vmatpush1.msra.mxu0 %v7607
  %7609 = vmatprep.subr.mxu0 0.0
  %v7610 = vand.u32 %v7335, 4294901760
  %v7611 = vsub.f32 %v7335, %v7610
  %7612 = vmatpush1.msra.mxu0 %v7611
  %7613 = vmatprep.subr.mxu0 0.0
  %v7614 = vand.u32 %v7334, 4294901760
  %v7615 = vsub.f32 %v7334, %v7614
  %7616 = vmatpush1.msra.mxu0 %v7615
  %7617 = vmatprep.subr.mxu0 0.0
  %v7618 = vand.u32 %v7333, 4294901760
  %v7619 = vsub.f32 %v7333, %v7618
  %7620 = vmatpush1.msra.mxu0 %v7619
  %7621 = vmatprep.subr.mxu0 0.0
  %v7622 = vand.u32 %v7332, 4294901760
  %v7623 = vsub.f32 %v7332, %v7622
  %7624 = vmatpush1.msra.mxu0 %v7623
  %7625 = vmatprep.subr.mxu0 0.0
  %v7626 = vand.u32 %v7331, 4294901760
  %v7627 = vsub.f32 %v7331, %v7626
  %7628 = vmatpush1.msra.mxu0 %v7627
  %7629 = vmatprep.subr.mxu0 0.0
  %v7630 = vand.u32 %v7330, 4294901760
  %v7631 = vsub.f32 %v7330, %v7630
  %7632 = vmatpush1.msra.mxu0 %v7631
  %7633 = vmatprep.subr.mxu0 0.0
  %v7634 = vand.u32 %v7329, 4294901760
  %v7635 = vsub.f32 %v7329, %v7634
  %7636 = vmatpush1.msra.mxu0 %v7635
  %7637 = vmatprep.subr.mxu0 0.0
  %v7638 = vand.u32 %v7328, 4294901760
  %v7639 = vsub.f32 %v7328, %v7638
  %7640 = vmatpush1.msra.mxu0 %v7639
  %7641 = vmatprep.subr.mxu0 0.0
  %v7642 = vand.u32 %v7327, 4294901760
  %v7643 = vsub.f32 %v7327, %v7642
  %7644 = vmatpush1.msra.mxu0 %v7643
  %7645 = vmatprep.subr.mxu0 0.0
  %v7646 = vand.u32 %v7326, 4294901760
  %v7647 = vsub.f32 %v7326, %v7646
  %7648 = vmatpush1.msra.mxu0 %v7647
  %7649 = vmatprep.subr.mxu0 0.0
  %v7650 = vand.u32 %v7325, 4294901760
  %v7651 = vsub.f32 %v7325, %v7650
  %7652 = vmatpush1.msra.mxu0 %v7651
  %7653 = vmatprep.subr.mxu0 0.0
  %v7654 = vand.u32 %v7324, 4294901760
  %v7655 = vsub.f32 %v7324, %v7654
  %7656 = vmatpush1.msra.mxu0 %v7655
  %7657 = vmatprep.subr.mxu0 0.0
  %v7658 = vand.u32 %v7323, 4294901760
  %v7659 = vsub.f32 %v7323, %v7658
  %7660 = vmatpush1.msra.mxu0 %v7659
  %7661 = vmatprep.subr.mxu0 0.0
  %7662 = vmatpush2.msra.mxu0 0.0
  %7663 = vmatprep.subr.mxu0 0.0
  %7664 = vmatpush2.msra.mxu0 0.0
  %7665 = vmatprep.subr.mxu0 0.0
  %7666 = vmatpush2.msra.mxu0 0.0
  %7667 = vmatprep.subr.mxu0 0.0
  %7668 = vmatpush2.msra.mxu0 0.0
  %7669 = vmatprep.subr.mxu0 0.0
  %7670 = vmatpush2.msra.mxu0 0.0
  %7671 = vmatprep.subr.mxu0 0.0
  %7672 = vmatpush2.msra.mxu0 0.0
  %7673 = vmatprep.subr.mxu0 0.0
  %7674 = vmatpush2.msra.mxu0 0.0
  %7675 = vmatprep.subr.mxu0 0.0
  %7676 = vmatpush2.msra.mxu0 0.0
  %7677 = vmatprep.subr.mxu0 0.0
  %7678 = vmatpush2.msra.mxu0 0.0
  %7679 = vmatprep.subr.mxu0 0.0
  %7680 = vmatpush2.msra.mxu0 0.0
  %7681 = vmatprep.subr.mxu0 0.0
  %7682 = vmatpush2.msra.mxu0 0.0
  %7683 = vmatprep.subr.mxu0 0.0
  %7684 = vmatpush2.msra.mxu0 0.0
  %7685 = vmatprep.subr.mxu0 0.0
  %7686 = vmatpush2.msra.mxu0 0.0
  %7687 = vmatprep.subr.mxu0 0.0
  %7688 = vmatpush2.msra.mxu0 0.0
  %7689 = vmatprep.subr.mxu0 0.0
  %7690 = vmatpush2.msra.mxu0 0.0
  %7691 = vmatprep.subr.mxu0 0.0
  %7692 = vmatpush2.msra.mxu0 0.0
  %7693 = vmatprep.mubr.f32.mxu0 0.0
  %v7694 = vand.u32 %v7316, 4294901760
  %v7695 = vsub.f32 %v7316, %v7694
  %7696 = vmatmul.mubr.f32.gmra.mxu0 %v7695
  %v7697 = vpop.f32.mrf.mxu0
  %v7698 = vadd.f32 %v7588, %v7697
  %v7699 = vpop.f32.mrf.mxu0
  %7700 = vmatprep.mubr.f32.mxu0 0.0
  %v7701 = vand.u32 %v7319, 4294901760
  %v7702 = vsub.f32 %v7319, %v7701
  %7703 = vmatmul.mubr.f32.gmra.mxu0 %v7702
  %v7704 = vpop.f32.mrf.mxu0
  %v7705 = vadd.f32 %v7594, %v7704
  %v7706 = vpop.f32.mrf.mxu0
  %7707 = vdwg.mxu0
  %7708 = vmatprep.subr.mxu0 0.0
  %v7709 = vand.u32 %v7338, 4294901760
  %7710 = vmatpush1.msra.mxu0 %v7709
  %7711 = vmatprep.subr.mxu0 0.0
  %v7712 = vand.u32 %v7337, 4294901760
  %7713 = vmatpush1.msra.mxu0 %v7712
  %7714 = vmatprep.subr.mxu0 0.0
  %v7715 = vand.u32 %v7336, 4294901760
  %7716 = vmatpush1.msra.mxu0 %v7715
  %7717 = vmatprep.subr.mxu0 0.0
  %v7718 = vand.u32 %v7335, 4294901760
  %7719 = vmatpush1.msra.mxu0 %v7718
  %7720 = vmatprep.subr.mxu0 0.0
  %v7721 = vand.u32 %v7334, 4294901760
  %7722 = vmatpush1.msra.mxu0 %v7721
  %7723 = vmatprep.subr.mxu0 0.0
  %v7724 = vand.u32 %v7333, 4294901760
  %7725 = vmatpush1.msra.mxu0 %v7724
  %7726 = vmatprep.subr.mxu0 0.0
  %v7727 = vand.u32 %v7332, 4294901760
  %7728 = vmatpush1.msra.mxu0 %v7727
  %7729 = vmatprep.subr.mxu0 0.0
  %v7730 = vand.u32 %v7331, 4294901760
  %7731 = vmatpush1.msra.mxu0 %v7730
  %7732 = vmatprep.subr.mxu0 0.0
  %v7733 = vand.u32 %v7330, 4294901760
  %7734 = vmatpush1.msra.mxu0 %v7733
  %7735 = vmatprep.subr.mxu0 0.0
  %v7736 = vand.u32 %v7329, 4294901760
  %7737 = vmatpush1.msra.mxu0 %v7736
  %7738 = vmatprep.subr.mxu0 0.0
  %v7739 = vand.u32 %v7328, 4294901760
  %7740 = vmatpush1.msra.mxu0 %v7739
  %7741 = vmatprep.subr.mxu0 0.0
  %v7742 = vand.u32 %v7327, 4294901760
  %7743 = vmatpush1.msra.mxu0 %v7742
  %7744 = vmatprep.subr.mxu0 0.0
  %v7745 = vand.u32 %v7326, 4294901760
  %7746 = vmatpush1.msra.mxu0 %v7745
  %7747 = vmatprep.subr.mxu0 0.0
  %v7748 = vand.u32 %v7325, 4294901760
  %7749 = vmatpush1.msra.mxu0 %v7748
  %7750 = vmatprep.subr.mxu0 0.0
  %v7751 = vand.u32 %v7324, 4294901760
  %7752 = vmatpush1.msra.mxu0 %v7751
  %7753 = vmatprep.subr.mxu0 0.0
  %v7754 = vand.u32 %v7323, 4294901760
  %7755 = vmatpush1.msra.mxu0 %v7754
  %7756 = vmatprep.subr.mxu0 0.0
  %7757 = vmatpush2.msra.mxu0 0.0
  %7758 = vmatprep.subr.mxu0 0.0
  %7759 = vmatpush2.msra.mxu0 0.0
  %7760 = vmatprep.subr.mxu0 0.0
  %7761 = vmatpush2.msra.mxu0 0.0
  %7762 = vmatprep.subr.mxu0 0.0
  %7763 = vmatpush2.msra.mxu0 0.0
  %7764 = vmatprep.subr.mxu0 0.0
  %7765 = vmatpush2.msra.mxu0 0.0
  %7766 = vmatprep.subr.mxu0 0.0
  %7767 = vmatpush2.msra.mxu0 0.0
  %7768 = vmatprep.subr.mxu0 0.0
  %7769 = vmatpush2.msra.mxu0 0.0
  %7770 = vmatprep.subr.mxu0 0.0
  %7771 = vmatpush2.msra.mxu0 0.0
  %7772 = vmatprep.subr.mxu0 0.0
  %7773 = vmatpush2.msra.mxu0 0.0
  %7774 = vmatprep.subr.mxu0 0.0
  %7775 = vmatpush2.msra.mxu0 0.0
  %7776 = vmatprep.subr.mxu0 0.0
  %7777 = vmatpush2.msra.mxu0 0.0
  %7778 = vmatprep.subr.mxu0 0.0
  %7779 = vmatpush2.msra.mxu0 0.0
  %7780 = vmatprep.subr.mxu0 0.0
  %7781 = vmatpush2.msra.mxu0 0.0
  %7782 = vmatprep.subr.mxu0 0.0
  %7783 = vmatpush2.msra.mxu0 0.0
  %7784 = vmatprep.subr.mxu0 0.0
  %7785 = vmatpush2.msra.mxu0 0.0
  %7786 = vmatprep.subr.mxu0 0.0
  %7787 = vmatpush2.msra.mxu0 0.0
  %7788 = vmatprep.mubr.f32.mxu0 0.0
  %v7789 = vand.u32 %v7316, 4294901760
  %v7790 = vsub.f32 %v7316, %v7789
  %v7791 = vand.u32 %v7790, 4294901760
  %7792 = vmatmul.mubr.f32.gmra.mxu0 %v7791
  %v7793 = vpop.f32.mrf.mxu0
  %v7794 = vadd.f32 %v7698, %v7793
  %v7795 = vpop.f32.mrf.mxu0
  %7796 = vmatprep.mubr.f32.mxu0 0.0
  %v7797 = vand.u32 %v7319, 4294901760
  %v7798 = vsub.f32 %v7319, %v7797
  %v7799 = vand.u32 %v7798, 4294901760
  %7800 = vmatmul.mubr.f32.gmra.mxu0 %v7799
  %v7801 = vpop.f32.mrf.mxu0
  %v7802 = vadd.f32 %v7705, %v7801
  %v7803 = vpop.f32.mrf.mxu0
  %7804 = vdwg.mxu0
  %7805 = vmatprep.subr.mxu0 0.0
  %v7806 = vand.u32 %v7338, 4294901760
  %v7807 = vsub.f32 %v7338, %v7806
  %v7808 = vand.u32 %v7807, 4294901760
  %7809 = vmatpush1.msra.mxu0 %v7808
  %7810 = vmatprep.subr.mxu0 0.0
  %v7811 = vand.u32 %v7337, 4294901760
  %v7812 = vsub.f32 %v7337, %v7811
  %v7813 = vand.u32 %v7812, 4294901760
  %7814 = vmatpush1.msra.mxu0 %v7813
  %7815 = vmatprep.subr.mxu0 0.0
  %v7816 = vand.u32 %v7336, 4294901760
  %v7817 = vsub.f32 %v7336, %v7816
  %v7818 = vand.u32 %v7817, 4294901760
  %7819 = vmatpush1.msra.mxu0 %v7818
  %7820 = vmatprep.subr.mxu0 0.0
  %v7821 = vand.u32 %v7335, 4294901760
  %v7822 = vsub.f32 %v7335, %v7821
  %v7823 = vand.u32 %v7822, 4294901760
  %7824 = vmatpush1.msra.mxu0 %v7823
  %7825 = vmatprep.subr.mxu0 0.0
  %v7826 = vand.u32 %v7334, 4294901760
  %v7827 = vsub.f32 %v7334, %v7826
  %v7828 = vand.u32 %v7827, 4294901760
  %7829 = vmatpush1.msra.mxu0 %v7828
  %7830 = vmatprep.subr.mxu0 0.0
  %v7831 = vand.u32 %v7333, 4294901760
  %v7832 = vsub.f32 %v7333, %v7831
  %v7833 = vand.u32 %v7832, 4294901760
  %7834 = vmatpush1.msra.mxu0 %v7833
  %7835 = vmatprep.subr.mxu0 0.0
  %v7836 = vand.u32 %v7332, 4294901760
  %v7837 = vsub.f32 %v7332, %v7836
  %v7838 = vand.u32 %v7837, 4294901760
  %7839 = vmatpush1.msra.mxu0 %v7838
  %7840 = vmatprep.subr.mxu0 0.0
  %v7841 = vand.u32 %v7331, 4294901760
  %v7842 = vsub.f32 %v7331, %v7841
  %v7843 = vand.u32 %v7842, 4294901760
  %7844 = vmatpush1.msra.mxu0 %v7843
  %7845 = vmatprep.subr.mxu0 0.0
  %v7846 = vand.u32 %v7330, 4294901760
  %v7847 = vsub.f32 %v7330, %v7846
  %v7848 = vand.u32 %v7847, 4294901760
  %7849 = vmatpush1.msra.mxu0 %v7848
  %7850 = vmatprep.subr.mxu0 0.0
  %v7851 = vand.u32 %v7329, 4294901760
  %v7852 = vsub.f32 %v7329, %v7851
  %v7853 = vand.u32 %v7852, 4294901760
  %7854 = vmatpush1.msra.mxu0 %v7853
  %7855 = vmatprep.subr.mxu0 0.0
  %v7856 = vand.u32 %v7328, 4294901760
  %v7857 = vsub.f32 %v7328, %v7856
  %v7858 = vand.u32 %v7857, 4294901760
  %7859 = vmatpush1.msra.mxu0 %v7858
  %7860 = vmatprep.subr.mxu0 0.0
  %v7861 = vand.u32 %v7327, 4294901760
  %v7862 = vsub.f32 %v7327, %v7861
  %v7863 = vand.u32 %v7862, 4294901760
  %7864 = vmatpush1.msra.mxu0 %v7863
  %7865 = vmatprep.subr.mxu0 0.0
  %v7866 = vand.u32 %v7326, 4294901760
  %v7867 = vsub.f32 %v7326, %v7866
  %v7868 = vand.u32 %v7867, 4294901760
  %7869 = vmatpush1.msra.mxu0 %v7868
  %7870 = vmatprep.subr.mxu0 0.0
  %v7871 = vand.u32 %v7325, 4294901760
  %v7872 = vsub.f32 %v7325, %v7871
  %v7873 = vand.u32 %v7872, 4294901760
  %7874 = vmatpush1.msra.mxu0 %v7873
  %7875 = vmatprep.subr.mxu0 0.0
  %v7876 = vand.u32 %v7324, 4294901760
  %v7877 = vsub.f32 %v7324, %v7876
  %v7878 = vand.u32 %v7877, 4294901760
  %7879 = vmatpush1.msra.mxu0 %v7878
  %7880 = vmatprep.subr.mxu0 0.0
  %v7881 = vand.u32 %v7323, 4294901760
  %v7882 = vsub.f32 %v7323, %v7881
  %v7883 = vand.u32 %v7882, 4294901760
  %7884 = vmatpush1.msra.mxu0 %v7883
  %7885 = vmatprep.subr.mxu0 0.0
  %7886 = vmatpush2.msra.mxu0 0.0
  %7887 = vmatprep.subr.mxu0 0.0
  %7888 = vmatpush2.msra.mxu0 0.0
  %7889 = vmatprep.subr.mxu0 0.0
  %7890 = vmatpush2.msra.mxu0 0.0
  %7891 = vmatprep.subr.mxu0 0.0
  %7892 = vmatpush2.msra.mxu0 0.0
  %7893 = vmatprep.subr.mxu0 0.0
  %7894 = vmatpush2.msra.mxu0 0.0
  %7895 = vmatprep.subr.mxu0 0.0
  %7896 = vmatpush2.msra.mxu0 0.0
  %7897 = vmatprep.subr.mxu0 0.0
  %7898 = vmatpush2.msra.mxu0 0.0
  %7899 = vmatprep.subr.mxu0 0.0
  %7900 = vmatpush2.msra.mxu0 0.0
  %7901 = vmatprep.subr.mxu0 0.0
  %7902 = vmatpush2.msra.mxu0 0.0
  %7903 = vmatprep.subr.mxu0 0.0
  %7904 = vmatpush2.msra.mxu0 0.0
  %7905 = vmatprep.subr.mxu0 0.0
  %7906 = vmatpush2.msra.mxu0 0.0
  %7907 = vmatprep.subr.mxu0 0.0
  %7908 = vmatpush2.msra.mxu0 0.0
  %7909 = vmatprep.subr.mxu0 0.0
  %7910 = vmatpush2.msra.mxu0 0.0
  %7911 = vmatprep.subr.mxu0 0.0
  %7912 = vmatpush2.msra.mxu0 0.0
  %7913 = vmatprep.subr.mxu0 0.0
  %7914 = vmatpush2.msra.mxu0 0.0
  %7915 = vmatprep.subr.mxu0 0.0
  %7916 = vmatpush2.msra.mxu0 0.0
  %7917 = vmatprep.mubr.f32.mxu0 0.0
  %v7918 = vand.u32 %v7316, 4294901760
  %7919 = vmatmul.mubr.f32.gmra.mxu0 %v7918
  %v7920 = vpop.f32.mrf.mxu0
  %v7921 = vadd.f32 %v7794, %v7920
  %v7922 = vpop.f32.mrf.mxu0
  %7923 = vmatprep.mubr.f32.mxu0 0.0
  %v7924 = vand.u32 %v7319, 4294901760
  %7925 = vmatmul.mubr.f32.gmra.mxu0 %v7924
  %v7926 = vpop.f32.mrf.mxu0
  %v7927 = vadd.f32 %v7802, %v7926
  %v7928 = vpop.f32.mrf.mxu0
  %7929 = vdwg.mxu0
  %7930 = vmatprep.subr.mxu0 0.0
  %v7931 = vand.u32 %v7338, 4294901760
  %7932 = vmatpush1.msra.mxu0 %v7931
  %7933 = vmatprep.subr.mxu0 0.0
  %v7934 = vand.u32 %v7337, 4294901760
  %7935 = vmatpush1.msra.mxu0 %v7934
  %7936 = vmatprep.subr.mxu0 0.0
  %v7937 = vand.u32 %v7336, 4294901760
  %7938 = vmatpush1.msra.mxu0 %v7937
  %7939 = vmatprep.subr.mxu0 0.0
  %v7940 = vand.u32 %v7335, 4294901760
  %7941 = vmatpush1.msra.mxu0 %v7940
  %7942 = vmatprep.subr.mxu0 0.0
  %v7943 = vand.u32 %v7334, 4294901760
  %7944 = vmatpush1.msra.mxu0 %v7943
  %7945 = vmatprep.subr.mxu0 0.0
  %v7946 = vand.u32 %v7333, 4294901760
  %7947 = vmatpush1.msra.mxu0 %v7946
  %7948 = vmatprep.subr.mxu0 0.0
  %v7949 = vand.u32 %v7332, 4294901760
  %7950 = vmatpush1.msra.mxu0 %v7949
  %7951 = vmatprep.subr.mxu0 0.0
  %v7952 = vand.u32 %v7331, 4294901760
  %7953 = vmatpush1.msra.mxu0 %v7952
  %7954 = vmatprep.subr.mxu0 0.0
  %v7955 = vand.u32 %v7330, 4294901760
  %7956 = vmatpush1.msra.mxu0 %v7955
  %7957 = vmatprep.subr.mxu0 0.0
  %v7958 = vand.u32 %v7329, 4294901760
  %7959 = vmatpush1.msra.mxu0 %v7958
  %7960 = vmatprep.subr.mxu0 0.0
  %v7961 = vand.u32 %v7328, 4294901760
  %7962 = vmatpush1.msra.mxu0 %v7961
  %7963 = vmatprep.subr.mxu0 0.0
  %v7964 = vand.u32 %v7327, 4294901760
  %7965 = vmatpush1.msra.mxu0 %v7964
  %7966 = vmatprep.subr.mxu0 0.0
  %v7967 = vand.u32 %v7326, 4294901760
  %7968 = vmatpush1.msra.mxu0 %v7967
  %7969 = vmatprep.subr.mxu0 0.0
  %v7970 = vand.u32 %v7325, 4294901760
  %7971 = vmatpush1.msra.mxu0 %v7970
  %7972 = vmatprep.subr.mxu0 0.0
  %v7973 = vand.u32 %v7324, 4294901760
  %7974 = vmatpush1.msra.mxu0 %v7973
  %7975 = vmatprep.subr.mxu0 0.0
  %v7976 = vand.u32 %v7323, 4294901760
  %7977 = vmatpush1.msra.mxu0 %v7976
  %7978 = vmatprep.subr.mxu0 0.0
  %7979 = vmatpush2.msra.mxu0 0.0
  %7980 = vmatprep.subr.mxu0 0.0
  %7981 = vmatpush2.msra.mxu0 0.0
  %7982 = vmatprep.subr.mxu0 0.0
  %7983 = vmatpush2.msra.mxu0 0.0
  %7984 = vmatprep.subr.mxu0 0.0
  %7985 = vmatpush2.msra.mxu0 0.0
  %7986 = vmatprep.subr.mxu0 0.0
  %7987 = vmatpush2.msra.mxu0 0.0
  %7988 = vmatprep.subr.mxu0 0.0
  %7989 = vmatpush2.msra.mxu0 0.0
  %7990 = vmatprep.subr.mxu0 0.0
  %7991 = vmatpush2.msra.mxu0 0.0
  %7992 = vmatprep.subr.mxu0 0.0
  %7993 = vmatpush2.msra.mxu0 0.0
  %7994 = vmatprep.subr.mxu0 0.0
  %7995 = vmatpush2.msra.mxu0 0.0
  %7996 = vmatprep.subr.mxu0 0.0
  %7997 = vmatpush2.msra.mxu0 0.0
  %7998 = vmatprep.subr.mxu0 0.0
  %7999 = vmatpush2.msra.mxu0 0.0
  %8000 = vmatprep.subr.mxu0 0.0
  %8001 = vmatpush2.msra.mxu0 0.0
  %8002 = vmatprep.subr.mxu0 0.0
  %8003 = vmatpush2.msra.mxu0 0.0
  %8004 = vmatprep.subr.mxu0 0.0
  %8005 = vmatpush2.msra.mxu0 0.0
  %8006 = vmatprep.subr.mxu0 0.0
  %8007 = vmatpush2.msra.mxu0 0.0
  %8008 = vmatprep.subr.mxu0 0.0
  %8009 = vmatpush2.msra.mxu0 0.0
  %8010 = vmatprep.mubr.f32.mxu0 0.0
  %v8011 = vand.u32 %v7316, 4294901760
  %8012 = vmatmul.mubr.f32.gmra.mxu0 %v8011
  %v8013 = vpop.f32.mrf.mxu0
  %v8014 = vadd.f32 %v7921, %v8013
  %v8015 = vpop.f32.mrf.mxu0
  %8016 = vmatprep.mubr.f32.mxu0 0.0
  %v8017 = vand.u32 %v7319, 4294901760
  %8018 = vmatmul.mubr.f32.gmra.mxu0 %v8017
  %v8019 = vpop.f32.mrf.mxu0
  %v8020 = vadd.f32 %v7927, %v8019
  %v8021 = vpop.f32.mrf.mxu0
  %8022 = vdwg.mxu0
  %8023 = vmatprep.subr.mxu0 0.0
  %v8024 = vand.u32 %v7309, 4294901760
  %8025 = vmatpush1.msra.mxu0 %v8024
  %8026 = vmatprep.subr.mxu0 0.0
  %v8027 = vand.u32 %v7308, 4294901760
  %8028 = vmatpush1.msra.mxu0 %v8027
  %8029 = vmatprep.subr.mxu0 0.0
  %v8030 = vand.u32 %v7307, 4294901760
  %8031 = vmatpush1.msra.mxu0 %v8030
  %8032 = vmatprep.subr.mxu0 0.0
  %v8033 = vand.u32 %v7306, 4294901760
  %8034 = vmatpush1.msra.mxu0 %v8033
  %8035 = vmatprep.subr.mxu0 0.0
  %v8036 = vand.u32 %v7305, 4294901760
  %8037 = vmatpush1.msra.mxu0 %v8036
  %8038 = vmatprep.subr.mxu0 0.0
  %v8039 = vand.u32 %v7304, 4294901760
  %8040 = vmatpush1.msra.mxu0 %v8039
  %8041 = vmatprep.subr.mxu0 0.0
  %v8042 = vand.u32 %v7303, 4294901760
  %8043 = vmatpush1.msra.mxu0 %v8042
  %8044 = vmatprep.subr.mxu0 0.0
  %v8045 = vand.u32 %v7302, 4294901760
  %8046 = vmatpush1.msra.mxu0 %v8045
  %8047 = vmatprep.subr.mxu0 0.0
  %v8048 = vand.u32 %v7301, 4294901760
  %8049 = vmatpush1.msra.mxu0 %v8048
  %8050 = vmatprep.subr.mxu0 0.0
  %v8051 = vand.u32 %v7300, 4294901760
  %8052 = vmatpush1.msra.mxu0 %v8051
  %8053 = vmatprep.subr.mxu0 0.0
  %v8054 = vand.u32 %v7299, 4294901760
  %8055 = vmatpush1.msra.mxu0 %v8054
  %8056 = vmatprep.subr.mxu0 0.0
  %v8057 = vand.u32 %v7298, 4294901760
  %8058 = vmatpush1.msra.mxu0 %v8057
  %8059 = vmatprep.subr.mxu0 0.0
  %v8060 = vand.u32 %v7297, 4294901760
  %8061 = vmatpush1.msra.mxu0 %v8060
  %8062 = vmatprep.subr.mxu0 0.0
  %v8063 = vand.u32 %v7296, 4294901760
  %8064 = vmatpush1.msra.mxu0 %v8063
  %8065 = vmatprep.subr.mxu0 0.0
  %v8066 = vand.u32 %v7295, 4294901760
  %8067 = vmatpush1.msra.mxu0 %v8066
  %8068 = vmatprep.subr.mxu0 0.0
  %v8069 = vand.u32 %v7294, 4294901760
  %8070 = vmatpush1.msra.mxu0 %v8069
  %8071 = vmatprep.subr.mxu0 0.0
  %8072 = vmatpush2.msra.mxu0 0.0
  %8073 = vmatprep.subr.mxu0 0.0
  %8074 = vmatpush2.msra.mxu0 0.0
  %8075 = vmatprep.subr.mxu0 0.0
  %8076 = vmatpush2.msra.mxu0 0.0
  %8077 = vmatprep.subr.mxu0 0.0
  %8078 = vmatpush2.msra.mxu0 0.0
  %8079 = vmatprep.subr.mxu0 0.0
  %8080 = vmatpush2.msra.mxu0 0.0
  %8081 = vmatprep.subr.mxu0 0.0
  %8082 = vmatpush2.msra.mxu0 0.0
  %8083 = vmatprep.subr.mxu0 0.0
  %8084 = vmatpush2.msra.mxu0 0.0
  %8085 = vmatprep.subr.mxu0 0.0
  %8086 = vmatpush2.msra.mxu0 0.0
  %8087 = vmatprep.subr.mxu0 0.0
  %8088 = vmatpush2.msra.mxu0 0.0
  %8089 = vmatprep.subr.mxu0 0.0
  %8090 = vmatpush2.msra.mxu0 0.0
  %8091 = vmatprep.subr.mxu0 0.0
  %8092 = vmatpush2.msra.mxu0 0.0
  %8093 = vmatprep.subr.mxu0 0.0
  %8094 = vmatpush2.msra.mxu0 0.0
  %8095 = vmatprep.subr.mxu0 0.0
  %8096 = vmatpush2.msra.mxu0 0.0
  %8097 = vmatprep.subr.mxu0 0.0
  %8098 = vmatpush2.msra.mxu0 0.0
  %8099 = vmatprep.subr.mxu0 0.0
  %8100 = vmatpush2.msra.mxu0 0.0
  %8101 = vmatprep.subr.mxu0 0.0
  %8102 = vmatpush2.msra.mxu0 0.0
  %8103 = vmatprep.mubr.f32.mxu0 0.0
  %v8104 = vand.u32 %v7287, 4294901760
  %v8105 = vsub.f32 %v7287, %v8104
  %v8106 = vand.u32 %v8105, 4294901760
  %v8107 = vsub.f32 %v8105, %v8106
  %v8108 = vand.u32 %v8107, 4294901760
  %8109 = vmatmul.mubr.f32.gmra.mxu0 %v8108
  %v8110 = vpop.f32.mrf.mxu0
  %v8111 = vadd.f32 %v8014, %v8110
  %v8112 = vpop.f32.mrf.mxu0
  %8113 = vmatprep.mubr.f32.mxu0 0.0
  %v8114 = vand.u32 %v7288, 4294901760
  %v8115 = vsub.f32 %v7288, %v8114
  %v8116 = vand.u32 %v8115, 4294901760
  %v8117 = vsub.f32 %v8115, %v8116
  %v8118 = vand.u32 %v8117, 4294901760
  %8119 = vmatmul.mubr.f32.gmra.mxu0 %v8118
  %v8120 = vpop.f32.mrf.mxu0
  %v8121 = vadd.f32 %v8020, %v8120
  %v8122 = vpop.f32.mrf.mxu0
  %8123 = vdwg.mxu0
  %8124 = vmatprep.subr.mxu0 0.0
  %v8125 = vand.u32 %v7309, 4294901760
  %v8126 = vsub.f32 %v7309, %v8125
  %v8127 = vand.u32 %v8126, 4294901760
  %v8128 = vsub.f32 %v8126, %v8127
  %v8129 = vand.u32 %v8128, 4294901760
  %8130 = vmatpush1.msra.mxu0 %v8129
  %8131 = vmatprep.subr.mxu0 0.0
  %v8132 = vand.u32 %v7308, 4294901760
  %v8133 = vsub.f32 %v7308, %v8132
  %v8134 = vand.u32 %v8133, 4294901760
  %v8135 = vsub.f32 %v8133, %v8134
  %v8136 = vand.u32 %v8135, 4294901760
  %8137 = vmatpush1.msra.mxu0 %v8136
  %8138 = vmatprep.subr.mxu0 0.0
  %v8139 = vand.u32 %v7307, 4294901760
  %v8140 = vsub.f32 %v7307, %v8139
  %v8141 = vand.u32 %v8140, 4294901760
  %v8142 = vsub.f32 %v8140, %v8141
  %v8143 = vand.u32 %v8142, 4294901760
  %8144 = vmatpush1.msra.mxu0 %v8143
  %8145 = vmatprep.subr.mxu0 0.0
  %v8146 = vand.u32 %v7306, 4294901760
  %v8147 = vsub.f32 %v7306, %v8146
  %v8148 = vand.u32 %v8147, 4294901760
  %v8149 = vsub.f32 %v8147, %v8148
  %v8150 = vand.u32 %v8149, 4294901760
  %8151 = vmatpush1.msra.mxu0 %v8150
  %8152 = vmatprep.subr.mxu0 0.0
  %v8153 = vand.u32 %v7305, 4294901760
  %v8154 = vsub.f32 %v7305, %v8153
  %v8155 = vand.u32 %v8154, 4294901760
  %v8156 = vsub.f32 %v8154, %v8155
  %v8157 = vand.u32 %v8156, 4294901760
  %8158 = vmatpush1.msra.mxu0 %v8157
  %8159 = vmatprep.subr.mxu0 0.0
  %v8160 = vand.u32 %v7304, 4294901760
  %v8161 = vsub.f32 %v7304, %v8160
  %v8162 = vand.u32 %v8161, 4294901760
  %v8163 = vsub.f32 %v8161, %v8162
  %v8164 = vand.u32 %v8163, 4294901760
  %8165 = vmatpush1.msra.mxu0 %v8164
  %8166 = vmatprep.subr.mxu0 0.0
  %v8167 = vand.u32 %v7303, 4294901760
  %v8168 = vsub.f32 %v7303, %v8167
  %v8169 = vand.u32 %v8168, 4294901760
  %v8170 = vsub.f32 %v8168, %v8169
  %v8171 = vand.u32 %v8170, 4294901760
  %8172 = vmatpush1.msra.mxu0 %v8171
  %8173 = vmatprep.subr.mxu0 0.0
  %v8174 = vand.u32 %v7302, 4294901760
  %v8175 = vsub.f32 %v7302, %v8174
  %v8176 = vand.u32 %v8175, 4294901760
  %v8177 = vsub.f32 %v8175, %v8176
  %v8178 = vand.u32 %v8177, 4294901760
  %8179 = vmatpush1.msra.mxu0 %v8178
  %8180 = vmatprep.subr.mxu0 0.0
  %v8181 = vand.u32 %v7301, 4294901760
  %v8182 = vsub.f32 %v7301, %v8181
  %v8183 = vand.u32 %v8182, 4294901760
  %v8184 = vsub.f32 %v8182, %v8183
  %v8185 = vand.u32 %v8184, 4294901760
  %8186 = vmatpush1.msra.mxu0 %v8185
  %8187 = vmatprep.subr.mxu0 0.0
  %v8188 = vand.u32 %v7300, 4294901760
  %v8189 = vsub.f32 %v7300, %v8188
  %v8190 = vand.u32 %v8189, 4294901760
  %v8191 = vsub.f32 %v8189, %v8190
  %v8192 = vand.u32 %v8191, 4294901760
  %8193 = vmatpush1.msra.mxu0 %v8192
  %8194 = vmatprep.subr.mxu0 0.0
  %v8195 = vand.u32 %v7299, 4294901760
  %v8196 = vsub.f32 %v7299, %v8195
  %v8197 = vand.u32 %v8196, 4294901760
  %v8198 = vsub.f32 %v8196, %v8197
  %v8199 = vand.u32 %v8198, 4294901760
  %8200 = vmatpush1.msra.mxu0 %v8199
  %8201 = vmatprep.subr.mxu0 0.0
  %v8202 = vand.u32 %v7298, 4294901760
  %v8203 = vsub.f32 %v7298, %v8202
  %v8204 = vand.u32 %v8203, 4294901760
  %v8205 = vsub.f32 %v8203, %v8204
  %v8206 = vand.u32 %v8205, 4294901760
  %8207 = vmatpush1.msra.mxu0 %v8206
  %8208 = vmatprep.subr.mxu0 0.0
  %v8209 = vand.u32 %v7297, 4294901760
  %v8210 = vsub.f32 %v7297, %v8209
  %v8211 = vand.u32 %v8210, 4294901760
  %v8212 = vsub.f32 %v8210, %v8211
  %v8213 = vand.u32 %v8212, 4294901760
  %8214 = vmatpush1.msra.mxu0 %v8213
  %8215 = vmatprep.subr.mxu0 0.0
  %v8216 = vand.u32 %v7296, 4294901760
  %v8217 = vsub.f32 %v7296, %v8216
  %v8218 = vand.u32 %v8217, 4294901760
  %v8219 = vsub.f32 %v8217, %v8218
  %v8220 = vand.u32 %v8219, 4294901760
  %8221 = vmatpush1.msra.mxu0 %v8220
  %8222 = vmatprep.subr.mxu0 0.0
  %v8223 = vand.u32 %v7295, 4294901760
  %v8224 = vsub.f32 %v7295, %v8223
  %v8225 = vand.u32 %v8224, 4294901760
  %v8226 = vsub.f32 %v8224, %v8225
  %v8227 = vand.u32 %v8226, 4294901760
  %8228 = vmatpush1.msra.mxu0 %v8227
  %8229 = vmatprep.subr.mxu0 0.0
  %v8230 = vand.u32 %v7294, 4294901760
  %v8231 = vsub.f32 %v7294, %v8230
  %v8232 = vand.u32 %v8231, 4294901760
  %v8233 = vsub.f32 %v8231, %v8232
  %v8234 = vand.u32 %v8233, 4294901760
  %8235 = vmatpush1.msra.mxu0 %v8234
  %8236 = vmatprep.subr.mxu0 0.0
  %8237 = vmatpush2.msra.mxu0 0.0
  %8238 = vmatprep.subr.mxu0 0.0
  %8239 = vmatpush2.msra.mxu0 0.0
  %8240 = vmatprep.subr.mxu0 0.0
  %8241 = vmatpush2.msra.mxu0 0.0
  %8242 = vmatprep.subr.mxu0 0.0
  %8243 = vmatpush2.msra.mxu0 0.0
  %8244 = vmatprep.subr.mxu0 0.0
  %8245 = vmatpush2.msra.mxu0 0.0
  %8246 = vmatprep.subr.mxu0 0.0
  %8247 = vmatpush2.msra.mxu0 0.0
  %8248 = vmatprep.subr.mxu0 0.0
  %8249 = vmatpush2.msra.mxu0 0.0
  %8250 = vmatprep.subr.mxu0 0.0
  %8251 = vmatpush2.msra.mxu0 0.0
  %8252 = vmatprep.subr.mxu0 0.0
  %8253 = vmatpush2.msra.mxu0 0.0
  %8254 = vmatprep.subr.mxu0 0.0
  %8255 = vmatpush2.msra.mxu0 0.0
  %8256 = vmatprep.subr.mxu0 0.0
  %8257 = vmatpush2.msra.mxu0 0.0
  %8258 = vmatprep.subr.mxu0 0.0
  %8259 = vmatpush2.msra.mxu0 0.0
  %8260 = vmatprep.subr.mxu0 0.0
  %8261 = vmatpush2.msra.mxu0 0.0
  %8262 = vmatprep.subr.mxu0 0.0
  %8263 = vmatpush2.msra.mxu0 0.0
  %8264 = vmatprep.subr.mxu0 0.0
  %8265 = vmatpush2.msra.mxu0 0.0
  %8266 = vmatprep.subr.mxu0 0.0
  %8267 = vmatpush2.msra.mxu0 0.0
  %8268 = vmatprep.mubr.f32.mxu0 0.0
  %v8269 = vand.u32 %v7287, 4294901760
  %8270 = vmatmul.mubr.f32.gmra.mxu0 %v8269
  %v8271 = vpop.f32.mrf.mxu0
  %v8272 = vadd.f32 %v8111, %v8271
  %v8273 = vpop.f32.mrf.mxu0
  %8274 = vmatprep.mubr.f32.mxu0 0.0
  %v8275 = vand.u32 %v7288, 4294901760
  %8276 = vmatmul.mubr.f32.gmra.mxu0 %v8275
  %v8277 = vpop.f32.mrf.mxu0
  %v8278 = vadd.f32 %v8121, %v8277
  %v8279 = vpop.f32.mrf.mxu0
  %8280 = vdwg.mxu0
  %8281 = vmatprep.subr.mxu0 0.0
  %v8282 = vand.u32 %v7309, 4294901760
  %v8283 = vsub.f32 %v7309, %v8282
  %8284 = vmatpush1.msra.mxu0 %v8283
  %8285 = vmatprep.subr.mxu0 0.0
  %v8286 = vand.u32 %v7308, 4294901760
  %v8287 = vsub.f32 %v7308, %v8286
  %8288 = vmatpush1.msra.mxu0 %v8287
  %8289 = vmatprep.subr.mxu0 0.0
  %v8290 = vand.u32 %v7307, 4294901760
  %v8291 = vsub.f32 %v7307, %v8290
  %8292 = vmatpush1.msra.mxu0 %v8291
  %8293 = vmatprep.subr.mxu0 0.0
  %v8294 = vand.u32 %v7306, 4294901760
  %v8295 = vsub.f32 %v7306, %v8294
  %8296 = vmatpush1.msra.mxu0 %v8295
  %8297 = vmatprep.subr.mxu0 0.0
  %v8298 = vand.u32 %v7305, 4294901760
  %v8299 = vsub.f32 %v7305, %v8298
  %8300 = vmatpush1.msra.mxu0 %v8299
  %8301 = vmatprep.subr.mxu0 0.0
  %v8302 = vand.u32 %v7304, 4294901760
  %v8303 = vsub.f32 %v7304, %v8302
  %8304 = vmatpush1.msra.mxu0 %v8303
  %8305 = vmatprep.subr.mxu0 0.0
  %v8306 = vand.u32 %v7303, 4294901760
  %v8307 = vsub.f32 %v7303, %v8306
  %8308 = vmatpush1.msra.mxu0 %v8307
  %8309 = vmatprep.subr.mxu0 0.0
  %v8310 = vand.u32 %v7302, 4294901760
  %v8311 = vsub.f32 %v7302, %v8310
  %8312 = vmatpush1.msra.mxu0 %v8311
  %8313 = vmatprep.subr.mxu0 0.0
  %v8314 = vand.u32 %v7301, 4294901760
  %v8315 = vsub.f32 %v7301, %v8314
  %8316 = vmatpush1.msra.mxu0 %v8315
  %8317 = vmatprep.subr.mxu0 0.0
  %v8318 = vand.u32 %v7300, 4294901760
  %v8319 = vsub.f32 %v7300, %v8318
  %8320 = vmatpush1.msra.mxu0 %v8319
  %8321 = vmatprep.subr.mxu0 0.0
  %v8322 = vand.u32 %v7299, 4294901760
  %v8323 = vsub.f32 %v7299, %v8322
  %8324 = vmatpush1.msra.mxu0 %v8323
  %8325 = vmatprep.subr.mxu0 0.0
  %v8326 = vand.u32 %v7298, 4294901760
  %v8327 = vsub.f32 %v7298, %v8326
  %8328 = vmatpush1.msra.mxu0 %v8327
  %8329 = vmatprep.subr.mxu0 0.0
  %v8330 = vand.u32 %v7297, 4294901760
  %v8331 = vsub.f32 %v7297, %v8330
  %8332 = vmatpush1.msra.mxu0 %v8331
  %8333 = vmatprep.subr.mxu0 0.0
  %v8334 = vand.u32 %v7296, 4294901760
  %v8335 = vsub.f32 %v7296, %v8334
  %8336 = vmatpush1.msra.mxu0 %v8335
  %8337 = vmatprep.subr.mxu0 0.0
  %v8338 = vand.u32 %v7295, 4294901760
  %v8339 = vsub.f32 %v7295, %v8338
  %8340 = vmatpush1.msra.mxu0 %v8339
  %8341 = vmatprep.subr.mxu0 0.0
  %v8342 = vand.u32 %v7294, 4294901760
  %v8343 = vsub.f32 %v7294, %v8342
  %8344 = vmatpush1.msra.mxu0 %v8343
  %8345 = vmatprep.subr.mxu0 0.0
  %8346 = vmatpush2.msra.mxu0 0.0
  %8347 = vmatprep.subr.mxu0 0.0
  %8348 = vmatpush2.msra.mxu0 0.0
  %8349 = vmatprep.subr.mxu0 0.0
  %8350 = vmatpush2.msra.mxu0 0.0
  %8351 = vmatprep.subr.mxu0 0.0
  %8352 = vmatpush2.msra.mxu0 0.0
  %8353 = vmatprep.subr.mxu0 0.0
  %8354 = vmatpush2.msra.mxu0 0.0
  %8355 = vmatprep.subr.mxu0 0.0
  %8356 = vmatpush2.msra.mxu0 0.0
  %8357 = vmatprep.subr.mxu0 0.0
  %8358 = vmatpush2.msra.mxu0 0.0
  %8359 = vmatprep.subr.mxu0 0.0
  %8360 = vmatpush2.msra.mxu0 0.0
  %8361 = vmatprep.subr.mxu0 0.0
  %8362 = vmatpush2.msra.mxu0 0.0
  %8363 = vmatprep.subr.mxu0 0.0
  %8364 = vmatpush2.msra.mxu0 0.0
  %8365 = vmatprep.subr.mxu0 0.0
  %8366 = vmatpush2.msra.mxu0 0.0
  %8367 = vmatprep.subr.mxu0 0.0
  %8368 = vmatpush2.msra.mxu0 0.0
  %8369 = vmatprep.subr.mxu0 0.0
  %8370 = vmatpush2.msra.mxu0 0.0
  %8371 = vmatprep.subr.mxu0 0.0
  %8372 = vmatpush2.msra.mxu0 0.0
  %8373 = vmatprep.subr.mxu0 0.0
  %8374 = vmatpush2.msra.mxu0 0.0
  %8375 = vmatprep.subr.mxu0 0.0
  %8376 = vmatpush2.msra.mxu0 0.0
  %8377 = vmatprep.mubr.f32.mxu0 0.0
  %v8378 = vand.u32 %v7287, 4294901760
  %v8379 = vsub.f32 %v7287, %v8378
  %8380 = vmatmul.mubr.f32.gmra.mxu0 %v8379
  %v8381 = vpop.f32.mrf.mxu0
  %v8382 = vadd.f32 %v8272, %v8381
  %v8383 = vpop.f32.mrf.mxu0
  %8384 = vmatprep.mubr.f32.mxu0 0.0
  %v8385 = vand.u32 %v7288, 4294901760
  %v8386 = vsub.f32 %v7288, %v8385
  %8387 = vmatmul.mubr.f32.gmra.mxu0 %v8386
  %v8388 = vpop.f32.mrf.mxu0
  %v8389 = vadd.f32 %v8278, %v8388
  %v8390 = vpop.f32.mrf.mxu0
  %8391 = vdwg.mxu0
  %8392 = vmatprep.subr.mxu0 0.0
  %v8393 = vand.u32 %v7309, 4294901760
  %8394 = vmatpush1.msra.mxu0 %v8393
  %8395 = vmatprep.subr.mxu0 0.0
  %v8396 = vand.u32 %v7308, 4294901760
  %8397 = vmatpush1.msra.mxu0 %v8396
  %8398 = vmatprep.subr.mxu0 0.0
  %v8399 = vand.u32 %v7307, 4294901760
  %8400 = vmatpush1.msra.mxu0 %v8399
  %8401 = vmatprep.subr.mxu0 0.0
  %v8402 = vand.u32 %v7306, 4294901760
  %8403 = vmatpush1.msra.mxu0 %v8402
  %8404 = vmatprep.subr.mxu0 0.0
  %v8405 = vand.u32 %v7305, 4294901760
  %8406 = vmatpush1.msra.mxu0 %v8405
  %8407 = vmatprep.subr.mxu0 0.0
  %v8408 = vand.u32 %v7304, 4294901760
  %8409 = vmatpush1.msra.mxu0 %v8408
  %8410 = vmatprep.subr.mxu0 0.0
  %v8411 = vand.u32 %v7303, 4294901760
  %8412 = vmatpush1.msra.mxu0 %v8411
  %8413 = vmatprep.subr.mxu0 0.0
  %v8414 = vand.u32 %v7302, 4294901760
  %8415 = vmatpush1.msra.mxu0 %v8414
  %8416 = vmatprep.subr.mxu0 0.0
  %v8417 = vand.u32 %v7301, 4294901760
  %8418 = vmatpush1.msra.mxu0 %v8417
  %8419 = vmatprep.subr.mxu0 0.0
  %v8420 = vand.u32 %v7300, 4294901760
  %8421 = vmatpush1.msra.mxu0 %v8420
  %8422 = vmatprep.subr.mxu0 0.0
  %v8423 = vand.u32 %v7299, 4294901760
  %8424 = vmatpush1.msra.mxu0 %v8423
  %8425 = vmatprep.subr.mxu0 0.0
  %v8426 = vand.u32 %v7298, 4294901760
  %8427 = vmatpush1.msra.mxu0 %v8426
  %8428 = vmatprep.subr.mxu0 0.0
  %v8429 = vand.u32 %v7297, 4294901760
  %8430 = vmatpush1.msra.mxu0 %v8429
  %8431 = vmatprep.subr.mxu0 0.0
  %v8432 = vand.u32 %v7296, 4294901760
  %8433 = vmatpush1.msra.mxu0 %v8432
  %8434 = vmatprep.subr.mxu0 0.0
  %v8435 = vand.u32 %v7295, 4294901760
  %8436 = vmatpush1.msra.mxu0 %v8435
  %8437 = vmatprep.subr.mxu0 0.0
  %v8438 = vand.u32 %v7294, 4294901760
  %8439 = vmatpush1.msra.mxu0 %v8438
  %8440 = vmatprep.subr.mxu0 0.0
  %8441 = vmatpush2.msra.mxu0 0.0
  %8442 = vmatprep.subr.mxu0 0.0
  %8443 = vmatpush2.msra.mxu0 0.0
  %8444 = vmatprep.subr.mxu0 0.0
  %8445 = vmatpush2.msra.mxu0 0.0
  %8446 = vmatprep.subr.mxu0 0.0
  %8447 = vmatpush2.msra.mxu0 0.0
  %8448 = vmatprep.subr.mxu0 0.0
  %8449 = vmatpush2.msra.mxu0 0.0
  %8450 = vmatprep.subr.mxu0 0.0
  %8451 = vmatpush2.msra.mxu0 0.0
  %8452 = vmatprep.subr.mxu0 0.0
  %8453 = vmatpush2.msra.mxu0 0.0
  %8454 = vmatprep.subr.mxu0 0.0
  %8455 = vmatpush2.msra.mxu0 0.0
  %8456 = vmatprep.subr.mxu0 0.0
  %8457 = vmatpush2.msra.mxu0 0.0
  %8458 = vmatprep.subr.mxu0 0.0
  %8459 = vmatpush2.msra.mxu0 0.0
  %8460 = vmatprep.subr.mxu0 0.0
  %8461 = vmatpush2.msra.mxu0 0.0
  %8462 = vmatprep.subr.mxu0 0.0
  %8463 = vmatpush2.msra.mxu0 0.0
  %8464 = vmatprep.subr.mxu0 0.0
  %8465 = vmatpush2.msra.mxu0 0.0
  %8466 = vmatprep.subr.mxu0 0.0
  %8467 = vmatpush2.msra.mxu0 0.0
  %8468 = vmatprep.subr.mxu0 0.0
  %8469 = vmatpush2.msra.mxu0 0.0
  %8470 = vmatprep.subr.mxu0 0.0
  %8471 = vmatpush2.msra.mxu0 0.0
  %8472 = vmatprep.mubr.f32.mxu0 0.0
  %v8473 = vand.u32 %v7287, 4294901760
  %v8474 = vsub.f32 %v7287, %v8473
  %v8475 = vand.u32 %v8474, 4294901760
  %8476 = vmatmul.mubr.f32.gmra.mxu0 %v8475
  %v8477 = vpop.f32.mrf.mxu0
  %v8478 = vadd.f32 %v8382, %v8477
  %v8479 = vpop.f32.mrf.mxu0
  %8480 = vmatprep.mubr.f32.mxu0 0.0
  %v8481 = vand.u32 %v7288, 4294901760
  %v8482 = vsub.f32 %v7288, %v8481
  %v8483 = vand.u32 %v8482, 4294901760
  %8484 = vmatmul.mubr.f32.gmra.mxu0 %v8483
  %v8485 = vpop.f32.mrf.mxu0
  %v8486 = vadd.f32 %v8389, %v8485
  %v8487 = vpop.f32.mrf.mxu0
  %8488 = vdwg.mxu0
  %8489 = vmatprep.subr.mxu0 0.0
  %v8490 = vand.u32 %v7309, 4294901760
  %v8491 = vsub.f32 %v7309, %v8490
  %v8492 = vand.u32 %v8491, 4294901760
  %8493 = vmatpush1.msra.mxu0 %v8492
  %8494 = vmatprep.subr.mxu0 0.0
  %v8495 = vand.u32 %v7308, 4294901760
  %v8496 = vsub.f32 %v7308, %v8495
  %v8497 = vand.u32 %v8496, 4294901760
  %8498 = vmatpush1.msra.mxu0 %v8497
  %8499 = vmatprep.subr.mxu0 0.0
  %v8500 = vand.u32 %v7307, 4294901760
  %v8501 = vsub.f32 %v7307, %v8500
  %v8502 = vand.u32 %v8501, 4294901760
  %8503 = vmatpush1.msra.mxu0 %v8502
  %8504 = vmatprep.subr.mxu0 0.0
  %v8505 = vand.u32 %v7306, 4294901760
  %v8506 = vsub.f32 %v7306, %v8505
  %v8507 = vand.u32 %v8506, 4294901760
  %8508 = vmatpush1.msra.mxu0 %v8507
  %8509 = vmatprep.subr.mxu0 0.0
  %v8510 = vand.u32 %v7305, 4294901760
  %v8511 = vsub.f32 %v7305, %v8510
  %v8512 = vand.u32 %v8511, 4294901760
  %8513 = vmatpush1.msra.mxu0 %v8512
  %8514 = vmatprep.subr.mxu0 0.0
  %v8515 = vand.u32 %v7304, 4294901760
  %v8516 = vsub.f32 %v7304, %v8515
  %v8517 = vand.u32 %v8516, 4294901760
  %8518 = vmatpush1.msra.mxu0 %v8517
  %8519 = vmatprep.subr.mxu0 0.0
  %v8520 = vand.u32 %v7303, 4294901760
  %v8521 = vsub.f32 %v7303, %v8520
  %v8522 = vand.u32 %v8521, 4294901760
  %8523 = vmatpush1.msra.mxu0 %v8522
  %8524 = vmatprep.subr.mxu0 0.0
  %v8525 = vand.u32 %v7302, 4294901760
  %v8526 = vsub.f32 %v7302, %v8525
  %v8527 = vand.u32 %v8526, 4294901760
  %8528 = vmatpush1.msra.mxu0 %v8527
  %8529 = vmatprep.subr.mxu0 0.0
  %v8530 = vand.u32 %v7301, 4294901760
  %v8531 = vsub.f32 %v7301, %v8530
  %v8532 = vand.u32 %v8531, 4294901760
  %8533 = vmatpush1.msra.mxu0 %v8532
  %8534 = vmatprep.subr.mxu0 0.0
  %v8535 = vand.u32 %v7300, 4294901760
  %v8536 = vsub.f32 %v7300, %v8535
  %v8537 = vand.u32 %v8536, 4294901760
  %8538 = vmatpush1.msra.mxu0 %v8537
  %8539 = vmatprep.subr.mxu0 0.0
  %v8540 = vand.u32 %v7299, 4294901760
  %v8541 = vsub.f32 %v7299, %v8540
  %v8542 = vand.u32 %v8541, 4294901760
  %8543 = vmatpush1.msra.mxu0 %v8542
  %8544 = vmatprep.subr.mxu0 0.0
  %v8545 = vand.u32 %v7298, 4294901760
  %v8546 = vsub.f32 %v7298, %v8545
  %v8547 = vand.u32 %v8546, 4294901760
  %8548 = vmatpush1.msra.mxu0 %v8547
  %8549 = vmatprep.subr.mxu0 0.0
  %v8550 = vand.u32 %v7297, 4294901760
  %v8551 = vsub.f32 %v7297, %v8550
  %v8552 = vand.u32 %v8551, 4294901760
  %8553 = vmatpush1.msra.mxu0 %v8552
  %8554 = vmatprep.subr.mxu0 0.0
  %v8555 = vand.u32 %v7296, 4294901760
  %v8556 = vsub.f32 %v7296, %v8555
  %v8557 = vand.u32 %v8556, 4294901760
  %8558 = vmatpush1.msra.mxu0 %v8557
  %8559 = vmatprep.subr.mxu0 0.0
  %v8560 = vand.u32 %v7295, 4294901760
  %v8561 = vsub.f32 %v7295, %v8560
  %v8562 = vand.u32 %v8561, 4294901760
  %8563 = vmatpush1.msra.mxu0 %v8562
  %8564 = vmatprep.subr.mxu0 0.0
  %v8565 = vand.u32 %v7294, 4294901760
  %v8566 = vsub.f32 %v7294, %v8565
  %v8567 = vand.u32 %v8566, 4294901760
  %8568 = vmatpush1.msra.mxu0 %v8567
  %8569 = vmatprep.subr.mxu0 0.0
  %8570 = vmatpush2.msra.mxu0 0.0
  %8571 = vmatprep.subr.mxu0 0.0
  %8572 = vmatpush2.msra.mxu0 0.0
  %8573 = vmatprep.subr.mxu0 0.0
  %8574 = vmatpush2.msra.mxu0 0.0
  %8575 = vmatprep.subr.mxu0 0.0
  %8576 = vmatpush2.msra.mxu0 0.0
  %8577 = vmatprep.subr.mxu0 0.0
  %8578 = vmatpush2.msra.mxu0 0.0
  %8579 = vmatprep.subr.mxu0 0.0
  %8580 = vmatpush2.msra.mxu0 0.0
  %8581 = vmatprep.subr.mxu0 0.0
  %8582 = vmatpush2.msra.mxu0 0.0
  %8583 = vmatprep.subr.mxu0 0.0
  %8584 = vmatpush2.msra.mxu0 0.0
  %8585 = vmatprep.subr.mxu0 0.0
  %8586 = vmatpush2.msra.mxu0 0.0
  %8587 = vmatprep.subr.mxu0 0.0
  %8588 = vmatpush2.msra.mxu0 0.0
  %8589 = vmatprep.subr.mxu0 0.0
  %8590 = vmatpush2.msra.mxu0 0.0
  %8591 = vmatprep.subr.mxu0 0.0
  %8592 = vmatpush2.msra.mxu0 0.0
  %8593 = vmatprep.subr.mxu0 0.0
  %8594 = vmatpush2.msra.mxu0 0.0
  %8595 = vmatprep.subr.mxu0 0.0
  %8596 = vmatpush2.msra.mxu0 0.0
  %8597 = vmatprep.subr.mxu0 0.0
  %8598 = vmatpush2.msra.mxu0 0.0
  %8599 = vmatprep.subr.mxu0 0.0
  %8600 = vmatpush2.msra.mxu0 0.0
  %8601 = vmatprep.mubr.f32.mxu0 0.0
  %v8602 = vand.u32 %v7287, 4294901760
  %8603 = vmatmul.mubr.f32.gmra.mxu0 %v8602
  %v8604 = vpop.f32.mrf.mxu0
  %v8605 = vadd.f32 %v8478, %v8604
  %v8606 = vpop.f32.mrf.mxu0
  %8607 = vmatprep.mubr.f32.mxu0 0.0
  %v8608 = vand.u32 %v7288, 4294901760
  %8609 = vmatmul.mubr.f32.gmra.mxu0 %v8608
  %v8610 = vpop.f32.mrf.mxu0
  %v8611 = vadd.f32 %v8486, %v8610
  %v8612 = vpop.f32.mrf.mxu0
  %8613 = vdwg.mxu0
  %8614 = vmatprep.subr.mxu0 0.0
  %v8615 = vand.u32 %v7309, 4294901760
  %8616 = vmatpush1.msra.mxu0 %v8615
  %8617 = vmatprep.subr.mxu0 0.0
  %v8618 = vand.u32 %v7308, 4294901760
  %8619 = vmatpush1.msra.mxu0 %v8618
  %8620 = vmatprep.subr.mxu0 0.0
  %v8621 = vand.u32 %v7307, 4294901760
  %8622 = vmatpush1.msra.mxu0 %v8621
  %8623 = vmatprep.subr.mxu0 0.0
  %v8624 = vand.u32 %v7306, 4294901760
  %8625 = vmatpush1.msra.mxu0 %v8624
  %8626 = vmatprep.subr.mxu0 0.0
  %v8627 = vand.u32 %v7305, 4294901760
  %8628 = vmatpush1.msra.mxu0 %v8627
  %8629 = vmatprep.subr.mxu0 0.0
  %v8630 = vand.u32 %v7304, 4294901760
  %8631 = vmatpush1.msra.mxu0 %v8630
  %8632 = vmatprep.subr.mxu0 0.0
  %v8633 = vand.u32 %v7303, 4294901760
  %8634 = vmatpush1.msra.mxu0 %v8633
  %8635 = vmatprep.subr.mxu0 0.0
  %v8636 = vand.u32 %v7302, 4294901760
  %8637 = vmatpush1.msra.mxu0 %v8636
  %8638 = vmatprep.subr.mxu0 0.0
  %v8639 = vand.u32 %v7301, 4294901760
  %8640 = vmatpush1.msra.mxu0 %v8639
  %8641 = vmatprep.subr.mxu0 0.0
  %v8642 = vand.u32 %v7300, 4294901760
  %8643 = vmatpush1.msra.mxu0 %v8642
  %8644 = vmatprep.subr.mxu0 0.0
  %v8645 = vand.u32 %v7299, 4294901760
  %8646 = vmatpush1.msra.mxu0 %v8645
  %8647 = vmatprep.subr.mxu0 0.0
  %v8648 = vand.u32 %v7298, 4294901760
  %8649 = vmatpush1.msra.mxu0 %v8648
  %8650 = vmatprep.subr.mxu0 0.0
  %v8651 = vand.u32 %v7297, 4294901760
  %8652 = vmatpush1.msra.mxu0 %v8651
  %8653 = vmatprep.subr.mxu0 0.0
  %v8654 = vand.u32 %v7296, 4294901760
  %8655 = vmatpush1.msra.mxu0 %v8654
  %8656 = vmatprep.subr.mxu0 0.0
  %v8657 = vand.u32 %v7295, 4294901760
  %8658 = vmatpush1.msra.mxu0 %v8657
  %8659 = vmatprep.subr.mxu0 0.0
  %v8660 = vand.u32 %v7294, 4294901760
  %8661 = vmatpush1.msra.mxu0 %v8660
  %8662 = vmatprep.subr.mxu0 0.0
  %8663 = vmatpush2.msra.mxu0 0.0
  %8664 = vmatprep.subr.mxu0 0.0
  %8665 = vmatpush2.msra.mxu0 0.0
  %8666 = vmatprep.subr.mxu0 0.0
  %8667 = vmatpush2.msra.mxu0 0.0
  %8668 = vmatprep.subr.mxu0 0.0
  %8669 = vmatpush2.msra.mxu0 0.0
  %8670 = vmatprep.subr.mxu0 0.0
  %8671 = vmatpush2.msra.mxu0 0.0
  %8672 = vmatprep.subr.mxu0 0.0
  %8673 = vmatpush2.msra.mxu0 0.0
  %8674 = vmatprep.subr.mxu0 0.0
  %8675 = vmatpush2.msra.mxu0 0.0
  %8676 = vmatprep.subr.mxu0 0.0
  %8677 = vmatpush2.msra.mxu0 0.0
  %8678 = vmatprep.subr.mxu0 0.0
  %8679 = vmatpush2.msra.mxu0 0.0
  %8680 = vmatprep.subr.mxu0 0.0
  %8681 = vmatpush2.msra.mxu0 0.0
  %8682 = vmatprep.subr.mxu0 0.0
  %8683 = vmatpush2.msra.mxu0 0.0
  %8684 = vmatprep.subr.mxu0 0.0
  %8685 = vmatpush2.msra.mxu0 0.0
  %8686 = vmatprep.subr.mxu0 0.0
  %8687 = vmatpush2.msra.mxu0 0.0
  %8688 = vmatprep.subr.mxu0 0.0
  %8689 = vmatpush2.msra.mxu0 0.0
  %8690 = vmatprep.subr.mxu0 0.0
  %8691 = vmatpush2.msra.mxu0 0.0
  %8692 = vmatprep.subr.mxu0 0.0
  %8693 = vmatpush2.msra.mxu0 0.0
  %8694 = vmatprep.mubr.f32.mxu0 0.0
  %v8695 = vand.u32 %v7287, 4294901760
  %8696 = vmatmul.mubr.f32.gmra.mxu0 %v8695
  %v8697 = vpop.f32.mrf.mxu0
  %v8698 = vadd.f32 %v8605, %v8697
  %v8699 = vpop.f32.mrf.mxu0
  %8700 = vmatprep.mubr.f32.mxu0 0.0
  %v8701 = vand.u32 %v7288, 4294901760
  %8702 = vmatmul.mubr.f32.gmra.mxu0 %v8701
  %v8703 = vpop.f32.mrf.mxu0
  %v8704 = vadd.f32 %v8611, %v8703
  %v8705 = vpop.f32.mrf.mxu0
  %8706 = vdwg.mxu0
  %v8707 = vrot.slane %v7287, 2
  %v8708 = vrot.slane %v7289, 2
  %v8709 = vsel %vm1682, %v8707, %v8708
  %v8710 = vrot.slane %v7288, 2
  %v8711 = vrot.slane %v7290, 2
  %v8712 = vsel %vm1682, %v8710, %v8711
  %s8715 = scalar_lea.vmem %s3, 1024
  %v8716 = vld [vmem:[%s8715] sm:$0xff]
  %v8717 = vld [vmem:[%s8715 + $0x8] sm:$0xff]
  %v8718 = vld [vmem:[%s8715 + $0x10] sm:$0xff]
  %v8719 = vld [vmem:[%s8715 + $0x18] sm:$0xff]
  %v8720 = vld [vmem:[%s8715 + $0x20] sm:$0xff]
  %v8721 = vld [vmem:[%s8715 + $0x28] sm:$0xff]
  %v8722 = vld [vmem:[%s8715 + $0x30] sm:$0xff]
  %v8723 = vld [vmem:[%s8715 + $0x38] sm:$0xff]
  %v8724 = vld [vmem:[%s8715 + $0x40] sm:$0xff]
  %v8725 = vld [vmem:[%s8715 + $0x48] sm:$0xff]
  %v8726 = vld [vmem:[%s8715 + $0x50] sm:$0xff]
  %v8727 = vld [vmem:[%s8715 + $0x58] sm:$0xff]
  %v8728 = vld [vmem:[%s8715 + $0x60] sm:$0xff]
  %v8729 = vld [vmem:[%s8715 + $0x68] sm:$0xff]
  %v8730 = vld [vmem:[%s8715 + $0x70] sm:$0xff]
  %v8731 = vld [vmem:[%s8715 + $0x78] sm:$0xff]
  %8732 = vmatprep.subr.mxu0 0.0
  %v8733 = vand.u32 %v8731, 4294901760
  %8734 = vmatpush1.msra.mxu0 %v8733
  %8735 = vmatprep.subr.mxu0 0.0
  %v8736 = vand.u32 %v8730, 4294901760
  %8737 = vmatpush1.msra.mxu0 %v8736
  %8738 = vmatprep.subr.mxu0 0.0
  %v8739 = vand.u32 %v8729, 4294901760
  %8740 = vmatpush1.msra.mxu0 %v8739
  %8741 = vmatprep.subr.mxu0 0.0
  %v8742 = vand.u32 %v8728, 4294901760
  %8743 = vmatpush1.msra.mxu0 %v8742
  %8744 = vmatprep.subr.mxu0 0.0
  %v8745 = vand.u32 %v8727, 4294901760
  %8746 = vmatpush1.msra.mxu0 %v8745
  %8747 = vmatprep.subr.mxu0 0.0
  %v8748 = vand.u32 %v8726, 4294901760
  %8749 = vmatpush1.msra.mxu0 %v8748
  %8750 = vmatprep.subr.mxu0 0.0
  %v8751 = vand.u32 %v8725, 4294901760
  %8752 = vmatpush1.msra.mxu0 %v8751
  %8753 = vmatprep.subr.mxu0 0.0
  %v8754 = vand.u32 %v8724, 4294901760
  %8755 = vmatpush1.msra.mxu0 %v8754
  %8756 = vmatprep.subr.mxu0 0.0
  %v8757 = vand.u32 %v8723, 4294901760
  %8758 = vmatpush1.msra.mxu0 %v8757
  %8759 = vmatprep.subr.mxu0 0.0
  %v8760 = vand.u32 %v8722, 4294901760
  %8761 = vmatpush1.msra.mxu0 %v8760
  %8762 = vmatprep.subr.mxu0 0.0
  %v8763 = vand.u32 %v8721, 4294901760
  %8764 = vmatpush1.msra.mxu0 %v8763
  %8765 = vmatprep.subr.mxu0 0.0
  %v8766 = vand.u32 %v8720, 4294901760
  %8767 = vmatpush1.msra.mxu0 %v8766
  %8768 = vmatprep.subr.mxu0 0.0
  %v8769 = vand.u32 %v8719, 4294901760
  %8770 = vmatpush1.msra.mxu0 %v8769
  %8771 = vmatprep.subr.mxu0 0.0
  %v8772 = vand.u32 %v8718, 4294901760
  %8773 = vmatpush1.msra.mxu0 %v8772
  %8774 = vmatprep.subr.mxu0 0.0
  %v8775 = vand.u32 %v8717, 4294901760
  %8776 = vmatpush1.msra.mxu0 %v8775
  %8777 = vmatprep.subr.mxu0 0.0
  %v8778 = vand.u32 %v8716, 4294901760
  %8779 = vmatpush1.msra.mxu0 %v8778
  %8780 = vmatprep.subr.mxu0 0.0
  %8781 = vmatpush2.msra.mxu0 0.0
  %8782 = vmatprep.subr.mxu0 0.0
  %8783 = vmatpush2.msra.mxu0 0.0
  %8784 = vmatprep.subr.mxu0 0.0
  %8785 = vmatpush2.msra.mxu0 0.0
  %8786 = vmatprep.subr.mxu0 0.0
  %8787 = vmatpush2.msra.mxu0 0.0
  %8788 = vmatprep.subr.mxu0 0.0
  %8789 = vmatpush2.msra.mxu0 0.0
  %8790 = vmatprep.subr.mxu0 0.0
  %8791 = vmatpush2.msra.mxu0 0.0
  %8792 = vmatprep.subr.mxu0 0.0
  %8793 = vmatpush2.msra.mxu0 0.0
  %8794 = vmatprep.subr.mxu0 0.0
  %8795 = vmatpush2.msra.mxu0 0.0
  %8796 = vmatprep.subr.mxu0 0.0
  %8797 = vmatpush2.msra.mxu0 0.0
  %8798 = vmatprep.subr.mxu0 0.0
  %8799 = vmatpush2.msra.mxu0 0.0
  %8800 = vmatprep.subr.mxu0 0.0
  %8801 = vmatpush2.msra.mxu0 0.0
  %8802 = vmatprep.subr.mxu0 0.0
  %8803 = vmatpush2.msra.mxu0 0.0
  %8804 = vmatprep.subr.mxu0 0.0
  %8805 = vmatpush2.msra.mxu0 0.0
  %8806 = vmatprep.subr.mxu0 0.0
  %8807 = vmatpush2.msra.mxu0 0.0
  %8808 = vmatprep.subr.mxu0 0.0
  %8809 = vmatpush2.msra.mxu0 0.0
  %8810 = vmatprep.subr.mxu0 0.0
  %8811 = vmatpush2.msra.mxu0 0.0
  %8812 = vmatprep.mubr.f32.mxu0 0.0
  %v8813 = vand.u32 %v8709, 4294901760
  %v8814 = vsub.f32 %v8709, %v8813
  %v8815 = vand.u32 %v8814, 4294901760
  %v8816 = vsub.f32 %v8814, %v8815
  %v8817 = vand.u32 %v8816, 4294901760
  %8818 = vmatmul.mubr.f32.gmra.mxu0 %v8817
  %v8819 = vpop.f32.mrf.mxu0
  %v8820 = vadd.f32 0.0, %v8819
  %v8821 = vpop.f32.mrf.mxu0
  %8822 = vmatprep.mubr.f32.mxu0 0.0
  %v8823 = vand.u32 %v8712, 4294901760
  %v8824 = vsub.f32 %v8712, %v8823
  %v8825 = vand.u32 %v8824, 4294901760
  %v8826 = vsub.f32 %v8824, %v8825
  %v8827 = vand.u32 %v8826, 4294901760
  %8828 = vmatmul.mubr.f32.gmra.mxu0 %v8827
  %v8829 = vpop.f32.mrf.mxu0
  %v8830 = vadd.f32 0.0, %v8829
  %v8831 = vpop.f32.mrf.mxu0
  %8832 = vdwg.mxu0
  %8833 = vmatprep.subr.mxu0 0.0
  %v8834 = vand.u32 %v8731, 4294901760
  %v8835 = vsub.f32 %v8731, %v8834
  %v8836 = vand.u32 %v8835, 4294901760
  %v8837 = vsub.f32 %v8835, %v8836
  %v8838 = vand.u32 %v8837, 4294901760
  %8839 = vmatpush1.msra.mxu0 %v8838
  %8840 = vmatprep.subr.mxu0 0.0
  %v8841 = vand.u32 %v8730, 4294901760
  %v8842 = vsub.f32 %v8730, %v8841
  %v8843 = vand.u32 %v8842, 4294901760
  %v8844 = vsub.f32 %v8842, %v8843
  %v8845 = vand.u32 %v8844, 4294901760
  %8846 = vmatpush1.msra.mxu0 %v8845
  %8847 = vmatprep.subr.mxu0 0.0
  %v8848 = vand.u32 %v8729, 4294901760
  %v8849 = vsub.f32 %v8729, %v8848
  %v8850 = vand.u32 %v8849, 4294901760
  %v8851 = vsub.f32 %v8849, %v8850
  %v8852 = vand.u32 %v8851, 4294901760
  %8853 = vmatpush1.msra.mxu0 %v8852
  %8854 = vmatprep.subr.mxu0 0.0
  %v8855 = vand.u32 %v8728, 4294901760
  %v8856 = vsub.f32 %v8728, %v8855
  %v8857 = vand.u32 %v8856, 4294901760
  %v8858 = vsub.f32 %v8856, %v8857
  %v8859 = vand.u32 %v8858, 4294901760
  %8860 = vmatpush1.msra.mxu0 %v8859
  %8861 = vmatprep.subr.mxu0 0.0
  %v8862 = vand.u32 %v8727, 4294901760
  %v8863 = vsub.f32 %v8727, %v8862
  %v8864 = vand.u32 %v8863, 4294901760
  %v8865 = vsub.f32 %v8863, %v8864
  %v8866 = vand.u32 %v8865, 4294901760
  %8867 = vmatpush1.msra.mxu0 %v8866
  %8868 = vmatprep.subr.mxu0 0.0
  %v8869 = vand.u32 %v8726, 4294901760
  %v8870 = vsub.f32 %v8726, %v8869
  %v8871 = vand.u32 %v8870, 4294901760
  %v8872 = vsub.f32 %v8870, %v8871
  %v8873 = vand.u32 %v8872, 4294901760
  %8874 = vmatpush1.msra.mxu0 %v8873
  %8875 = vmatprep.subr.mxu0 0.0
  %v8876 = vand.u32 %v8725, 4294901760
  %v8877 = vsub.f32 %v8725, %v8876
  %v8878 = vand.u32 %v8877, 4294901760
  %v8879 = vsub.f32 %v8877, %v8878
  %v8880 = vand.u32 %v8879, 4294901760
  %8881 = vmatpush1.msra.mxu0 %v8880
  %8882 = vmatprep.subr.mxu0 0.0
  %v8883 = vand.u32 %v8724, 4294901760
  %v8884 = vsub.f32 %v8724, %v8883
  %v8885 = vand.u32 %v8884, 4294901760
  %v8886 = vsub.f32 %v8884, %v8885
  %v8887 = vand.u32 %v8886, 4294901760
  %8888 = vmatpush1.msra.mxu0 %v8887
  %8889 = vmatprep.subr.mxu0 0.0
  %v8890 = vand.u32 %v8723, 4294901760
  %v8891 = vsub.f32 %v8723, %v8890
  %v8892 = vand.u32 %v8891, 4294901760
  %v8893 = vsub.f32 %v8891, %v8892
  %v8894 = vand.u32 %v8893, 4294901760
  %8895 = vmatpush1.msra.mxu0 %v8894
  %8896 = vmatprep.subr.mxu0 0.0
  %v8897 = vand.u32 %v8722, 4294901760
  %v8898 = vsub.f32 %v8722, %v8897
  %v8899 = vand.u32 %v8898, 4294901760
  %v8900 = vsub.f32 %v8898, %v8899
  %v8901 = vand.u32 %v8900, 4294901760
  %8902 = vmatpush1.msra.mxu0 %v8901
  %8903 = vmatprep.subr.mxu0 0.0
  %v8904 = vand.u32 %v8721, 4294901760
  %v8905 = vsub.f32 %v8721, %v8904
  %v8906 = vand.u32 %v8905, 4294901760
  %v8907 = vsub.f32 %v8905, %v8906
  %v8908 = vand.u32 %v8907, 4294901760
  %8909 = vmatpush1.msra.mxu0 %v8908
  %8910 = vmatprep.subr.mxu0 0.0
  %v8911 = vand.u32 %v8720, 4294901760
  %v8912 = vsub.f32 %v8720, %v8911
  %v8913 = vand.u32 %v8912, 4294901760
  %v8914 = vsub.f32 %v8912, %v8913
  %v8915 = vand.u32 %v8914, 4294901760
  %8916 = vmatpush1.msra.mxu0 %v8915
  %8917 = vmatprep.subr.mxu0 0.0
  %v8918 = vand.u32 %v8719, 4294901760
  %v8919 = vsub.f32 %v8719, %v8918
  %v8920 = vand.u32 %v8919, 4294901760
  %v8921 = vsub.f32 %v8919, %v8920
  %v8922 = vand.u32 %v8921, 4294901760
  %8923 = vmatpush1.msra.mxu0 %v8922
  %8924 = vmatprep.subr.mxu0 0.0
  %v8925 = vand.u32 %v8718, 4294901760
  %v8926 = vsub.f32 %v8718, %v8925
  %v8927 = vand.u32 %v8926, 4294901760
  %v8928 = vsub.f32 %v8926, %v8927
  %v8929 = vand.u32 %v8928, 4294901760
  %8930 = vmatpush1.msra.mxu0 %v8929
  %8931 = vmatprep.subr.mxu0 0.0
  %v8932 = vand.u32 %v8717, 4294901760
  %v8933 = vsub.f32 %v8717, %v8932
  %v8934 = vand.u32 %v8933, 4294901760
  %v8935 = vsub.f32 %v8933, %v8934
  %v8936 = vand.u32 %v8935, 4294901760
  %8937 = vmatpush1.msra.mxu0 %v8936
  %8938 = vmatprep.subr.mxu0 0.0
  %v8939 = vand.u32 %v8716, 4294901760
  %v8940 = vsub.f32 %v8716, %v8939
  %v8941 = vand.u32 %v8940, 4294901760
  %v8942 = vsub.f32 %v8940, %v8941
  %v8943 = vand.u32 %v8942, 4294901760
  %8944 = vmatpush1.msra.mxu0 %v8943
  %8945 = vmatprep.subr.mxu0 0.0
  %8946 = vmatpush2.msra.mxu0 0.0
  %8947 = vmatprep.subr.mxu0 0.0
  %8948 = vmatpush2.msra.mxu0 0.0
  %8949 = vmatprep.subr.mxu0 0.0
  %8950 = vmatpush2.msra.mxu0 0.0
  %8951 = vmatprep.subr.mxu0 0.0
  %8952 = vmatpush2.msra.mxu0 0.0
  %8953 = vmatprep.subr.mxu0 0.0
  %8954 = vmatpush2.msra.mxu0 0.0
  %8955 = vmatprep.subr.mxu0 0.0
  %8956 = vmatpush2.msra.mxu0 0.0
  %8957 = vmatprep.subr.mxu0 0.0
  %8958 = vmatpush2.msra.mxu0 0.0
  %8959 = vmatprep.subr.mxu0 0.0
  %8960 = vmatpush2.msra.mxu0 0.0
  %8961 = vmatprep.subr.mxu0 0.0
  %8962 = vmatpush2.msra.mxu0 0.0
  %8963 = vmatprep.subr.mxu0 0.0
  %8964 = vmatpush2.msra.mxu0 0.0
  %8965 = vmatprep.subr.mxu0 0.0
  %8966 = vmatpush2.msra.mxu0 0.0
  %8967 = vmatprep.subr.mxu0 0.0
  %8968 = vmatpush2.msra.mxu0 0.0
  %8969 = vmatprep.subr.mxu0 0.0
  %8970 = vmatpush2.msra.mxu0 0.0
  %8971 = vmatprep.subr.mxu0 0.0
  %8972 = vmatpush2.msra.mxu0 0.0
  %8973 = vmatprep.subr.mxu0 0.0
  %8974 = vmatpush2.msra.mxu0 0.0
  %8975 = vmatprep.subr.mxu0 0.0
  %8976 = vmatpush2.msra.mxu0 0.0
  %8977 = vmatprep.mubr.f32.mxu0 0.0
  %v8978 = vand.u32 %v8709, 4294901760
  %8979 = vmatmul.mubr.f32.gmra.mxu0 %v8978
  %v8980 = vpop.f32.mrf.mxu0
  %v8981 = vadd.f32 %v8820, %v8980
  %v8982 = vpop.f32.mrf.mxu0
  %8983 = vmatprep.mubr.f32.mxu0 0.0
  %v8984 = vand.u32 %v8712, 4294901760
  %8985 = vmatmul.mubr.f32.gmra.mxu0 %v8984
  %v8986 = vpop.f32.mrf.mxu0
  %v8987 = vadd.f32 %v8830, %v8986
  %v8988 = vpop.f32.mrf.mxu0
  %8989 = vdwg.mxu0
  %8990 = vmatprep.subr.mxu0 0.0
  %v8991 = vand.u32 %v8731, 4294901760
  %v8992 = vsub.f32 %v8731, %v8991
  %8993 = vmatpush1.msra.mxu0 %v8992
  %8994 = vmatprep.subr.mxu0 0.0
  %v8995 = vand.u32 %v8730, 4294901760
  %v8996 = vsub.f32 %v8730, %v8995
  %8997 = vmatpush1.msra.mxu0 %v8996
  %8998 = vmatprep.subr.mxu0 0.0
  %v8999 = vand.u32 %v8729, 4294901760
  %v9000 = vsub.f32 %v8729, %v8999
  %9001 = vmatpush1.msra.mxu0 %v9000
  %9002 = vmatprep.subr.mxu0 0.0
  %v9003 = vand.u32 %v8728, 4294901760
  %v9004 = vsub.f32 %v8728, %v9003
  %9005 = vmatpush1.msra.mxu0 %v9004
  %9006 = vmatprep.subr.mxu0 0.0
  %v9007 = vand.u32 %v8727, 4294901760
  %v9008 = vsub.f32 %v8727, %v9007
  %9009 = vmatpush1.msra.mxu0 %v9008
  %9010 = vmatprep.subr.mxu0 0.0
  %v9011 = vand.u32 %v8726, 4294901760
  %v9012 = vsub.f32 %v8726, %v9011
  %9013 = vmatpush1.msra.mxu0 %v9012
  %9014 = vmatprep.subr.mxu0 0.0
  %v9015 = vand.u32 %v8725, 4294901760
  %v9016 = vsub.f32 %v8725, %v9015
  %9017 = vmatpush1.msra.mxu0 %v9016
  %9018 = vmatprep.subr.mxu0 0.0
  %v9019 = vand.u32 %v8724, 4294901760
  %v9020 = vsub.f32 %v8724, %v9019
  %9021 = vmatpush1.msra.mxu0 %v9020
  %9022 = vmatprep.subr.mxu0 0.0
  %v9023 = vand.u32 %v8723, 4294901760
  %v9024 = vsub.f32 %v8723, %v9023
  %9025 = vmatpush1.msra.mxu0 %v9024
  %9026 = vmatprep.subr.mxu0 0.0
  %v9027 = vand.u32 %v8722, 4294901760
  %v9028 = vsub.f32 %v8722, %v9027
  %9029 = vmatpush1.msra.mxu0 %v9028
  %9030 = vmatprep.subr.mxu0 0.0
  %v9031 = vand.u32 %v8721, 4294901760
  %v9032 = vsub.f32 %v8721, %v9031
  %9033 = vmatpush1.msra.mxu0 %v9032
  %9034 = vmatprep.subr.mxu0 0.0
  %v9035 = vand.u32 %v8720, 4294901760
  %v9036 = vsub.f32 %v8720, %v9035
  %9037 = vmatpush1.msra.mxu0 %v9036
  %9038 = vmatprep.subr.mxu0 0.0
  %v9039 = vand.u32 %v8719, 4294901760
  %v9040 = vsub.f32 %v8719, %v9039
  %9041 = vmatpush1.msra.mxu0 %v9040
  %9042 = vmatprep.subr.mxu0 0.0
  %v9043 = vand.u32 %v8718, 4294901760
  %v9044 = vsub.f32 %v8718, %v9043
  %9045 = vmatpush1.msra.mxu0 %v9044
  %9046 = vmatprep.subr.mxu0 0.0
  %v9047 = vand.u32 %v8717, 4294901760
  %v9048 = vsub.f32 %v8717, %v9047
  %9049 = vmatpush1.msra.mxu0 %v9048
  %9050 = vmatprep.subr.mxu0 0.0
  %v9051 = vand.u32 %v8716, 4294901760
  %v9052 = vsub.f32 %v8716, %v9051
  %9053 = vmatpush1.msra.mxu0 %v9052
  %9054 = vmatprep.subr.mxu0 0.0
  %9055 = vmatpush2.msra.mxu0 0.0
  %9056 = vmatprep.subr.mxu0 0.0
  %9057 = vmatpush2.msra.mxu0 0.0
  %9058 = vmatprep.subr.mxu0 0.0
  %9059 = vmatpush2.msra.mxu0 0.0
  %9060 = vmatprep.subr.mxu0 0.0
  %9061 = vmatpush2.msra.mxu0 0.0
  %9062 = vmatprep.subr.mxu0 0.0
  %9063 = vmatpush2.msra.mxu0 0.0
  %9064 = vmatprep.subr.mxu0 0.0
  %9065 = vmatpush2.msra.mxu0 0.0
  %9066 = vmatprep.subr.mxu0 0.0
  %9067 = vmatpush2.msra.mxu0 0.0
  %9068 = vmatprep.subr.mxu0 0.0
  %9069 = vmatpush2.msra.mxu0 0.0
  %9070 = vmatprep.subr.mxu0 0.0
  %9071 = vmatpush2.msra.mxu0 0.0
  %9072 = vmatprep.subr.mxu0 0.0
  %9073 = vmatpush2.msra.mxu0 0.0
  %9074 = vmatprep.subr.mxu0 0.0
  %9075 = vmatpush2.msra.mxu0 0.0
  %9076 = vmatprep.subr.mxu0 0.0
  %9077 = vmatpush2.msra.mxu0 0.0
  %9078 = vmatprep.subr.mxu0 0.0
  %9079 = vmatpush2.msra.mxu0 0.0
  %9080 = vmatprep.subr.mxu0 0.0
  %9081 = vmatpush2.msra.mxu0 0.0
  %9082 = vmatprep.subr.mxu0 0.0
  %9083 = vmatpush2.msra.mxu0 0.0
  %9084 = vmatprep.subr.mxu0 0.0
  %9085 = vmatpush2.msra.mxu0 0.0
  %9086 = vmatprep.mubr.f32.mxu0 0.0
  %v9087 = vand.u32 %v8709, 4294901760
  %v9088 = vsub.f32 %v8709, %v9087
  %9089 = vmatmul.mubr.f32.gmra.mxu0 %v9088
  %v9090 = vpop.f32.mrf.mxu0
  %v9091 = vadd.f32 %v8981, %v9090
  %v9092 = vpop.f32.mrf.mxu0
  %9093 = vmatprep.mubr.f32.mxu0 0.0
  %v9094 = vand.u32 %v8712, 4294901760
  %v9095 = vsub.f32 %v8712, %v9094
  %9096 = vmatmul.mubr.f32.gmra.mxu0 %v9095
  %v9097 = vpop.f32.mrf.mxu0
  %v9098 = vadd.f32 %v8987, %v9097
  %v9099 = vpop.f32.mrf.mxu0
  %9100 = vdwg.mxu0
  %9101 = vmatprep.subr.mxu0 0.0
  %v9102 = vand.u32 %v8731, 4294901760
  %9103 = vmatpush1.msra.mxu0 %v9102
  %9104 = vmatprep.subr.mxu0 0.0
  %v9105 = vand.u32 %v8730, 4294901760
  %9106 = vmatpush1.msra.mxu0 %v9105
  %9107 = vmatprep.subr.mxu0 0.0
  %v9108 = vand.u32 %v8729, 4294901760
  %9109 = vmatpush1.msra.mxu0 %v9108
  %9110 = vmatprep.subr.mxu0 0.0
  %v9111 = vand.u32 %v8728, 4294901760
  %9112 = vmatpush1.msra.mxu0 %v9111
  %9113 = vmatprep.subr.mxu0 0.0
  %v9114 = vand.u32 %v8727, 4294901760
  %9115 = vmatpush1.msra.mxu0 %v9114
  %9116 = vmatprep.subr.mxu0 0.0
  %v9117 = vand.u32 %v8726, 4294901760
  %9118 = vmatpush1.msra.mxu0 %v9117
  %9119 = vmatprep.subr.mxu0 0.0
  %v9120 = vand.u32 %v8725, 4294901760
  %9121 = vmatpush1.msra.mxu0 %v9120
  %9122 = vmatprep.subr.mxu0 0.0
  %v9123 = vand.u32 %v8724, 4294901760
  %9124 = vmatpush1.msra.mxu0 %v9123
  %9125 = vmatprep.subr.mxu0 0.0
  %v9126 = vand.u32 %v8723, 4294901760
  %9127 = vmatpush1.msra.mxu0 %v9126
  %9128 = vmatprep.subr.mxu0 0.0
  %v9129 = vand.u32 %v8722, 4294901760
  %9130 = vmatpush1.msra.mxu0 %v9129
  %9131 = vmatprep.subr.mxu0 0.0
  %v9132 = vand.u32 %v8721, 4294901760
  %9133 = vmatpush1.msra.mxu0 %v9132
  %9134 = vmatprep.subr.mxu0 0.0
  %v9135 = vand.u32 %v8720, 4294901760
  %9136 = vmatpush1.msra.mxu0 %v9135
  %9137 = vmatprep.subr.mxu0 0.0
  %v9138 = vand.u32 %v8719, 4294901760
  %9139 = vmatpush1.msra.mxu0 %v9138
  %9140 = vmatprep.subr.mxu0 0.0
  %v9141 = vand.u32 %v8718, 4294901760
  %9142 = vmatpush1.msra.mxu0 %v9141
  %9143 = vmatprep.subr.mxu0 0.0
  %v9144 = vand.u32 %v8717, 4294901760
  %9145 = vmatpush1.msra.mxu0 %v9144
  %9146 = vmatprep.subr.mxu0 0.0
  %v9147 = vand.u32 %v8716, 4294901760
  %9148 = vmatpush1.msra.mxu0 %v9147
  %9149 = vmatprep.subr.mxu0 0.0
  %9150 = vmatpush2.msra.mxu0 0.0
  %9151 = vmatprep.subr.mxu0 0.0
  %9152 = vmatpush2.msra.mxu0 0.0
  %9153 = vmatprep.subr.mxu0 0.0
  %9154 = vmatpush2.msra.mxu0 0.0
  %9155 = vmatprep.subr.mxu0 0.0
  %9156 = vmatpush2.msra.mxu0 0.0
  %9157 = vmatprep.subr.mxu0 0.0
  %9158 = vmatpush2.msra.mxu0 0.0
  %9159 = vmatprep.subr.mxu0 0.0
  %9160 = vmatpush2.msra.mxu0 0.0
  %9161 = vmatprep.subr.mxu0 0.0
  %9162 = vmatpush2.msra.mxu0 0.0
  %9163 = vmatprep.subr.mxu0 0.0
  %9164 = vmatpush2.msra.mxu0 0.0
  %9165 = vmatprep.subr.mxu0 0.0
  %9166 = vmatpush2.msra.mxu0 0.0
  %9167 = vmatprep.subr.mxu0 0.0
  %9168 = vmatpush2.msra.mxu0 0.0
  %9169 = vmatprep.subr.mxu0 0.0
  %9170 = vmatpush2.msra.mxu0 0.0
  %9171 = vmatprep.subr.mxu0 0.0
  %9172 = vmatpush2.msra.mxu0 0.0
  %9173 = vmatprep.subr.mxu0 0.0
  %9174 = vmatpush2.msra.mxu0 0.0
  %9175 = vmatprep.subr.mxu0 0.0
  %9176 = vmatpush2.msra.mxu0 0.0
  %9177 = vmatprep.subr.mxu0 0.0
  %9178 = vmatpush2.msra.mxu0 0.0
  %9179 = vmatprep.subr.mxu0 0.0
  %9180 = vmatpush2.msra.mxu0 0.0
  %9181 = vmatprep.mubr.f32.mxu0 0.0
  %v9182 = vand.u32 %v8709, 4294901760
  %v9183 = vsub.f32 %v8709, %v9182
  %v9184 = vand.u32 %v9183, 4294901760
  %9185 = vmatmul.mubr.f32.gmra.mxu0 %v9184
  %v9186 = vpop.f32.mrf.mxu0
  %v9187 = vadd.f32 %v9091, %v9186
  %v9188 = vpop.f32.mrf.mxu0
  %9189 = vmatprep.mubr.f32.mxu0 0.0
  %v9190 = vand.u32 %v8712, 4294901760
  %v9191 = vsub.f32 %v8712, %v9190
  %v9192 = vand.u32 %v9191, 4294901760
  %9193 = vmatmul.mubr.f32.gmra.mxu0 %v9192
  %v9194 = vpop.f32.mrf.mxu0
  %v9195 = vadd.f32 %v9098, %v9194
  %v9196 = vpop.f32.mrf.mxu0
  %9197 = vdwg.mxu0
  %9198 = vmatprep.subr.mxu0 0.0
  %v9199 = vand.u32 %v8731, 4294901760
  %v9200 = vsub.f32 %v8731, %v9199
  %v9201 = vand.u32 %v9200, 4294901760
  %9202 = vmatpush1.msra.mxu0 %v9201
  %9203 = vmatprep.subr.mxu0 0.0
  %v9204 = vand.u32 %v8730, 4294901760
  %v9205 = vsub.f32 %v8730, %v9204
  %v9206 = vand.u32 %v9205, 4294901760
  %9207 = vmatpush1.msra.mxu0 %v9206
  %9208 = vmatprep.subr.mxu0 0.0
  %v9209 = vand.u32 %v8729, 4294901760
  %v9210 = vsub.f32 %v8729, %v9209
  %v9211 = vand.u32 %v9210, 4294901760
  %9212 = vmatpush1.msra.mxu0 %v9211
  %9213 = vmatprep.subr.mxu0 0.0
  %v9214 = vand.u32 %v8728, 4294901760
  %v9215 = vsub.f32 %v8728, %v9214
  %v9216 = vand.u32 %v9215, 4294901760
  %9217 = vmatpush1.msra.mxu0 %v9216
  %9218 = vmatprep.subr.mxu0 0.0
  %v9219 = vand.u32 %v8727, 4294901760
  %v9220 = vsub.f32 %v8727, %v9219
  %v9221 = vand.u32 %v9220, 4294901760
  %9222 = vmatpush1.msra.mxu0 %v9221
  %9223 = vmatprep.subr.mxu0 0.0
  %v9224 = vand.u32 %v8726, 4294901760
  %v9225 = vsub.f32 %v8726, %v9224
  %v9226 = vand.u32 %v9225, 4294901760
  %9227 = vmatpush1.msra.mxu0 %v9226
  %9228 = vmatprep.subr.mxu0 0.0
  %v9229 = vand.u32 %v8725, 4294901760
  %v9230 = vsub.f32 %v8725, %v9229
  %v9231 = vand.u32 %v9230, 4294901760
  %9232 = vmatpush1.msra.mxu0 %v9231
  %9233 = vmatprep.subr.mxu0 0.0
  %v9234 = vand.u32 %v8724, 4294901760
  %v9235 = vsub.f32 %v8724, %v9234
  %v9236 = vand.u32 %v9235, 4294901760
  %9237 = vmatpush1.msra.mxu0 %v9236
  %9238 = vmatprep.subr.mxu0 0.0
  %v9239 = vand.u32 %v8723, 4294901760
  %v9240 = vsub.f32 %v8723, %v9239
  %v9241 = vand.u32 %v9240, 4294901760
  %9242 = vmatpush1.msra.mxu0 %v9241
  %9243 = vmatprep.subr.mxu0 0.0
  %v9244 = vand.u32 %v8722, 4294901760
  %v9245 = vsub.f32 %v8722, %v9244
  %v9246 = vand.u32 %v9245, 4294901760
  %9247 = vmatpush1.msra.mxu0 %v9246
  %9248 = vmatprep.subr.mxu0 0.0
  %v9249 = vand.u32 %v8721, 4294901760
  %v9250 = vsub.f32 %v8721, %v9249
  %v9251 = vand.u32 %v9250, 4294901760
  %9252 = vmatpush1.msra.mxu0 %v9251
  %9253 = vmatprep.subr.mxu0 0.0
  %v9254 = vand.u32 %v8720, 4294901760
  %v9255 = vsub.f32 %v8720, %v9254
  %v9256 = vand.u32 %v9255, 4294901760
  %9257 = vmatpush1.msra.mxu0 %v9256
  %9258 = vmatprep.subr.mxu0 0.0
  %v9259 = vand.u32 %v8719, 4294901760
  %v9260 = vsub.f32 %v8719, %v9259
  %v9261 = vand.u32 %v9260, 4294901760
  %9262 = vmatpush1.msra.mxu0 %v9261
  %9263 = vmatprep.subr.mxu0 0.0
  %v9264 = vand.u32 %v8718, 4294901760
  %v9265 = vsub.f32 %v8718, %v9264
  %v9266 = vand.u32 %v9265, 4294901760
  %9267 = vmatpush1.msra.mxu0 %v9266
  %9268 = vmatprep.subr.mxu0 0.0
  %v9269 = vand.u32 %v8717, 4294901760
  %v9270 = vsub.f32 %v8717, %v9269
  %v9271 = vand.u32 %v9270, 4294901760
  %9272 = vmatpush1.msra.mxu0 %v9271
  %9273 = vmatprep.subr.mxu0 0.0
  %v9274 = vand.u32 %v8716, 4294901760
  %v9275 = vsub.f32 %v8716, %v9274
  %v9276 = vand.u32 %v9275, 4294901760
  %9277 = vmatpush1.msra.mxu0 %v9276
  %9278 = vmatprep.subr.mxu0 0.0
  %9279 = vmatpush2.msra.mxu0 0.0
  %9280 = vmatprep.subr.mxu0 0.0
  %9281 = vmatpush2.msra.mxu0 0.0
  %9282 = vmatprep.subr.mxu0 0.0
  %9283 = vmatpush2.msra.mxu0 0.0
  %9284 = vmatprep.subr.mxu0 0.0
  %9285 = vmatpush2.msra.mxu0 0.0
  %9286 = vmatprep.subr.mxu0 0.0
  %9287 = vmatpush2.msra.mxu0 0.0
  %9288 = vmatprep.subr.mxu0 0.0
  %9289 = vmatpush2.msra.mxu0 0.0
  %9290 = vmatprep.subr.mxu0 0.0
  %9291 = vmatpush2.msra.mxu0 0.0
  %9292 = vmatprep.subr.mxu0 0.0
  %9293 = vmatpush2.msra.mxu0 0.0
  %9294 = vmatprep.subr.mxu0 0.0
  %9295 = vmatpush2.msra.mxu0 0.0
  %9296 = vmatprep.subr.mxu0 0.0
  %9297 = vmatpush2.msra.mxu0 0.0
  %9298 = vmatprep.subr.mxu0 0.0
  %9299 = vmatpush2.msra.mxu0 0.0
  %9300 = vmatprep.subr.mxu0 0.0
  %9301 = vmatpush2.msra.mxu0 0.0
  %9302 = vmatprep.subr.mxu0 0.0
  %9303 = vmatpush2.msra.mxu0 0.0
  %9304 = vmatprep.subr.mxu0 0.0
  %9305 = vmatpush2.msra.mxu0 0.0
  %9306 = vmatprep.subr.mxu0 0.0
  %9307 = vmatpush2.msra.mxu0 0.0
  %9308 = vmatprep.subr.mxu0 0.0
  %9309 = vmatpush2.msra.mxu0 0.0
  %9310 = vmatprep.mubr.f32.mxu0 0.0
  %v9311 = vand.u32 %v8709, 4294901760
  %9312 = vmatmul.mubr.f32.gmra.mxu0 %v9311
  %v9313 = vpop.f32.mrf.mxu0
  %v9314 = vadd.f32 %v9187, %v9313
  %v9315 = vpop.f32.mrf.mxu0
  %9316 = vmatprep.mubr.f32.mxu0 0.0
  %v9317 = vand.u32 %v8712, 4294901760
  %9318 = vmatmul.mubr.f32.gmra.mxu0 %v9317
  %v9319 = vpop.f32.mrf.mxu0
  %v9320 = vadd.f32 %v9195, %v9319
  %v9321 = vpop.f32.mrf.mxu0
  %9322 = vdwg.mxu0
  %9323 = vmatprep.subr.mxu0 0.0
  %v9324 = vand.u32 %v8731, 4294901760
  %9325 = vmatpush1.msra.mxu0 %v9324
  %9326 = vmatprep.subr.mxu0 0.0
  %v9327 = vand.u32 %v8730, 4294901760
  %9328 = vmatpush1.msra.mxu0 %v9327
  %9329 = vmatprep.subr.mxu0 0.0
  %v9330 = vand.u32 %v8729, 4294901760
  %9331 = vmatpush1.msra.mxu0 %v9330
  %9332 = vmatprep.subr.mxu0 0.0
  %v9333 = vand.u32 %v8728, 4294901760
  %9334 = vmatpush1.msra.mxu0 %v9333
  %9335 = vmatprep.subr.mxu0 0.0
  %v9336 = vand.u32 %v8727, 4294901760
  %9337 = vmatpush1.msra.mxu0 %v9336
  %9338 = vmatprep.subr.mxu0 0.0
  %v9339 = vand.u32 %v8726, 4294901760
  %9340 = vmatpush1.msra.mxu0 %v9339
  %9341 = vmatprep.subr.mxu0 0.0
  %v9342 = vand.u32 %v8725, 4294901760
  %9343 = vmatpush1.msra.mxu0 %v9342
  %9344 = vmatprep.subr.mxu0 0.0
  %v9345 = vand.u32 %v8724, 4294901760
  %9346 = vmatpush1.msra.mxu0 %v9345
  %9347 = vmatprep.subr.mxu0 0.0
  %v9348 = vand.u32 %v8723, 4294901760
  %9349 = vmatpush1.msra.mxu0 %v9348
  %9350 = vmatprep.subr.mxu0 0.0
  %v9351 = vand.u32 %v8722, 4294901760
  %9352 = vmatpush1.msra.mxu0 %v9351
  %9353 = vmatprep.subr.mxu0 0.0
  %v9354 = vand.u32 %v8721, 4294901760
  %9355 = vmatpush1.msra.mxu0 %v9354
  %9356 = vmatprep.subr.mxu0 0.0
  %v9357 = vand.u32 %v8720, 4294901760
  %9358 = vmatpush1.msra.mxu0 %v9357
  %9359 = vmatprep.subr.mxu0 0.0
  %v9360 = vand.u32 %v8719, 4294901760
  %9361 = vmatpush1.msra.mxu0 %v9360
  %9362 = vmatprep.subr.mxu0 0.0
  %v9363 = vand.u32 %v8718, 4294901760
  %9364 = vmatpush1.msra.mxu0 %v9363
  %9365 = vmatprep.subr.mxu0 0.0
  %v9366 = vand.u32 %v8717, 4294901760
  %9367 = vmatpush1.msra.mxu0 %v9366
  %9368 = vmatprep.subr.mxu0 0.0
  %v9369 = vand.u32 %v8716, 4294901760
  %9370 = vmatpush1.msra.mxu0 %v9369
  %9371 = vmatprep.subr.mxu0 0.0
  %9372 = vmatpush2.msra.mxu0 0.0
  %9373 = vmatprep.subr.mxu0 0.0
  %9374 = vmatpush2.msra.mxu0 0.0
  %9375 = vmatprep.subr.mxu0 0.0
  %9376 = vmatpush2.msra.mxu0 0.0
  %9377 = vmatprep.subr.mxu0 0.0
  %9378 = vmatpush2.msra.mxu0 0.0
  %9379 = vmatprep.subr.mxu0 0.0
  %9380 = vmatpush2.msra.mxu0 0.0
  %9381 = vmatprep.subr.mxu0 0.0
  %9382 = vmatpush2.msra.mxu0 0.0
  %9383 = vmatprep.subr.mxu0 0.0
  %9384 = vmatpush2.msra.mxu0 0.0
  %9385 = vmatprep.subr.mxu0 0.0
  %9386 = vmatpush2.msra.mxu0 0.0
  %9387 = vmatprep.subr.mxu0 0.0
  %9388 = vmatpush2.msra.mxu0 0.0
  %9389 = vmatprep.subr.mxu0 0.0
  %9390 = vmatpush2.msra.mxu0 0.0
  %9391 = vmatprep.subr.mxu0 0.0
  %9392 = vmatpush2.msra.mxu0 0.0
  %9393 = vmatprep.subr.mxu0 0.0
  %9394 = vmatpush2.msra.mxu0 0.0
  %9395 = vmatprep.subr.mxu0 0.0
  %9396 = vmatpush2.msra.mxu0 0.0
  %9397 = vmatprep.subr.mxu0 0.0
  %9398 = vmatpush2.msra.mxu0 0.0
  %9399 = vmatprep.subr.mxu0 0.0
  %9400 = vmatpush2.msra.mxu0 0.0
  %9401 = vmatprep.subr.mxu0 0.0
  %9402 = vmatpush2.msra.mxu0 0.0
  %9403 = vmatprep.mubr.f32.mxu0 0.0
  %v9404 = vand.u32 %v8709, 4294901760
  %9405 = vmatmul.mubr.f32.gmra.mxu0 %v9404
  %v9406 = vpop.f32.mrf.mxu0
  %v9407 = vadd.f32 %v9314, %v9406
  %v9408 = vpop.f32.mrf.mxu0
  %9409 = vmatprep.mubr.f32.mxu0 0.0
  %v9410 = vand.u32 %v8712, 4294901760
  %9411 = vmatmul.mubr.f32.gmra.mxu0 %v9410
  %v9412 = vpop.f32.mrf.mxu0
  %v9413 = vadd.f32 %v9320, %v9412
  %v9414 = vpop.f32.mrf.mxu0
  %9415 = vdwg.mxu0
  %v9416 = vadd.f32 %v8698, %v9407
  %v9417 = vadd.f32 %v8704, %v9413
  %v9419 = vlaneseq
  %v9420 = vshrl.u32 %v9419, 7
  %v9421 = vsub.s32 0, %v9420
  %v9422 = vrot.slane %v7292, %v9421
  %v9424 = vadd.f32 %v9416, %v9422
  %v9425 = vadd.f32 %v9417, %v9422
  %v9426 = vmax.f32 %v9424, 0.0
  %v9427 = vmax.f32 %v9425, 0.0
  %v9430 = vrot.slane %v9426, 7
  %v9431 = vrot.slane %v9427, 7
  %v9434 = vsel %vm2547, 0.0, %v9430
  %v9435 = vsel %vm2547, 0.0, %v9431
  %v9436 = vsel %vm2547, %v9430, 0.0
  %v9437 = vsel %vm2547, %v9431, 0.0
  %s9438 = scalar_lea.vmem %s4, 3
  %v9439 = vld [vmem:[%s9438] sm:$0x1]
  %s9440 = scalar_lea.vmem %s3, 1152
  %v9441 = vld [vmem:[%s9440] sm:$0xff]
  %v9442 = vld [vmem:[%s9440 + $0x8] sm:$0xff]
  %v9443 = vld [vmem:[%s9440 + $0x10] sm:$0xff]
  %v9444 = vld [vmem:[%s9440 + $0x18] sm:$0xff]
  %v9445 = vld [vmem:[%s9440 + $0x20] sm:$0xff]
  %v9446 = vld [vmem:[%s9440 + $0x28] sm:$0xff]
  %v9447 = vld [vmem:[%s9440 + $0x30] sm:$0xff]
  %v9448 = vld [vmem:[%s9440 + $0x38] sm:$0xff]
  %v9449 = vld [vmem:[%s9440 + $0x40] sm:$0xff]
  %v9450 = vld [vmem:[%s9440 + $0x48] sm:$0xff]
  %v9451 = vld [vmem:[%s9440 + $0x50] sm:$0xff]
  %v9452 = vld [vmem:[%s9440 + $0x58] sm:$0xff]
  %v9453 = vld [vmem:[%s9440 + $0x60] sm:$0xff]
  %v9454 = vld [vmem:[%s9440 + $0x68] sm:$0xff]
  %v9455 = vld [vmem:[%s9440 + $0x70] sm:$0xff]
  %v9456 = vld [vmem:[%s9440 + $0x78] sm:$0xff]
  %v9461 = vrot.slane %v9434, 1
  %v9462 = vrot.slane %v9436, 1
  %v9463 = vsel %vm49, %v9461, %v9462
  %v9464 = vrot.slane %v9435, 1
  %v9465 = vrot.slane %v9437, 1
  %v9466 = vsel %vm49, %v9464, %v9465
  %s9469 = scalar_lea.vmem %s3, 1280
  %v9470 = vld [vmem:[%s9469] sm:$0xff]
  %v9471 = vld [vmem:[%s9469 + $0x8] sm:$0xff]
  %v9472 = vld [vmem:[%s9469 + $0x10] sm:$0xff]
  %v9473 = vld [vmem:[%s9469 + $0x18] sm:$0xff]
  %v9474 = vld [vmem:[%s9469 + $0x20] sm:$0xff]
  %v9475 = vld [vmem:[%s9469 + $0x28] sm:$0xff]
  %v9476 = vld [vmem:[%s9469 + $0x30] sm:$0xff]
  %v9477 = vld [vmem:[%s9469 + $0x38] sm:$0xff]
  %v9478 = vld [vmem:[%s9469 + $0x40] sm:$0xff]
  %v9479 = vld [vmem:[%s9469 + $0x48] sm:$0xff]
  %v9480 = vld [vmem:[%s9469 + $0x50] sm:$0xff]
  %v9481 = vld [vmem:[%s9469 + $0x58] sm:$0xff]
  %v9482 = vld [vmem:[%s9469 + $0x60] sm:$0xff]
  %v9483 = vld [vmem:[%s9469 + $0x68] sm:$0xff]
  %v9484 = vld [vmem:[%s9469 + $0x70] sm:$0xff]
  %v9485 = vld [vmem:[%s9469 + $0x78] sm:$0xff]
  %9486 = vmatprep.subr.mxu0 0.0
  %v9487 = vand.u32 %v9485, 4294901760
  %9488 = vmatpush1.msra.mxu0 %v9487
  %9489 = vmatprep.subr.mxu0 0.0
  %v9490 = vand.u32 %v9484, 4294901760
  %9491 = vmatpush1.msra.mxu0 %v9490
  %9492 = vmatprep.subr.mxu0 0.0
  %v9493 = vand.u32 %v9483, 4294901760
  %9494 = vmatpush1.msra.mxu0 %v9493
  %9495 = vmatprep.subr.mxu0 0.0
  %v9496 = vand.u32 %v9482, 4294901760
  %9497 = vmatpush1.msra.mxu0 %v9496
  %9498 = vmatprep.subr.mxu0 0.0
  %v9499 = vand.u32 %v9481, 4294901760
  %9500 = vmatpush1.msra.mxu0 %v9499
  %9501 = vmatprep.subr.mxu0 0.0
  %v9502 = vand.u32 %v9480, 4294901760
  %9503 = vmatpush1.msra.mxu0 %v9502
  %9504 = vmatprep.subr.mxu0 0.0
  %v9505 = vand.u32 %v9479, 4294901760
  %9506 = vmatpush1.msra.mxu0 %v9505
  %9507 = vmatprep.subr.mxu0 0.0
  %v9508 = vand.u32 %v9478, 4294901760
  %9509 = vmatpush1.msra.mxu0 %v9508
  %9510 = vmatprep.subr.mxu0 0.0
  %v9511 = vand.u32 %v9477, 4294901760
  %9512 = vmatpush1.msra.mxu0 %v9511
  %9513 = vmatprep.subr.mxu0 0.0
  %v9514 = vand.u32 %v9476, 4294901760
  %9515 = vmatpush1.msra.mxu0 %v9514
  %9516 = vmatprep.subr.mxu0 0.0
  %v9517 = vand.u32 %v9475, 4294901760
  %9518 = vmatpush1.msra.mxu0 %v9517
  %9519 = vmatprep.subr.mxu0 0.0
  %v9520 = vand.u32 %v9474, 4294901760
  %9521 = vmatpush1.msra.mxu0 %v9520
  %9522 = vmatprep.subr.mxu0 0.0
  %v9523 = vand.u32 %v9473, 4294901760
  %9524 = vmatpush1.msra.mxu0 %v9523
  %9525 = vmatprep.subr.mxu0 0.0
  %v9526 = vand.u32 %v9472, 4294901760
  %9527 = vmatpush1.msra.mxu0 %v9526
  %9528 = vmatprep.subr.mxu0 0.0
  %v9529 = vand.u32 %v9471, 4294901760
  %9530 = vmatpush1.msra.mxu0 %v9529
  %9531 = vmatprep.subr.mxu0 0.0
  %v9532 = vand.u32 %v9470, 4294901760
  %9533 = vmatpush1.msra.mxu0 %v9532
  %9534 = vmatprep.subr.mxu0 0.0
  %9535 = vmatpush2.msra.mxu0 0.0
  %9536 = vmatprep.subr.mxu0 0.0
  %9537 = vmatpush2.msra.mxu0 0.0
  %9538 = vmatprep.subr.mxu0 0.0
  %9539 = vmatpush2.msra.mxu0 0.0
  %9540 = vmatprep.subr.mxu0 0.0
  %9541 = vmatpush2.msra.mxu0 0.0
  %9542 = vmatprep.subr.mxu0 0.0
  %9543 = vmatpush2.msra.mxu0 0.0
  %9544 = vmatprep.subr.mxu0 0.0
  %9545 = vmatpush2.msra.mxu0 0.0
  %9546 = vmatprep.subr.mxu0 0.0
  %9547 = vmatpush2.msra.mxu0 0.0
  %9548 = vmatprep.subr.mxu0 0.0
  %9549 = vmatpush2.msra.mxu0 0.0
  %9550 = vmatprep.subr.mxu0 0.0
  %9551 = vmatpush2.msra.mxu0 0.0
  %9552 = vmatprep.subr.mxu0 0.0
  %9553 = vmatpush2.msra.mxu0 0.0
  %9554 = vmatprep.subr.mxu0 0.0
  %9555 = vmatpush2.msra.mxu0 0.0
  %9556 = vmatprep.subr.mxu0 0.0
  %9557 = vmatpush2.msra.mxu0 0.0
  %9558 = vmatprep.subr.mxu0 0.0
  %9559 = vmatpush2.msra.mxu0 0.0
  %9560 = vmatprep.subr.mxu0 0.0
  %9561 = vmatpush2.msra.mxu0 0.0
  %9562 = vmatprep.subr.mxu0 0.0
  %9563 = vmatpush2.msra.mxu0 0.0
  %9564 = vmatprep.subr.mxu0 0.0
  %9565 = vmatpush2.msra.mxu0 0.0
  %9566 = vmatprep.mubr.f32.mxu0 0.0
  %v9567 = vand.u32 %v9463, 4294901760
  %v9568 = vsub.f32 %v9463, %v9567
  %v9569 = vand.u32 %v9568, 4294901760
  %v9570 = vsub.f32 %v9568, %v9569
  %v9571 = vand.u32 %v9570, 4294901760
  %9572 = vmatmul.mubr.f32.gmra.mxu0 %v9571
  %v9573 = vpop.f32.mrf.mxu0
  %v9574 = vadd.f32 0.0, %v9573
  %v9575 = vpop.f32.mrf.mxu0
  %9576 = vmatprep.mubr.f32.mxu0 0.0
  %v9577 = vand.u32 %v9466, 4294901760
  %v9578 = vsub.f32 %v9466, %v9577
  %v9579 = vand.u32 %v9578, 4294901760
  %v9580 = vsub.f32 %v9578, %v9579
  %v9581 = vand.u32 %v9580, 4294901760
  %9582 = vmatmul.mubr.f32.gmra.mxu0 %v9581
  %v9583 = vpop.f32.mrf.mxu0
  %v9584 = vadd.f32 0.0, %v9583
  %v9585 = vpop.f32.mrf.mxu0
  %9586 = vdwg.mxu0
  %9587 = vmatprep.subr.mxu0 0.0
  %v9588 = vand.u32 %v9485, 4294901760
  %v9589 = vsub.f32 %v9485, %v9588
  %v9590 = vand.u32 %v9589, 4294901760
  %v9591 = vsub.f32 %v9589, %v9590
  %v9592 = vand.u32 %v9591, 4294901760
  %9593 = vmatpush1.msra.mxu0 %v9592
  %9594 = vmatprep.subr.mxu0 0.0
  %v9595 = vand.u32 %v9484, 4294901760
  %v9596 = vsub.f32 %v9484, %v9595
  %v9597 = vand.u32 %v9596, 4294901760
  %v9598 = vsub.f32 %v9596, %v9597
  %v9599 = vand.u32 %v9598, 4294901760
  %9600 = vmatpush1.msra.mxu0 %v9599
  %9601 = vmatprep.subr.mxu0 0.0
  %v9602 = vand.u32 %v9483, 4294901760
  %v9603 = vsub.f32 %v9483, %v9602
  %v9604 = vand.u32 %v9603, 4294901760
  %v9605 = vsub.f32 %v9603, %v9604
  %v9606 = vand.u32 %v9605, 4294901760
  %9607 = vmatpush1.msra.mxu0 %v9606
  %9608 = vmatprep.subr.mxu0 0.0
  %v9609 = vand.u32 %v9482, 4294901760
  %v9610 = vsub.f32 %v9482, %v9609
  %v9611 = vand.u32 %v9610, 4294901760
  %v9612 = vsub.f32 %v9610, %v9611
  %v9613 = vand.u32 %v9612, 4294901760
  %9614 = vmatpush1.msra.mxu0 %v9613
  %9615 = vmatprep.subr.mxu0 0.0
  %v9616 = vand.u32 %v9481, 4294901760
  %v9617 = vsub.f32 %v9481, %v9616
  %v9618 = vand.u32 %v9617, 4294901760
  %v9619 = vsub.f32 %v9617, %v9618
  %v9620 = vand.u32 %v9619, 4294901760
  %9621 = vmatpush1.msra.mxu0 %v9620
  %9622 = vmatprep.subr.mxu0 0.0
  %v9623 = vand.u32 %v9480, 4294901760
  %v9624 = vsub.f32 %v9480, %v9623
  %v9625 = vand.u32 %v9624, 4294901760
  %v9626 = vsub.f32 %v9624, %v9625
  %v9627 = vand.u32 %v9626, 4294901760
  %9628 = vmatpush1.msra.mxu0 %v9627
  %9629 = vmatprep.subr.mxu0 0.0
  %v9630 = vand.u32 %v9479, 4294901760
  %v9631 = vsub.f32 %v9479, %v9630
  %v9632 = vand.u32 %v9631, 4294901760
  %v9633 = vsub.f32 %v9631, %v9632
  %v9634 = vand.u32 %v9633, 4294901760
  %9635 = vmatpush1.msra.mxu0 %v9634
  %9636 = vmatprep.subr.mxu0 0.0
  %v9637 = vand.u32 %v9478, 4294901760
  %v9638 = vsub.f32 %v9478, %v9637
  %v9639 = vand.u32 %v9638, 4294901760
  %v9640 = vsub.f32 %v9638, %v9639
  %v9641 = vand.u32 %v9640, 4294901760
  %9642 = vmatpush1.msra.mxu0 %v9641
  %9643 = vmatprep.subr.mxu0 0.0
  %v9644 = vand.u32 %v9477, 4294901760
  %v9645 = vsub.f32 %v9477, %v9644
  %v9646 = vand.u32 %v9645, 4294901760
  %v9647 = vsub.f32 %v9645, %v9646
  %v9648 = vand.u32 %v9647, 4294901760
  %9649 = vmatpush1.msra.mxu0 %v9648
  %9650 = vmatprep.subr.mxu0 0.0
  %v9651 = vand.u32 %v9476, 4294901760
  %v9652 = vsub.f32 %v9476, %v9651
  %v9653 = vand.u32 %v9652, 4294901760
  %v9654 = vsub.f32 %v9652, %v9653
  %v9655 = vand.u32 %v9654, 4294901760
  %9656 = vmatpush1.msra.mxu0 %v9655
  %9657 = vmatprep.subr.mxu0 0.0
  %v9658 = vand.u32 %v9475, 4294901760
  %v9659 = vsub.f32 %v9475, %v9658
  %v9660 = vand.u32 %v9659, 4294901760
  %v9661 = vsub.f32 %v9659, %v9660
  %v9662 = vand.u32 %v9661, 4294901760
  %9663 = vmatpush1.msra.mxu0 %v9662
  %9664 = vmatprep.subr.mxu0 0.0
  %v9665 = vand.u32 %v9474, 4294901760
  %v9666 = vsub.f32 %v9474, %v9665
  %v9667 = vand.u32 %v9666, 4294901760
  %v9668 = vsub.f32 %v9666, %v9667
  %v9669 = vand.u32 %v9668, 4294901760
  %9670 = vmatpush1.msra.mxu0 %v9669
  %9671 = vmatprep.subr.mxu0 0.0
  %v9672 = vand.u32 %v9473, 4294901760
  %v9673 = vsub.f32 %v9473, %v9672
  %v9674 = vand.u32 %v9673, 4294901760
  %v9675 = vsub.f32 %v9673, %v9674
  %v9676 = vand.u32 %v9675, 4294901760
  %9677 = vmatpush1.msra.mxu0 %v9676
  %9678 = vmatprep.subr.mxu0 0.0
  %v9679 = vand.u32 %v9472, 4294901760
  %v9680 = vsub.f32 %v9472, %v9679
  %v9681 = vand.u32 %v9680, 4294901760
  %v9682 = vsub.f32 %v9680, %v9681
  %v9683 = vand.u32 %v9682, 4294901760
  %9684 = vmatpush1.msra.mxu0 %v9683
  %9685 = vmatprep.subr.mxu0 0.0
  %v9686 = vand.u32 %v9471, 4294901760
  %v9687 = vsub.f32 %v9471, %v9686
  %v9688 = vand.u32 %v9687, 4294901760
  %v9689 = vsub.f32 %v9687, %v9688
  %v9690 = vand.u32 %v9689, 4294901760
  %9691 = vmatpush1.msra.mxu0 %v9690
  %9692 = vmatprep.subr.mxu0 0.0
  %v9693 = vand.u32 %v9470, 4294901760
  %v9694 = vsub.f32 %v9470, %v9693
  %v9695 = vand.u32 %v9694, 4294901760
  %v9696 = vsub.f32 %v9694, %v9695
  %v9697 = vand.u32 %v9696, 4294901760
  %9698 = vmatpush1.msra.mxu0 %v9697
  %9699 = vmatprep.subr.mxu0 0.0
  %9700 = vmatpush2.msra.mxu0 0.0
  %9701 = vmatprep.subr.mxu0 0.0
  %9702 = vmatpush2.msra.mxu0 0.0
  %9703 = vmatprep.subr.mxu0 0.0
  %9704 = vmatpush2.msra.mxu0 0.0
  %9705 = vmatprep.subr.mxu0 0.0
  %9706 = vmatpush2.msra.mxu0 0.0
  %9707 = vmatprep.subr.mxu0 0.0
  %9708 = vmatpush2.msra.mxu0 0.0
  %9709 = vmatprep.subr.mxu0 0.0
  %9710 = vmatpush2.msra.mxu0 0.0
  %9711 = vmatprep.subr.mxu0 0.0
  %9712 = vmatpush2.msra.mxu0 0.0
  %9713 = vmatprep.subr.mxu0 0.0
  %9714 = vmatpush2.msra.mxu0 0.0
  %9715 = vmatprep.subr.mxu0 0.0
  %9716 = vmatpush2.msra.mxu0 0.0
  %9717 = vmatprep.subr.mxu0 0.0
  %9718 = vmatpush2.msra.mxu0 0.0
  %9719 = vmatprep.subr.mxu0 0.0
  %9720 = vmatpush2.msra.mxu0 0.0
  %9721 = vmatprep.subr.mxu0 0.0
  %9722 = vmatpush2.msra.mxu0 0.0
  %9723 = vmatprep.subr.mxu0 0.0
  %9724 = vmatpush2.msra.mxu0 0.0
  %9725 = vmatprep.subr.mxu0 0.0
  %9726 = vmatpush2.msra.mxu0 0.0
  %9727 = vmatprep.subr.mxu0 0.0
  %9728 = vmatpush2.msra.mxu0 0.0
  %9729 = vmatprep.subr.mxu0 0.0
  %9730 = vmatpush2.msra.mxu0 0.0
  %9731 = vmatprep.mubr.f32.mxu0 0.0
  %v9732 = vand.u32 %v9463, 4294901760
  %9733 = vmatmul.mubr.f32.gmra.mxu0 %v9732
  %v9734 = vpop.f32.mrf.mxu0
  %v9735 = vadd.f32 %v9574, %v9734
  %v9736 = vpop.f32.mrf.mxu0
  %9737 = vmatprep.mubr.f32.mxu0 0.0
  %v9738 = vand.u32 %v9466, 4294901760
  %9739 = vmatmul.mubr.f32.gmra.mxu0 %v9738
  %v9740 = vpop.f32.mrf.mxu0
  %v9741 = vadd.f32 %v9584, %v9740
  %v9742 = vpop.f32.mrf.mxu0
  %9743 = vdwg.mxu0
  %9744 = vmatprep.subr.mxu0 0.0
  %v9745 = vand.u32 %v9485, 4294901760
  %v9746 = vsub.f32 %v9485, %v9745
  %9747 = vmatpush1.msra.mxu0 %v9746
  %9748 = vmatprep.subr.mxu0 0.0
  %v9749 = vand.u32 %v9484, 4294901760
  %v9750 = vsub.f32 %v9484, %v9749
  %9751 = vmatpush1.msra.mxu0 %v9750
  %9752 = vmatprep.subr.mxu0 0.0
  %v9753 = vand.u32 %v9483, 4294901760
  %v9754 = vsub.f32 %v9483, %v9753
  %9755 = vmatpush1.msra.mxu0 %v9754
  %9756 = vmatprep.subr.mxu0 0.0
  %v9757 = vand.u32 %v9482, 4294901760
  %v9758 = vsub.f32 %v9482, %v9757
  %9759 = vmatpush1.msra.mxu0 %v9758
  %9760 = vmatprep.subr.mxu0 0.0
  %v9761 = vand.u32 %v9481, 4294901760
  %v9762 = vsub.f32 %v9481, %v9761
  %9763 = vmatpush1.msra.mxu0 %v9762
  %9764 = vmatprep.subr.mxu0 0.0
  %v9765 = vand.u32 %v9480, 4294901760
  %v9766 = vsub.f32 %v9480, %v9765
  %9767 = vmatpush1.msra.mxu0 %v9766
  %9768 = vmatprep.subr.mxu0 0.0
  %v9769 = vand.u32 %v9479, 4294901760
  %v9770 = vsub.f32 %v9479, %v9769
  %9771 = vmatpush1.msra.mxu0 %v9770
  %9772 = vmatprep.subr.mxu0 0.0
  %v9773 = vand.u32 %v9478, 4294901760
  %v9774 = vsub.f32 %v9478, %v9773
  %9775 = vmatpush1.msra.mxu0 %v9774
  %9776 = vmatprep.subr.mxu0 0.0
  %v9777 = vand.u32 %v9477, 4294901760
  %v9778 = vsub.f32 %v9477, %v9777
  %9779 = vmatpush1.msra.mxu0 %v9778
  %9780 = vmatprep.subr.mxu0 0.0
  %v9781 = vand.u32 %v9476, 4294901760
  %v9782 = vsub.f32 %v9476, %v9781
  %9783 = vmatpush1.msra.mxu0 %v9782
  %9784 = vmatprep.subr.mxu0 0.0
  %v9785 = vand.u32 %v9475, 4294901760
  %v9786 = vsub.f32 %v9475, %v9785
  %9787 = vmatpush1.msra.mxu0 %v9786
  %9788 = vmatprep.subr.mxu0 0.0
  %v9789 = vand.u32 %v9474, 4294901760
  %v9790 = vsub.f32 %v9474, %v9789
  %9791 = vmatpush1.msra.mxu0 %v9790
  %9792 = vmatprep.subr.mxu0 0.0
  %v9793 = vand.u32 %v9473, 4294901760
  %v9794 = vsub.f32 %v9473, %v9793
  %9795 = vmatpush1.msra.mxu0 %v9794
  %9796 = vmatprep.subr.mxu0 0.0
  %v9797 = vand.u32 %v9472, 4294901760
  %v9798 = vsub.f32 %v9472, %v9797
  %9799 = vmatpush1.msra.mxu0 %v9798
  %9800 = vmatprep.subr.mxu0 0.0
  %v9801 = vand.u32 %v9471, 4294901760
  %v9802 = vsub.f32 %v9471, %v9801
  %9803 = vmatpush1.msra.mxu0 %v9802
  %9804 = vmatprep.subr.mxu0 0.0
  %v9805 = vand.u32 %v9470, 4294901760
  %v9806 = vsub.f32 %v9470, %v9805
  %9807 = vmatpush1.msra.mxu0 %v9806
  %9808 = vmatprep.subr.mxu0 0.0
  %9809 = vmatpush2.msra.mxu0 0.0
  %9810 = vmatprep.subr.mxu0 0.0
  %9811 = vmatpush2.msra.mxu0 0.0
  %9812 = vmatprep.subr.mxu0 0.0
  %9813 = vmatpush2.msra.mxu0 0.0
  %9814 = vmatprep.subr.mxu0 0.0
  %9815 = vmatpush2.msra.mxu0 0.0
  %9816 = vmatprep.subr.mxu0 0.0
  %9817 = vmatpush2.msra.mxu0 0.0
  %9818 = vmatprep.subr.mxu0 0.0
  %9819 = vmatpush2.msra.mxu0 0.0
  %9820 = vmatprep.subr.mxu0 0.0
  %9821 = vmatpush2.msra.mxu0 0.0
  %9822 = vmatprep.subr.mxu0 0.0
  %9823 = vmatpush2.msra.mxu0 0.0
  %9824 = vmatprep.subr.mxu0 0.0
  %9825 = vmatpush2.msra.mxu0 0.0
  %9826 = vmatprep.subr.mxu0 0.0
  %9827 = vmatpush2.msra.mxu0 0.0
  %9828 = vmatprep.subr.mxu0 0.0
  %9829 = vmatpush2.msra.mxu0 0.0
  %9830 = vmatprep.subr.mxu0 0.0
  %9831 = vmatpush2.msra.mxu0 0.0
  %9832 = vmatprep.subr.mxu0 0.0
  %9833 = vmatpush2.msra.mxu0 0.0
  %9834 = vmatprep.subr.mxu0 0.0
  %9835 = vmatpush2.msra.mxu0 0.0
  %9836 = vmatprep.subr.mxu0 0.0
  %9837 = vmatpush2.msra.mxu0 0.0
  %9838 = vmatprep.subr.mxu0 0.0
  %9839 = vmatpush2.msra.mxu0 0.0
  %9840 = vmatprep.mubr.f32.mxu0 0.0
  %v9841 = vand.u32 %v9463, 4294901760
  %v9842 = vsub.f32 %v9463, %v9841
  %9843 = vmatmul.mubr.f32.gmra.mxu0 %v9842
  %v9844 = vpop.f32.mrf.mxu0
  %v9845 = vadd.f32 %v9735, %v9844
  %v9846 = vpop.f32.mrf.mxu0
  %9847 = vmatprep.mubr.f32.mxu0 0.0
  %v9848 = vand.u32 %v9466, 4294901760
  %v9849 = vsub.f32 %v9466, %v9848
  %9850 = vmatmul.mubr.f32.gmra.mxu0 %v9849
  %v9851 = vpop.f32.mrf.mxu0
  %v9852 = vadd.f32 %v9741, %v9851
  %v9853 = vpop.f32.mrf.mxu0
  %9854 = vdwg.mxu0
  %9855 = vmatprep.subr.mxu0 0.0
  %v9856 = vand.u32 %v9485, 4294901760
  %9857 = vmatpush1.msra.mxu0 %v9856
  %9858 = vmatprep.subr.mxu0 0.0
  %v9859 = vand.u32 %v9484, 4294901760
  %9860 = vmatpush1.msra.mxu0 %v9859
  %9861 = vmatprep.subr.mxu0 0.0
  %v9862 = vand.u32 %v9483, 4294901760
  %9863 = vmatpush1.msra.mxu0 %v9862
  %9864 = vmatprep.subr.mxu0 0.0
  %v9865 = vand.u32 %v9482, 4294901760
  %9866 = vmatpush1.msra.mxu0 %v9865
  %9867 = vmatprep.subr.mxu0 0.0
  %v9868 = vand.u32 %v9481, 4294901760
  %9869 = vmatpush1.msra.mxu0 %v9868
  %9870 = vmatprep.subr.mxu0 0.0
  %v9871 = vand.u32 %v9480, 4294901760
  %9872 = vmatpush1.msra.mxu0 %v9871
  %9873 = vmatprep.subr.mxu0 0.0
  %v9874 = vand.u32 %v9479, 4294901760
  %9875 = vmatpush1.msra.mxu0 %v9874
  %9876 = vmatprep.subr.mxu0 0.0
  %v9877 = vand.u32 %v9478, 4294901760
  %9878 = vmatpush1.msra.mxu0 %v9877
  %9879 = vmatprep.subr.mxu0 0.0
  %v9880 = vand.u32 %v9477, 4294901760
  %9881 = vmatpush1.msra.mxu0 %v9880
  %9882 = vmatprep.subr.mxu0 0.0
  %v9883 = vand.u32 %v9476, 4294901760
  %9884 = vmatpush1.msra.mxu0 %v9883
  %9885 = vmatprep.subr.mxu0 0.0
  %v9886 = vand.u32 %v9475, 4294901760
  %9887 = vmatpush1.msra.mxu0 %v9886
  %9888 = vmatprep.subr.mxu0 0.0
  %v9889 = vand.u32 %v9474, 4294901760
  %9890 = vmatpush1.msra.mxu0 %v9889
  %9891 = vmatprep.subr.mxu0 0.0
  %v9892 = vand.u32 %v9473, 4294901760
  %9893 = vmatpush1.msra.mxu0 %v9892
  %9894 = vmatprep.subr.mxu0 0.0
  %v9895 = vand.u32 %v9472, 4294901760
  %9896 = vmatpush1.msra.mxu0 %v9895
  %9897 = vmatprep.subr.mxu0 0.0
  %v9898 = vand.u32 %v9471, 4294901760
  %9899 = vmatpush1.msra.mxu0 %v9898
  %9900 = vmatprep.subr.mxu0 0.0
  %v9901 = vand.u32 %v9470, 4294901760
  %9902 = vmatpush1.msra.mxu0 %v9901
  %9903 = vmatprep.subr.mxu0 0.0
  %9904 = vmatpush2.msra.mxu0 0.0
  %9905 = vmatprep.subr.mxu0 0.0
  %9906 = vmatpush2.msra.mxu0 0.0
  %9907 = vmatprep.subr.mxu0 0.0
  %9908 = vmatpush2.msra.mxu0 0.0
  %9909 = vmatprep.subr.mxu0 0.0
  %9910 = vmatpush2.msra.mxu0 0.0
  %9911 = vmatprep.subr.mxu0 0.0
  %9912 = vmatpush2.msra.mxu0 0.0
  %9913 = vmatprep.subr.mxu0 0.0
  %9914 = vmatpush2.msra.mxu0 0.0
  %9915 = vmatprep.subr.mxu0 0.0
  %9916 = vmatpush2.msra.mxu0 0.0
  %9917 = vmatprep.subr.mxu0 0.0
  %9918 = vmatpush2.msra.mxu0 0.0
  %9919 = vmatprep.subr.mxu0 0.0
  %9920 = vmatpush2.msra.mxu0 0.0
  %9921 = vmatprep.subr.mxu0 0.0
  %9922 = vmatpush2.msra.mxu0 0.0
  %9923 = vmatprep.subr.mxu0 0.0
  %9924 = vmatpush2.msra.mxu0 0.0
  %9925 = vmatprep.subr.mxu0 0.0
  %9926 = vmatpush2.msra.mxu0 0.0
  %9927 = vmatprep.subr.mxu0 0.0
  %9928 = vmatpush2.msra.mxu0 0.0
  %9929 = vmatprep.subr.mxu0 0.0
  %9930 = vmatpush2.msra.mxu0 0.0
  %9931 = vmatprep.subr.mxu0 0.0
  %9932 = vmatpush2.msra.mxu0 0.0
  %9933 = vmatprep.subr.mxu0 0.0
  %9934 = vmatpush2.msra.mxu0 0.0
  %9935 = vmatprep.mubr.f32.mxu0 0.0
  %v9936 = vand.u32 %v9463, 4294901760
  %v9937 = vsub.f32 %v9463, %v9936
  %v9938 = vand.u32 %v9937, 4294901760
  %9939 = vmatmul.mubr.f32.gmra.mxu0 %v9938
  %v9940 = vpop.f32.mrf.mxu0
  %v9941 = vadd.f32 %v9845, %v9940
  %v9942 = vpop.f32.mrf.mxu0
  %9943 = vmatprep.mubr.f32.mxu0 0.0
  %v9944 = vand.u32 %v9466, 4294901760
  %v9945 = vsub.f32 %v9466, %v9944
  %v9946 = vand.u32 %v9945, 4294901760
  %9947 = vmatmul.mubr.f32.gmra.mxu0 %v9946
  %v9948 = vpop.f32.mrf.mxu0
  %v9949 = vadd.f32 %v9852, %v9948
  %v9950 = vpop.f32.mrf.mxu0
  %9951 = vdwg.mxu0
  %9952 = vmatprep.subr.mxu0 0.0
  %v9953 = vand.u32 %v9485, 4294901760
  %v9954 = vsub.f32 %v9485, %v9953
  %v9955 = vand.u32 %v9954, 4294901760
  %9956 = vmatpush1.msra.mxu0 %v9955
  %9957 = vmatprep.subr.mxu0 0.0
  %v9958 = vand.u32 %v9484, 4294901760
  %v9959 = vsub.f32 %v9484, %v9958
  %v9960 = vand.u32 %v9959, 4294901760
  %9961 = vmatpush1.msra.mxu0 %v9960
  %9962 = vmatprep.subr.mxu0 0.0
  %v9963 = vand.u32 %v9483, 4294901760
  %v9964 = vsub.f32 %v9483, %v9963
  %v9965 = vand.u32 %v9964, 4294901760
  %9966 = vmatpush1.msra.mxu0 %v9965
  %9967 = vmatprep.subr.mxu0 0.0
  %v9968 = vand.u32 %v9482, 4294901760
  %v9969 = vsub.f32 %v9482, %v9968
  %v9970 = vand.u32 %v9969, 4294901760
  %9971 = vmatpush1.msra.mxu0 %v9970
  %9972 = vmatprep.subr.mxu0 0.0
  %v9973 = vand.u32 %v9481, 4294901760
  %v9974 = vsub.f32 %v9481, %v9973
  %v9975 = vand.u32 %v9974, 4294901760
  %9976 = vmatpush1.msra.mxu0 %v9975
  %9977 = vmatprep.subr.mxu0 0.0
  %v9978 = vand.u32 %v9480, 4294901760
  %v9979 = vsub.f32 %v9480, %v9978
  %v9980 = vand.u32 %v9979, 4294901760
  %9981 = vmatpush1.msra.mxu0 %v9980
  %9982 = vmatprep.subr.mxu0 0.0
  %v9983 = vand.u32 %v9479, 4294901760
  %v9984 = vsub.f32 %v9479, %v9983
  %v9985 = vand.u32 %v9984, 4294901760
  %9986 = vmatpush1.msra.mxu0 %v9985
  %9987 = vmatprep.subr.mxu0 0.0
  %v9988 = vand.u32 %v9478, 4294901760
  %v9989 = vsub.f32 %v9478, %v9988
  %v9990 = vand.u32 %v9989, 4294901760
  %9991 = vmatpush1.msra.mxu0 %v9990
  %9992 = vmatprep.subr.mxu0 0.0
  %v9993 = vand.u32 %v9477, 4294901760
  %v9994 = vsub.f32 %v9477, %v9993
  %v9995 = vand.u32 %v9994, 4294901760
  %9996 = vmatpush1.msra.mxu0 %v9995
  %9997 = vmatprep.subr.mxu0 0.0
  %v9998 = vand.u32 %v9476, 4294901760
  %v9999 = vsub.f32 %v9476, %v9998
  %v10000 = vand.u32 %v9999, 4294901760
  %10001 = vmatpush1.msra.mxu0 %v10000
  %10002 = vmatprep.subr.mxu0 0.0
  %v10003 = vand.u32 %v9475, 4294901760
  %v10004 = vsub.f32 %v9475, %v10003
  %v10005 = vand.u32 %v10004, 4294901760
  %10006 = vmatpush1.msra.mxu0 %v10005
  %10007 = vmatprep.subr.mxu0 0.0
  %v10008 = vand.u32 %v9474, 4294901760
  %v10009 = vsub.f32 %v9474, %v10008
  %v10010 = vand.u32 %v10009, 4294901760
  %10011 = vmatpush1.msra.mxu0 %v10010
  %10012 = vmatprep.subr.mxu0 0.0
  %v10013 = vand.u32 %v9473, 4294901760
  %v10014 = vsub.f32 %v9473, %v10013
  %v10015 = vand.u32 %v10014, 4294901760
  %10016 = vmatpush1.msra.mxu0 %v10015
  %10017 = vmatprep.subr.mxu0 0.0
  %v10018 = vand.u32 %v9472, 4294901760
  %v10019 = vsub.f32 %v9472, %v10018
  %v10020 = vand.u32 %v10019, 4294901760
  %10021 = vmatpush1.msra.mxu0 %v10020
  %10022 = vmatprep.subr.mxu0 0.0
  %v10023 = vand.u32 %v9471, 4294901760
  %v10024 = vsub.f32 %v9471, %v10023
  %v10025 = vand.u32 %v10024, 4294901760
  %10026 = vmatpush1.msra.mxu0 %v10025
  %10027 = vmatprep.subr.mxu0 0.0
  %v10028 = vand.u32 %v9470, 4294901760
  %v10029 = vsub.f32 %v9470, %v10028
  %v10030 = vand.u32 %v10029, 4294901760
  %10031 = vmatpush1.msra.mxu0 %v10030
  %10032 = vmatprep.subr.mxu0 0.0
  %10033 = vmatpush2.msra.mxu0 0.0
  %10034 = vmatprep.subr.mxu0 0.0
  %10035 = vmatpush2.msra.mxu0 0.0
  %10036 = vmatprep.subr.mxu0 0.0
  %10037 = vmatpush2.msra.mxu0 0.0
  %10038 = vmatprep.subr.mxu0 0.0
  %10039 = vmatpush2.msra.mxu0 0.0
  %10040 = vmatprep.subr.mxu0 0.0
  %10041 = vmatpush2.msra.mxu0 0.0
  %10042 = vmatprep.subr.mxu0 0.0
  %10043 = vmatpush2.msra.mxu0 0.0
  %10044 = vmatprep.subr.mxu0 0.0
  %10045 = vmatpush2.msra.mxu0 0.0
  %10046 = vmatprep.subr.mxu0 0.0
  %10047 = vmatpush2.msra.mxu0 0.0
  %10048 = vmatprep.subr.mxu0 0.0
  %10049 = vmatpush2.msra.mxu0 0.0
  %10050 = vmatprep.subr.mxu0 0.0
  %10051 = vmatpush2.msra.mxu0 0.0
  %10052 = vmatprep.subr.mxu0 0.0
  %10053 = vmatpush2.msra.mxu0 0.0
  %10054 = vmatprep.subr.mxu0 0.0
  %10055 = vmatpush2.msra.mxu0 0.0
  %10056 = vmatprep.subr.mxu0 0.0
  %10057 = vmatpush2.msra.mxu0 0.0
  %10058 = vmatprep.subr.mxu0 0.0
  %10059 = vmatpush2.msra.mxu0 0.0
  %10060 = vmatprep.subr.mxu0 0.0
  %10061 = vmatpush2.msra.mxu0 0.0
  %10062 = vmatprep.subr.mxu0 0.0
  %10063 = vmatpush2.msra.mxu0 0.0
  %10064 = vmatprep.mubr.f32.mxu0 0.0
  %v10065 = vand.u32 %v9463, 4294901760
  %10066 = vmatmul.mubr.f32.gmra.mxu0 %v10065
  %v10067 = vpop.f32.mrf.mxu0
  %v10068 = vadd.f32 %v9941, %v10067
  %v10069 = vpop.f32.mrf.mxu0
  %10070 = vmatprep.mubr.f32.mxu0 0.0
  %v10071 = vand.u32 %v9466, 4294901760
  %10072 = vmatmul.mubr.f32.gmra.mxu0 %v10071
  %v10073 = vpop.f32.mrf.mxu0
  %v10074 = vadd.f32 %v9949, %v10073
  %v10075 = vpop.f32.mrf.mxu0
  %10076 = vdwg.mxu0
  %10077 = vmatprep.subr.mxu0 0.0
  %v10078 = vand.u32 %v9485, 4294901760
  %10079 = vmatpush1.msra.mxu0 %v10078
  %10080 = vmatprep.subr.mxu0 0.0
  %v10081 = vand.u32 %v9484, 4294901760
  %10082 = vmatpush1.msra.mxu0 %v10081
  %10083 = vmatprep.subr.mxu0 0.0
  %v10084 = vand.u32 %v9483, 4294901760
  %10085 = vmatpush1.msra.mxu0 %v10084
  %10086 = vmatprep.subr.mxu0 0.0
  %v10087 = vand.u32 %v9482, 4294901760
  %10088 = vmatpush1.msra.mxu0 %v10087
  %10089 = vmatprep.subr.mxu0 0.0
  %v10090 = vand.u32 %v9481, 4294901760
  %10091 = vmatpush1.msra.mxu0 %v10090
  %10092 = vmatprep.subr.mxu0 0.0
  %v10093 = vand.u32 %v9480, 4294901760
  %10094 = vmatpush1.msra.mxu0 %v10093
  %10095 = vmatprep.subr.mxu0 0.0
  %v10096 = vand.u32 %v9479, 4294901760
  %10097 = vmatpush1.msra.mxu0 %v10096
  %10098 = vmatprep.subr.mxu0 0.0
  %v10099 = vand.u32 %v9478, 4294901760
  %10100 = vmatpush1.msra.mxu0 %v10099
  %10101 = vmatprep.subr.mxu0 0.0
  %v10102 = vand.u32 %v9477, 4294901760
  %10103 = vmatpush1.msra.mxu0 %v10102
  %10104 = vmatprep.subr.mxu0 0.0
  %v10105 = vand.u32 %v9476, 4294901760
  %10106 = vmatpush1.msra.mxu0 %v10105
  %10107 = vmatprep.subr.mxu0 0.0
  %v10108 = vand.u32 %v9475, 4294901760
  %10109 = vmatpush1.msra.mxu0 %v10108
  %10110 = vmatprep.subr.mxu0 0.0
  %v10111 = vand.u32 %v9474, 4294901760
  %10112 = vmatpush1.msra.mxu0 %v10111
  %10113 = vmatprep.subr.mxu0 0.0
  %v10114 = vand.u32 %v9473, 4294901760
  %10115 = vmatpush1.msra.mxu0 %v10114
  %10116 = vmatprep.subr.mxu0 0.0
  %v10117 = vand.u32 %v9472, 4294901760
  %10118 = vmatpush1.msra.mxu0 %v10117
  %10119 = vmatprep.subr.mxu0 0.0
  %v10120 = vand.u32 %v9471, 4294901760
  %10121 = vmatpush1.msra.mxu0 %v10120
  %10122 = vmatprep.subr.mxu0 0.0
  %v10123 = vand.u32 %v9470, 4294901760
  %10124 = vmatpush1.msra.mxu0 %v10123
  %10125 = vmatprep.subr.mxu0 0.0
  %10126 = vmatpush2.msra.mxu0 0.0
  %10127 = vmatprep.subr.mxu0 0.0
  %10128 = vmatpush2.msra.mxu0 0.0
  %10129 = vmatprep.subr.mxu0 0.0
  %10130 = vmatpush2.msra.mxu0 0.0
  %10131 = vmatprep.subr.mxu0 0.0
  %10132 = vmatpush2.msra.mxu0 0.0
  %10133 = vmatprep.subr.mxu0 0.0
  %10134 = vmatpush2.msra.mxu0 0.0
  %10135 = vmatprep.subr.mxu0 0.0
  %10136 = vmatpush2.msra.mxu0 0.0
  %10137 = vmatprep.subr.mxu0 0.0
  %10138 = vmatpush2.msra.mxu0 0.0
  %10139 = vmatprep.subr.mxu0 0.0
  %10140 = vmatpush2.msra.mxu0 0.0
  %10141 = vmatprep.subr.mxu0 0.0
  %10142 = vmatpush2.msra.mxu0 0.0
  %10143 = vmatprep.subr.mxu0 0.0
  %10144 = vmatpush2.msra.mxu0 0.0
  %10145 = vmatprep.subr.mxu0 0.0
  %10146 = vmatpush2.msra.mxu0 0.0
  %10147 = vmatprep.subr.mxu0 0.0
  %10148 = vmatpush2.msra.mxu0 0.0
  %10149 = vmatprep.subr.mxu0 0.0
  %10150 = vmatpush2.msra.mxu0 0.0
  %10151 = vmatprep.subr.mxu0 0.0
  %10152 = vmatpush2.msra.mxu0 0.0
  %10153 = vmatprep.subr.mxu0 0.0
  %10154 = vmatpush2.msra.mxu0 0.0
  %10155 = vmatprep.subr.mxu0 0.0
  %10156 = vmatpush2.msra.mxu0 0.0
  %10157 = vmatprep.mubr.f32.mxu0 0.0
  %v10158 = vand.u32 %v9463, 4294901760
  %10159 = vmatmul.mubr.f32.gmra.mxu0 %v10158
  %v10160 = vpop.f32.mrf.mxu0
  %v10161 = vadd.f32 %v10068, %v10160
  %v10162 = vpop.f32.mrf.mxu0
  %10163 = vmatprep.mubr.f32.mxu0 0.0
  %v10164 = vand.u32 %v9466, 4294901760
  %10165 = vmatmul.mubr.f32.gmra.mxu0 %v10164
  %v10166 = vpop.f32.mrf.mxu0
  %v10167 = vadd.f32 %v10074, %v10166
  %v10168 = vpop.f32.mrf.mxu0
  %10169 = vdwg.mxu0
  %10170 = vmatprep.subr.mxu0 0.0
  %v10171 = vand.u32 %v9456, 4294901760
  %10172 = vmatpush1.msra.mxu0 %v10171
  %10173 = vmatprep.subr.mxu0 0.0
  %v10174 = vand.u32 %v9455, 4294901760
  %10175 = vmatpush1.msra.mxu0 %v10174
  %10176 = vmatprep.subr.mxu0 0.0
  %v10177 = vand.u32 %v9454, 4294901760
  %10178 = vmatpush1.msra.mxu0 %v10177
  %10179 = vmatprep.subr.mxu0 0.0
  %v10180 = vand.u32 %v9453, 4294901760
  %10181 = vmatpush1.msra.mxu0 %v10180
  %10182 = vmatprep.subr.mxu0 0.0
  %v10183 = vand.u32 %v9452, 4294901760
  %10184 = vmatpush1.msra.mxu0 %v10183
  %10185 = vmatprep.subr.mxu0 0.0
  %v10186 = vand.u32 %v9451, 4294901760
  %10187 = vmatpush1.msra.mxu0 %v10186
  %10188 = vmatprep.subr.mxu0 0.0
  %v10189 = vand.u32 %v9450, 4294901760
  %10190 = vmatpush1.msra.mxu0 %v10189
  %10191 = vmatprep.subr.mxu0 0.0
  %v10192 = vand.u32 %v9449, 4294901760
  %10193 = vmatpush1.msra.mxu0 %v10192
  %10194 = vmatprep.subr.mxu0 0.0
  %v10195 = vand.u32 %v9448, 4294901760
  %10196 = vmatpush1.msra.mxu0 %v10195
  %10197 = vmatprep.subr.mxu0 0.0
  %v10198 = vand.u32 %v9447, 4294901760
  %10199 = vmatpush1.msra.mxu0 %v10198
  %10200 = vmatprep.subr.mxu0 0.0
  %v10201 = vand.u32 %v9446, 4294901760
  %10202 = vmatpush1.msra.mxu0 %v10201
  %10203 = vmatprep.subr.mxu0 0.0
  %v10204 = vand.u32 %v9445, 4294901760
  %10205 = vmatpush1.msra.mxu0 %v10204
  %10206 = vmatprep.subr.mxu0 0.0
  %v10207 = vand.u32 %v9444, 4294901760
  %10208 = vmatpush1.msra.mxu0 %v10207
  %10209 = vmatprep.subr.mxu0 0.0
  %v10210 = vand.u32 %v9443, 4294901760
  %10211 = vmatpush1.msra.mxu0 %v10210
  %10212 = vmatprep.subr.mxu0 0.0
  %v10213 = vand.u32 %v9442, 4294901760
  %10214 = vmatpush1.msra.mxu0 %v10213
  %10215 = vmatprep.subr.mxu0 0.0
  %v10216 = vand.u32 %v9441, 4294901760
  %10217 = vmatpush1.msra.mxu0 %v10216
  %10218 = vmatprep.subr.mxu0 0.0
  %10219 = vmatpush2.msra.mxu0 0.0
  %10220 = vmatprep.subr.mxu0 0.0
  %10221 = vmatpush2.msra.mxu0 0.0
  %10222 = vmatprep.subr.mxu0 0.0
  %10223 = vmatpush2.msra.mxu0 0.0
  %10224 = vmatprep.subr.mxu0 0.0
  %10225 = vmatpush2.msra.mxu0 0.0
  %10226 = vmatprep.subr.mxu0 0.0
  %10227 = vmatpush2.msra.mxu0 0.0
  %10228 = vmatprep.subr.mxu0 0.0
  %10229 = vmatpush2.msra.mxu0 0.0
  %10230 = vmatprep.subr.mxu0 0.0
  %10231 = vmatpush2.msra.mxu0 0.0
  %10232 = vmatprep.subr.mxu0 0.0
  %10233 = vmatpush2.msra.mxu0 0.0
  %10234 = vmatprep.subr.mxu0 0.0
  %10235 = vmatpush2.msra.mxu0 0.0
  %10236 = vmatprep.subr.mxu0 0.0
  %10237 = vmatpush2.msra.mxu0 0.0
  %10238 = vmatprep.subr.mxu0 0.0
  %10239 = vmatpush2.msra.mxu0 0.0
  %10240 = vmatprep.subr.mxu0 0.0
  %10241 = vmatpush2.msra.mxu0 0.0
  %10242 = vmatprep.subr.mxu0 0.0
  %10243 = vmatpush2.msra.mxu0 0.0
  %10244 = vmatprep.subr.mxu0 0.0
  %10245 = vmatpush2.msra.mxu0 0.0
  %10246 = vmatprep.subr.mxu0 0.0
  %10247 = vmatpush2.msra.mxu0 0.0
  %10248 = vmatprep.subr.mxu0 0.0
  %10249 = vmatpush2.msra.mxu0 0.0
  %10250 = vmatprep.mubr.f32.mxu0 0.0
  %v10251 = vand.u32 %v9434, 4294901760
  %v10252 = vsub.f32 %v9434, %v10251
  %v10253 = vand.u32 %v10252, 4294901760
  %v10254 = vsub.f32 %v10252, %v10253
  %v10255 = vand.u32 %v10254, 4294901760
  %10256 = vmatmul.mubr.f32.gmra.mxu0 %v10255
  %v10257 = vpop.f32.mrf.mxu0
  %v10258 = vadd.f32 %v10161, %v10257
  %v10259 = vpop.f32.mrf.mxu0
  %10260 = vmatprep.mubr.f32.mxu0 0.0
  %v10261 = vand.u32 %v9435, 4294901760
  %v10262 = vsub.f32 %v9435, %v10261
  %v10263 = vand.u32 %v10262, 4294901760
  %v10264 = vsub.f32 %v10262, %v10263
  %v10265 = vand.u32 %v10264, 4294901760
  %10266 = vmatmul.mubr.f32.gmra.mxu0 %v10265
  %v10267 = vpop.f32.mrf.mxu0
  %v10268 = vadd.f32 %v10167, %v10267
  %v10269 = vpop.f32.mrf.mxu0
  %10270 = vdwg.mxu0
  %10271 = vmatprep.subr.mxu0 0.0
  %v10272 = vand.u32 %v9456, 4294901760
  %v10273 = vsub.f32 %v9456, %v10272
  %v10274 = vand.u32 %v10273, 4294901760
  %v10275 = vsub.f32 %v10273, %v10274
  %v10276 = vand.u32 %v10275, 4294901760
  %10277 = vmatpush1.msra.mxu0 %v10276
  %10278 = vmatprep.subr.mxu0 0.0
  %v10279 = vand.u32 %v9455, 4294901760
  %v10280 = vsub.f32 %v9455, %v10279
  %v10281 = vand.u32 %v10280, 4294901760
  %v10282 = vsub.f32 %v10280, %v10281
  %v10283 = vand.u32 %v10282, 4294901760
  %10284 = vmatpush1.msra.mxu0 %v10283
  %10285 = vmatprep.subr.mxu0 0.0
  %v10286 = vand.u32 %v9454, 4294901760
  %v10287 = vsub.f32 %v9454, %v10286
  %v10288 = vand.u32 %v10287, 4294901760
  %v10289 = vsub.f32 %v10287, %v10288
  %v10290 = vand.u32 %v10289, 4294901760
  %10291 = vmatpush1.msra.mxu0 %v10290
  %10292 = vmatprep.subr.mxu0 0.0
  %v10293 = vand.u32 %v9453, 4294901760
  %v10294 = vsub.f32 %v9453, %v10293
  %v10295 = vand.u32 %v10294, 4294901760
  %v10296 = vsub.f32 %v10294, %v10295
  %v10297 = vand.u32 %v10296, 4294901760
  %10298 = vmatpush1.msra.mxu0 %v10297
  %10299 = vmatprep.subr.mxu0 0.0
  %v10300 = vand.u32 %v9452, 4294901760
  %v10301 = vsub.f32 %v9452, %v10300
  %v10302 = vand.u32 %v10301, 4294901760
  %v10303 = vsub.f32 %v10301, %v10302
  %v10304 = vand.u32 %v10303, 4294901760
  %10305 = vmatpush1.msra.mxu0 %v10304
  %10306 = vmatprep.subr.mxu0 0.0
  %v10307 = vand.u32 %v9451, 4294901760
  %v10308 = vsub.f32 %v9451, %v10307
  %v10309 = vand.u32 %v10308, 4294901760
  %v10310 = vsub.f32 %v10308, %v10309
  %v10311 = vand.u32 %v10310, 4294901760
  %10312 = vmatpush1.msra.mxu0 %v10311
  %10313 = vmatprep.subr.mxu0 0.0
  %v10314 = vand.u32 %v9450, 4294901760
  %v10315 = vsub.f32 %v9450, %v10314
  %v10316 = vand.u32 %v10315, 4294901760
  %v10317 = vsub.f32 %v10315, %v10316
  %v10318 = vand.u32 %v10317, 4294901760
  %10319 = vmatpush1.msra.mxu0 %v10318
  %10320 = vmatprep.subr.mxu0 0.0
  %v10321 = vand.u32 %v9449, 4294901760
  %v10322 = vsub.f32 %v9449, %v10321
  %v10323 = vand.u32 %v10322, 4294901760
  %v10324 = vsub.f32 %v10322, %v10323
  %v10325 = vand.u32 %v10324, 4294901760
  %10326 = vmatpush1.msra.mxu0 %v10325
  %10327 = vmatprep.subr.mxu0 0.0
  %v10328 = vand.u32 %v9448, 4294901760
  %v10329 = vsub.f32 %v9448, %v10328
  %v10330 = vand.u32 %v10329, 4294901760
  %v10331 = vsub.f32 %v10329, %v10330
  %v10332 = vand.u32 %v10331, 4294901760
  %10333 = vmatpush1.msra.mxu0 %v10332
  %10334 = vmatprep.subr.mxu0 0.0
  %v10335 = vand.u32 %v9447, 4294901760
  %v10336 = vsub.f32 %v9447, %v10335
  %v10337 = vand.u32 %v10336, 4294901760
  %v10338 = vsub.f32 %v10336, %v10337
  %v10339 = vand.u32 %v10338, 4294901760
  %10340 = vmatpush1.msra.mxu0 %v10339
  %10341 = vmatprep.subr.mxu0 0.0
  %v10342 = vand.u32 %v9446, 4294901760
  %v10343 = vsub.f32 %v9446, %v10342
  %v10344 = vand.u32 %v10343, 4294901760
  %v10345 = vsub.f32 %v10343, %v10344
  %v10346 = vand.u32 %v10345, 4294901760
  %10347 = vmatpush1.msra.mxu0 %v10346
  %10348 = vmatprep.subr.mxu0 0.0
  %v10349 = vand.u32 %v9445, 4294901760
  %v10350 = vsub.f32 %v9445, %v10349
  %v10351 = vand.u32 %v10350, 4294901760
  %v10352 = vsub.f32 %v10350, %v10351
  %v10353 = vand.u32 %v10352, 4294901760
  %10354 = vmatpush1.msra.mxu0 %v10353
  %10355 = vmatprep.subr.mxu0 0.0
  %v10356 = vand.u32 %v9444, 4294901760
  %v10357 = vsub.f32 %v9444, %v10356
  %v10358 = vand.u32 %v10357, 4294901760
  %v10359 = vsub.f32 %v10357, %v10358
  %v10360 = vand.u32 %v10359, 4294901760
  %10361 = vmatpush1.msra.mxu0 %v10360
  %10362 = vmatprep.subr.mxu0 0.0
  %v10363 = vand.u32 %v9443, 4294901760
  %v10364 = vsub.f32 %v9443, %v10363
  %v10365 = vand.u32 %v10364, 4294901760
  %v10366 = vsub.f32 %v10364, %v10365
  %v10367 = vand.u32 %v10366, 4294901760
  %10368 = vmatpush1.msra.mxu0 %v10367
  %10369 = vmatprep.subr.mxu0 0.0
  %v10370 = vand.u32 %v9442, 4294901760
  %v10371 = vsub.f32 %v9442, %v10370
  %v10372 = vand.u32 %v10371, 4294901760
  %v10373 = vsub.f32 %v10371, %v10372
  %v10374 = vand.u32 %v10373, 4294901760
  %10375 = vmatpush1.msra.mxu0 %v10374
  %10376 = vmatprep.subr.mxu0 0.0
  %v10377 = vand.u32 %v9441, 4294901760
  %v10378 = vsub.f32 %v9441, %v10377
  %v10379 = vand.u32 %v10378, 4294901760
  %v10380 = vsub.f32 %v10378, %v10379
  %v10381 = vand.u32 %v10380, 4294901760
  %10382 = vmatpush1.msra.mxu0 %v10381
  %10383 = vmatprep.subr.mxu0 0.0
  %10384 = vmatpush2.msra.mxu0 0.0
  %10385 = vmatprep.subr.mxu0 0.0
  %10386 = vmatpush2.msra.mxu0 0.0
  %10387 = vmatprep.subr.mxu0 0.0
  %10388 = vmatpush2.msra.mxu0 0.0
  %10389 = vmatprep.subr.mxu0 0.0
  %10390 = vmatpush2.msra.mxu0 0.0
  %10391 = vmatprep.subr.mxu0 0.0
  %10392 = vmatpush2.msra.mxu0 0.0
  %10393 = vmatprep.subr.mxu0 0.0
  %10394 = vmatpush2.msra.mxu0 0.0
  %10395 = vmatprep.subr.mxu0 0.0
  %10396 = vmatpush2.msra.mxu0 0.0
  %10397 = vmatprep.subr.mxu0 0.0
  %10398 = vmatpush2.msra.mxu0 0.0
  %10399 = vmatprep.subr.mxu0 0.0
  %10400 = vmatpush2.msra.mxu0 0.0
  %10401 = vmatprep.subr.mxu0 0.0
  %10402 = vmatpush2.msra.mxu0 0.0
  %10403 = vmatprep.subr.mxu0 0.0
  %10404 = vmatpush2.msra.mxu0 0.0
  %10405 = vmatprep.subr.mxu0 0.0
  %10406 = vmatpush2.msra.mxu0 0.0
  %10407 = vmatprep.subr.mxu0 0.0
  %10408 = vmatpush2.msra.mxu0 0.0
  %10409 = vmatprep.subr.mxu0 0.0
  %10410 = vmatpush2.msra.mxu0 0.0
  %10411 = vmatprep.subr.mxu0 0.0
  %10412 = vmatpush2.msra.mxu0 0.0
  %10413 = vmatprep.subr.mxu0 0.0
  %10414 = vmatpush2.msra.mxu0 0.0
  %10415 = vmatprep.mubr.f32.mxu0 0.0
  %v10416 = vand.u32 %v9434, 4294901760
  %10417 = vmatmul.mubr.f32.gmra.mxu0 %v10416
  %v10418 = vpop.f32.mrf.mxu0
  %v10419 = vadd.f32 %v10258, %v10418
  %v10420 = vpop.f32.mrf.mxu0
  %10421 = vmatprep.mubr.f32.mxu0 0.0
  %v10422 = vand.u32 %v9435, 4294901760
  %10423 = vmatmul.mubr.f32.gmra.mxu0 %v10422
  %v10424 = vpop.f32.mrf.mxu0
  %v10425 = vadd.f32 %v10268, %v10424
  %v10426 = vpop.f32.mrf.mxu0
  %10427 = vdwg.mxu0
  %10428 = vmatprep.subr.mxu0 0.0
  %v10429 = vand.u32 %v9456, 4294901760
  %v10430 = vsub.f32 %v9456, %v10429
  %10431 = vmatpush1.msra.mxu0 %v10430
  %10432 = vmatprep.subr.mxu0 0.0
  %v10433 = vand.u32 %v9455, 4294901760
  %v10434 = vsub.f32 %v9455, %v10433
  %10435 = vmatpush1.msra.mxu0 %v10434
  %10436 = vmatprep.subr.mxu0 0.0
  %v10437 = vand.u32 %v9454, 4294901760
  %v10438 = vsub.f32 %v9454, %v10437
  %10439 = vmatpush1.msra.mxu0 %v10438
  %10440 = vmatprep.subr.mxu0 0.0
  %v10441 = vand.u32 %v9453, 4294901760
  %v10442 = vsub.f32 %v9453, %v10441
  %10443 = vmatpush1.msra.mxu0 %v10442
  %10444 = vmatprep.subr.mxu0 0.0
  %v10445 = vand.u32 %v9452, 4294901760
  %v10446 = vsub.f32 %v9452, %v10445
  %10447 = vmatpush1.msra.mxu0 %v10446
  %10448 = vmatprep.subr.mxu0 0.0
  %v10449 = vand.u32 %v9451, 4294901760
  %v10450 = vsub.f32 %v9451, %v10449
  %10451 = vmatpush1.msra.mxu0 %v10450
  %10452 = vmatprep.subr.mxu0 0.0
  %v10453 = vand.u32 %v9450, 4294901760
  %v10454 = vsub.f32 %v9450, %v10453
  %10455 = vmatpush1.msra.mxu0 %v10454
  %10456 = vmatprep.subr.mxu0 0.0
  %v10457 = vand.u32 %v9449, 4294901760
  %v10458 = vsub.f32 %v9449, %v10457
  %10459 = vmatpush1.msra.mxu0 %v10458
  %10460 = vmatprep.subr.mxu0 0.0
  %v10461 = vand.u32 %v9448, 4294901760
  %v10462 = vsub.f32 %v9448, %v10461
  %10463 = vmatpush1.msra.mxu0 %v10462
  %10464 = vmatprep.subr.mxu0 0.0
  %v10465 = vand.u32 %v9447, 4294901760
  %v10466 = vsub.f32 %v9447, %v10465
  %10467 = vmatpush1.msra.mxu0 %v10466
  %10468 = vmatprep.subr.mxu0 0.0
  %v10469 = vand.u32 %v9446, 4294901760
  %v10470 = vsub.f32 %v9446, %v10469
  %10471 = vmatpush1.msra.mxu0 %v10470
  %10472 = vmatprep.subr.mxu0 0.0
  %v10473 = vand.u32 %v9445, 4294901760
  %v10474 = vsub.f32 %v9445, %v10473
  %10475 = vmatpush1.msra.mxu0 %v10474
  %10476 = vmatprep.subr.mxu0 0.0
  %v10477 = vand.u32 %v9444, 4294901760
  %v10478 = vsub.f32 %v9444, %v10477
  %10479 = vmatpush1.msra.mxu0 %v10478
  %10480 = vmatprep.subr.mxu0 0.0
  %v10481 = vand.u32 %v9443, 4294901760
  %v10482 = vsub.f32 %v9443, %v10481
  %10483 = vmatpush1.msra.mxu0 %v10482
  %10484 = vmatprep.subr.mxu0 0.0
  %v10485 = vand.u32 %v9442, 4294901760
  %v10486 = vsub.f32 %v9442, %v10485
  %10487 = vmatpush1.msra.mxu0 %v10486
  %10488 = vmatprep.subr.mxu0 0.0
  %v10489 = vand.u32 %v9441, 4294901760
  %v10490 = vsub.f32 %v9441, %v10489
  %10491 = vmatpush1.msra.mxu0 %v10490
  %10492 = vmatprep.subr.mxu0 0.0
  %10493 = vmatpush2.msra.mxu0 0.0
  %10494 = vmatprep.subr.mxu0 0.0
  %10495 = vmatpush2.msra.mxu0 0.0
  %10496 = vmatprep.subr.mxu0 0.0
  %10497 = vmatpush2.msra.mxu0 0.0
  %10498 = vmatprep.subr.mxu0 0.0
  %10499 = vmatpush2.msra.mxu0 0.0
  %10500 = vmatprep.subr.mxu0 0.0
  %10501 = vmatpush2.msra.mxu0 0.0
  %10502 = vmatprep.subr.mxu0 0.0
  %10503 = vmatpush2.msra.mxu0 0.0
  %10504 = vmatprep.subr.mxu0 0.0
  %10505 = vmatpush2.msra.mxu0 0.0
  %10506 = vmatprep.subr.mxu0 0.0
  %10507 = vmatpush2.msra.mxu0 0.0
  %10508 = vmatprep.subr.mxu0 0.0
  %10509 = vmatpush2.msra.mxu0 0.0
  %10510 = vmatprep.subr.mxu0 0.0
  %10511 = vmatpush2.msra.mxu0 0.0
  %10512 = vmatprep.subr.mxu0 0.0
  %10513 = vmatpush2.msra.mxu0 0.0
  %10514 = vmatprep.subr.mxu0 0.0
  %10515 = vmatpush2.msra.mxu0 0.0
  %10516 = vmatprep.subr.mxu0 0.0
  %10517 = vmatpush2.msra.mxu0 0.0
  %10518 = vmatprep.subr.mxu0 0.0
  %10519 = vmatpush2.msra.mxu0 0.0
  %10520 = vmatprep.subr.mxu0 0.0
  %10521 = vmatpush2.msra.mxu0 0.0
  %10522 = vmatprep.subr.mxu0 0.0
  %10523 = vmatpush2.msra.mxu0 0.0
  %10524 = vmatprep.mubr.f32.mxu0 0.0
  %v10525 = vand.u32 %v9434, 4294901760
  %v10526 = vsub.f32 %v9434, %v10525
  %10527 = vmatmul.mubr.f32.gmra.mxu0 %v10526
  %v10528 = vpop.f32.mrf.mxu0
  %v10529 = vadd.f32 %v10419, %v10528
  %v10530 = vpop.f32.mrf.mxu0
  %10531 = vmatprep.mubr.f32.mxu0 0.0
  %v10532 = vand.u32 %v9435, 4294901760
  %v10533 = vsub.f32 %v9435, %v10532
  %10534 = vmatmul.mubr.f32.gmra.mxu0 %v10533
  %v10535 = vpop.f32.mrf.mxu0
  %v10536 = vadd.f32 %v10425, %v10535
  %v10537 = vpop.f32.mrf.mxu0
  %10538 = vdwg.mxu0
  %10539 = vmatprep.subr.mxu0 0.0
  %v10540 = vand.u32 %v9456, 4294901760
  %10541 = vmatpush1.msra.mxu0 %v10540
  %10542 = vmatprep.subr.mxu0 0.0
  %v10543 = vand.u32 %v9455, 4294901760
  %10544 = vmatpush1.msra.mxu0 %v10543
  %10545 = vmatprep.subr.mxu0 0.0
  %v10546 = vand.u32 %v9454, 4294901760
  %10547 = vmatpush1.msra.mxu0 %v10546
  %10548 = vmatprep.subr.mxu0 0.0
  %v10549 = vand.u32 %v9453, 4294901760
  %10550 = vmatpush1.msra.mxu0 %v10549
  %10551 = vmatprep.subr.mxu0 0.0
  %v10552 = vand.u32 %v9452, 4294901760
  %10553 = vmatpush1.msra.mxu0 %v10552
  %10554 = vmatprep.subr.mxu0 0.0
  %v10555 = vand.u32 %v9451, 4294901760
  %10556 = vmatpush1.msra.mxu0 %v10555
  %10557 = vmatprep.subr.mxu0 0.0
  %v10558 = vand.u32 %v9450, 4294901760
  %10559 = vmatpush1.msra.mxu0 %v10558
  %10560 = vmatprep.subr.mxu0 0.0
  %v10561 = vand.u32 %v9449, 4294901760
  %10562 = vmatpush1.msra.mxu0 %v10561
  %10563 = vmatprep.subr.mxu0 0.0
  %v10564 = vand.u32 %v9448, 4294901760
  %10565 = vmatpush1.msra.mxu0 %v10564
  %10566 = vmatprep.subr.mxu0 0.0
  %v10567 = vand.u32 %v9447, 4294901760
  %10568 = vmatpush1.msra.mxu0 %v10567
  %10569 = vmatprep.subr.mxu0 0.0
  %v10570 = vand.u32 %v9446, 4294901760
  %10571 = vmatpush1.msra.mxu0 %v10570
  %10572 = vmatprep.subr.mxu0 0.0
  %v10573 = vand.u32 %v9445, 4294901760
  %10574 = vmatpush1.msra.mxu0 %v10573
  %10575 = vmatprep.subr.mxu0 0.0
  %v10576 = vand.u32 %v9444, 4294901760
  %10577 = vmatpush1.msra.mxu0 %v10576
  %10578 = vmatprep.subr.mxu0 0.0
  %v10579 = vand.u32 %v9443, 4294901760
  %10580 = vmatpush1.msra.mxu0 %v10579
  %10581 = vmatprep.subr.mxu0 0.0
  %v10582 = vand.u32 %v9442, 4294901760
  %10583 = vmatpush1.msra.mxu0 %v10582
  %10584 = vmatprep.subr.mxu0 0.0
  %v10585 = vand.u32 %v9441, 4294901760
  %10586 = vmatpush1.msra.mxu0 %v10585
  %10587 = vmatprep.subr.mxu0 0.0
  %10588 = vmatpush2.msra.mxu0 0.0
  %10589 = vmatprep.subr.mxu0 0.0
  %10590 = vmatpush2.msra.mxu0 0.0
  %10591 = vmatprep.subr.mxu0 0.0
  %10592 = vmatpush2.msra.mxu0 0.0
  %10593 = vmatprep.subr.mxu0 0.0
  %10594 = vmatpush2.msra.mxu0 0.0
  %10595 = vmatprep.subr.mxu0 0.0
  %10596 = vmatpush2.msra.mxu0 0.0
  %10597 = vmatprep.subr.mxu0 0.0
  %10598 = vmatpush2.msra.mxu0 0.0
  %10599 = vmatprep.subr.mxu0 0.0
  %10600 = vmatpush2.msra.mxu0 0.0
  %10601 = vmatprep.subr.mxu0 0.0
  %10602 = vmatpush2.msra.mxu0 0.0
  %10603 = vmatprep.subr.mxu0 0.0
  %10604 = vmatpush2.msra.mxu0 0.0
  %10605 = vmatprep.subr.mxu0 0.0
  %10606 = vmatpush2.msra.mxu0 0.0
  %10607 = vmatprep.subr.mxu0 0.0
  %10608 = vmatpush2.msra.mxu0 0.0
  %10609 = vmatprep.subr.mxu0 0.0
  %10610 = vmatpush2.msra.mxu0 0.0
  %10611 = vmatprep.subr.mxu0 0.0
  %10612 = vmatpush2.msra.mxu0 0.0
  %10613 = vmatprep.subr.mxu0 0.0
  %10614 = vmatpush2.msra.mxu0 0.0
  %10615 = vmatprep.subr.mxu0 0.0
  %10616 = vmatpush2.msra.mxu0 0.0
  %10617 = vmatprep.subr.mxu0 0.0
  %10618 = vmatpush2.msra.mxu0 0.0
  %10619 = vmatprep.mubr.f32.mxu0 0.0
  %v10620 = vand.u32 %v9434, 4294901760
  %v10621 = vsub.f32 %v9434, %v10620
  %v10622 = vand.u32 %v10621, 4294901760
  %10623 = vmatmul.mubr.f32.gmra.mxu0 %v10622
  %v10624 = vpop.f32.mrf.mxu0
  %v10625 = vadd.f32 %v10529, %v10624
  %v10626 = vpop.f32.mrf.mxu0
  %10627 = vmatprep.mubr.f32.mxu0 0.0
  %v10628 = vand.u32 %v9435, 4294901760
  %v10629 = vsub.f32 %v9435, %v10628
  %v10630 = vand.u32 %v10629, 4294901760
  %10631 = vmatmul.mubr.f32.gmra.mxu0 %v10630
  %v10632 = vpop.f32.mrf.mxu0
  %v10633 = vadd.f32 %v10536, %v10632
  %v10634 = vpop.f32.mrf.mxu0
  %10635 = vdwg.mxu0
  %10636 = vmatprep.subr.mxu0 0.0
  %v10637 = vand.u32 %v9456, 4294901760
  %v10638 = vsub.f32 %v9456, %v10637
  %v10639 = vand.u32 %v10638, 4294901760
  %10640 = vmatpush1.msra.mxu0 %v10639
  %10641 = vmatprep.subr.mxu0 0.0
  %v10642 = vand.u32 %v9455, 4294901760
  %v10643 = vsub.f32 %v9455, %v10642
  %v10644 = vand.u32 %v10643, 4294901760
  %10645 = vmatpush1.msra.mxu0 %v10644
  %10646 = vmatprep.subr.mxu0 0.0
  %v10647 = vand.u32 %v9454, 4294901760
  %v10648 = vsub.f32 %v9454, %v10647
  %v10649 = vand.u32 %v10648, 4294901760
  %10650 = vmatpush1.msra.mxu0 %v10649
  %10651 = vmatprep.subr.mxu0 0.0
  %v10652 = vand.u32 %v9453, 4294901760
  %v10653 = vsub.f32 %v9453, %v10652
  %v10654 = vand.u32 %v10653, 4294901760
  %10655 = vmatpush1.msra.mxu0 %v10654
  %10656 = vmatprep.subr.mxu0 0.0
  %v10657 = vand.u32 %v9452, 4294901760
  %v10658 = vsub.f32 %v9452, %v10657
  %v10659 = vand.u32 %v10658, 4294901760
  %10660 = vmatpush1.msra.mxu0 %v10659
  %10661 = vmatprep.subr.mxu0 0.0
  %v10662 = vand.u32 %v9451, 4294901760
  %v10663 = vsub.f32 %v9451, %v10662
  %v10664 = vand.u32 %v10663, 4294901760
  %10665 = vmatpush1.msra.mxu0 %v10664
  %10666 = vmatprep.subr.mxu0 0.0
  %v10667 = vand.u32 %v9450, 4294901760
  %v10668 = vsub.f32 %v9450, %v10667
  %v10669 = vand.u32 %v10668, 4294901760
  %10670 = vmatpush1.msra.mxu0 %v10669
  %10671 = vmatprep.subr.mxu0 0.0
  %v10672 = vand.u32 %v9449, 4294901760
  %v10673 = vsub.f32 %v9449, %v10672
  %v10674 = vand.u32 %v10673, 4294901760
  %10675 = vmatpush1.msra.mxu0 %v10674
  %10676 = vmatprep.subr.mxu0 0.0
  %v10677 = vand.u32 %v9448, 4294901760
  %v10678 = vsub.f32 %v9448, %v10677
  %v10679 = vand.u32 %v10678, 4294901760
  %10680 = vmatpush1.msra.mxu0 %v10679
  %10681 = vmatprep.subr.mxu0 0.0
  %v10682 = vand.u32 %v9447, 4294901760
  %v10683 = vsub.f32 %v9447, %v10682
  %v10684 = vand.u32 %v10683, 4294901760
  %10685 = vmatpush1.msra.mxu0 %v10684
  %10686 = vmatprep.subr.mxu0 0.0
  %v10687 = vand.u32 %v9446, 4294901760
  %v10688 = vsub.f32 %v9446, %v10687
  %v10689 = vand.u32 %v10688, 4294901760
  %10690 = vmatpush1.msra.mxu0 %v10689
  %10691 = vmatprep.subr.mxu0 0.0
  %v10692 = vand.u32 %v9445, 4294901760
  %v10693 = vsub.f32 %v9445, %v10692
  %v10694 = vand.u32 %v10693, 4294901760
  %10695 = vmatpush1.msra.mxu0 %v10694
  %10696 = vmatprep.subr.mxu0 0.0
  %v10697 = vand.u32 %v9444, 4294901760
  %v10698 = vsub.f32 %v9444, %v10697
  %v10699 = vand.u32 %v10698, 4294901760
  %10700 = vmatpush1.msra.mxu0 %v10699
  %10701 = vmatprep.subr.mxu0 0.0
  %v10702 = vand.u32 %v9443, 4294901760
  %v10703 = vsub.f32 %v9443, %v10702
  %v10704 = vand.u32 %v10703, 4294901760
  %10705 = vmatpush1.msra.mxu0 %v10704
  %10706 = vmatprep.subr.mxu0 0.0
  %v10707 = vand.u32 %v9442, 4294901760
  %v10708 = vsub.f32 %v9442, %v10707
  %v10709 = vand.u32 %v10708, 4294901760
  %10710 = vmatpush1.msra.mxu0 %v10709
  %10711 = vmatprep.subr.mxu0 0.0
  %v10712 = vand.u32 %v9441, 4294901760
  %v10713 = vsub.f32 %v9441, %v10712
  %v10714 = vand.u32 %v10713, 4294901760
  %10715 = vmatpush1.msra.mxu0 %v10714
  %10716 = vmatprep.subr.mxu0 0.0
  %10717 = vmatpush2.msra.mxu0 0.0
  %10718 = vmatprep.subr.mxu0 0.0
  %10719 = vmatpush2.msra.mxu0 0.0
  %10720 = vmatprep.subr.mxu0 0.0
  %10721 = vmatpush2.msra.mxu0 0.0
  %10722 = vmatprep.subr.mxu0 0.0
  %10723 = vmatpush2.msra.mxu0 0.0
  %10724 = vmatprep.subr.mxu0 0.0
  %10725 = vmatpush2.msra.mxu0 0.0
  %10726 = vmatprep.subr.mxu0 0.0
  %10727 = vmatpush2.msra.mxu0 0.0
  %10728 = vmatprep.subr.mxu0 0.0
  %10729 = vmatpush2.msra.mxu0 0.0
  %10730 = vmatprep.subr.mxu0 0.0
  %10731 = vmatpush2.msra.mxu0 0.0
  %10732 = vmatprep.subr.mxu0 0.0
  %10733 = vmatpush2.msra.mxu0 0.0
  %10734 = vmatprep.subr.mxu0 0.0
  %10735 = vmatpush2.msra.mxu0 0.0
  %10736 = vmatprep.subr.mxu0 0.0
  %10737 = vmatpush2.msra.mxu0 0.0
  %10738 = vmatprep.subr.mxu0 0.0
  %10739 = vmatpush2.msra.mxu0 0.0
  %10740 = vmatprep.subr.mxu0 0.0
  %10741 = vmatpush2.msra.mxu0 0.0
  %10742 = vmatprep.subr.mxu0 0.0
  %10743 = vmatpush2.msra.mxu0 0.0
  %10744 = vmatprep.subr.mxu0 0.0
  %10745 = vmatpush2.msra.mxu0 0.0
  %10746 = vmatprep.subr.mxu0 0.0
  %10747 = vmatpush2.msra.mxu0 0.0
  %10748 = vmatprep.mubr.f32.mxu0 0.0
  %v10749 = vand.u32 %v9434, 4294901760
  %10750 = vmatmul.mubr.f32.gmra.mxu0 %v10749
  %v10751 = vpop.f32.mrf.mxu0
  %v10752 = vadd.f32 %v10625, %v10751
  %v10753 = vpop.f32.mrf.mxu0
  %10754 = vmatprep.mubr.f32.mxu0 0.0
  %v10755 = vand.u32 %v9435, 4294901760
  %10756 = vmatmul.mubr.f32.gmra.mxu0 %v10755
  %v10757 = vpop.f32.mrf.mxu0
  %v10758 = vadd.f32 %v10633, %v10757
  %v10759 = vpop.f32.mrf.mxu0
  %10760 = vdwg.mxu0
  %10761 = vmatprep.subr.mxu0 0.0
  %v10762 = vand.u32 %v9456, 4294901760
  %10763 = vmatpush1.msra.mxu0 %v10762
  %10764 = vmatprep.subr.mxu0 0.0
  %v10765 = vand.u32 %v9455, 4294901760
  %10766 = vmatpush1.msra.mxu0 %v10765
  %10767 = vmatprep.subr.mxu0 0.0
  %v10768 = vand.u32 %v9454, 4294901760
  %10769 = vmatpush1.msra.mxu0 %v10768
  %10770 = vmatprep.subr.mxu0 0.0
  %v10771 = vand.u32 %v9453, 4294901760
  %10772 = vmatpush1.msra.mxu0 %v10771
  %10773 = vmatprep.subr.mxu0 0.0
  %v10774 = vand.u32 %v9452, 4294901760
  %10775 = vmatpush1.msra.mxu0 %v10774
  %10776 = vmatprep.subr.mxu0 0.0
  %v10777 = vand.u32 %v9451, 4294901760
  %10778 = vmatpush1.msra.mxu0 %v10777
  %10779 = vmatprep.subr.mxu0 0.0
  %v10780 = vand.u32 %v9450, 4294901760
  %10781 = vmatpush1.msra.mxu0 %v10780
  %10782 = vmatprep.subr.mxu0 0.0
  %v10783 = vand.u32 %v9449, 4294901760
  %10784 = vmatpush1.msra.mxu0 %v10783
  %10785 = vmatprep.subr.mxu0 0.0
  %v10786 = vand.u32 %v9448, 4294901760
  %10787 = vmatpush1.msra.mxu0 %v10786
  %10788 = vmatprep.subr.mxu0 0.0
  %v10789 = vand.u32 %v9447, 4294901760
  %10790 = vmatpush1.msra.mxu0 %v10789
  %10791 = vmatprep.subr.mxu0 0.0
  %v10792 = vand.u32 %v9446, 4294901760
  %10793 = vmatpush1.msra.mxu0 %v10792
  %10794 = vmatprep.subr.mxu0 0.0
  %v10795 = vand.u32 %v9445, 4294901760
  %10796 = vmatpush1.msra.mxu0 %v10795
  %10797 = vmatprep.subr.mxu0 0.0
  %v10798 = vand.u32 %v9444, 4294901760
  %10799 = vmatpush1.msra.mxu0 %v10798
  %10800 = vmatprep.subr.mxu0 0.0
  %v10801 = vand.u32 %v9443, 4294901760
  %10802 = vmatpush1.msra.mxu0 %v10801
  %10803 = vmatprep.subr.mxu0 0.0
  %v10804 = vand.u32 %v9442, 4294901760
  %10805 = vmatpush1.msra.mxu0 %v10804
  %10806 = vmatprep.subr.mxu0 0.0
  %v10807 = vand.u32 %v9441, 4294901760
  %10808 = vmatpush1.msra.mxu0 %v10807
  %10809 = vmatprep.subr.mxu0 0.0
  %10810 = vmatpush2.msra.mxu0 0.0
  %10811 = vmatprep.subr.mxu0 0.0
  %10812 = vmatpush2.msra.mxu0 0.0
  %10813 = vmatprep.subr.mxu0 0.0
  %10814 = vmatpush2.msra.mxu0 0.0
  %10815 = vmatprep.subr.mxu0 0.0
  %10816 = vmatpush2.msra.mxu0 0.0
  %10817 = vmatprep.subr.mxu0 0.0
  %10818 = vmatpush2.msra.mxu0 0.0
  %10819 = vmatprep.subr.mxu0 0.0
  %10820 = vmatpush2.msra.mxu0 0.0
  %10821 = vmatprep.subr.mxu0 0.0
  %10822 = vmatpush2.msra.mxu0 0.0
  %10823 = vmatprep.subr.mxu0 0.0
  %10824 = vmatpush2.msra.mxu0 0.0
  %10825 = vmatprep.subr.mxu0 0.0
  %10826 = vmatpush2.msra.mxu0 0.0
  %10827 = vmatprep.subr.mxu0 0.0
  %10828 = vmatpush2.msra.mxu0 0.0
  %10829 = vmatprep.subr.mxu0 0.0
  %10830 = vmatpush2.msra.mxu0 0.0
  %10831 = vmatprep.subr.mxu0 0.0
  %10832 = vmatpush2.msra.mxu0 0.0
  %10833 = vmatprep.subr.mxu0 0.0
  %10834 = vmatpush2.msra.mxu0 0.0
  %10835 = vmatprep.subr.mxu0 0.0
  %10836 = vmatpush2.msra.mxu0 0.0
  %10837 = vmatprep.subr.mxu0 0.0
  %10838 = vmatpush2.msra.mxu0 0.0
  %10839 = vmatprep.subr.mxu0 0.0
  %10840 = vmatpush2.msra.mxu0 0.0
  %10841 = vmatprep.mubr.f32.mxu0 0.0
  %v10842 = vand.u32 %v9434, 4294901760
  %10843 = vmatmul.mubr.f32.gmra.mxu0 %v10842
  %v10844 = vpop.f32.mrf.mxu0
  %v10845 = vadd.f32 %v10752, %v10844
  %v10846 = vpop.f32.mrf.mxu0
  %10847 = vmatprep.mubr.f32.mxu0 0.0
  %v10848 = vand.u32 %v9435, 4294901760
  %10849 = vmatmul.mubr.f32.gmra.mxu0 %v10848
  %v10850 = vpop.f32.mrf.mxu0
  %v10851 = vadd.f32 %v10758, %v10850
  %v10852 = vpop.f32.mrf.mxu0
  %10853 = vdwg.mxu0
  %v10854 = vrot.slane %v9434, 2
  %v10855 = vrot.slane %v9436, 2
  %v10856 = vsel %vm1682, %v10854, %v10855
  %v10857 = vrot.slane %v9435, 2
  %v10858 = vrot.slane %v9437, 2
  %v10859 = vsel %vm1682, %v10857, %v10858
  %s10862 = scalar_lea.vmem %s3, 1408
  %v10863 = vld [vmem:[%s10862] sm:$0xff]
  %v10864 = vld [vmem:[%s10862 + $0x8] sm:$0xff]
  %v10865 = vld [vmem:[%s10862 + $0x10] sm:$0xff]
  %v10866 = vld [vmem:[%s10862 + $0x18] sm:$0xff]
  %v10867 = vld [vmem:[%s10862 + $0x20] sm:$0xff]
  %v10868 = vld [vmem:[%s10862 + $0x28] sm:$0xff]
  %v10869 = vld [vmem:[%s10862 + $0x30] sm:$0xff]
  %v10870 = vld [vmem:[%s10862 + $0x38] sm:$0xff]
  %v10871 = vld [vmem:[%s10862 + $0x40] sm:$0xff]
  %v10872 = vld [vmem:[%s10862 + $0x48] sm:$0xff]
  %v10873 = vld [vmem:[%s10862 + $0x50] sm:$0xff]
  %v10874 = vld [vmem:[%s10862 + $0x58] sm:$0xff]
  %v10875 = vld [vmem:[%s10862 + $0x60] sm:$0xff]
  %v10876 = vld [vmem:[%s10862 + $0x68] sm:$0xff]
  %v10877 = vld [vmem:[%s10862 + $0x70] sm:$0xff]
  %v10878 = vld [vmem:[%s10862 + $0x78] sm:$0xff]
  %10879 = vmatprep.subr.mxu0 0.0
  %v10880 = vand.u32 %v10878, 4294901760
  %10881 = vmatpush1.msra.mxu0 %v10880
  %10882 = vmatprep.subr.mxu0 0.0
  %v10883 = vand.u32 %v10877, 4294901760
  %10884 = vmatpush1.msra.mxu0 %v10883
  %10885 = vmatprep.subr.mxu0 0.0
  %v10886 = vand.u32 %v10876, 4294901760
  %10887 = vmatpush1.msra.mxu0 %v10886
  %10888 = vmatprep.subr.mxu0 0.0
  %v10889 = vand.u32 %v10875, 4294901760
  %10890 = vmatpush1.msra.mxu0 %v10889
  %10891 = vmatprep.subr.mxu0 0.0
  %v10892 = vand.u32 %v10874, 4294901760
  %10893 = vmatpush1.msra.mxu0 %v10892
  %10894 = vmatprep.subr.mxu0 0.0
  %v10895 = vand.u32 %v10873, 4294901760
  %10896 = vmatpush1.msra.mxu0 %v10895
  %10897 = vmatprep.subr.mxu0 0.0
  %v10898 = vand.u32 %v10872, 4294901760
  %10899 = vmatpush1.msra.mxu0 %v10898
  %10900 = vmatprep.subr.mxu0 0.0
  %v10901 = vand.u32 %v10871, 4294901760
  %10902 = vmatpush1.msra.mxu0 %v10901
  %10903 = vmatprep.subr.mxu0 0.0
  %v10904 = vand.u32 %v10870, 4294901760
  %10905 = vmatpush1.msra.mxu0 %v10904
  %10906 = vmatprep.subr.mxu0 0.0
  %v10907 = vand.u32 %v10869, 4294901760
  %10908 = vmatpush1.msra.mxu0 %v10907
  %10909 = vmatprep.subr.mxu0 0.0
  %v10910 = vand.u32 %v10868, 4294901760
  %10911 = vmatpush1.msra.mxu0 %v10910
  %10912 = vmatprep.subr.mxu0 0.0
  %v10913 = vand.u32 %v10867, 4294901760
  %10914 = vmatpush1.msra.mxu0 %v10913
  %10915 = vmatprep.subr.mxu0 0.0
  %v10916 = vand.u32 %v10866, 4294901760
  %10917 = vmatpush1.msra.mxu0 %v10916
  %10918 = vmatprep.subr.mxu0 0.0
  %v10919 = vand.u32 %v10865, 4294901760
  %10920 = vmatpush1.msra.mxu0 %v10919
  %10921 = vmatprep.subr.mxu0 0.0
  %v10922 = vand.u32 %v10864, 4294901760
  %10923 = vmatpush1.msra.mxu0 %v10922
  %10924 = vmatprep.subr.mxu0 0.0
  %v10925 = vand.u32 %v10863, 4294901760
  %10926 = vmatpush1.msra.mxu0 %v10925
  %10927 = vmatprep.subr.mxu0 0.0
  %10928 = vmatpush2.msra.mxu0 0.0
  %10929 = vmatprep.subr.mxu0 0.0
  %10930 = vmatpush2.msra.mxu0 0.0
  %10931 = vmatprep.subr.mxu0 0.0
  %10932 = vmatpush2.msra.mxu0 0.0
  %10933 = vmatprep.subr.mxu0 0.0
  %10934 = vmatpush2.msra.mxu0 0.0
  %10935 = vmatprep.subr.mxu0 0.0
  %10936 = vmatpush2.msra.mxu0 0.0
  %10937 = vmatprep.subr.mxu0 0.0
  %10938 = vmatpush2.msra.mxu0 0.0
  %10939 = vmatprep.subr.mxu0 0.0
  %10940 = vmatpush2.msra.mxu0 0.0
  %10941 = vmatprep.subr.mxu0 0.0
  %10942 = vmatpush2.msra.mxu0 0.0
  %10943 = vmatprep.subr.mxu0 0.0
  %10944 = vmatpush2.msra.mxu0 0.0
  %10945 = vmatprep.subr.mxu0 0.0
  %10946 = vmatpush2.msra.mxu0 0.0
  %10947 = vmatprep.subr.mxu0 0.0
  %10948 = vmatpush2.msra.mxu0 0.0
  %10949 = vmatprep.subr.mxu0 0.0
  %10950 = vmatpush2.msra.mxu0 0.0
  %10951 = vmatprep.subr.mxu0 0.0
  %10952 = vmatpush2.msra.mxu0 0.0
  %10953 = vmatprep.subr.mxu0 0.0
  %10954 = vmatpush2.msra.mxu0 0.0
  %10955 = vmatprep.subr.mxu0 0.0
  %10956 = vmatpush2.msra.mxu0 0.0
  %10957 = vmatprep.subr.mxu0 0.0
  %10958 = vmatpush2.msra.mxu0 0.0
  %10959 = vmatprep.mubr.f32.mxu0 0.0
  %v10960 = vand.u32 %v10856, 4294901760
  %v10961 = vsub.f32 %v10856, %v10960
  %v10962 = vand.u32 %v10961, 4294901760
  %v10963 = vsub.f32 %v10961, %v10962
  %v10964 = vand.u32 %v10963, 4294901760
  %10965 = vmatmul.mubr.f32.gmra.mxu0 %v10964
  %v10966 = vpop.f32.mrf.mxu0
  %v10967 = vadd.f32 0.0, %v10966
  %v10968 = vpop.f32.mrf.mxu0
  %10969 = vmatprep.mubr.f32.mxu0 0.0
  %v10970 = vand.u32 %v10859, 4294901760
  %v10971 = vsub.f32 %v10859, %v10970
  %v10972 = vand.u32 %v10971, 4294901760
  %v10973 = vsub.f32 %v10971, %v10972
  %v10974 = vand.u32 %v10973, 4294901760
  %10975 = vmatmul.mubr.f32.gmra.mxu0 %v10974
  %v10976 = vpop.f32.mrf.mxu0
  %v10977 = vadd.f32 0.0, %v10976
  %v10978 = vpop.f32.mrf.mxu0
  %10979 = vdwg.mxu0
  %10980 = vmatprep.subr.mxu0 0.0
  %v10981 = vand.u32 %v10878, 4294901760
  %v10982 = vsub.f32 %v10878, %v10981
  %v10983 = vand.u32 %v10982, 4294901760
  %v10984 = vsub.f32 %v10982, %v10983
  %v10985 = vand.u32 %v10984, 4294901760
  %10986 = vmatpush1.msra.mxu0 %v10985
  %10987 = vmatprep.subr.mxu0 0.0
  %v10988 = vand.u32 %v10877, 4294901760
  %v10989 = vsub.f32 %v10877, %v10988
  %v10990 = vand.u32 %v10989, 4294901760
  %v10991 = vsub.f32 %v10989, %v10990
  %v10992 = vand.u32 %v10991, 4294901760
  %10993 = vmatpush1.msra.mxu0 %v10992
  %10994 = vmatprep.subr.mxu0 0.0
  %v10995 = vand.u32 %v10876, 4294901760
  %v10996 = vsub.f32 %v10876, %v10995
  %v10997 = vand.u32 %v10996, 4294901760
  %v10998 = vsub.f32 %v10996, %v10997
  %v10999 = vand.u32 %v10998, 4294901760
  %11000 = vmatpush1.msra.mxu0 %v10999
  %11001 = vmatprep.subr.mxu0 0.0
  %v11002 = vand.u32 %v10875, 4294901760
  %v11003 = vsub.f32 %v10875, %v11002
  %v11004 = vand.u32 %v11003, 4294901760
  %v11005 = vsub.f32 %v11003, %v11004
  %v11006 = vand.u32 %v11005, 4294901760
  %11007 = vmatpush1.msra.mxu0 %v11006
  %11008 = vmatprep.subr.mxu0 0.0
  %v11009 = vand.u32 %v10874, 4294901760
  %v11010 = vsub.f32 %v10874, %v11009
  %v11011 = vand.u32 %v11010, 4294901760
  %v11012 = vsub.f32 %v11010, %v11011
  %v11013 = vand.u32 %v11012, 4294901760
  %11014 = vmatpush1.msra.mxu0 %v11013
  %11015 = vmatprep.subr.mxu0 0.0
  %v11016 = vand.u32 %v10873, 4294901760
  %v11017 = vsub.f32 %v10873, %v11016
  %v11018 = vand.u32 %v11017, 4294901760
  %v11019 = vsub.f32 %v11017, %v11018
  %v11020 = vand.u32 %v11019, 4294901760
  %11021 = vmatpush1.msra.mxu0 %v11020
  %11022 = vmatprep.subr.mxu0 0.0
  %v11023 = vand.u32 %v10872, 4294901760
  %v11024 = vsub.f32 %v10872, %v11023
  %v11025 = vand.u32 %v11024, 4294901760
  %v11026 = vsub.f32 %v11024, %v11025
  %v11027 = vand.u32 %v11026, 4294901760
  %11028 = vmatpush1.msra.mxu0 %v11027
  %11029 = vmatprep.subr.mxu0 0.0
  %v11030 = vand.u32 %v10871, 4294901760
  %v11031 = vsub.f32 %v10871, %v11030
  %v11032 = vand.u32 %v11031, 4294901760
  %v11033 = vsub.f32 %v11031, %v11032
  %v11034 = vand.u32 %v11033, 4294901760
  %11035 = vmatpush1.msra.mxu0 %v11034
  %11036 = vmatprep.subr.mxu0 0.0
  %v11037 = vand.u32 %v10870, 4294901760
  %v11038 = vsub.f32 %v10870, %v11037
  %v11039 = vand.u32 %v11038, 4294901760
  %v11040 = vsub.f32 %v11038, %v11039
  %v11041 = vand.u32 %v11040, 4294901760
  %11042 = vmatpush1.msra.mxu0 %v11041
  %11043 = vmatprep.subr.mxu0 0.0
  %v11044 = vand.u32 %v10869, 4294901760
  %v11045 = vsub.f32 %v10869, %v11044
  %v11046 = vand.u32 %v11045, 4294901760
  %v11047 = vsub.f32 %v11045, %v11046
  %v11048 = vand.u32 %v11047, 4294901760
  %11049 = vmatpush1.msra.mxu0 %v11048
  %11050 = vmatprep.subr.mxu0 0.0
  %v11051 = vand.u32 %v10868, 4294901760
  %v11052 = vsub.f32 %v10868, %v11051
  %v11053 = vand.u32 %v11052, 4294901760
  %v11054 = vsub.f32 %v11052, %v11053
  %v11055 = vand.u32 %v11054, 4294901760
  %11056 = vmatpush1.msra.mxu0 %v11055
  %11057 = vmatprep.subr.mxu0 0.0
  %v11058 = vand.u32 %v10867, 4294901760
  %v11059 = vsub.f32 %v10867, %v11058
  %v11060 = vand.u32 %v11059, 4294901760
  %v11061 = vsub.f32 %v11059, %v11060
  %v11062 = vand.u32 %v11061, 4294901760
  %11063 = vmatpush1.msra.mxu0 %v11062
  %11064 = vmatprep.subr.mxu0 0.0
  %v11065 = vand.u32 %v10866, 4294901760
  %v11066 = vsub.f32 %v10866, %v11065
  %v11067 = vand.u32 %v11066, 4294901760
  %v11068 = vsub.f32 %v11066, %v11067
  %v11069 = vand.u32 %v11068, 4294901760
  %11070 = vmatpush1.msra.mxu0 %v11069
  %11071 = vmatprep.subr.mxu0 0.0
  %v11072 = vand.u32 %v10865, 4294901760
  %v11073 = vsub.f32 %v10865, %v11072
  %v11074 = vand.u32 %v11073, 4294901760
  %v11075 = vsub.f32 %v11073, %v11074
  %v11076 = vand.u32 %v11075, 4294901760
  %11077 = vmatpush1.msra.mxu0 %v11076
  %11078 = vmatprep.subr.mxu0 0.0
  %v11079 = vand.u32 %v10864, 4294901760
  %v11080 = vsub.f32 %v10864, %v11079
  %v11081 = vand.u32 %v11080, 4294901760
  %v11082 = vsub.f32 %v11080, %v11081
  %v11083 = vand.u32 %v11082, 4294901760
  %11084 = vmatpush1.msra.mxu0 %v11083
  %11085 = vmatprep.subr.mxu0 0.0
  %v11086 = vand.u32 %v10863, 4294901760
  %v11087 = vsub.f32 %v10863, %v11086
  %v11088 = vand.u32 %v11087, 4294901760
  %v11089 = vsub.f32 %v11087, %v11088
  %v11090 = vand.u32 %v11089, 4294901760
  %11091 = vmatpush1.msra.mxu0 %v11090
  %11092 = vmatprep.subr.mxu0 0.0
  %11093 = vmatpush2.msra.mxu0 0.0
  %11094 = vmatprep.subr.mxu0 0.0
  %11095 = vmatpush2.msra.mxu0 0.0
  %11096 = vmatprep.subr.mxu0 0.0
  %11097 = vmatpush2.msra.mxu0 0.0
  %11098 = vmatprep.subr.mxu0 0.0
  %11099 = vmatpush2.msra.mxu0 0.0
  %11100 = vmatprep.subr.mxu0 0.0
  %11101 = vmatpush2.msra.mxu0 0.0
  %11102 = vmatprep.subr.mxu0 0.0
  %11103 = vmatpush2.msra.mxu0 0.0
  %11104 = vmatprep.subr.mxu0 0.0
  %11105 = vmatpush2.msra.mxu0 0.0
  %11106 = vmatprep.subr.mxu0 0.0
  %11107 = vmatpush2.msra.mxu0 0.0
  %11108 = vmatprep.subr.mxu0 0.0
  %11109 = vmatpush2.msra.mxu0 0.0
  %11110 = vmatprep.subr.mxu0 0.0
  %11111 = vmatpush2.msra.mxu0 0.0
  %11112 = vmatprep.subr.mxu0 0.0
  %11113 = vmatpush2.msra.mxu0 0.0
  %11114 = vmatprep.subr.mxu0 0.0
  %11115 = vmatpush2.msra.mxu0 0.0
  %11116 = vmatprep.subr.mxu0 0.0
  %11117 = vmatpush2.msra.mxu0 0.0
  %11118 = vmatprep.subr.mxu0 0.0
  %11119 = vmatpush2.msra.mxu0 0.0
  %11120 = vmatprep.subr.mxu0 0.0
  %11121 = vmatpush2.msra.mxu0 0.0
  %11122 = vmatprep.subr.mxu0 0.0
  %11123 = vmatpush2.msra.mxu0 0.0
  %11124 = vmatprep.mubr.f32.mxu0 0.0
  %v11125 = vand.u32 %v10856, 4294901760
  %11126 = vmatmul.mubr.f32.gmra.mxu0 %v11125
  %v11127 = vpop.f32.mrf.mxu0
  %v11128 = vadd.f32 %v10967, %v11127
  %v11129 = vpop.f32.mrf.mxu0
  %11130 = vmatprep.mubr.f32.mxu0 0.0
  %v11131 = vand.u32 %v10859, 4294901760
  %11132 = vmatmul.mubr.f32.gmra.mxu0 %v11131
  %v11133 = vpop.f32.mrf.mxu0
  %v11134 = vadd.f32 %v10977, %v11133
  %v11135 = vpop.f32.mrf.mxu0
  %11136 = vdwg.mxu0
  %11137 = vmatprep.subr.mxu0 0.0
  %v11138 = vand.u32 %v10878, 4294901760
  %v11139 = vsub.f32 %v10878, %v11138
  %11140 = vmatpush1.msra.mxu0 %v11139
  %11141 = vmatprep.subr.mxu0 0.0
  %v11142 = vand.u32 %v10877, 4294901760
  %v11143 = vsub.f32 %v10877, %v11142
  %11144 = vmatpush1.msra.mxu0 %v11143
  %11145 = vmatprep.subr.mxu0 0.0
  %v11146 = vand.u32 %v10876, 4294901760
  %v11147 = vsub.f32 %v10876, %v11146
  %11148 = vmatpush1.msra.mxu0 %v11147
  %11149 = vmatprep.subr.mxu0 0.0
  %v11150 = vand.u32 %v10875, 4294901760
  %v11151 = vsub.f32 %v10875, %v11150
  %11152 = vmatpush1.msra.mxu0 %v11151
  %11153 = vmatprep.subr.mxu0 0.0
  %v11154 = vand.u32 %v10874, 4294901760
  %v11155 = vsub.f32 %v10874, %v11154
  %11156 = vmatpush1.msra.mxu0 %v11155
  %11157 = vmatprep.subr.mxu0 0.0
  %v11158 = vand.u32 %v10873, 4294901760
  %v11159 = vsub.f32 %v10873, %v11158
  %11160 = vmatpush1.msra.mxu0 %v11159
  %11161 = vmatprep.subr.mxu0 0.0
  %v11162 = vand.u32 %v10872, 4294901760
  %v11163 = vsub.f32 %v10872, %v11162
  %11164 = vmatpush1.msra.mxu0 %v11163
  %11165 = vmatprep.subr.mxu0 0.0
  %v11166 = vand.u32 %v10871, 4294901760
  %v11167 = vsub.f32 %v10871, %v11166
  %11168 = vmatpush1.msra.mxu0 %v11167
  %11169 = vmatprep.subr.mxu0 0.0
  %v11170 = vand.u32 %v10870, 4294901760
  %v11171 = vsub.f32 %v10870, %v11170
  %11172 = vmatpush1.msra.mxu0 %v11171
  %11173 = vmatprep.subr.mxu0 0.0
  %v11174 = vand.u32 %v10869, 4294901760
  %v11175 = vsub.f32 %v10869, %v11174
  %11176 = vmatpush1.msra.mxu0 %v11175
  %11177 = vmatprep.subr.mxu0 0.0
  %v11178 = vand.u32 %v10868, 4294901760
  %v11179 = vsub.f32 %v10868, %v11178
  %11180 = vmatpush1.msra.mxu0 %v11179
  %11181 = vmatprep.subr.mxu0 0.0
  %v11182 = vand.u32 %v10867, 4294901760
  %v11183 = vsub.f32 %v10867, %v11182
  %11184 = vmatpush1.msra.mxu0 %v11183
  %11185 = vmatprep.subr.mxu0 0.0
  %v11186 = vand.u32 %v10866, 4294901760
  %v11187 = vsub.f32 %v10866, %v11186
  %11188 = vmatpush1.msra.mxu0 %v11187
  %11189 = vmatprep.subr.mxu0 0.0
  %v11190 = vand.u32 %v10865, 4294901760
  %v11191 = vsub.f32 %v10865, %v11190
  %11192 = vmatpush1.msra.mxu0 %v11191
  %11193 = vmatprep.subr.mxu0 0.0
  %v11194 = vand.u32 %v10864, 4294901760
  %v11195 = vsub.f32 %v10864, %v11194
  %11196 = vmatpush1.msra.mxu0 %v11195
  %11197 = vmatprep.subr.mxu0 0.0
  %v11198 = vand.u32 %v10863, 4294901760
  %v11199 = vsub.f32 %v10863, %v11198
  %11200 = vmatpush1.msra.mxu0 %v11199
  %11201 = vmatprep.subr.mxu0 0.0
  %11202 = vmatpush2.msra.mxu0 0.0
  %11203 = vmatprep.subr.mxu0 0.0
  %11204 = vmatpush2.msra.mxu0 0.0
  %11205 = vmatprep.subr.mxu0 0.0
  %11206 = vmatpush2.msra.mxu0 0.0
  %11207 = vmatprep.subr.mxu0 0.0
  %11208 = vmatpush2.msra.mxu0 0.0
  %11209 = vmatprep.subr.mxu0 0.0
  %11210 = vmatpush2.msra.mxu0 0.0
  %11211 = vmatprep.subr.mxu0 0.0
  %11212 = vmatpush2.msra.mxu0 0.0
  %11213 = vmatprep.subr.mxu0 0.0
  %11214 = vmatpush2.msra.mxu0 0.0
  %11215 = vmatprep.subr.mxu0 0.0
  %11216 = vmatpush2.msra.mxu0 0.0
  %11217 = vmatprep.subr.mxu0 0.0
  %11218 = vmatpush2.msra.mxu0 0.0
  %11219 = vmatprep.subr.mxu0 0.0
  %11220 = vmatpush2.msra.mxu0 0.0
  %11221 = vmatprep.subr.mxu0 0.0
  %11222 = vmatpush2.msra.mxu0 0.0
  %11223 = vmatprep.subr.mxu0 0.0
  %11224 = vmatpush2.msra.mxu0 0.0
  %11225 = vmatprep.subr.mxu0 0.0
  %11226 = vmatpush2.msra.mxu0 0.0
  %11227 = vmatprep.subr.mxu0 0.0
  %11228 = vmatpush2.msra.mxu0 0.0
  %11229 = vmatprep.subr.mxu0 0.0
  %11230 = vmatpush2.msra.mxu0 0.0
  %11231 = vmatprep.subr.mxu0 0.0
  %11232 = vmatpush2.msra.mxu0 0.0
  %11233 = vmatprep.mubr.f32.mxu0 0.0
  %v11234 = vand.u32 %v10856, 4294901760
  %v11235 = vsub.f32 %v10856, %v11234
  %11236 = vmatmul.mubr.f32.gmra.mxu0 %v11235
  %v11237 = vpop.f32.mrf.mxu0
  %v11238 = vadd.f32 %v11128, %v11237
  %v11239 = vpop.f32.mrf.mxu0
  %11240 = vmatprep.mubr.f32.mxu0 0.0
  %v11241 = vand.u32 %v10859, 4294901760
  %v11242 = vsub.f32 %v10859, %v11241
  %11243 = vmatmul.mubr.f32.gmra.mxu0 %v11242
  %v11244 = vpop.f32.mrf.mxu0
  %v11245 = vadd.f32 %v11134, %v11244
  %v11246 = vpop.f32.mrf.mxu0
  %11247 = vdwg.mxu0
  %11248 = vmatprep.subr.mxu0 0.0
  %v11249 = vand.u32 %v10878, 4294901760
  %11250 = vmatpush1.msra.mxu0 %v11249
  %11251 = vmatprep.subr.mxu0 0.0
  %v11252 = vand.u32 %v10877, 4294901760
  %11253 = vmatpush1.msra.mxu0 %v11252
  %11254 = vmatprep.subr.mxu0 0.0
  %v11255 = vand.u32 %v10876, 4294901760
  %11256 = vmatpush1.msra.mxu0 %v11255
  %11257 = vmatprep.subr.mxu0 0.0
  %v11258 = vand.u32 %v10875, 4294901760
  %11259 = vmatpush1.msra.mxu0 %v11258
  %11260 = vmatprep.subr.mxu0 0.0
  %v11261 = vand.u32 %v10874, 4294901760
  %11262 = vmatpush1.msra.mxu0 %v11261
  %11263 = vmatprep.subr.mxu0 0.0
  %v11264 = vand.u32 %v10873, 4294901760
  %11265 = vmatpush1.msra.mxu0 %v11264
  %11266 = vmatprep.subr.mxu0 0.0
  %v11267 = vand.u32 %v10872, 4294901760
  %11268 = vmatpush1.msra.mxu0 %v11267
  %11269 = vmatprep.subr.mxu0 0.0
  %v11270 = vand.u32 %v10871, 4294901760
  %11271 = vmatpush1.msra.mxu0 %v11270
  %11272 = vmatprep.subr.mxu0 0.0
  %v11273 = vand.u32 %v10870, 4294901760
  %11274 = vmatpush1.msra.mxu0 %v11273
  %11275 = vmatprep.subr.mxu0 0.0
  %v11276 = vand.u32 %v10869, 4294901760
  %11277 = vmatpush1.msra.mxu0 %v11276
  %11278 = vmatprep.subr.mxu0 0.0
  %v11279 = vand.u32 %v10868, 4294901760
  %11280 = vmatpush1.msra.mxu0 %v11279
  %11281 = vmatprep.subr.mxu0 0.0
  %v11282 = vand.u32 %v10867, 4294901760
  %11283 = vmatpush1.msra.mxu0 %v11282
  %11284 = vmatprep.subr.mxu0 0.0
  %v11285 = vand.u32 %v10866, 4294901760
  %11286 = vmatpush1.msra.mxu0 %v11285
  %11287 = vmatprep.subr.mxu0 0.0
  %v11288 = vand.u32 %v10865, 4294901760
  %11289 = vmatpush1.msra.mxu0 %v11288
  %11290 = vmatprep.subr.mxu0 0.0
  %v11291 = vand.u32 %v10864, 4294901760
  %11292 = vmatpush1.msra.mxu0 %v11291
  %11293 = vmatprep.subr.mxu0 0.0
  %v11294 = vand.u32 %v10863, 4294901760
  %11295 = vmatpush1.msra.mxu0 %v11294
  %11296 = vmatprep.subr.mxu0 0.0
  %11297 = vmatpush2.msra.mxu0 0.0
  %11298 = vmatprep.subr.mxu0 0.0
  %11299 = vmatpush2.msra.mxu0 0.0
  %11300 = vmatprep.subr.mxu0 0.0
  %11301 = vmatpush2.msra.mxu0 0.0
  %11302 = vmatprep.subr.mxu0 0.0
  %11303 = vmatpush2.msra.mxu0 0.0
  %11304 = vmatprep.subr.mxu0 0.0
  %11305 = vmatpush2.msra.mxu0 0.0
  %11306 = vmatprep.subr.mxu0 0.0
  %11307 = vmatpush2.msra.mxu0 0.0
  %11308 = vmatprep.subr.mxu0 0.0
  %11309 = vmatpush2.msra.mxu0 0.0
  %11310 = vmatprep.subr.mxu0 0.0
  %11311 = vmatpush2.msra.mxu0 0.0
  %11312 = vmatprep.subr.mxu0 0.0
  %11313 = vmatpush2.msra.mxu0 0.0
  %11314 = vmatprep.subr.mxu0 0.0
  %11315 = vmatpush2.msra.mxu0 0.0
  %11316 = vmatprep.subr.mxu0 0.0
  %11317 = vmatpush2.msra.mxu0 0.0
  %11318 = vmatprep.subr.mxu0 0.0
  %11319 = vmatpush2.msra.mxu0 0.0
  %11320 = vmatprep.subr.mxu0 0.0
  %11321 = vmatpush2.msra.mxu0 0.0
  %11322 = vmatprep.subr.mxu0 0.0
  %11323 = vmatpush2.msra.mxu0 0.0
  %11324 = vmatprep.subr.mxu0 0.0
  %11325 = vmatpush2.msra.mxu0 0.0
  %11326 = vmatprep.subr.mxu0 0.0
  %11327 = vmatpush2.msra.mxu0 0.0
  %11328 = vmatprep.mubr.f32.mxu0 0.0
  %v11329 = vand.u32 %v10856, 4294901760
  %v11330 = vsub.f32 %v10856, %v11329
  %v11331 = vand.u32 %v11330, 4294901760
  %11332 = vmatmul.mubr.f32.gmra.mxu0 %v11331
  %v11333 = vpop.f32.mrf.mxu0
  %v11334 = vadd.f32 %v11238, %v11333
  %v11335 = vpop.f32.mrf.mxu0
  %11336 = vmatprep.mubr.f32.mxu0 0.0
  %v11337 = vand.u32 %v10859, 4294901760
  %v11338 = vsub.f32 %v10859, %v11337
  %v11339 = vand.u32 %v11338, 4294901760
  %11340 = vmatmul.mubr.f32.gmra.mxu0 %v11339
  %v11341 = vpop.f32.mrf.mxu0
  %v11342 = vadd.f32 %v11245, %v11341
  %v11343 = vpop.f32.mrf.mxu0
  %11344 = vdwg.mxu0
  %11345 = vmatprep.subr.mxu0 0.0
  %v11346 = vand.u32 %v10878, 4294901760
  %v11347 = vsub.f32 %v10878, %v11346
  %v11348 = vand.u32 %v11347, 4294901760
  %11349 = vmatpush1.msra.mxu0 %v11348
  %11350 = vmatprep.subr.mxu0 0.0
  %v11351 = vand.u32 %v10877, 4294901760
  %v11352 = vsub.f32 %v10877, %v11351
  %v11353 = vand.u32 %v11352, 4294901760
  %11354 = vmatpush1.msra.mxu0 %v11353
  %11355 = vmatprep.subr.mxu0 0.0
  %v11356 = vand.u32 %v10876, 4294901760
  %v11357 = vsub.f32 %v10876, %v11356
  %v11358 = vand.u32 %v11357, 4294901760
  %11359 = vmatpush1.msra.mxu0 %v11358
  %11360 = vmatprep.subr.mxu0 0.0
  %v11361 = vand.u32 %v10875, 4294901760
  %v11362 = vsub.f32 %v10875, %v11361
  %v11363 = vand.u32 %v11362, 4294901760
  %11364 = vmatpush1.msra.mxu0 %v11363
  %11365 = vmatprep.subr.mxu0 0.0
  %v11366 = vand.u32 %v10874, 4294901760
  %v11367 = vsub.f32 %v10874, %v11366
  %v11368 = vand.u32 %v11367, 4294901760
  %11369 = vmatpush1.msra.mxu0 %v11368
  %11370 = vmatprep.subr.mxu0 0.0
  %v11371 = vand.u32 %v10873, 4294901760
  %v11372 = vsub.f32 %v10873, %v11371
  %v11373 = vand.u32 %v11372, 4294901760
  %11374 = vmatpush1.msra.mxu0 %v11373
  %11375 = vmatprep.subr.mxu0 0.0
  %v11376 = vand.u32 %v10872, 4294901760
  %v11377 = vsub.f32 %v10872, %v11376
  %v11378 = vand.u32 %v11377, 4294901760
  %11379 = vmatpush1.msra.mxu0 %v11378
  %11380 = vmatprep.subr.mxu0 0.0
  %v11381 = vand.u32 %v10871, 4294901760
  %v11382 = vsub.f32 %v10871, %v11381
  %v11383 = vand.u32 %v11382, 4294901760
  %11384 = vmatpush1.msra.mxu0 %v11383
  %11385 = vmatprep.subr.mxu0 0.0
  %v11386 = vand.u32 %v10870, 4294901760
  %v11387 = vsub.f32 %v10870, %v11386
  %v11388 = vand.u32 %v11387, 4294901760
  %11389 = vmatpush1.msra.mxu0 %v11388
  %11390 = vmatprep.subr.mxu0 0.0
  %v11391 = vand.u32 %v10869, 4294901760
  %v11392 = vsub.f32 %v10869, %v11391
  %v11393 = vand.u32 %v11392, 4294901760
  %11394 = vmatpush1.msra.mxu0 %v11393
  %11395 = vmatprep.subr.mxu0 0.0
  %v11396 = vand.u32 %v10868, 4294901760
  %v11397 = vsub.f32 %v10868, %v11396
  %v11398 = vand.u32 %v11397, 4294901760
  %11399 = vmatpush1.msra.mxu0 %v11398
  %11400 = vmatprep.subr.mxu0 0.0
  %v11401 = vand.u32 %v10867, 4294901760
  %v11402 = vsub.f32 %v10867, %v11401
  %v11403 = vand.u32 %v11402, 4294901760
  %11404 = vmatpush1.msra.mxu0 %v11403
  %11405 = vmatprep.subr.mxu0 0.0
  %v11406 = vand.u32 %v10866, 4294901760
  %v11407 = vsub.f32 %v10866, %v11406
  %v11408 = vand.u32 %v11407, 4294901760
  %11409 = vmatpush1.msra.mxu0 %v11408
  %11410 = vmatprep.subr.mxu0 0.0
  %v11411 = vand.u32 %v10865, 4294901760
  %v11412 = vsub.f32 %v10865, %v11411
  %v11413 = vand.u32 %v11412, 4294901760
  %11414 = vmatpush1.msra.mxu0 %v11413
  %11415 = vmatprep.subr.mxu0 0.0
  %v11416 = vand.u32 %v10864, 4294901760
  %v11417 = vsub.f32 %v10864, %v11416
  %v11418 = vand.u32 %v11417, 4294901760
  %11419 = vmatpush1.msra.mxu0 %v11418
  %11420 = vmatprep.subr.mxu0 0.0
  %v11421 = vand.u32 %v10863, 4294901760
  %v11422 = vsub.f32 %v10863, %v11421
  %v11423 = vand.u32 %v11422, 4294901760
  %11424 = vmatpush1.msra.mxu0 %v11423
  %11425 = vmatprep.subr.mxu0 0.0
  %11426 = vmatpush2.msra.mxu0 0.0
  %11427 = vmatprep.subr.mxu0 0.0
  %11428 = vmatpush2.msra.mxu0 0.0
  %11429 = vmatprep.subr.mxu0 0.0
  %11430 = vmatpush2.msra.mxu0 0.0
  %11431 = vmatprep.subr.mxu0 0.0
  %11432 = vmatpush2.msra.mxu0 0.0
  %11433 = vmatprep.subr.mxu0 0.0
  %11434 = vmatpush2.msra.mxu0 0.0
  %11435 = vmatprep.subr.mxu0 0.0
  %11436 = vmatpush2.msra.mxu0 0.0
  %11437 = vmatprep.subr.mxu0 0.0
  %11438 = vmatpush2.msra.mxu0 0.0
  %11439 = vmatprep.subr.mxu0 0.0
  %11440 = vmatpush2.msra.mxu0 0.0
  %11441 = vmatprep.subr.mxu0 0.0
  %11442 = vmatpush2.msra.mxu0 0.0
  %11443 = vmatprep.subr.mxu0 0.0
  %11444 = vmatpush2.msra.mxu0 0.0
  %11445 = vmatprep.subr.mxu0 0.0
  %11446 = vmatpush2.msra.mxu0 0.0
  %11447 = vmatprep.subr.mxu0 0.0
  %11448 = vmatpush2.msra.mxu0 0.0
  %11449 = vmatprep.subr.mxu0 0.0
  %11450 = vmatpush2.msra.mxu0 0.0
  %11451 = vmatprep.subr.mxu0 0.0
  %11452 = vmatpush2.msra.mxu0 0.0
  %11453 = vmatprep.subr.mxu0 0.0
  %11454 = vmatpush2.msra.mxu0 0.0
  %11455 = vmatprep.subr.mxu0 0.0
  %11456 = vmatpush2.msra.mxu0 0.0
  %11457 = vmatprep.mubr.f32.mxu0 0.0
  %v11458 = vand.u32 %v10856, 4294901760
  %11459 = vmatmul.mubr.f32.gmra.mxu0 %v11458
  %v11460 = vpop.f32.mrf.mxu0
  %v11461 = vadd.f32 %v11334, %v11460
  %v11462 = vpop.f32.mrf.mxu0
  %11463 = vmatprep.mubr.f32.mxu0 0.0
  %v11464 = vand.u32 %v10859, 4294901760
  %11465 = vmatmul.mubr.f32.gmra.mxu0 %v11464
  %v11466 = vpop.f32.mrf.mxu0
  %v11467 = vadd.f32 %v11342, %v11466
  %v11468 = vpop.f32.mrf.mxu0
  %11469 = vdwg.mxu0
  %11470 = vmatprep.subr.mxu0 0.0
  %v11471 = vand.u32 %v10878, 4294901760
  %11472 = vmatpush1.msra.mxu0 %v11471
  %11473 = vmatprep.subr.mxu0 0.0
  %v11474 = vand.u32 %v10877, 4294901760
  %11475 = vmatpush1.msra.mxu0 %v11474
  %11476 = vmatprep.subr.mxu0 0.0
  %v11477 = vand.u32 %v10876, 4294901760
  %11478 = vmatpush1.msra.mxu0 %v11477
  %11479 = vmatprep.subr.mxu0 0.0
  %v11480 = vand.u32 %v10875, 4294901760
  %11481 = vmatpush1.msra.mxu0 %v11480
  %11482 = vmatprep.subr.mxu0 0.0
  %v11483 = vand.u32 %v10874, 4294901760
  %11484 = vmatpush1.msra.mxu0 %v11483
  %11485 = vmatprep.subr.mxu0 0.0
  %v11486 = vand.u32 %v10873, 4294901760
  %11487 = vmatpush1.msra.mxu0 %v11486
  %11488 = vmatprep.subr.mxu0 0.0
  %v11489 = vand.u32 %v10872, 4294901760
  %11490 = vmatpush1.msra.mxu0 %v11489
  %11491 = vmatprep.subr.mxu0 0.0
  %v11492 = vand.u32 %v10871, 4294901760
  %11493 = vmatpush1.msra.mxu0 %v11492
  %11494 = vmatprep.subr.mxu0 0.0
  %v11495 = vand.u32 %v10870, 4294901760
  %11496 = vmatpush1.msra.mxu0 %v11495
  %11497 = vmatprep.subr.mxu0 0.0
  %v11498 = vand.u32 %v10869, 4294901760
  %11499 = vmatpush1.msra.mxu0 %v11498
  %11500 = vmatprep.subr.mxu0 0.0
  %v11501 = vand.u32 %v10868, 4294901760
  %11502 = vmatpush1.msra.mxu0 %v11501
  %11503 = vmatprep.subr.mxu0 0.0
  %v11504 = vand.u32 %v10867, 4294901760
  %11505 = vmatpush1.msra.mxu0 %v11504
  %11506 = vmatprep.subr.mxu0 0.0
  %v11507 = vand.u32 %v10866, 4294901760
  %11508 = vmatpush1.msra.mxu0 %v11507
  %11509 = vmatprep.subr.mxu0 0.0
  %v11510 = vand.u32 %v10865, 4294901760
  %11511 = vmatpush1.msra.mxu0 %v11510
  %11512 = vmatprep.subr.mxu0 0.0
  %v11513 = vand.u32 %v10864, 4294901760
  %11514 = vmatpush1.msra.mxu0 %v11513
  %11515 = vmatprep.subr.mxu0 0.0
  %v11516 = vand.u32 %v10863, 4294901760
  %11517 = vmatpush1.msra.mxu0 %v11516
  %11518 = vmatprep.subr.mxu0 0.0
  %11519 = vmatpush2.msra.mxu0 0.0
  %11520 = vmatprep.subr.mxu0 0.0
  %11521 = vmatpush2.msra.mxu0 0.0
  %11522 = vmatprep.subr.mxu0 0.0
  %11523 = vmatpush2.msra.mxu0 0.0
  %11524 = vmatprep.subr.mxu0 0.0
  %11525 = vmatpush2.msra.mxu0 0.0
  %11526 = vmatprep.subr.mxu0 0.0
  %11527 = vmatpush2.msra.mxu0 0.0
  %11528 = vmatprep.subr.mxu0 0.0
  %11529 = vmatpush2.msra.mxu0 0.0
  %11530 = vmatprep.subr.mxu0 0.0
  %11531 = vmatpush2.msra.mxu0 0.0
  %11532 = vmatprep.subr.mxu0 0.0
  %11533 = vmatpush2.msra.mxu0 0.0
  %11534 = vmatprep.subr.mxu0 0.0
  %11535 = vmatpush2.msra.mxu0 0.0
  %11536 = vmatprep.subr.mxu0 0.0
  %11537 = vmatpush2.msra.mxu0 0.0
  %11538 = vmatprep.subr.mxu0 0.0
  %11539 = vmatpush2.msra.mxu0 0.0
  %11540 = vmatprep.subr.mxu0 0.0
  %11541 = vmatpush2.msra.mxu0 0.0
  %11542 = vmatprep.subr.mxu0 0.0
  %11543 = vmatpush2.msra.mxu0 0.0
  %11544 = vmatprep.subr.mxu0 0.0
  %11545 = vmatpush2.msra.mxu0 0.0
  %11546 = vmatprep.subr.mxu0 0.0
  %11547 = vmatpush2.msra.mxu0 0.0
  %11548 = vmatprep.subr.mxu0 0.0
  %11549 = vmatpush2.msra.mxu0 0.0
  %11550 = vmatprep.mubr.f32.mxu0 0.0
  %v11551 = vand.u32 %v10856, 4294901760
  %11552 = vmatmul.mubr.f32.gmra.mxu0 %v11551
  %v11553 = vpop.f32.mrf.mxu0
  %v11554 = vadd.f32 %v11461, %v11553
  %v11555 = vpop.f32.mrf.mxu0
  %11556 = vmatprep.mubr.f32.mxu0 0.0
  %v11557 = vand.u32 %v10859, 4294901760
  %11558 = vmatmul.mubr.f32.gmra.mxu0 %v11557
  %v11559 = vpop.f32.mrf.mxu0
  %v11560 = vadd.f32 %v11467, %v11559
  %v11561 = vpop.f32.mrf.mxu0
  %11562 = vdwg.mxu0
  %v11563 = vadd.f32 %v10845, %v11554
  %v11564 = vadd.f32 %v10851, %v11560
  %v11566 = vlaneseq
  %v11567 = vshrl.u32 %v11566, 7
  %v11568 = vsub.s32 0, %v11567
  %v11569 = vrot.slane %v9439, %v11568
  %v11571 = vadd.f32 %v11563, %v11569
  %v11572 = vadd.f32 %v11564, %v11569
  %v11573 = vadd.f32 %v11571, %v7277
  %v11574 = vadd.f32 %v11572, %v7278
  %11575 = vst [vmem:[%s5] sm:$0xff] %v11573
  %11576 = vst [vmem:[%s5 + $0x8] sm:$0xff] %v11574
  // Predicated region
  $region22: #{conv_sequence_forward.1} parent=0 // pred_check
    _
  $region23: #{conv_sequence_forward.1} parent=0 // pred_check_branch
    %11578 = sbr.rel (0) target = $region25
  $region24: #{conv_sequence_forward.1} parent=0 // pred_region
    _
  $region25: #{conv_sequence_forward.1} parent=0 // pred_fallthru
    _
  // Predicated region
  $region26: #{conv_sequence_forward.1} parent=0 // pred_check
    _
  $region27: #{conv_sequence_forward.1} parent=0 // pred_check_branch
    %11580 = sbr.rel (0) target = $region29
  $region28: #{conv_sequence_forward.1} parent=0 // pred_region
    _
  $region29: #{conv_sequence_forward.1} parent=0 // pred_fallthru
    _

</llo_original>
